<compile_context>
chip_gen: v6e
topology: v6e:2x2x1
jax: 0.10.0
libtpu: 0.0.40
codegen_flags: <defaults>
</compile_context>

<pallas_src>
import jax
import jax.numpy as jnp
from jax import lax
from jax.experimental import pallas as pl
from jax.experimental.pallas import tpu as pltpu

_EPS = 1e-5
_VMEM_LIMIT = 32 * 1024 * 1024


def _largest_tile(total, cap):
    cap = max(1, min(total, cap))
    for t in range(cap, 0, -1):
        if total % t == 0:
            return t
    return 1


# ----------------------------------------------------------------------------
# Kernel 1: separable bilinear resize, tiled over the N*C dim.
# ----------------------------------------------------------------------------
def _bilinear_resize_kernel(x_ref, axt_ref, ayt_ref, o_ref):
    # x_ref: (TB, H_in, W_in); axt_ref: (W_in, W_out); ayt_ref: (H_in, H_out)
    # o_ref: (TB, H_out, W_out)
    tb, h_in, w_in = x_ref.shape
    w_out = axt_ref.shape[1]
    h_out = ayt_ref.shape[1]

    x = x_ref[...]
    # W-axis interpolation: batch folded into the matmul M dim (no broadcasts,
    # no per-batch tiny matmuls).
    t = jnp.dot(x.reshape(tb * h_in, w_in), axt_ref[...],
                preferred_element_type=jnp.float32)
    t = t.reshape(tb, h_in, w_out)
    t = jnp.transpose(t, (0, 2, 1))                      # (TB, W_out, H_in)
    # H-axis interpolation.
    u = jnp.dot(t.reshape(tb * w_out, h_in), ayt_ref[...],
                preferred_element_type=jnp.float32)
    u = u.reshape(tb, w_out, h_out)
    o_ref[...] = jnp.transpose(u, (0, 2, 1))             # (TB, H_out, W_out)


def _interp_matrix(in_size, out_size):
    """Dense 1-D interpolation matrix matching F.interpolate(mode='bilinear',
    align_corners=False)."""
    scale = in_size / out_size
    dst = jnp.arange(out_size, dtype=jnp.float32)
    src = jnp.maximum((dst + 0.5) * scale - 0.5, 0.0)
    i0 = jnp.minimum(jnp.floor(src).astype(jnp.int32), in_size - 1)
    i1 = jnp.minimum(i0 + 1, in_size - 1)
    w1 = src - i0.astype(jnp.float32)
    w0 = 1.0 - w1
    return (w0[:, None] * jax.nn.one_hot(i0, in_size, dtype=jnp.float32)
            + w1[:, None] * jax.nn.one_hot(i1, in_size, dtype=jnp.float32))


def _bilinear_resize(x, out_hw):
    """NCHW input -> (N, C, H_out*W_out) f32 output (flattened spatial)."""
    n, c, h_in, w_in = x.shape
    h_out, w_out = out_hw
    ax_t = jnp.transpose(_interp_matrix(w_in, w_out))    # (W_in, W_out)
    ay_t = jnp.transpose(_interp_matrix(h_in, h_out))    # (H_in, H_out)

    b = n * c
    # ~4 MiB output block per grid step (double-buffered by the pipeline).
    cap = max(1, (4 * 1024 * 1024) // (h_out * w_out * 4))
    tb = _largest_tile(b, cap)
    xb = x.reshape(b, h_in, w_in)                        # free reshape

    out = pl.pallas_call(
        _bilinear_resize_kernel,
        out_shape=jax.ShapeDtypeStruct((b, h_out, w_out), jnp.float32),
        grid=(b // tb,),
        in_specs=[
            pl.BlockSpec((tb, h_in, w_in), lambda i: (i, 0, 0)),
            pl.BlockSpec((w_in, w_out), lambda i: (0, 0)),
            pl.BlockSpec((h_in, h_out), lambda i: (0, 0)),
        ],
        out_specs=pl.BlockSpec((tb, h_out, w_out), lambda i: (i, 0, 0)),
        compiler_params=pltpu.CompilerParams(
            dimension_semantics=("parallel",),
            vmem_limit_bytes=_VMEM_LIMIT),
    )(xb, ax_t, ay_t)
    return out.reshape(n, c, h_out * w_out)


# ----------------------------------------------------------------------------
# Kernel 2: fused [concat -> conv3x3+BN+ReLU -> conv3x3+BN+ReLU], one image
#           per grid step; intermediate activation stays in VMEM scratch.
# ----------------------------------------------------------------------------
def _double_conv_kernel(x1_ref, x2_ref, w1a_ref, w1b_ref, w2_ref,
                        s1_ref, t1_ref, s2_ref, t2_ref,
                        o_ref, p1a, p1b, p2):
    # x1_ref: (1, C1, H*W) upsampled branch   (NCHW-flat)
    # x2_ref: (1, C2, H*W) skip connection    (NCHW-flat)
    # w1a/w1b: (9*C1, Cmid)/(9*C2, Cmid)  conv1 weights split along the concat
    # w2: (9*Cmid, Cout); s*/t*: (1, C) folded conv-bias + eval-BN affine
    # o_ref: (1, Cout, H*W)  (NCHW-flat, lane-dense: last dim = H*W)
    # p1a/p1b/p2: zero-padded HWC scratch buffers (H+2, W+2, C)
    hp, wp, c1 = p1a.shape
    h, w = hp - 2, wp - 2
    c2 = p1b.shape[-1]
    cmid = p2.shape[-1]

    def load_pad(src_ref, dst_ref, c):
        # NC(HW) block -> (HW, C) via a 2-D transpose -> padded (H+2, W+2, C).
        hwc = jnp.transpose(src_ref[0]).reshape(h, w, c)
        dst_ref[...] = jnp.zeros_like(dst_ref)
        dst_ref[1:h + 1, 1:w + 1, :] = hwc

    load_pad(x1_ref, p1a, c1)
    load_pad(x2_ref, p1b, c2)

    def im2col(pref, c):
        cols = []
        for t in range(9):                               # static unroll
            dy, dx = divmod(t, 3)
            cols.append(pref[dy:dy + h, dx:dx + w, :].reshape(h * w, c))
        return jnp.concatenate(cols, axis=-1)            # (H*W, 9*C)

    # Conv1: concat fused as two matmuls into one accumulator (K = 9*C each).
    acc = jnp.dot(im2col(p1a, c1), w1a_ref[...],
                  preferred_element_type=jnp.float32)
    acc = acc + jnp.dot(im2col(p1b, c2), w1b_ref[...],
                        preferred_element_type=jnp.float32)
    y1 = jnp.maximum(acc * s1_ref[...] + t1_ref[...], 0.0)   # BN(eval)+ReLU

    # Conv2: intermediate never leaves VMEM.
    p2[...] = jnp.zeros_like(p2)
    p2[1:h + 1, 1:w + 1, :] = y1.reshape(h, w, cmid)
    acc2 = jnp.dot(im2col(p2, cmid), w2_ref[...],
                   preferred_element_type=jnp.float32)
    y2 = jnp.maximum(acc2 * s2_ref[...] + t2_ref[...], 0.0)  # (H*W, Cout)

    # Store NCHW-flat directly (lane-dense: last dim = H*W).
    o_ref[0] = jnp.transpose(y2)                             # (Cout, H*W)


def _double_conv(x1f, x2f, params, h, w):
    n, c1, hw = x1f.shape
    c2 = x2f.shape[1]
    cmid = params['w1a'].shape[-1]
    cout = params['w2'].shape[-1]

    return pl.pallas_call(
        _double_conv_kernel,
        out_shape=jax.ShapeDtypeStruct((n, cout, hw), jnp.float32),
        grid=(n,),
        in_specs=[
            pl.BlockSpec((1, c1, hw), lambda i: (i, 0, 0)),
            pl.BlockSpec((1, c2, hw), lambda i: (i, 0, 0)),
            pl.BlockSpec((9 * c1, cmid), lambda i: (0, 0)),
            pl.BlockSpec((9 * c2, cmid), lambda i: (0, 0)),
            pl.BlockSpec((9 * cmid, cout), lambda i: (0, 0)),
            pl.BlockSpec((1, cmid), lambda i: (0, 0)),
            pl.BlockSpec((1, cmid), lambda i: (0, 0)),
            pl.BlockSpec((1, cout), lambda i: (0, 0)),
            pl.BlockSpec((1, cout), lambda i: (0, 0)),
        ],
        out_specs=pl.BlockSpec((1, cout, hw), lambda i: (i, 0, 0)),
        scratch_shapes=[
            pltpu.VMEM((h + 2, w + 2, c1), jnp.float32),
            pltpu.VMEM((h + 2, w + 2, c2), jnp.float32),
            pltpu.VMEM((h + 2, w + 2, cmid), jnp.float32),
        ],
        compiler_params=pltpu.CompilerParams(
            dimension_semantics=("parallel",),
            vmem_limit_bytes=_VMEM_LIMIT),
    )(x1f, x2f, params['w1a'], params['w1b'], params['w2'],
      params['s1'], params['t1'], params['s2'], params['t2'])


# ----------------------------------------------------------------------------
# Module forward (NCHW in, NCHW out — only free reshapes at the boundary)
# ----------------------------------------------------------------------------
def up_forward(x1, x2, params):
    n, c1, h1, w1 = x1.shape
    _, c2, h2, w2 = x2.shape
    x1_up = _bilinear_resize(x1, (h2, w2))               # (N, C1, H2*W2)
    x2f = x2.reshape(n, c2, h2 * w2)                     # free reshape
    cout = params['w2'].shape[-1]
    y = _double_conv(x1_up, x2f, params, h2, w2)         # (N, Cout, H2*W2)
    return y.reshape(n, cout, h2, w2)                    # free reshape


# ----------------------------------------------------------------------------
# Deterministic parameter init (PyTorch shapes: Conv2d OIHW, BN per-channel)
# ----------------------------------------------------------------------------
def init_params(key, c1, c2, out_channels):
    ks = jax.random.split(key, 12)
    cin = c1 + c2

    def conv_bn(keys, cin_, cout_):
        k0, k1, k2, k3, k4, k5 = keys
        wt = 0.1 * jax.random.normal(k0, (cout_, cin_, 3, 3), jnp.float32)
        b = 0.1 * jax.random.normal(k1, (cout_,), jnp.float32)
        g = 1.0 + 0.1 * jax.random.normal(k2, (cout_,), jnp.float32)
        beta = 0.1 * jax.random.normal(k3, (cout_,), jnp.float32)
        m = 0.1 * jax.random.normal(k4, (cout_,), jnp.float32)
        v = 1.0 + 0.1 * jnp.abs(jax.random.normal(k5, (cout_,), jnp.float32))
        scale = g / jnp.sqrt(v + _EPS)
        shift = beta + scale * (b - m)
        raw = dict(w=wt, b=b, g=g, beta=beta, m=m, v=v)
        return wt, scale, shift, raw

    w1, scale1, shift1, raw1 = conv_bn(ks[0:6], cin, out_channels)
    w2, scale2, shift2, raw2 = conv_bn(ks[6:12], out_channels, out_channels)

    def im2col_w(wt):
        # (O, I, 3, 3) -> (9*I, O), row index = (dy*3 + dx)*I + i
        o, i = wt.shape[0], wt.shape[1]
        return jnp.transpose(wt, (2, 3, 1, 0)).reshape(9 * i, o)

    params = dict(
        w1a=im2col_w(w1[:, :c1]),        # x1_up half of the concat
        w1b=im2col_w(w1[:, c1:]),        # x2 half of the concat
        w2=im2col_w(w2),
        s1=scale1.reshape(1, -1), t1=shift1.reshape(1, -1),
        s2=scale2.reshape(1, -1), t2=shift2.reshape(1, -1),
    )
    return params, (raw1, raw2)


# ----------------------------------------------------------------------------
# Pure-JAX reference (same math, XLA ops) for sanity checking
# ----------------------------------------------------------------------------
def reference_forward(x1, x2, raw):
    raw1, raw2 = raw
    _, _, h1, w1 = x1.shape
    _, _, h2, w2 = x2.shape
    ay = _interp_matrix(h1, h2)
    ax = _interp_matrix(w1, w2)
    x1_up = jnp.einsum('ih,nchw->nciw', ay, x1)
    x1_up = jnp.einsum('jw,nciw->ncij', ax, x1_up)
    x = jnp.concatenate([x1_up, x2], axis=1)             # torch.cat([x1, x2])

    def block(x, p):
        y = lax.conv_general_dilated(x, p['w'], window_strides=(1, 1),
                                     padding=((1, 1), (1, 1)),
                                     dimension_numbers=('NCHW', 'OIHW', 'NCHW'))
        y = y + p['b'][None, :, None, None]
        y = (p['g'][None, :, None, None]
             * (y - p['m'][None, :, None, None])
             / jnp.sqrt(p['v'] + _EPS)[None, :, None, None]
             + p['beta'][None, :, None, None])
        return jnp.maximum(y, 0.0)

    return block(block(x, raw1), raw2)


if __name__ == "__main__":
    key = jax.random.PRNGKey(0)
    k1, k2, kp = jax.random.split(key, 3)

    # x1: low-res feature map; x2: skip connection. Up(in_channels=8, out=4).
    N, C1, C2 = 2, 4, 4
    H1 = W1 = 8
    H2 = W2 = 16
    out_channels = 4

    x1 = jax.random.normal(k1, (N, C1, H1, W1), jnp.float32)
    x2 = jax.random.normal(k2, (N, C2, H2, W2), jnp.float32)
    params, raw = init_params(kp, C1, C2, out_channels)

    out = jax.jit(up_forward)(x1, x2, params)
    out = jax.block_until_ready(out)

    assert out.shape == (N, out_channels, H2, W2), out.shape
    ref = reference_forward(x1, x2, raw)
    max_err = float(jnp.max(jnp.abs(out - ref)))
    assert jnp.allclose(out, ref, atol=1e-2, rtol=1e-2), max_err

    print("KERNEL_OK")
</pallas_src>

<mosaic_0001>
module attributes {stable_mosaic.version = 11 : i64} {
  func.func @_bilinear_resize_kernel(%arg0: i32, %arg1: memref<8x8x8xf32, #tpu.memory_space<vmem>>, %arg2: memref<8x16xf32, #tpu.memory_space<vmem>>, %arg3: memref<8x16xf32, #tpu.memory_space<vmem>>, %arg4: memref<8x16x16xf32, #tpu.memory_space<vmem>>) attributes {dimension_semantics = [#tpu.dimension_semantics<parallel>], iteration_bounds = array<i64: 1>, scalar_prefetch = 0 : i64, scratch_operands = 0 : i64, tpu.core_type = #tpu.core_type<tc>, window_params = [{transform_indices = @transform_0, window_bounds = array<i64: 8, 8, 8>}, {pipeline_mode = #tpu.pipeline_mode<synchronous>, transform_indices = @transform_1, window_bounds = array<i64: 8, 16>}, {pipeline_mode = #tpu.pipeline_mode<synchronous>, transform_indices = @transform_2, window_bounds = array<i64: 8, 16>}, {transform_indices = @transform_3, window_bounds = array<i64: 8, 16, 16>}]} {
    %c0 = arith.constant 0 : index
    %c0_0 = arith.constant 0 : index
    %c0_1 = arith.constant 0 : index
    %0 = vector.load %arg1[%c0, %c0_0, %c0_1] : memref<8x8x8xf32, #tpu.memory_space<vmem>>, vector<8x8x8xf32>
    %1 = vector.shape_cast %0 : vector<8x8x8xf32> to vector<64x8xf32>
    %c0_2 = arith.constant 0 : index
    %c0_3 = arith.constant 0 : index
    %2 = vector.load %arg2[%c0_2, %c0_3] : memref<8x16xf32, #tpu.memory_space<vmem>>, vector<8x16xf32>
    %cst = arith.constant dense<0.000000e+00> : vector<64x16xf32>
    %3 = tpu.matmul %1, %2, %cst {dimension_numbers = #tpu.dot_dimension_numbers<[1], [0], [0], [1], [0, 0, 1, 1], [], []>} : vector<64x8xf32>, vector<8x16xf32>, vector<64x16xf32> -> vector<64x16xf32>
    %4 = vector.shape_cast %3 : vector<64x16xf32> to vector<8x8x16xf32>
    %5 = tpu.transpose %4, [0, 2, 1] : vector<8x8x16xf32> -> vector<8x16x8xf32>
    %6 = vector.shape_cast %5 : vector<8x16x8xf32> to vector<128x8xf32>
    %c0_4 = arith.constant 0 : index
    %c0_5 = arith.constant 0 : index
    %7 = vector.load %arg3[%c0_4, %c0_5] : memref<8x16xf32, #tpu.memory_space<vmem>>, vector<8x16xf32>
    %cst_6 = arith.constant dense<0.000000e+00> : vector<128x16xf32>
    %8 = tpu.matmul %6, %7, %cst_6 {dimension_numbers = #tpu.dot_dimension_numbers<[1], [0], [0], [1], [0, 0, 1, 1], [], []>} : vector<128x8xf32>, vector<8x16xf32>, vector<128x16xf32> -> vector<128x16xf32>
    %9 = vector.shape_cast %8 : vector<128x16xf32> to vector<8x16x16xf32>
    %10 = tpu.transpose %9, [0, 2, 1] : vector<8x16x16xf32> -> vector<8x16x16xf32>
    %c0_7 = arith.constant 0 : index
    %c0_8 = arith.constant 0 : index
    %c0_9 = arith.constant 0 : index
    %11 = vector.load %arg4[%c0_7, %c0_8, %c0_9] : memref<8x16x16xf32, #tpu.memory_space<vmem>>, vector<8x16x16xf32>
    tpu.vector_store %arg4[%c0_7, %c0_8, %c0_9], %10 {strides = array<i32>} : memref<8x16x16xf32, #tpu.memory_space<vmem>>, vector<8x16x16xf32>,
    return
  }
  func.func @transform_0(%arg0: i32) -> (i32, i32, i32) {
    %c0_i32 = arith.constant 0 : i32
    %c0_i32_0 = arith.constant 0 : i32
    %c0_i32_1 = arith.constant 0 : i32
    return %arg0, %c0_i32, %c0_i32_0 : i32, i32, i32
  }
  func.func @transform_1(%arg0: i32) -> (i32, i32) {
    %c0_i32 = arith.constant 0 : i32
    %c0_i32_0 = arith.constant 0 : i32
    %c0_i32_1 = arith.constant 0 : i32
    return %c0_i32, %c0_i32_0 : i32, i32
  }
  func.func @transform_2(%arg0: i32) -> (i32, i32) {
    %c0_i32 = arith.constant 0 : i32
    %c0_i32_0 = arith.constant 0 : i32
    %c0_i32_1 = arith.constant 0 : i32
    return %c0_i32, %c0_i32_0 : i32, i32
  }
  func.func @transform_3(%arg0: i32) -> (i32, i32, i32) {
    %c0_i32 = arith.constant 0 : i32
    %c0_i32_0 = arith.constant 0 : i32
    %c0_i32_1 = arith.constant 0 : i32
    return %arg0, %c0_i32, %c0_i32_0 : i32, i32, i32
  }
}

module attributes {stable_mosaic.version = 11 : i64} {
  func.func @_double_conv_kernel(%arg0: i32, %arg1: memref<1x4x256xf32, #tpu.memory_space<vmem>>, %arg2: memref<1x4x256xf32, #tpu.memory_space<vmem>>, %arg3: memref<36x4xf32, #tpu.memory_space<vmem>>, %arg4: memref<36x4xf32, #tpu.memory_space<vmem>>, %arg5: memref<36x4xf32, #tpu.memory_space<vmem>>, %arg6: memref<1x4xf32, #tpu.memory_space<vmem>>, %arg7: memref<1x4xf32, #tpu.memory_space<vmem>>, %arg8: memref<1x4xf32, #tpu.memory_space<vmem>>, %arg9: memref<1x4xf32, #tpu.memory_space<vmem>>, %arg10: memref<1x4x256xf32, #tpu.memory_space<vmem>>, %arg11: memref<18x18x4xf32, #tpu.memory_space<vmem>>, %arg12: memref<18x18x4xf32, #tpu.memory_space<vmem>>, %arg13: memref<18x18x4xf32, #tpu.memory_space<vmem>>) attributes {dimension_semantics = [#tpu.dimension_semantics<parallel>], iteration_bounds = array<i64: 2>, scalar_prefetch = 0 : i64, scratch_operands = 3 : i64, tpu.core_type = #tpu.core_type<tc>, window_params = [{transform_indices = @transform_0, window_bounds = array<i64: 1, 4, 256>}, {transform_indices = @transform_1, window_bounds = array<i64: 1, 4, 256>}, {pipeline_mode = #tpu.pipeline_mode<synchronous>, transform_indices = @transform_2, window_bounds = array<i64: 36, 4>}, {pipeline_mode = #tpu.pipeline_mode<synchronous>, transform_indices = @transform_3, window_bounds = array<i64: 36, 4>}, {pipeline_mode = #tpu.pipeline_mode<synchronous>, transform_indices = @transform_4, window_bounds = array<i64: 36, 4>}, {pipeline_mode = #tpu.pipeline_mode<synchronous>, transform_indices = @transform_5, window_bounds = array<i64: 1, 4>}, {pipeline_mode = #tpu.pipeline_mode<synchronous>, transform_indices = @transform_6, window_bounds = array<i64: 1, 4>}, {pipeline_mode = #tpu.pipeline_mode<synchronous>, transform_indices = @transform_7, window_bounds = array<i64: 1, 4>}, {pipeline_mode = #tpu.pipeline_mode<synchronous>, transform_indices = @transform_8, window_bounds = array<i64: 1, 4>}, {transform_indices = @transform_9, window_bounds = array<i64: 1, 4, 256>}]} {
    %c0 = arith.constant 0 : index
    %c0_0 = arith.constant 0 : index
    %c0_1 = arith.constant 0 : index
    %0 = vector.load %arg1[%c0, %c0_0, %c0_1] : memref<1x4x256xf32, #tpu.memory_space<vmem>>, vector<1x4x256xf32>
    %1 = vector.shape_cast %0 : vector<1x4x256xf32> to vector<4x256xf32>
    %2 = tpu.transpose %1, [1, 0] : vector<4x256xf32> -> vector<256x4xf32>
    %3 = vector.shape_cast %2 : vector<256x4xf32> to vector<16x16x4xf32>
    %cst = arith.constant 0.000000e+00 : f32
    %4 = vector.broadcast %cst : f32 to vector<18x18x4xf32>
    %c0_2 = arith.constant 0 : index
    %c0_3 = arith.constant 0 : index
    %c0_4 = arith.constant 0 : index
    %5 = vector.load %arg11[%c0_2, %c0_3, %c0_4] : memref<18x18x4xf32, #tpu.memory_space<vmem>>, vector<18x18x4xf32>
    tpu.vector_store %arg11[%c0_2, %c0_3, %c0_4], %4 {strides = array<i32>} : memref<18x18x4xf32, #tpu.memory_space<vmem>>, vector<18x18x4xf32>,
    %c1 = arith.constant 1 : index
    %c1_5 = arith.constant 1 : index
    %c0_6 = arith.constant 0 : index
    %6 = vector.load %arg11[%c1, %c1_5, %c0_6] : memref<18x18x4xf32, #tpu.memory_space<vmem>>, vector<16x16x4xf32>
    tpu.vector_store %arg11[%c1, %c1_5, %c0_6], %3 {strides = array<i32>} : memref<18x18x4xf32, #tpu.memory_space<vmem>>, vector<16x16x4xf32>,
    %c0_7 = arith.constant 0 : index
    %c0_8 = arith.constant 0 : index
    %c0_9 = arith.constant 0 : index
    %7 = vector.load %arg2[%c0_7, %c0_8, %c0_9] : memref<1x4x256xf32, #tpu.memory_space<vmem>>, vector<1x4x256xf32>
    %8 = vector.shape_cast %7 : vector<1x4x256xf32> to vector<4x256xf32>
    %9 = tpu.transpose %8, [1, 0] : vector<4x256xf32> -> vector<256x4xf32>
    %10 = vector.shape_cast %9 : vector<256x4xf32> to vector<16x16x4xf32>
    %cst_10 = arith.constant 0.000000e+00 : f32
    %11 = vector.broadcast %cst_10 : f32 to vector<18x18x4xf32>
    %c0_11 = arith.constant 0 : index
    %c0_12 = arith.constant 0 : index
    %c0_13 = arith.constant 0 : index
    %12 = vector.load %arg12[%c0_11, %c0_12, %c0_13] : memref<18x18x4xf32, #tpu.memory_space<vmem>>, vector<18x18x4xf32>
    tpu.vector_store %arg12[%c0_11, %c0_12, %c0_13], %11 {strides = array<i32>} : memref<18x18x4xf32, #tpu.memory_space<vmem>>, vector<18x18x4xf32>,
    %c1_14 = arith.constant 1 : index
    %c1_15 = arith.constant 1 : index
    %c0_16 = arith.constant 0 : index
    %13 = vector.load %arg12[%c1_14, %c1_15, %c0_16] : memref<18x18x4xf32, #tpu.memory_space<vmem>>, vector<16x16x4xf32>
    tpu.vector_store %arg12[%c1_14, %c1_15, %c0_16], %10 {strides = array<i32>} : memref<18x18x4xf32, #tpu.memory_space<vmem>>, vector<16x16x4xf32>,
    %c0_17 = arith.constant 0 : index
    %c0_18 = arith.constant 0 : index
    %c0_19 = arith.constant 0 : index
    %14 = vector.load %arg11[%c0_17, %c0_18, %c0_19] : memref<18x18x4xf32, #tpu.memory_space<vmem>>, vector<16x16x4xf32>
    %15 = vector.shape_cast %14 : vector<16x16x4xf32> to vector<256x4xf32>
    %c0_20 = arith.constant 0 : index
    %c1_21 = arith.constant 1 : index
    %c0_22 = arith.constant 0 : index
    %16 = vector.load %arg11[%c0_20, %c1_21, %c0_22] : memref<18x18x4xf32, #tpu.memory_space<vmem>>, vector<16x16x4xf32>
    %17 = vector.shape_cast %16 : vector<16x16x4xf32> to vector<256x4xf32>
    %c0_23 = arith.constant 0 : index
    %c2 = arith.constant 2 : index
    %c0_24 = arith.constant 0 : index
    %18 = vector.load %arg11[%c0_23, %c2, %c0_24] : memref<18x18x4xf32, #tpu.memory_space<vmem>>, vector<16x16x4xf32>
    %19 = vector.shape_cast %18 : vector<16x16x4xf32> to vector<256x4xf32>
    %c1_25 = arith.constant 1 : index
    %c0_26 = arith.constant 0 : index
    %c0_27 = arith.constant 0 : index
    %20 = vector.load %arg11[%c1_25, %c0_26, %c0_27] : memref<18x18x4xf32, #tpu.memory_space<vmem>>, vector<16x16x4xf32>
    %21 = vector.shape_cast %20 : vector<16x16x4xf32> to vector<256x4xf32>
    %c1_28 = arith.constant 1 : index
    %c1_29 = arith.constant 1 : index
    %c0_30 = arith.constant 0 : index
    %22 = vector.load %arg11[%c1_28, %c1_29, %c0_30] : memref<18x18x4xf32, #tpu.memory_space<vmem>>, vector<16x16x4xf32>
    %23 = vector.shape_cast %22 : vector<16x16x4xf32> to vector<256x4xf32>
    %c1_31 = arith.constant 1 : index
    %c2_32 = arith.constant 2 : index
    %c0_33 = arith.constant 0 : index
    %24 = vector.load %arg11[%c1_31, %c2_32, %c0_33] : memref<18x18x4xf32, #tpu.memory_space<vmem>>, vector<16x16x4xf32>
    %25 = vector.shape_cast %24 : vector<16x16x4xf32> to vector<256x4xf32>
    %c2_34 = arith.constant 2 : index
    %c0_35 = arith.constant 0 : index
    %c0_36 = arith.constant 0 : index
    %26 = vector.load %arg11[%c2_34, %c0_35, %c0_36] : memref<18x18x4xf32, #tpu.memory_space<vmem>>, vector<16x16x4xf32>
    %27 = vector.shape_cast %26 : vector<16x16x4xf32> to vector<256x4xf32>
    %c2_37 = arith.constant 2 : index
    %c1_38 = arith.constant 1 : index
    %c0_39 = arith.constant 0 : index
    %28 = vector.load %arg11[%c2_37, %c1_38, %c0_39] : memref<18x18x4xf32, #tpu.memory_space<vmem>>, vector<16x16x4xf32>
    %29 = vector.shape_cast %28 : vector<16x16x4xf32> to vector<256x4xf32>
    %c2_40 = arith.constant 2 : index
    %c2_41 = arith.constant 2 : index
    %c0_42 = arith.constant 0 : index
    %30 = vector.load %arg11[%c2_40, %c2_41, %c0_42] : memref<18x18x4xf32, #tpu.memory_space<vmem>>, vector<16x16x4xf32>
    %31 = vector.shape_cast %30 : vector<16x16x4xf32> to vector<256x4xf32>
    %32 = tpu.concatenate %15, %17, %19, %21, %23, %25, %27, %29, %31 in 1 : vector<256x4xf32>, vector<256x4xf32>, vector<256x4xf32>, vector<256x4xf32>, vector<256x4xf32>, vector<256x4xf32>, vector<256x4xf32>, vector<256x4xf32>, vector<256x4xf32> -> vector<256x36xf32>
    %c0_43 = arith.constant 0 : index
    %c0_44 = arith.constant 0 : index
    %33 = vector.load %arg3[%c0_43, %c0_44] : memref<36x4xf32, #tpu.memory_space<vmem>>, vector<36x4xf32>
    %cst_45 = arith.constant dense<0.000000e+00> : vector<256x4xf32>
    %34 = tpu.matmul %32, %33, %cst_45 {dimension_numbers = #tpu.dot_dimension_numbers<[1], [0], [0], [1], [0, 0, 1, 1], [], []>} : vector<256x36xf32>, vector<36x4xf32>, vector<256x4xf32> -> vector<256x4xf32>
    %c0_46 = arith.constant 0 : index
    %c0_47 = arith.constant 0 : index
    %c0_48 = arith.constant 0 : index
    %35 = vector.load %arg12[%c0_46, %c0_47, %c0_48] : memref<18x18x4xf32, #tpu.memory_space<vmem>>, vector<16x16x4xf32>
    %36 = vector.shape_cast %35 : vector<16x16x4xf32> to vector<256x4xf32>
    %c0_49 = arith.constant 0 : index
    %c1_50 = arith.constant 1 : index
    %c0_51 = arith.constant 0 : index
    %37 = vector.load %arg12[%c0_49, %c1_50, %c0_51] : memref<18x18x4xf32, #tpu.memory_space<vmem>>, vector<16x16x4xf32>
    %38 = vector.shape_cast %37 : vector<16x16x4xf32> to vector<256x4xf32>
    %c0_52 = arith.constant 0 : index
    %c2_53 = arith.constant 2 : index
    %c0_54 = arith.constant 0 : index
    %39 = vector.load %arg12[%c0_52, %c2_53, %c0_54] : memref<18x18x4xf32, #tpu.memory_space<vmem>>, vector<16x16x4xf32>
    %40 = vector.shape_cast %39 : vector<16x16x4xf32> to vector<256x4xf32>
    %c1_55 = arith.constant 1 : index
    %c0_56 = arith.constant 0 : index
    %c0_57 = arith.constant 0 : index
    %41 = vector.load %arg12[%c1_55, %c0_56, %c0_57] : memref<18x18x4xf32, #tpu.memory_space<vmem>>, vector<16x16x4xf32>
    %42 = vector.shape_cast %41 : vector<16x16x4xf32> to vector<256x4xf32>
    %c1_58 = arith.constant 1 : index
    %c1_59 = arith.constant 1 : index
    %c0_60 = arith.constant 0 : index
    %43 = vector.load %arg12[%c1_58, %c1_59, %c0_60] : memref<18x18x4xf32, #tpu.memory_space<vmem>>, vector<16x16x4xf32>
    %44 = vector.shape_cast %43 : vector<16x16x4xf32> to vector<256x4xf32>
    %c1_61 = arith.constant 1 : index
    %c2_62 = arith.constant 2 : index
    %c0_63 = arith.constant 0 : index
    %45 = vector.load %arg12[%c1_61, %c2_62, %c0_63] : memref<18x18x4xf32, #tpu.memory_space<vmem>>, vector<16x16x4xf32>
    %46 = vector.shape_cast %45 : vector<16x16x4xf32> to vector<256x4xf32>
    %c2_64 = arith.constant 2 : index
    %c0_65 = arith.constant 0 : index
    %c0_66 = arith.constant 0 : index
    %47 = vector.load %arg12[%c2_64, %c0_65, %c0_66] : memref<18x18x4xf32, #tpu.memory_space<vmem>>, vector<16x16x4xf32>
    %48 = vector.shape_cast %47 : vector<16x16x4xf32> to vector<256x4xf32>
    %c2_67 = arith.constant 2 : index
    %c1_68 = arith.constant 1 : index
    %c0_69 = arith.constant 0 : index
    %49 = vector.load %arg12[%c2_67, %c1_68, %c0_69] : memref<18x18x4xf32, #tpu.memory_space<vmem>>, vector<16x16x4xf32>
    %50 = vector.shape_cast %49 : vector<16x16x4xf32> to vector<256x4xf32>
    %c2_70 = arith.constant 2 : index
    %c2_71 = arith.constant 2 : index
    %c0_72 = arith.constant 0 : index
    %51 = vector.load %arg12[%c2_70, %c2_71, %c0_72] : memref<18x18x4xf32, #tpu.memory_space<vmem>>, vector<16x16x4xf32>
    %52 = vector.shape_cast %51 : vector<16x16x4xf32> to vector<256x4xf32>
    %53 = tpu.concatenate %36, %38, %40, %42, %44, %46, %48, %50, %52 in 1 : vector<256x4xf32>, vector<256x4xf32>, vector<256x4xf32>, vector<256x4xf32>, vector<256x4xf32>, vector<256x4xf32>, vector<256x4xf32>, vector<256x4xf32>, vector<256x4xf32> -> vector<256x36xf32>
    %c0_73 = arith.constant 0 : index
    %c0_74 = arith.constant 0 : index
    %54 = vector.load %arg4[%c0_73, %c0_74] : memref<36x4xf32, #tpu.memory_space<vmem>>, vector<36x4xf32>
    %cst_75 = arith.constant dense<0.000000e+00> : vector<256x4xf32>
    %55 = tpu.matmul %53, %54, %cst_75 {dimension_numbers = #tpu.dot_dimension_numbers<[1], [0], [0], [1], [0, 0, 1, 1], [], []>} : vector<256x36xf32>, vector<36x4xf32>, vector<256x4xf32> -> vector<256x4xf32>
    %56 = arith.addf %34, %55 : vector<256x4xf32>
    %c0_76 = arith.constant 0 : index
    %c0_77 = arith.constant 0 : index
    %57 = vector.load %arg6[%c0_76, %c0_77] : memref<1x4xf32, #tpu.memory_space<vmem>>, vector<1x4xf32>
    %58 = vector.broadcast %57 : vector<1x4xf32> to vector<256x4xf32>
    %59 = arith.mulf %56, %58 : vector<256x4xf32>
    %c0_78 = arith.constant 0 : index
    %c0_79 = arith.constant 0 : index
    %60 = vector.load %arg7[%c0_78, %c0_79] : memref<1x4xf32, #tpu.memory_space<vmem>>, vector<1x4xf32>
    %61 = vector.broadcast %60 : vector<1x4xf32> to vector<256x4xf32>
    %62 = arith.addf %59, %61 : vector<256x4xf32>
    %cst_80 = arith.constant 0.000000e+00 : f32
    %63 = vector.broadcast %cst_80 : f32 to vector<256x4xf32>
    %64 = arith.maximumf %62, %63 : vector<256x4xf32>
    %cst_81 = arith.constant 0.000000e+00 : f32
    %65 = vector.broadcast %cst_81 : f32 to vector<18x18x4xf32>
    %c0_82 = arith.constant 0 : index
    %c0_83 = arith.constant 0 : index
    %c0_84 = arith.constant 0 : index
    %66 = vector.load %arg13[%c0_82, %c0_83, %c0_84] : memref<18x18x4xf32, #tpu.memory_space<vmem>>, vector<18x18x4xf32>
    tpu.vector_store %arg13[%c0_82, %c0_83, %c0_84], %65 {strides = array<i32>} : memref<18x18x4xf32, #tpu.memory_space<vmem>>, vector<18x18x4xf32>,
    %67 = vector.shape_cast %64 : vector<256x4xf32> to vector<16x16x4xf32>
    %c1_85 = arith.constant 1 : index
    %c1_86 = arith.constant 1 : index
    %c0_87 = arith.constant 0 : index
    %68 = vector.load %arg13[%c1_85, %c1_86, %c0_87] : memref<18x18x4xf32, #tpu.memory_space<vmem>>, vector<16x16x4xf32>
    tpu.vector_store %arg13[%c1_85, %c1_86, %c0_87], %67 {strides = array<i32>} : memref<18x18x4xf32, #tpu.memory_space<vmem>>, vector<16x16x4xf32>,
    %c0_88 = arith.constant 0 : index
    %c0_89 = arith.constant 0 : index
    %c0_90 = arith.constant 0 : index
    %69 = vector.load %arg13[%c0_88, %c0_89, %c0_90] : memref<18x18x4xf32, #tpu.memory_space<vmem>>, vector<16x16x4xf32>
    %70 = vector.shape_cast %69 : vector<16x16x4xf32> to vector<256x4xf32>
    %c0_91 = arith.constant 0 : index
    %c1_92 = arith.constant 1 : index
    %c0_93 = arith.constant 0 : index
    %71 = vector.load %arg13[%c0_91, %c1_92, %c0_93] : memref<18x18x4xf32, #tpu.memory_space<vmem>>, vector<16x16x4xf32>
    %72 = vector.shape_cast %71 : vector<16x16x4xf32> to vector<256x4xf32>
    %c0_94 = arith.constant 0 : index
    %c2_95 = arith.constant 2 : index
    %c0_96 = arith.constant 0 : index
    %73 = vector.load %arg13[%c0_94, %c2_95, %c0_96] : memref<18x18x4xf32, #tpu.memory_space<vmem>>, vector<16x16x4xf32>
    %74 = vector.shape_cast %73 : vector<16x16x4xf32> to vector<256x4xf32>
    %c1_97 = arith.constant 1 : index
    %c0_98 = arith.constant 0 : index
    %c0_99 = arith.constant 0 : index
    %75 = vector.load %arg13[%c1_97, %c0_98, %c0_99] : memref<18x18x4xf32, #tpu.memory_space<vmem>>, vector<16x16x4xf32>
    %76 = vector.shape_cast %75 : vector<16x16x4xf32> to vector<256x4xf32>
    %c1_100 = arith.constant 1 : index
    %c1_101 = arith.constant 1 : index
    %c0_102 = arith.constant 0 : index
    %77 = vector.load %arg13[%c1_100, %c1_101, %c0_102] : memref<18x18x4xf32, #tpu.memory_space<vmem>>, vector<16x16x4xf32>
    %78 = vector.shape_cast %77 : vector<16x16x4xf32> to vector<256x4xf32>
    %c1_103 = arith.constant 1 : index
    %c2_104 = arith.constant 2 : index
    %c0_105 = arith.constant 0 : index
    %79 = vector.load %arg13[%c1_103, %c2_104, %c0_105] : memref<18x18x4xf32, #tpu.memory_space<vmem>>, vector<16x16x4xf32>
    %80 = vector.shape_cast %79 : vector<16x16x4xf32> to vector<256x4xf32>
    %c2_106 = arith.constant 2 : index
    %c0_107 = arith.constant 0 : index
    %c0_108 = arith.constant 0 : index
    %81 = vector.load %arg13[%c2_106, %c0_107, %c0_108] : memref<18x18x4xf32, #tpu.memory_space<vmem>>, vector<16x16x4xf32>
    %82 = vector.shape_cast %81 : vector<16x16x4xf32> to vector<256x4xf32>
    %c2_109 = arith.constant 2 : index
    %c1_110 = arith.constant 1 : index
    %c0_111 = arith.constant 0 : index
    %83 = vector.load %arg13[%c2_109, %c1_110, %c0_111] : memref<18x18x4xf32, #tpu.memory_space<vmem>>, vector<16x16x4xf32>
    %84 = vector.shape_cast %83 : vector<16x16x4xf32> to vector<256x4xf32>
    %c2_112 = arith.constant 2 : index
    %c2_113 = arith.constant 2 : index
    %c0_114 = arith.constant 0 : index
    %85 = vector.load %arg13[%c2_112, %c2_113, %c0_114] : memref<18x18x4xf32, #tpu.memory_space<vmem>>, vector<16x16x4xf32>
    %86 = vector.shape_cast %85 : vector<16x16x4xf32> to vector<256x4xf32>
    %87 = tpu.concatenate %70, %72, %74, %76, %78, %80, %82, %84, %86 in 1 : vector<256x4xf32>, vector<256x4xf32>, vector<256x4xf32>, vector<256x4xf32>, vector<256x4xf32>, vector<256x4xf32>, vector<256x4xf32>, vector<256x4xf32>, vector<256x4xf32> -> vector<256x36xf32>
    %c0_115 = arith.constant 0 : index
    %c0_116 = arith.constant 0 : index
    %88 = vector.load %arg5[%c0_115, %c0_116] : memref<36x4xf32, #tpu.memory_space<vmem>>, vector<36x4xf32>
    %cst_117 = arith.constant dense<0.000000e+00> : vector<256x4xf32>
    %89 = tpu.matmul %87, %88, %cst_117 {dimension_numbers = #tpu.dot_dimension_numbers<[1], [0], [0], [1], [0, 0, 1, 1], [], []>} : vector<256x36xf32>, vector<36x4xf32>, vector<256x4xf32> -> vector<256x4xf32>
    %c0_118 = arith.constant 0 : index
    %c0_119 = arith.constant 0 : index
    %90 = vector.load %arg8[%c0_118, %c0_119] : memref<1x4xf32, #tpu.memory_space<vmem>>, vector<1x4xf32>
    %91 = vector.broadcast %90 : vector<1x4xf32> to vector<256x4xf32>
    %92 = arith.mulf %89, %91 : vector<256x4xf32>
    %c0_120 = arith.constant 0 : index
    %c0_121 = arith.constant 0 : index
    %93 = vector.load %arg9[%c0_120, %c0_121] : memref<1x4xf32, #tpu.memory_space<vmem>>, vector<1x4xf32>
    %94 = vector.broadcast %93 : vector<1x4xf32> to vector<256x4xf32>
    %95 = arith.addf %92, %94 : vector<256x4xf32>
    %cst_122 = arith.constant 0.000000e+00 : f32
    %96 = vector.broadcast %cst_122 : f32 to vector<256x4xf32>
    %97 = arith.maximumf %95, %96 : vector<256x4xf32>
    %98 = tpu.transpose %97, [1, 0] : vector<256x4xf32> -> vector<4x256xf32>
    %c0_123 = arith.constant 0 : index
    %c0_124 = arith.constant 0 : index
    %c0_125 = arith.constant 0 : index
    %99 = vector.load %arg10[%c0_123, %c0_124, %c0_125] : memref<1x4x256xf32, #tpu.memory_space<vmem>>, vector<1x4x256xf32>
    %100 = vector.shape_cast %99 : vector<1x4x256xf32> to vector<4x256xf32>
    %101 = vector.shape_cast %98 : vector<4x256xf32> to vector<1x4x256xf32>
    tpu.vector_store %arg10[%c0_123, %c0_124, %c0_125], %101 {strides = array<i32>} : memref<1x4x256xf32, #tpu.memory_space<vmem>>, vector<1x4x256xf32>,
    return
  }
  func.func @transform_0(%arg0: i32) -> (i32, i32, i32) {
    %c0_i32 = arith.constant 0 : i32
    %c0_i32_0 = arith.constant 0 : i32
    %c0_i32_1 = arith.constant 0 : i32
    return %arg0, %c0_i32, %c0_i32_0 : i32, i32, i32
  }
  func.func @transform_1(%arg0: i32) -> (i32, i32, i32) {
    %c0_i32 = arith.constant 0 : i32
    %c0_i32_0 = arith.constant 0 : i32
    %c0_i32_1 = arith.constant 0 : i32
    return %arg0, %c0_i32, %c0_i32_0 : i32, i32, i32
  }
  func.func @transform_2(%arg0: i32) -> (i32, i32) {
    %c0_i32 = arith.constant 0 : i32
    %c0_i32_0 = arith.constant 0 : i32
    %c0_i32_1 = arith.constant 0 : i32
    return %c0_i32, %c0_i32_0 : i32, i32
  }
  func.func @transform_3(%arg0: i32) -> (i32, i32) {
    %c0_i32 = arith.constant 0 : i32
    %c0_i32_0 = arith.constant 0 : i32
    %c0_i32_1 = arith.constant 0 : i32
    return %c0_i32, %c0_i32_0 : i32, i32
  }
  func.func @transform_4(%arg0: i32) -> (i32, i32) {
    %c0_i32 = arith.constant 0 : i32
    %c0_i32_0 = arith.constant 0 : i32
    %c0_i32_1 = arith.constant 0 : i32
    return %c0_i32, %c0_i32_0 : i32, i32
  }
  func.func @transform_5(%arg0: i32) -> (i32, i32) {
    %c0_i32 = arith.constant 0 : i32
    %c0_i32_0 = arith.constant 0 : i32
    %c0_i32_1 = arith.constant 0 : i32
    return %c0_i32, %c0_i32_0 : i32, i32
  }
  func.func @transform_6(%arg0: i32) -> (i32, i32) {
    %c0_i32 = arith.constant 0 : i32
    %c0_i32_0 = arith.constant 0 : i32
    %c0_i32_1 = arith.constant 0 : i32
    return %c0_i32, %c0_i32_0 : i32, i32
  }
  func.func @transform_7(%arg0: i32) -> (i32, i32) {
    %c0_i32 = arith.constant 0 : i32
    %c0_i32_0 = arith.constant 0 : i32
    %c0_i32_1 = arith.constant 0 : i32
    return %c0_i32, %c0_i32_0 : i32, i32
  }
  func.func @transform_8(%arg0: i32) -> (i32, i32) {
    %c0_i32 = arith.constant 0 : i32
    %c0_i32_0 = arith.constant 0 : i32
    %c0_i32_1 = arith.constant 0 : i32
    return %c0_i32, %c0_i32_0 : i32, i32
  }
  func.func @transform_9(%arg0: i32) -> (i32, i32, i32) {
    %c0_i32 = arith.constant 0 : i32
    %c0_i32_0 = arith.constant 0 : i32
    %c0_i32_1 = arith.constant 0 : i32
    return %arg0, %c0_i32, %c0_i32_0 : i32, i32, i32
  }
}

</mosaic_0001>

<llo_original>
// kernel: up_forward.2
$region0: #{up_forward.2}
  #allocation0 [shape = 'u32[]', space=smem, size = 0x4, offset = 0x4, fixed_abs, tag = 'smem constant byte address 0x4 - core index']
  #allocation1 [shape = 'u32[144,128]{1,0:T(1,128)}', space=vmem, size = 0x12000, scoped, tag = 'internal scratch']
  %s0 = inlined_call_operand.hbm [shape: f32[8,8,8], index: 0, kind: input, shape index: {}]
  %s1 = inlined_call_operand.vmem [shape: f32[8,16], index: 1, kind: input, shape index: {}, may-alias: {1,2}]
  %s2 = inlined_call_operand.vmem [shape: f32[8,16], index: 2, kind: input, shape index: {}, may-alias: {1,2}]
  %s3 = inlined_call_operand.vmem [shape: f32[8,16,16], index: 3, kind: output, shape index: {}]
  %s4 = sld [smem:[#allocation0]]
  $region26: #{up_forward.2} parent=0
    _
  %s6 = ssub.s32 1, %s4
  %s7 = scalar_select 0, %s6, %s4
  $region1: #{up_forward.2} parent=0
    #allocation2 [shape = 'u8[32768]{0}', space=vmem, size = 0x8000, scoped, tag = 'input window, operand 0, single buffered']
    #allocation3 [shape = 's32[1]{0}', space=sflag, size = 0x4, scoped, tag = 'scoped memory for up_forward.2']
    %8 = vsyncpa [#allocation3], 0
    // Predicated region
    $region2: #{up_forward.2} parent=1 // pred_check
      _
    $region3: #{up_forward.2} parent=1 // pred_check_branch
      %10 = sbr.rel (0) target = $region5
    $region4: #{up_forward.2} parent=1 // pred_region
      %s12 = ssub.s32 1024, 1024
      %13 = vsyncadd [#allocation3], %s12
      %s14 = sshll.u32 [#allocation2], 4
      %s15 = int_to_ptr.vmem [resolvable:$true] %s14
      %20 = dma.hbm_to_vmem [thread:$0]  %s0, 1024, %s15, [#allocation3], 128, 128, 8
    $region5: #{up_forward.2} parent=1 // pred_fallthru
      _
    // Predicated region
    $region6: #{up_forward.2} parent=1 // pred_check
      _
    $region7: #{up_forward.2} parent=1 // pred_check_branch
      %22 = sbr.rel (0) target = $region9
    $region8: #{up_forward.2} parent=1 // pred_region
      _
    $region9: #{up_forward.2} parent=1 // pred_fallthru
      _
    // Predicated region
    $region10: #{up_forward.2} parent=1 // pred_check
      _
    $region11: #{up_forward.2} parent=1 // pred_check_branch
      %24 = sbr.rel (0) target = $region13
    $region12: #{up_forward.2} parent=1 // pred_region
      _
    $region13: #{up_forward.2} parent=1 // pred_fallthru
      _
    // Predicated region
    $region14: #{up_forward.2} parent=1 // pred_check
      _
    $region15: #{up_forward.2} parent=1 // pred_check_branch
      %26 = sbr.rel (0) target = $region17
    $region16: #{up_forward.2} parent=1 // pred_region
      %27 = dma.done [#allocation3], 1024
    $region17: #{up_forward.2} parent=1 // pred_fallthru
      _
    %v28 = vld [vmem:[#allocation2] sm:$0xff]
    %v29 = vld [vmem:[#allocation2 + $0x8] sm:$0xff]
    %v30 = vld [vmem:[#allocation2 + $0x10] sm:$0xff]
    %v31 = vld [vmem:[#allocation2 + $0x18] sm:$0xff]
    %v32 = vld [vmem:[#allocation2 + $0x20] sm:$0xff]
    %v33 = vld [vmem:[#allocation2 + $0x28] sm:$0xff]
    %v34 = vld [vmem:[#allocation2 + $0x30] sm:$0xff]
    %v35 = vld [vmem:[#allocation2 + $0x38] sm:$0xff]
    %v36 = vld [vmem:[%s1] sm:$0xff]
    %vm37 = vcmask 64512
    %v39 = vsel %vm37, %v28, 0
    %v42 = vsel %vm37, %v29, 0
    %v45 = vsel %vm37, %v30, 0
    %v48 = vsel %vm37, %v31, 0
    %v51 = vsel %vm37, %v32, 0
    %v54 = vsel %vm37, %v33, 0
    %v57 = vsel %vm37, %v34, 0
    %v60 = vsel %vm37, %v35, 0
    %62 = vmatprep.subr.mxu0 0.0
    %63 = vmatpush1.msra.mxu0 0.0
    %64 = vmatprep.subr.mxu0 0.0
    %65 = vmatpush1.msra.mxu0 0.0
    %66 = vmatprep.subr.mxu0 0.0
    %67 = vmatpush1.msra.mxu0 0.0
    %68 = vmatprep.subr.mxu0 0.0
    %69 = vmatpush1.msra.mxu0 0.0
    %70 = vmatprep.subr.mxu0 0.0
    %71 = vmatpush1.msra.mxu0 0.0
    %72 = vmatprep.subr.mxu0 0.0
    %73 = vmatpush1.msra.mxu0 0.0
    %74 = vmatprep.subr.mxu0 0.0
    %75 = vmatpush1.msra.mxu0 0.0
    %76 = vmatprep.subr.mxu0 0.0
    %77 = vmatpush1.msra.mxu0 0.0
    %78 = vmatprep.subr.mxu0 0.0
    %79 = vmatpush1.msra.mxu0 0.0
    %80 = vmatprep.subr.mxu0 0.0
    %81 = vmatpush1.msra.mxu0 0.0
    %82 = vmatprep.subr.mxu0 0.0
    %83 = vmatpush1.msra.mxu0 0.0
    %84 = vmatprep.subr.mxu0 0.0
    %85 = vmatpush1.msra.mxu0 0.0
    %86 = vmatprep.subr.mxu0 0.0
    %87 = vmatpush1.msra.mxu0 0.0
    %88 = vmatprep.subr.mxu0 0.0
    %89 = vmatpush1.msra.mxu0 0.0
    %90 = vmatprep.subr.mxu0 0.0
    %91 = vmatpush1.msra.mxu0 0.0
    %92 = vmatprep.subr.mxu0 0.0
    %93 = vmatpush1.msra.mxu0 %v36
    %94 = vmatprep.subr.mxu0 0.0
    %95 = vmatpush2.msra.mxu0 0.0
    %96 = vmatprep.subr.mxu0 0.0
    %97 = vmatpush2.msra.mxu0 0.0
    %98 = vmatprep.subr.mxu0 0.0
    %99 = vmatpush2.msra.mxu0 0.0
    %100 = vmatprep.subr.mxu0 0.0
    %101 = vmatpush2.msra.mxu0 0.0
    %102 = vmatprep.subr.mxu0 0.0
    %103 = vmatpush2.msra.mxu0 0.0
    %104 = vmatprep.subr.mxu0 0.0
    %105 = vmatpush2.msra.mxu0 0.0
    %106 = vmatprep.subr.mxu0 0.0
    %107 = vmatpush2.msra.mxu0 0.0
    %108 = vmatprep.subr.mxu0 0.0
    %109 = vmatpush2.msra.mxu0 0.0
    %110 = vmatprep.subr.mxu0 0.0
    %111 = vmatpush2.msra.mxu0 0.0
    %112 = vmatprep.subr.mxu0 0.0
    %113 = vmatpush2.msra.mxu0 0.0
    %114 = vmatprep.subr.mxu0 0.0
    %115 = vmatpush2.msra.mxu0 0.0
    %116 = vmatprep.subr.mxu0 0.0
    %117 = vmatpush2.msra.mxu0 0.0
    %118 = vmatprep.subr.mxu0 0.0
    %119 = vmatpush2.msra.mxu0 0.0
    %120 = vmatprep.subr.mxu0 0.0
    %121 = vmatpush2.msra.mxu0 0.0
    %122 = vmatprep.subr.mxu0 0.0
    %123 = vmatpush2.msra.mxu0 0.0
    %124 = vmatprep.subr.mxu0 0.0
    %125 = vmatpush2.msra.mxu0 0.0
    %126 = vmatprep.mubr.f32.mxu0 0.0
    %127 = vmatmul.mubr.f32.gmra.mxu0 %v39
    %v128 = vpop.f32.mrf.mxu0
    %v129 = vadd.f32 0.0, %v128
    %v130 = vpop.f32.mrf.mxu0
    %131 = vmatprep.mubr.f32.mxu0 0.0
    %132 = vmatmul.mubr.f32.gmra.mxu0 %v42
    %v133 = vpop.f32.mrf.mxu0
    %v134 = vadd.f32 0.0, %v133
    %v135 = vpop.f32.mrf.mxu0
    %136 = vmatprep.mubr.f32.mxu0 0.0
    %137 = vmatmul.mubr.f32.gmra.mxu0 %v45
    %v138 = vpop.f32.mrf.mxu0
    %v139 = vadd.f32 0.0, %v138
    %v140 = vpop.f32.mrf.mxu0
    %141 = vmatprep.mubr.f32.mxu0 0.0
    %142 = vmatmul.mubr.f32.gmra.mxu0 %v48
    %v143 = vpop.f32.mrf.mxu0
    %v144 = vadd.f32 0.0, %v143
    %v145 = vpop.f32.mrf.mxu0
    %146 = vmatprep.mubr.f32.mxu0 0.0
    %147 = vmatmul.mubr.f32.gmra.mxu0 %v51
    %v148 = vpop.f32.mrf.mxu0
    %v149 = vadd.f32 0.0, %v148
    %v150 = vpop.f32.mrf.mxu0
    %151 = vmatprep.mubr.f32.mxu0 0.0
    %152 = vmatmul.mubr.f32.gmra.mxu0 %v54
    %v153 = vpop.f32.mrf.mxu0
    %v154 = vadd.f32 0.0, %v153
    %v155 = vpop.f32.mrf.mxu0
    %156 = vmatprep.mubr.f32.mxu0 0.0
    %157 = vmatmul.mubr.f32.gmra.mxu0 %v57
    %v158 = vpop.f32.mrf.mxu0
    %v159 = vadd.f32 0.0, %v158
    %v160 = vpop.f32.mrf.mxu0
    %161 = vmatprep.mubr.f32.mxu0 0.0
    %162 = vmatmul.mubr.f32.gmra.mxu0 %v60
    %v163 = vpop.f32.mrf.mxu0
    %v164 = vadd.f32 0.0, %v163
    %v165 = vpop.f32.mrf.mxu0
    %166 = vdwg.mxu0
    %167 = vxpose.xlu0.b32.start [1/16] %v129, 128
    %168 = vxpose.xlu0.b32.cont [2/16] 0.0, 128
    %169 = vxpose.xlu0.b32.cont [3/16] 0.0, 128
    %170 = vxpose.xlu0.b32.cont [4/16] 0.0, 128
    %171 = vxpose.xlu0.b32.cont [5/16] 0.0, 128
    %172 = vxpose.xlu0.b32.cont [6/16] 0.0, 128
    %173 = vxpose.xlu0.b32.cont [7/16] 0.0, 128
    %174 = vxpose.xlu0.b32.cont [8/16] 0.0, 128
    %175 = vxpose.xlu0.b32.cont [9/16] 0.0, 128
    %176 = vxpose.xlu0.b32.cont [10/16] 0.0, 128
    %177 = vxpose.xlu0.b32.cont [11/16] 0.0, 128
    %178 = vxpose.xlu0.b32.cont [12/16] 0.0, 128
    %179 = vxpose.xlu0.b32.cont [13/16] 0.0, 128
    %180 = vxpose.xlu0.b32.cont [14/16] 0.0, 128
    %181 = vxpose.xlu0.b32.cont [15/16] 0.0, 128
    %182 = vxpose.xlu0.b32.end [16/16] 0.0, 128
    %v183 = vpop.trf.xlu0
    %v184 = vpop.trf.xlu0
    %v185 = vpop.trf.xlu0
    %v186 = vpop.trf.xlu0
    %v187 = vpop.trf.xlu0
    %v188 = vpop.trf.xlu0
    %v189 = vpop.trf.xlu0
    %v190 = vpop.trf.xlu0
    %v191 = vpop.trf.xlu0
    %v192 = vpop.trf.xlu0
    %v193 = vpop.trf.xlu0
    %v194 = vpop.trf.xlu0
    %v195 = vpop.trf.xlu0
    %v196 = vpop.trf.xlu0
    %v197 = vpop.trf.xlu0
    %v198 = vpop.trf.xlu0
    %199 = vxpose.xlu0.b32.start [1/16] %v134, 128
    %200 = vxpose.xlu0.b32.cont [2/16] 0.0, 128
    %201 = vxpose.xlu0.b32.cont [3/16] 0.0, 128
    %202 = vxpose.xlu0.b32.cont [4/16] 0.0, 128
    %203 = vxpose.xlu0.b32.cont [5/16] 0.0, 128
    %204 = vxpose.xlu0.b32.cont [6/16] 0.0, 128
    %205 = vxpose.xlu0.b32.cont [7/16] 0.0, 128
    %206 = vxpose.xlu0.b32.cont [8/16] 0.0, 128
    %207 = vxpose.xlu0.b32.cont [9/16] 0.0, 128
    %208 = vxpose.xlu0.b32.cont [10/16] 0.0, 128
    %209 = vxpose.xlu0.b32.cont [11/16] 0.0, 128
    %210 = vxpose.xlu0.b32.cont [12/16] 0.0, 128
    %211 = vxpose.xlu0.b32.cont [13/16] 0.0, 128
    %212 = vxpose.xlu0.b32.cont [14/16] 0.0, 128
    %213 = vxpose.xlu0.b32.cont [15/16] 0.0, 128
    %214 = vxpose.xlu0.b32.end [16/16] 0.0, 128
    %v215 = vpop.trf.xlu0
    %v216 = vpop.trf.xlu0
    %v217 = vpop.trf.xlu0
    %v218 = vpop.trf.xlu0
    %v219 = vpop.trf.xlu0
    %v220 = vpop.trf.xlu0
    %v221 = vpop.trf.xlu0
    %v222 = vpop.trf.xlu0
    %v223 = vpop.trf.xlu0
    %v224 = vpop.trf.xlu0
    %v225 = vpop.trf.xlu0
    %v226 = vpop.trf.xlu0
    %v227 = vpop.trf.xlu0
    %v228 = vpop.trf.xlu0
    %v229 = vpop.trf.xlu0
    %v230 = vpop.trf.xlu0
    %231 = vxpose.xlu0.b32.start [1/16] %v139, 128
    %232 = vxpose.xlu0.b32.cont [2/16] 0.0, 128
    %233 = vxpose.xlu0.b32.cont [3/16] 0.0, 128
    %234 = vxpose.xlu0.b32.cont [4/16] 0.0, 128
    %235 = vxpose.xlu0.b32.cont [5/16] 0.0, 128
    %236 = vxpose.xlu0.b32.cont [6/16] 0.0, 128
    %237 = vxpose.xlu0.b32.cont [7/16] 0.0, 128
    %238 = vxpose.xlu0.b32.cont [8/16] 0.0, 128
    %239 = vxpose.xlu0.b32.cont [9/16] 0.0, 128
    %240 = vxpose.xlu0.b32.cont [10/16] 0.0, 128
    %241 = vxpose.xlu0.b32.cont [11/16] 0.0, 128
    %242 = vxpose.xlu0.b32.cont [12/16] 0.0, 128
    %243 = vxpose.xlu0.b32.cont [13/16] 0.0, 128
    %244 = vxpose.xlu0.b32.cont [14/16] 0.0, 128
    %245 = vxpose.xlu0.b32.cont [15/16] 0.0, 128
    %246 = vxpose.xlu0.b32.end [16/16] 0.0, 128
    %v247 = vpop.trf.xlu0
    %v248 = vpop.trf.xlu0
    %v249 = vpop.trf.xlu0
    %v250 = vpop.trf.xlu0
    %v251 = vpop.trf.xlu0
    %v252 = vpop.trf.xlu0
    %v253 = vpop.trf.xlu0
    %v254 = vpop.trf.xlu0
    %v255 = vpop.trf.xlu0
    %v256 = vpop.trf.xlu0
    %v257 = vpop.trf.xlu0
    %v258 = vpop.trf.xlu0
    %v259 = vpop.trf.xlu0
    %v260 = vpop.trf.xlu0
    %v261 = vpop.trf.xlu0
    %v262 = vpop.trf.xlu0
    %263 = vxpose.xlu0.b32.start [1/16] %v144, 128
    %264 = vxpose.xlu0.b32.cont [2/16] 0.0, 128
    %265 = vxpose.xlu0.b32.cont [3/16] 0.0, 128
    %266 = vxpose.xlu0.b32.cont [4/16] 0.0, 128
    %267 = vxpose.xlu0.b32.cont [5/16] 0.0, 128
    %268 = vxpose.xlu0.b32.cont [6/16] 0.0, 128
    %269 = vxpose.xlu0.b32.cont [7/16] 0.0, 128
    %270 = vxpose.xlu0.b32.cont [8/16] 0.0, 128
    %271 = vxpose.xlu0.b32.cont [9/16] 0.0, 128
    %272 = vxpose.xlu0.b32.cont [10/16] 0.0, 128
    %273 = vxpose.xlu0.b32.cont [11/16] 0.0, 128
    %274 = vxpose.xlu0.b32.cont [12/16] 0.0, 128
    %275 = vxpose.xlu0.b32.cont [13/16] 0.0, 128
    %276 = vxpose.xlu0.b32.cont [14/16] 0.0, 128
    %277 = vxpose.xlu0.b32.cont [15/16] 0.0, 128
    %278 = vxpose.xlu0.b32.end [16/16] 0.0, 128
    %v279 = vpop.trf.xlu0
    %v280 = vpop.trf.xlu0
    %v281 = vpop.trf.xlu0
    %v282 = vpop.trf.xlu0
    %v283 = vpop.trf.xlu0
    %v284 = vpop.trf.xlu0
    %v285 = vpop.trf.xlu0
    %v286 = vpop.trf.xlu0
    %v287 = vpop.trf.xlu0
    %v288 = vpop.trf.xlu0
    %v289 = vpop.trf.xlu0
    %v290 = vpop.trf.xlu0
    %v291 = vpop.trf.xlu0
    %v292 = vpop.trf.xlu0
    %v293 = vpop.trf.xlu0
    %v294 = vpop.trf.xlu0
    %295 = vxpose.xlu0.b32.start [1/16] %v149, 128
    %296 = vxpose.xlu0.b32.cont [2/16] 0.0, 128
    %297 = vxpose.xlu0.b32.cont [3/16] 0.0, 128
    %298 = vxpose.xlu0.b32.cont [4/16] 0.0, 128
    %299 = vxpose.xlu0.b32.cont [5/16] 0.0, 128
    %300 = vxpose.xlu0.b32.cont [6/16] 0.0, 128
    %301 = vxpose.xlu0.b32.cont [7/16] 0.0, 128
    %302 = vxpose.xlu0.b32.cont [8/16] 0.0, 128
    %303 = vxpose.xlu0.b32.cont [9/16] 0.0, 128
    %304 = vxpose.xlu0.b32.cont [10/16] 0.0, 128
    %305 = vxpose.xlu0.b32.cont [11/16] 0.0, 128
    %306 = vxpose.xlu0.b32.cont [12/16] 0.0, 128
    %307 = vxpose.xlu0.b32.cont [13/16] 0.0, 128
    %308 = vxpose.xlu0.b32.cont [14/16] 0.0, 128
    %309 = vxpose.xlu0.b32.cont [15/16] 0.0, 128
    %310 = vxpose.xlu0.b32.end [16/16] 0.0, 128
    %v311 = vpop.trf.xlu0
    %v312 = vpop.trf.xlu0
    %v313 = vpop.trf.xlu0
    %v314 = vpop.trf.xlu0
    %v315 = vpop.trf.xlu0
    %v316 = vpop.trf.xlu0
    %v317 = vpop.trf.xlu0
    %v318 = vpop.trf.xlu0
    %v319 = vpop.trf.xlu0
    %v320 = vpop.trf.xlu0
    %v321 = vpop.trf.xlu0
    %v322 = vpop.trf.xlu0
    %v323 = vpop.trf.xlu0
    %v324 = vpop.trf.xlu0
    %v325 = vpop.trf.xlu0
    %v326 = vpop.trf.xlu0
    %327 = vxpose.xlu0.b32.start [1/16] %v154, 128
    %328 = vxpose.xlu0.b32.cont [2/16] 0.0, 128
    %329 = vxpose.xlu0.b32.cont [3/16] 0.0, 128
    %330 = vxpose.xlu0.b32.cont [4/16] 0.0, 128
    %331 = vxpose.xlu0.b32.cont [5/16] 0.0, 128
    %332 = vxpose.xlu0.b32.cont [6/16] 0.0, 128
    %333 = vxpose.xlu0.b32.cont [7/16] 0.0, 128
    %334 = vxpose.xlu0.b32.cont [8/16] 0.0, 128
    %335 = vxpose.xlu0.b32.cont [9/16] 0.0, 128
    %336 = vxpose.xlu0.b32.cont [10/16] 0.0, 128
    %337 = vxpose.xlu0.b32.cont [11/16] 0.0, 128
    %338 = vxpose.xlu0.b32.cont [12/16] 0.0, 128
    %339 = vxpose.xlu0.b32.cont [13/16] 0.0, 128
    %340 = vxpose.xlu0.b32.cont [14/16] 0.0, 128
    %341 = vxpose.xlu0.b32.cont [15/16] 0.0, 128
    %342 = vxpose.xlu0.b32.end [16/16] 0.0, 128
    %v343 = vpop.trf.xlu0
    %v344 = vpop.trf.xlu0
    %v345 = vpop.trf.xlu0
    %v346 = vpop.trf.xlu0
    %v347 = vpop.trf.xlu0
    %v348 = vpop.trf.xlu0
    %v349 = vpop.trf.xlu0
    %v350 = vpop.trf.xlu0
    %v351 = vpop.trf.xlu0
    %v352 = vpop.trf.xlu0
    %v353 = vpop.trf.xlu0
    %v354 = vpop.trf.xlu0
    %v355 = vpop.trf.xlu0
    %v356 = vpop.trf.xlu0
    %v357 = vpop.trf.xlu0
    %v358 = vpop.trf.xlu0
    %359 = vxpose.xlu0.b32.start [1/16] %v159, 128
    %360 = vxpose.xlu0.b32.cont [2/16] 0.0, 128
    %361 = vxpose.xlu0.b32.cont [3/16] 0.0, 128
    %362 = vxpose.xlu0.b32.cont [4/16] 0.0, 128
    %363 = vxpose.xlu0.b32.cont [5/16] 0.0, 128
    %364 = vxpose.xlu0.b32.cont [6/16] 0.0, 128
    %365 = vxpose.xlu0.b32.cont [7/16] 0.0, 128
    %366 = vxpose.xlu0.b32.cont [8/16] 0.0, 128
    %367 = vxpose.xlu0.b32.cont [9/16] 0.0, 128
    %368 = vxpose.xlu0.b32.cont [10/16] 0.0, 128
    %369 = vxpose.xlu0.b32.cont [11/16] 0.0, 128
    %370 = vxpose.xlu0.b32.cont [12/16] 0.0, 128
    %371 = vxpose.xlu0.b32.cont [13/16] 0.0, 128
    %372 = vxpose.xlu0.b32.cont [14/16] 0.0, 128
    %373 = vxpose.xlu0.b32.cont [15/16] 0.0, 128
    %374 = vxpose.xlu0.b32.end [16/16] 0.0, 128
    %v375 = vpop.trf.xlu0
    %v376 = vpop.trf.xlu0
    %v377 = vpop.trf.xlu0
    %v378 = vpop.trf.xlu0
    %v379 = vpop.trf.xlu0
    %v380 = vpop.trf.xlu0
    %v381 = vpop.trf.xlu0
    %v382 = vpop.trf.xlu0
    %v383 = vpop.trf.xlu0
    %v384 = vpop.trf.xlu0
    %v385 = vpop.trf.xlu0
    %v386 = vpop.trf.xlu0
    %v387 = vpop.trf.xlu0
    %v388 = vpop.trf.xlu0
    %v389 = vpop.trf.xlu0
    %v390 = vpop.trf.xlu0
    %391 = vxpose.xlu0.b32.start [1/16] %v164, 128
    %392 = vxpose.xlu0.b32.cont [2/16] 0.0, 128
    %393 = vxpose.xlu0.b32.cont [3/16] 0.0, 128
    %394 = vxpose.xlu0.b32.cont [4/16] 0.0, 128
    %395 = vxpose.xlu0.b32.cont [5/16] 0.0, 128
    %396 = vxpose.xlu0.b32.cont [6/16] 0.0, 128
    %397 = vxpose.xlu0.b32.cont [7/16] 0.0, 128
    %398 = vxpose.xlu0.b32.cont [8/16] 0.0, 128
    %399 = vxpose.xlu0.b32.cont [9/16] 0.0, 128
    %400 = vxpose.xlu0.b32.cont [10/16] 0.0, 128
    %401 = vxpose.xlu0.b32.cont [11/16] 0.0, 128
    %402 = vxpose.xlu0.b32.cont [12/16] 0.0, 128
    %403 = vxpose.xlu0.b32.cont [13/16] 0.0, 128
    %404 = vxpose.xlu0.b32.cont [14/16] 0.0, 128
    %405 = vxpose.xlu0.b32.cont [15/16] 0.0, 128
    %406 = vxpose.xlu0.b32.end [16/16] 0.0, 128
    %v407 = vpop.trf.xlu0
    %v408 = vpop.trf.xlu0
    %v409 = vpop.trf.xlu0
    %v410 = vpop.trf.xlu0
    %v411 = vpop.trf.xlu0
    %v412 = vpop.trf.xlu0
    %v413 = vpop.trf.xlu0
    %v414 = vpop.trf.xlu0
    %v415 = vpop.trf.xlu0
    %v416 = vpop.trf.xlu0
    %v417 = vpop.trf.xlu0
    %v418 = vpop.trf.xlu0
    %v419 = vpop.trf.xlu0
    %v420 = vpop.trf.xlu0
    %v421 = vpop.trf.xlu0
    %v422 = vpop.trf.xlu0
    %v423 = vld [vmem:[%s2] sm:$0xff]
    %v425 = vsel %vm37, %v183, 0
    %v428 = vsel %vm37, %v184, 0
    %v431 = vsel %vm37, %v215, 0
    %v434 = vsel %vm37, %v216, 0
    %v437 = vsel %vm37, %v247, 0
    %v440 = vsel %vm37, %v248, 0
    %v443 = vsel %vm37, %v279, 0
    %v446 = vsel %vm37, %v280, 0
    %v449 = vsel %vm37, %v311, 0
    %v452 = vsel %vm37, %v312, 0
    %v455 = vsel %vm37, %v343, 0
    %v458 = vsel %vm37, %v344, 0
    %v461 = vsel %vm37, %v375, 0
    %v464 = vsel %vm37, %v376, 0
    %v467 = vsel %vm37, %v407, 0
    %v470 = vsel %vm37, %v408, 0
    %472 = vmatprep.subr.mxu0 0.0
    %473 = vmatpush1.msra.mxu0 0.0
    %474 = vmatprep.subr.mxu0 0.0
    %475 = vmatpush1.msra.mxu0 0.0
    %476 = vmatprep.subr.mxu0 0.0
    %477 = vmatpush1.msra.mxu0 0.0
    %478 = vmatprep.subr.mxu0 0.0
    %479 = vmatpush1.msra.mxu0 0.0
    %480 = vmatprep.subr.mxu0 0.0
    %481 = vmatpush1.msra.mxu0 0.0
    %482 = vmatprep.subr.mxu0 0.0
    %483 = vmatpush1.msra.mxu0 0.0
    %484 = vmatprep.subr.mxu0 0.0
    %485 = vmatpush1.msra.mxu0 0.0
    %486 = vmatprep.subr.mxu0 0.0
    %487 = vmatpush1.msra.mxu0 0.0
    %488 = vmatprep.subr.mxu0 0.0
    %489 = vmatpush1.msra.mxu0 0.0
    %490 = vmatprep.subr.mxu0 0.0
    %491 = vmatpush1.msra.mxu0 0.0
    %492 = vmatprep.subr.mxu0 0.0
    %493 = vmatpush1.msra.mxu0 0.0
    %494 = vmatprep.subr.mxu0 0.0
    %495 = vmatpush1.msra.mxu0 0.0
    %496 = vmatprep.subr.mxu0 0.0
    %497 = vmatpush1.msra.mxu0 0.0
    %498 = vmatprep.subr.mxu0 0.0
    %499 = vmatpush1.msra.mxu0 0.0
    %500 = vmatprep.subr.mxu0 0.0
    %501 = vmatpush1.msra.mxu0 0.0
    %502 = vmatprep.subr.mxu0 0.0
    %503 = vmatpush1.msra.mxu0 %v423
    %504 = vmatprep.subr.mxu0 0.0
    %505 = vmatpush2.msra.mxu0 0.0
    %506 = vmatprep.subr.mxu0 0.0
    %507 = vmatpush2.msra.mxu0 0.0
    %508 = vmatprep.subr.mxu0 0.0
    %509 = vmatpush2.msra.mxu0 0.0
    %510 = vmatprep.subr.mxu0 0.0
    %511 = vmatpush2.msra.mxu0 0.0
    %512 = vmatprep.subr.mxu0 0.0
    %513 = vmatpush2.msra.mxu0 0.0
    %514 = vmatprep.subr.mxu0 0.0
    %515 = vmatpush2.msra.mxu0 0.0
    %516 = vmatprep.subr.mxu0 0.0
    %517 = vmatpush2.msra.mxu0 0.0
    %518 = vmatprep.subr.mxu0 0.0
    %519 = vmatpush2.msra.mxu0 0.0
    %520 = vmatprep.subr.mxu0 0.0
    %521 = vmatpush2.msra.mxu0 0.0
    %522 = vmatprep.subr.mxu0 0.0
    %523 = vmatpush2.msra.mxu0 0.0
    %524 = vmatprep.subr.mxu0 0.0
    %525 = vmatpush2.msra.mxu0 0.0
    %526 = vmatprep.subr.mxu0 0.0
    %527 = vmatpush2.msra.mxu0 0.0
    %528 = vmatprep.subr.mxu0 0.0
    %529 = vmatpush2.msra.mxu0 0.0
    %530 = vmatprep.subr.mxu0 0.0
    %531 = vmatpush2.msra.mxu0 0.0
    %532 = vmatprep.subr.mxu0 0.0
    %533 = vmatpush2.msra.mxu0 0.0
    %534 = vmatprep.subr.mxu0 0.0
    %535 = vmatpush2.msra.mxu0 0.0
    %536 = vmatprep.mubr.f32.mxu0 0.0
    %537 = vmatmul.mubr.f32.gmra.mxu0 %v425
    %v538 = vpop.f32.mrf.mxu0
    %v539 = vadd.f32 0.0, %v538
    %v540 = vpop.f32.mrf.mxu0
    %541 = vmatprep.mubr.f32.mxu0 0.0
    %542 = vmatmul.mubr.f32.gmra.mxu0 %v428
    %v543 = vpop.f32.mrf.mxu0
    %v544 = vadd.f32 0.0, %v543
    %v545 = vpop.f32.mrf.mxu0
    %546 = vmatprep.mubr.f32.mxu0 0.0
    %547 = vmatmul.mubr.f32.gmra.mxu0 %v431
    %v548 = vpop.f32.mrf.mxu0
    %v549 = vadd.f32 0.0, %v548
    %v550 = vpop.f32.mrf.mxu0
    %551 = vmatprep.mubr.f32.mxu0 0.0
    %552 = vmatmul.mubr.f32.gmra.mxu0 %v434
    %v553 = vpop.f32.mrf.mxu0
    %v554 = vadd.f32 0.0, %v553
    %v555 = vpop.f32.mrf.mxu0
    %556 = vmatprep.mubr.f32.mxu0 0.0
    %557 = vmatmul.mubr.f32.gmra.mxu0 %v437
    %v558 = vpop.f32.mrf.mxu0
    %v559 = vadd.f32 0.0, %v558
    %v560 = vpop.f32.mrf.mxu0
    %561 = vmatprep.mubr.f32.mxu0 0.0
    %562 = vmatmul.mubr.f32.gmra.mxu0 %v440
    %v563 = vpop.f32.mrf.mxu0
    %v564 = vadd.f32 0.0, %v563
    %v565 = vpop.f32.mrf.mxu0
    %566 = vmatprep.mubr.f32.mxu0 0.0
    %567 = vmatmul.mubr.f32.gmra.mxu0 %v443
    %v568 = vpop.f32.mrf.mxu0
    %v569 = vadd.f32 0.0, %v568
    %v570 = vpop.f32.mrf.mxu0
    %571 = vmatprep.mubr.f32.mxu0 0.0
    %572 = vmatmul.mubr.f32.gmra.mxu0 %v446
    %v573 = vpop.f32.mrf.mxu0
    %v574 = vadd.f32 0.0, %v573
    %v575 = vpop.f32.mrf.mxu0
    %576 = vmatprep.mubr.f32.mxu0 0.0
    %577 = vmatmul.mubr.f32.gmra.mxu0 %v449
    %v578 = vpop.f32.mrf.mxu0
    %v579 = vadd.f32 0.0, %v578
    %v580 = vpop.f32.mrf.mxu0
    %581 = vmatprep.mubr.f32.mxu0 0.0
    %582 = vmatmul.mubr.f32.gmra.mxu0 %v452
    %v583 = vpop.f32.mrf.mxu0
    %v584 = vadd.f32 0.0, %v583
    %v585 = vpop.f32.mrf.mxu0
    %586 = vmatprep.mubr.f32.mxu0 0.0
    %587 = vmatmul.mubr.f32.gmra.mxu0 %v455
    %v588 = vpop.f32.mrf.mxu0
    %v589 = vadd.f32 0.0, %v588
    %v590 = vpop.f32.mrf.mxu0
    %591 = vmatprep.mubr.f32.mxu0 0.0
    %592 = vmatmul.mubr.f32.gmra.mxu0 %v458
    %v593 = vpop.f32.mrf.mxu0
    %v594 = vadd.f32 0.0, %v593
    %v595 = vpop.f32.mrf.mxu0
    %596 = vmatprep.mubr.f32.mxu0 0.0
    %597 = vmatmul.mubr.f32.gmra.mxu0 %v461
    %v598 = vpop.f32.mrf.mxu0
    %v599 = vadd.f32 0.0, %v598
    %v600 = vpop.f32.mrf.mxu0
    %601 = vmatprep.mubr.f32.mxu0 0.0
    %602 = vmatmul.mubr.f32.gmra.mxu0 %v464
    %v603 = vpop.f32.mrf.mxu0
    %v604 = vadd.f32 0.0, %v603
    %v605 = vpop.f32.mrf.mxu0
    %606 = vmatprep.mubr.f32.mxu0 0.0
    %607 = vmatmul.mubr.f32.gmra.mxu0 %v467
    %v608 = vpop.f32.mrf.mxu0
    %v609 = vadd.f32 0.0, %v608
    %v610 = vpop.f32.mrf.mxu0
    %611 = vmatprep.mubr.f32.mxu0 0.0
    %612 = vmatmul.mubr.f32.gmra.mxu0 %v470
    %v613 = vpop.f32.mrf.mxu0
    %v614 = vadd.f32 0.0, %v613
    %v615 = vpop.f32.mrf.mxu0
    %616 = vdwg.mxu0
    %617 = vxpose.xlu0.b32.start [1/16] %v539, 128
    %618 = vxpose.xlu0.b32.cont [2/16] %v544, 128
    %619 = vxpose.xlu0.b32.cont [3/16] 0.0, 128
    %620 = vxpose.xlu0.b32.cont [4/16] 0.0, 128
    %621 = vxpose.xlu0.b32.cont [5/16] 0.0, 128
    %622 = vxpose.xlu0.b32.cont [6/16] 0.0, 128
    %623 = vxpose.xlu0.b32.cont [7/16] 0.0, 128
    %624 = vxpose.xlu0.b32.cont [8/16] 0.0, 128
    %625 = vxpose.xlu0.b32.cont [9/16] 0.0, 128
    %626 = vxpose.xlu0.b32.cont [10/16] 0.0, 128
    %627 = vxpose.xlu0.b32.cont [11/16] 0.0, 128
    %628 = vxpose.xlu0.b32.cont [12/16] 0.0, 128
    %629 = vxpose.xlu0.b32.cont [13/16] 0.0, 128
    %630 = vxpose.xlu0.b32.cont [14/16] 0.0, 128
    %631 = vxpose.xlu0.b32.cont [15/16] 0.0, 128
    %632 = vxpose.xlu0.b32.end [16/16] 0.0, 128
    %v633 = vpop.trf.xlu0
    %v634 = vpop.trf.xlu0
    %v635 = vpop.trf.xlu0
    %v636 = vpop.trf.xlu0
    %v637 = vpop.trf.xlu0
    %v638 = vpop.trf.xlu0
    %v639 = vpop.trf.xlu0
    %v640 = vpop.trf.xlu0
    %v641 = vpop.trf.xlu0
    %v642 = vpop.trf.xlu0
    %v643 = vpop.trf.xlu0
    %v644 = vpop.trf.xlu0
    %v645 = vpop.trf.xlu0
    %v646 = vpop.trf.xlu0
    %v647 = vpop.trf.xlu0
    %v648 = vpop.trf.xlu0
    %649 = vxpose.xlu0.b32.start [1/16] %v549, 128
    %650 = vxpose.xlu0.b32.cont [2/16] %v554, 128
    %651 = vxpose.xlu0.b32.cont [3/16] 0.0, 128
    %652 = vxpose.xlu0.b32.cont [4/16] 0.0, 128
    %653 = vxpose.xlu0.b32.cont [5/16] 0.0, 128
    %654 = vxpose.xlu0.b32.cont [6/16] 0.0, 128
    %655 = vxpose.xlu0.b32.cont [7/16] 0.0, 128
    %656 = vxpose.xlu0.b32.cont [8/16] 0.0, 128
    %657 = vxpose.xlu0.b32.cont [9/16] 0.0, 128
    %658 = vxpose.xlu0.b32.cont [10/16] 0.0, 128
    %659 = vxpose.xlu0.b32.cont [11/16] 0.0, 128
    %660 = vxpose.xlu0.b32.cont [12/16] 0.0, 128
    %661 = vxpose.xlu0.b32.cont [13/16] 0.0, 128
    %662 = vxpose.xlu0.b32.cont [14/16] 0.0, 128
    %663 = vxpose.xlu0.b32.cont [15/16] 0.0, 128
    %664 = vxpose.xlu0.b32.end [16/16] 0.0, 128
    %v665 = vpop.trf.xlu0
    %v666 = vpop.trf.xlu0
    %v667 = vpop.trf.xlu0
    %v668 = vpop.trf.xlu0
    %v669 = vpop.trf.xlu0
    %v670 = vpop.trf.xlu0
    %v671 = vpop.trf.xlu0
    %v672 = vpop.trf.xlu0
    %v673 = vpop.trf.xlu0
    %v674 = vpop.trf.xlu0
    %v675 = vpop.trf.xlu0
    %v676 = vpop.trf.xlu0
    %v677 = vpop.trf.xlu0
    %v678 = vpop.trf.xlu0
    %v679 = vpop.trf.xlu0
    %v680 = vpop.trf.xlu0
    %681 = vxpose.xlu0.b32.start [1/16] %v559, 128
    %682 = vxpose.xlu0.b32.cont [2/16] %v564, 128
    %683 = vxpose.xlu0.b32.cont [3/16] 0.0, 128
    %684 = vxpose.xlu0.b32.cont [4/16] 0.0, 128
    %685 = vxpose.xlu0.b32.cont [5/16] 0.0, 128
    %686 = vxpose.xlu0.b32.cont [6/16] 0.0, 128
    %687 = vxpose.xlu0.b32.cont [7/16] 0.0, 128
    %688 = vxpose.xlu0.b32.cont [8/16] 0.0, 128
    %689 = vxpose.xlu0.b32.cont [9/16] 0.0, 128
    %690 = vxpose.xlu0.b32.cont [10/16] 0.0, 128
    %691 = vxpose.xlu0.b32.cont [11/16] 0.0, 128
    %692 = vxpose.xlu0.b32.cont [12/16] 0.0, 128
    %693 = vxpose.xlu0.b32.cont [13/16] 0.0, 128
    %694 = vxpose.xlu0.b32.cont [14/16] 0.0, 128
    %695 = vxpose.xlu0.b32.cont [15/16] 0.0, 128
    %696 = vxpose.xlu0.b32.end [16/16] 0.0, 128
    %v697 = vpop.trf.xlu0
    %v698 = vpop.trf.xlu0
    %v699 = vpop.trf.xlu0
    %v700 = vpop.trf.xlu0
    %v701 = vpop.trf.xlu0
    %v702 = vpop.trf.xlu0
    %v703 = vpop.trf.xlu0
    %v704 = vpop.trf.xlu0
    %v705 = vpop.trf.xlu0
    %v706 = vpop.trf.xlu0
    %v707 = vpop.trf.xlu0
    %v708 = vpop.trf.xlu0
    %v709 = vpop.trf.xlu0
    %v710 = vpop.trf.xlu0
    %v711 = vpop.trf.xlu0
    %v712 = vpop.trf.xlu0
    %713 = vxpose.xlu0.b32.start [1/16] %v569, 128
    %714 = vxpose.xlu0.b32.cont [2/16] %v574, 128
    %715 = vxpose.xlu0.b32.cont [3/16] 0.0, 128
    %716 = vxpose.xlu0.b32.cont [4/16] 0.0, 128
    %717 = vxpose.xlu0.b32.cont [5/16] 0.0, 128
    %718 = vxpose.xlu0.b32.cont [6/16] 0.0, 128
    %719 = vxpose.xlu0.b32.cont [7/16] 0.0, 128
    %720 = vxpose.xlu0.b32.cont [8/16] 0.0, 128
    %721 = vxpose.xlu0.b32.cont [9/16] 0.0, 128
    %722 = vxpose.xlu0.b32.cont [10/16] 0.0, 128
    %723 = vxpose.xlu0.b32.cont [11/16] 0.0, 128
    %724 = vxpose.xlu0.b32.cont [12/16] 0.0, 128
    %725 = vxpose.xlu0.b32.cont [13/16] 0.0, 128
    %726 = vxpose.xlu0.b32.cont [14/16] 0.0, 128
    %727 = vxpose.xlu0.b32.cont [15/16] 0.0, 128
    %728 = vxpose.xlu0.b32.end [16/16] 0.0, 128
    %v729 = vpop.trf.xlu0
    %v730 = vpop.trf.xlu0
    %v731 = vpop.trf.xlu0
    %v732 = vpop.trf.xlu0
    %v733 = vpop.trf.xlu0
    %v734 = vpop.trf.xlu0
    %v735 = vpop.trf.xlu0
    %v736 = vpop.trf.xlu0
    %v737 = vpop.trf.xlu0
    %v738 = vpop.trf.xlu0
    %v739 = vpop.trf.xlu0
    %v740 = vpop.trf.xlu0
    %v741 = vpop.trf.xlu0
    %v742 = vpop.trf.xlu0
    %v743 = vpop.trf.xlu0
    %v744 = vpop.trf.xlu0
    %745 = vxpose.xlu0.b32.start [1/16] %v579, 128
    %746 = vxpose.xlu0.b32.cont [2/16] %v584, 128
    %747 = vxpose.xlu0.b32.cont [3/16] 0.0, 128
    %748 = vxpose.xlu0.b32.cont [4/16] 0.0, 128
    %749 = vxpose.xlu0.b32.cont [5/16] 0.0, 128
    %750 = vxpose.xlu0.b32.cont [6/16] 0.0, 128
    %751 = vxpose.xlu0.b32.cont [7/16] 0.0, 128
    %752 = vxpose.xlu0.b32.cont [8/16] 0.0, 128
    %753 = vxpose.xlu0.b32.cont [9/16] 0.0, 128
    %754 = vxpose.xlu0.b32.cont [10/16] 0.0, 128
    %755 = vxpose.xlu0.b32.cont [11/16] 0.0, 128
    %756 = vxpose.xlu0.b32.cont [12/16] 0.0, 128
    %757 = vxpose.xlu0.b32.cont [13/16] 0.0, 128
    %758 = vxpose.xlu0.b32.cont [14/16] 0.0, 128
    %759 = vxpose.xlu0.b32.cont [15/16] 0.0, 128
    %760 = vxpose.xlu0.b32.end [16/16] 0.0, 128
    %v761 = vpop.trf.xlu0
    %v762 = vpop.trf.xlu0
    %v763 = vpop.trf.xlu0
    %v764 = vpop.trf.xlu0
    %v765 = vpop.trf.xlu0
    %v766 = vpop.trf.xlu0
    %v767 = vpop.trf.xlu0
    %v768 = vpop.trf.xlu0
    %v769 = vpop.trf.xlu0
    %v770 = vpop.trf.xlu0
    %v771 = vpop.trf.xlu0
    %v772 = vpop.trf.xlu0
    %v773 = vpop.trf.xlu0
    %v774 = vpop.trf.xlu0
    %v775 = vpop.trf.xlu0
    %v776 = vpop.trf.xlu0
    %777 = vxpose.xlu0.b32.start [1/16] %v589, 128
    %778 = vxpose.xlu0.b32.cont [2/16] %v594, 128
    %779 = vxpose.xlu0.b32.cont [3/16] 0.0, 128
    %780 = vxpose.xlu0.b32.cont [4/16] 0.0, 128
    %781 = vxpose.xlu0.b32.cont [5/16] 0.0, 128
    %782 = vxpose.xlu0.b32.cont [6/16] 0.0, 128
    %783 = vxpose.xlu0.b32.cont [7/16] 0.0, 128
    %784 = vxpose.xlu0.b32.cont [8/16] 0.0, 128
    %785 = vxpose.xlu0.b32.cont [9/16] 0.0, 128
    %786 = vxpose.xlu0.b32.cont [10/16] 0.0, 128
    %787 = vxpose.xlu0.b32.cont [11/16] 0.0, 128
    %788 = vxpose.xlu0.b32.cont [12/16] 0.0, 128
    %789 = vxpose.xlu0.b32.cont [13/16] 0.0, 128
    %790 = vxpose.xlu0.b32.cont [14/16] 0.0, 128
    %791 = vxpose.xlu0.b32.cont [15/16] 0.0, 128
    %792 = vxpose.xlu0.b32.end [16/16] 0.0, 128
    %v793 = vpop.trf.xlu0
    %v794 = vpop.trf.xlu0
    %v795 = vpop.trf.xlu0
    %v796 = vpop.trf.xlu0
    %v797 = vpop.trf.xlu0
    %v798 = vpop.trf.xlu0
    %v799 = vpop.trf.xlu0
    %v800 = vpop.trf.xlu0
    %v801 = vpop.trf.xlu0
    %v802 = vpop.trf.xlu0
    %v803 = vpop.trf.xlu0
    %v804 = vpop.trf.xlu0
    %v805 = vpop.trf.xlu0
    %v806 = vpop.trf.xlu0
    %v807 = vpop.trf.xlu0
    %v808 = vpop.trf.xlu0
    %809 = vxpose.xlu0.b32.start [1/16] %v599, 128
    %810 = vxpose.xlu0.b32.cont [2/16] %v604, 128
    %811 = vxpose.xlu0.b32.cont [3/16] 0.0, 128
    %812 = vxpose.xlu0.b32.cont [4/16] 0.0, 128
    %813 = vxpose.xlu0.b32.cont [5/16] 0.0, 128
    %814 = vxpose.xlu0.b32.cont [6/16] 0.0, 128
    %815 = vxpose.xlu0.b32.cont [7/16] 0.0, 128
    %816 = vxpose.xlu0.b32.cont [8/16] 0.0, 128
    %817 = vxpose.xlu0.b32.cont [9/16] 0.0, 128
    %818 = vxpose.xlu0.b32.cont [10/16] 0.0, 128
    %819 = vxpose.xlu0.b32.cont [11/16] 0.0, 128
    %820 = vxpose.xlu0.b32.cont [12/16] 0.0, 128
    %821 = vxpose.xlu0.b32.cont [13/16] 0.0, 128
    %822 = vxpose.xlu0.b32.cont [14/16] 0.0, 128
    %823 = vxpose.xlu0.b32.cont [15/16] 0.0, 128
    %824 = vxpose.xlu0.b32.end [16/16] 0.0, 128
    %v825 = vpop.trf.xlu0
    %v826 = vpop.trf.xlu0
    %v827 = vpop.trf.xlu0
    %v828 = vpop.trf.xlu0
    %v829 = vpop.trf.xlu0
    %v830 = vpop.trf.xlu0
    %v831 = vpop.trf.xlu0
    %v832 = vpop.trf.xlu0
    %v833 = vpop.trf.xlu0
    %v834 = vpop.trf.xlu0
    %v835 = vpop.trf.xlu0
    %v836 = vpop.trf.xlu0
    %v837 = vpop.trf.xlu0
    %v838 = vpop.trf.xlu0
    %v839 = vpop.trf.xlu0
    %v840 = vpop.trf.xlu0
    %841 = vxpose.xlu0.b32.start [1/16] %v609, 128
    %842 = vxpose.xlu0.b32.cont [2/16] %v614, 128
    %843 = vxpose.xlu0.b32.cont [3/16] 0.0, 128
    %844 = vxpose.xlu0.b32.cont [4/16] 0.0, 128
    %845 = vxpose.xlu0.b32.cont [5/16] 0.0, 128
    %846 = vxpose.xlu0.b32.cont [6/16] 0.0, 128
    %847 = vxpose.xlu0.b32.cont [7/16] 0.0, 128
    %848 = vxpose.xlu0.b32.cont [8/16] 0.0, 128
    %849 = vxpose.xlu0.b32.cont [9/16] 0.0, 128
    %850 = vxpose.xlu0.b32.cont [10/16] 0.0, 128
    %851 = vxpose.xlu0.b32.cont [11/16] 0.0, 128
    %852 = vxpose.xlu0.b32.cont [12/16] 0.0, 128
    %853 = vxpose.xlu0.b32.cont [13/16] 0.0, 128
    %854 = vxpose.xlu0.b32.cont [14/16] 0.0, 128
    %855 = vxpose.xlu0.b32.cont [15/16] 0.0, 128
    %856 = vxpose.xlu0.b32.end [16/16] 0.0, 128
    %v857 = vpop.trf.xlu0
    %v858 = vpop.trf.xlu0
    %v859 = vpop.trf.xlu0
    %v860 = vpop.trf.xlu0
    %v861 = vpop.trf.xlu0
    %v862 = vpop.trf.xlu0
    %v863 = vpop.trf.xlu0
    %v864 = vpop.trf.xlu0
    %v865 = vpop.trf.xlu0
    %v866 = vpop.trf.xlu0
    %v867 = vpop.trf.xlu0
    %v868 = vpop.trf.xlu0
    %v869 = vpop.trf.xlu0
    %v870 = vpop.trf.xlu0
    %v871 = vpop.trf.xlu0
    %v872 = vpop.trf.xlu0
    %vm873 = vcmask 130048
    %874 = vst.msk [vmem:[%s3] sm:$0xff] %vm873, %v633
    %875 = vst.msk [vmem:[%s3 + $0x8] sm:$0xff] %vm873, %v634
    %876 = vst.msk [vmem:[%s3 + $0x10] sm:$0xff] %vm873, %v665
    %877 = vst.msk [vmem:[%s3 + $0x18] sm:$0xff] %vm873, %v666
    %878 = vst.msk [vmem:[%s3 + $0x20] sm:$0xff] %vm873, %v697
    %879 = vst.msk [vmem:[%s3 + $0x28] sm:$0xff] %vm873, %v698
    %880 = vst.msk [vmem:[%s3 + $0x30] sm:$0xff] %vm873, %v729
    %881 = vst.msk [vmem:[%s3 + $0x38] sm:$0xff] %vm873, %v730
    %882 = vst.msk [vmem:[%s3 + $0x40] sm:$0xff] %vm873, %v761
    %883 = vst.msk [vmem:[%s3 + $0x48] sm:$0xff] %vm873, %v762
    %884 = vst.msk [vmem:[%s3 + $0x50] sm:$0xff] %vm873, %v793
    %885 = vst.msk [vmem:[%s3 + $0x58] sm:$0xff] %vm873, %v794
    %886 = vst.msk [vmem:[%s3 + $0x60] sm:$0xff] %vm873, %v825
    %887 = vst.msk [vmem:[%s3 + $0x68] sm:$0xff] %vm873, %v826
    %888 = vst.msk [vmem:[%s3 + $0x70] sm:$0xff] %vm873, %v857
    %889 = vst.msk [vmem:[%s3 + $0x78] sm:$0xff] %vm873, %v858
    // Predicated region
    $region18: #{up_forward.2} parent=1 // pred_check
      _
    $region19: #{up_forward.2} parent=1 // pred_check_branch
      %891 = sbr.rel (0) target = $region21
    $region20: #{up_forward.2} parent=1 // pred_region
      _
    $region21: #{up_forward.2} parent=1 // pred_fallthru
      _
    // Predicated region
    $region22: #{up_forward.2} parent=1 // pred_check
      _
    $region23: #{up_forward.2} parent=1 // pred_check_branch
      %893 = sbr.rel (0) target = $region25
    $region24: #{up_forward.2} parent=1 // pred_region
      _
    $region25: #{up_forward.2} parent=1 // pred_fallthru
      _
    %894 = vsyncpa [#allocation3], 1

// kernel: up_forward.3
$region0: #{up_forward.3}
  #allocation0 [shape = 'u32[]', space=smem, size = 0x4, offset = 0x4, fixed_abs, tag = 'smem constant byte address 0x4 - core index']
  #allocation1 [shape = 'u32[144,128]{1,0:T(1,128)}', space=vmem, size = 0x12000, scoped, tag = 'internal scratch']
  #allocation2 [shape = 'f32[18,18,4]{2,1,0:T(8,128)}', space=vmem, size = 0x36000, scoped, tag = 'scratch operand']
  #allocation3 [shape = 'f32[18,18,4]{2,1,0:T(8,128)}', space=vmem, size = 0x36000, scoped, tag = 'scratch operand']
  #allocation4 [shape = 'f32[18,18,4]{2,1,0:T(8,128)}', space=vmem, size = 0x36000, scoped, tag = 'scratch operand']
  %s0 = inlined_call_operand.vmem [shape: f32[2,4,256], index: 0, kind: input, shape index: {}]
  %s1 = inlined_call_operand.vmem [shape: f32[2,4,256], index: 1, kind: input, shape index: {}]
  %s2 = inlined_call_operand.vmem [shape: f32[36,4], index: 2, kind: input, shape index: {}]
  %s3 = inlined_call_operand.vmem [shape: f32[36,4], index: 3, kind: input, shape index: {}]
  %s4 = inlined_call_operand.vmem [shape: f32[36,4], index: 4, kind: input, shape index: {}]
  %s5 = inlined_call_operand.vmem [shape: f32[1,4], index: 5, kind: input, shape index: {}]
  %s6 = inlined_call_operand.vmem [shape: f32[1,4], index: 6, kind: input, shape index: {}]
  %s7 = inlined_call_operand.vmem [shape: f32[1,4], index: 7, kind: input, shape index: {}]
  %s8 = inlined_call_operand.vmem [shape: f32[1,4], index: 8, kind: input, shape index: {}]
  %s9 = inlined_call_operand.vmem [shape: f32[2,4,256], index: 9, kind: output, shape index: {}]
  %s10 = sld [smem:[#allocation0]]
  $region69: #{up_forward.3} parent=0
    _
  %s12 = ssub.s32 1, %s10
  %s13 = scalar_select 0, %s12, %s10
  loop: start=0, step=1, limit=4
  $region2: #{up_forward.3} parent=0 // loop_pre_header
    _
  $region3: #{up_forward.3} parent=0 // loop_header
    %s15 = sphi 0, %s19
    %p16 = scmp.ge.s32.totalorder %s15, 4
    %s25 = sphi 0, %s27
    %s28 = sphi 0, %s25
    %s29 = sphi 0, %s28
    %s45 = sphi 0, %s29
    %s51 = sphi 0, %s53
    %s54 = sphi 0, %s51
    %s55 = sphi 0, %s54
    %s71 = sphi 0, %s55
    %s75 = sphi 0, %s75
    %s77 = sphi 0, %s75
    %s78 = sphi 0, %s77
    %s92 = sphi 0, %s78
    %s96 = sphi 0, %s96
    %s98 = sphi 0, %s96
    %s99 = sphi 0, %s98
    %s113 = sphi 0, %s99
    %s117 = sphi 0, %s117
    %s119 = sphi 0, %s117
    %s120 = sphi 0, %s119
    %s134 = sphi 0, %s120
    %s138 = sphi 0, %s138
    %s140 = sphi 0, %s138
    %s141 = sphi 0, %s140
    %s155 = sphi 0, %s141
    %s159 = sphi 0, %s159
    %s161 = sphi 0, %s159
    %s162 = sphi 0, %s161
    %s176 = sphi 0, %s162
    %s180 = sphi 0, %s180
    %s182 = sphi 0, %s180
    %s183 = sphi 0, %s182
    %s197 = sphi 0, %s183
    %s201 = sphi 0, %s201
    %s203 = sphi 0, %s201
    %s204 = sphi 0, %s203
    %s218 = sphi 0, %s204
    %s224 = sphi 0, %s226
    %s227 = sphi 0, %s224
    %s228 = sphi 0, %s227
    %s244 = sphi 0, %s228
  $region4: #{up_forward.3} parent=0 // loop_header_branch
    %18 = sbr.rel (%p16) target = $region8
  $region5: #{up_forward.3} parent=0 // loop_body
    %s20 = ssub.s32 %s15, 1
    %s21 = ssub.s32 %s15, 2
    %s22 = sadd.s32 %s15, 1
    %s23 = ssub.s32 %s15, %s22
    %p24 = scmp.eq.s32.totalorder %s23, 0
    %s26 = sadd.s32 %s25, 1
    %s27 = scalar_select %p24, %s25, %s26
    %p30 = pneg %p24
    %p31 = scmp.eq.s32.totalorder %s15, 1
    %p32 = por %p30, %p31
    %p33 = scmp.ne.s32.totalorder %s25, %s28
    %p34 = scmp.eq.s32.totalorder %s15, 0
    %p35 = por %p33, %p34
    %p36 = scmp.ne.s32.totalorder %s25, %s28
    %p37 = scmp.eq.s32.totalorder %s20, 1
    %p38 = por %p36, %p37
    %p39 = scmp.ne.s32.totalorder %s28, %s29
    %p40 = scmp.eq.s32.totalorder %s20, 0
    %p41 = por %p39, %p40
    %p42 = scmp.ne.s32.totalorder %s28, %s29
    %p43 = scmp.eq.s32.totalorder %s21, 1
    %p44 = por %p42, %p43
    %p46 = scmp.ne.s32.totalorder %s29, %s45
    %p47 = scmp.eq.s32.totalorder %s21, 0
    %p48 = por %p46, %p47
    %s49 = ssub.s32 %s15, %s22
    %p50 = scmp.eq.s32.totalorder %s49, 0
    %s52 = sadd.s32 %s51, 1
    %s53 = scalar_select %p50, %s51, %s52
    %p56 = pneg %p50
    %p57 = scmp.eq.s32.totalorder %s15, 1
    %p58 = por %p56, %p57
    %p59 = scmp.ne.s32.totalorder %s51, %s54
    %p60 = scmp.eq.s32.totalorder %s15, 0
    %p61 = por %p59, %p60
    %p62 = scmp.ne.s32.totalorder %s51, %s54
    %p63 = scmp.eq.s32.totalorder %s20, 1
    %p64 = por %p62, %p63
    %p65 = scmp.ne.s32.totalorder %s54, %s55
    %p66 = scmp.eq.s32.totalorder %s20, 0
    %p67 = por %p65, %p66
    %p68 = scmp.ne.s32.totalorder %s54, %s55
    %p69 = scmp.eq.s32.totalorder %s21, 1
    %p70 = por %p68, %p69
    %p72 = scmp.ne.s32.totalorder %s55, %s71
    %p73 = scmp.eq.s32.totalorder %s21, 0
    %p74 = por %p72, %p73
    %s76 = sadd.s32 %s75, 1
    %p79 = scmp.eq.s32.totalorder %s15, 1
    %p80 = scmp.ne.s32.totalorder %s75, %s77
    %p81 = scmp.eq.s32.totalorder %s15, 0
    %p82 = por %p80, %p81
    %p83 = scmp.ne.s32.totalorder %s75, %s77
    %p84 = scmp.eq.s32.totalorder %s20, 1
    %p85 = por %p83, %p84
    %p86 = scmp.ne.s32.totalorder %s77, %s78
    %p87 = scmp.eq.s32.totalorder %s20, 0
    %p88 = por %p86, %p87
    %p89 = scmp.ne.s32.totalorder %s77, %s78
    %p90 = scmp.eq.s32.totalorder %s21, 1
    %p91 = por %p89, %p90
    %p93 = scmp.ne.s32.totalorder %s78, %s92
    %p94 = scmp.eq.s32.totalorder %s21, 0
    %p95 = por %p93, %p94
    %s97 = sadd.s32 %s96, 1
    %p100 = scmp.eq.s32.totalorder %s15, 1
    %p101 = scmp.ne.s32.totalorder %s96, %s98
    %p102 = scmp.eq.s32.totalorder %s15, 0
    %p103 = por %p101, %p102
    %p104 = scmp.ne.s32.totalorder %s96, %s98
    %p105 = scmp.eq.s32.totalorder %s20, 1
    %p106 = por %p104, %p105
    %p107 = scmp.ne.s32.totalorder %s98, %s99
    %p108 = scmp.eq.s32.totalorder %s20, 0
    %p109 = por %p107, %p108
    %p110 = scmp.ne.s32.totalorder %s98, %s99
    %p111 = scmp.eq.s32.totalorder %s21, 1
    %p112 = por %p110, %p111
    %p114 = scmp.ne.s32.totalorder %s99, %s113
    %p115 = scmp.eq.s32.totalorder %s21, 0
    %p116 = por %p114, %p115
    %s118 = sadd.s32 %s117, 1
    %p121 = scmp.eq.s32.totalorder %s15, 1
    %p122 = scmp.ne.s32.totalorder %s117, %s119
    %p123 = scmp.eq.s32.totalorder %s15, 0
    %p124 = por %p122, %p123
    %p125 = scmp.ne.s32.totalorder %s117, %s119
    %p126 = scmp.eq.s32.totalorder %s20, 1
    %p127 = por %p125, %p126
    %p128 = scmp.ne.s32.totalorder %s119, %s120
    %p129 = scmp.eq.s32.totalorder %s20, 0
    %p130 = por %p128, %p129
    %p131 = scmp.ne.s32.totalorder %s119, %s120
    %p132 = scmp.eq.s32.totalorder %s21, 1
    %p133 = por %p131, %p132
    %p135 = scmp.ne.s32.totalorder %s120, %s134
    %p136 = scmp.eq.s32.totalorder %s21, 0
    %p137 = por %p135, %p136
    %s139 = sadd.s32 %s138, 1
    %p142 = scmp.eq.s32.totalorder %s15, 1
    %p143 = scmp.ne.s32.totalorder %s138, %s140
    %p144 = scmp.eq.s32.totalorder %s15, 0
    %p145 = por %p143, %p144
    %p146 = scmp.ne.s32.totalorder %s138, %s140
    %p147 = scmp.eq.s32.totalorder %s20, 1
    %p148 = por %p146, %p147
    %p149 = scmp.ne.s32.totalorder %s140, %s141
    %p150 = scmp.eq.s32.totalorder %s20, 0
    %p151 = por %p149, %p150
    %p152 = scmp.ne.s32.totalorder %s140, %s141
    %p153 = scmp.eq.s32.totalorder %s21, 1
    %p154 = por %p152, %p153
    %p156 = scmp.ne.s32.totalorder %s141, %s155
    %p157 = scmp.eq.s32.totalorder %s21, 0
    %p158 = por %p156, %p157
    %s160 = sadd.s32 %s159, 1
    %p163 = scmp.eq.s32.totalorder %s15, 1
    %p164 = scmp.ne.s32.totalorder %s159, %s161
    %p165 = scmp.eq.s32.totalorder %s15, 0
    %p166 = por %p164, %p165
    %p167 = scmp.ne.s32.totalorder %s159, %s161
    %p168 = scmp.eq.s32.totalorder %s20, 1
    %p169 = por %p167, %p168
    %p170 = scmp.ne.s32.totalorder %s161, %s162
    %p171 = scmp.eq.s32.totalorder %s20, 0
    %p172 = por %p170, %p171
    %p173 = scmp.ne.s32.totalorder %s161, %s162
    %p174 = scmp.eq.s32.totalorder %s21, 1
    %p175 = por %p173, %p174
    %p177 = scmp.ne.s32.totalorder %s162, %s176
    %p178 = scmp.eq.s32.totalorder %s21, 0
    %p179 = por %p177, %p178
    %s181 = sadd.s32 %s180, 1
    %p184 = scmp.eq.s32.totalorder %s15, 1
    %p185 = scmp.ne.s32.totalorder %s180, %s182
    %p186 = scmp.eq.s32.totalorder %s15, 0
    %p187 = por %p185, %p186
    %p188 = scmp.ne.s32.totalorder %s180, %s182
    %p189 = scmp.eq.s32.totalorder %s20, 1
    %p190 = por %p188, %p189
    %p191 = scmp.ne.s32.totalorder %s182, %s183
    %p192 = scmp.eq.s32.totalorder %s20, 0
    %p193 = por %p191, %p192
    %p194 = scmp.ne.s32.totalorder %s182, %s183
    %p195 = scmp.eq.s32.totalorder %s21, 1
    %p196 = por %p194, %p195
    %p198 = scmp.ne.s32.totalorder %s183, %s197
    %p199 = scmp.eq.s32.totalorder %s21, 0
    %p200 = por %p198, %p199
    %s202 = sadd.s32 %s201, 1
    %p205 = scmp.eq.s32.totalorder %s15, 1
    %p206 = scmp.ne.s32.totalorder %s201, %s203
    %p207 = scmp.eq.s32.totalorder %s15, 0
    %p208 = por %p206, %p207
    %p209 = scmp.ne.s32.totalorder %s201, %s203
    %p210 = scmp.eq.s32.totalorder %s20, 1
    %p211 = por %p209, %p210
    %p212 = scmp.ne.s32.totalorder %s203, %s204
    %p213 = scmp.eq.s32.totalorder %s20, 0
    %p214 = por %p212, %p213
    %p215 = scmp.ne.s32.totalorder %s203, %s204
    %p216 = scmp.eq.s32.totalorder %s21, 1
    %p217 = por %p215, %p216
    %p219 = scmp.ne.s32.totalorder %s204, %s218
    %p220 = scmp.eq.s32.totalorder %s21, 0
    %p221 = por %p219, %p220
    %s222 = ssub.s32 %s15, %s22
    %p223 = scmp.eq.s32.totalorder %s222, 0
    %s225 = sadd.s32 %s224, 1
    %s226 = scalar_select %p223, %s224, %s225
    %p229 = pneg %p223
    %p230 = scmp.eq.s32.totalorder %s15, 1
    %p231 = por %p229, %p230
    %p232 = scmp.ne.s32.totalorder %s224, %s227
    %p233 = scmp.eq.s32.totalorder %s15, 0
    %p234 = por %p232, %p233
    %p235 = scmp.ne.s32.totalorder %s224, %s227
    %p236 = scmp.eq.s32.totalorder %s20, 1
    %p237 = por %p235, %p236
    %p238 = scmp.ne.s32.totalorder %s227, %s228
    %p239 = scmp.eq.s32.totalorder %s20, 0
    %p240 = por %p238, %p239
    %p241 = scmp.ne.s32.totalorder %s227, %s228
    %p242 = scmp.eq.s32.totalorder %s21, 1
    %p243 = por %p241, %p242
    %p245 = scmp.ne.s32.totalorder %s228, %s244
    %p246 = scmp.eq.s32.totalorder %s21, 0
    %p247 = por %p245, %p246
    %p248 = scmp.le.s32.totalorder 1, %s15
    %p249 = scmp.lt.s32.totalorder %s15, 3
    %p250 = pnand %p248, %p249
    %p251 = pneg %p250
    // Predicated region
    $region9: #{up_forward.3} parent=5 // pred_check
      _
    $region10: #{up_forward.3} parent=5 // pred_check_branch
      %253 = sbr.rel (%p250) target = $region12
    $region11: #{up_forward.3} parent=5 // pred_region
      %s254 = ssub.s32 %s15, 1
      // Predicated region
      $region13: #{up_forward.3} parent=11 // pred_check
        %p255 = pneg %p88
      $region14: #{up_forward.3} parent=11 // pred_check_branch
        %257 = sbr.rel (%p255) target = $region16
      $region15: #{up_forward.3} parent=11 // pred_region
        _
      $region16: #{up_forward.3} parent=11 // pred_fallthru
        _
      // Predicated region
      $region17: #{up_forward.3} parent=11 // pred_check
        %p258 = pneg %p109
      $region18: #{up_forward.3} parent=11 // pred_check_branch
        %260 = sbr.rel (%p258) target = $region20
      $region19: #{up_forward.3} parent=11 // pred_region
        _
      $region20: #{up_forward.3} parent=11 // pred_fallthru
        _
      // Predicated region
      $region21: #{up_forward.3} parent=11 // pred_check
        %p261 = pneg %p130
      $region22: #{up_forward.3} parent=11 // pred_check_branch
        %263 = sbr.rel (%p261) target = $region24
      $region23: #{up_forward.3} parent=11 // pred_region
        _
      $region24: #{up_forward.3} parent=11 // pred_fallthru
        _
      // Predicated region
      $region25: #{up_forward.3} parent=11 // pred_check
        %p264 = pneg %p151
      $region26: #{up_forward.3} parent=11 // pred_check_branch
        %266 = sbr.rel (%p264) target = $region28
      $region27: #{up_forward.3} parent=11 // pred_region
        _
      $region28: #{up_forward.3} parent=11 // pred_fallthru
        _
      // Predicated region
      $region29: #{up_forward.3} parent=11 // pred_check
        %p267 = pneg %p172
      $region30: #{up_forward.3} parent=11 // pred_check_branch
        %269 = sbr.rel (%p267) target = $region32
      $region31: #{up_forward.3} parent=11 // pred_region
        _
      $region32: #{up_forward.3} parent=11 // pred_fallthru
        _
      // Predicated region
      $region33: #{up_forward.3} parent=11 // pred_check
        %p270 = pneg %p193
      $region34: #{up_forward.3} parent=11 // pred_check_branch
        %272 = sbr.rel (%p270) target = $region36
      $region35: #{up_forward.3} parent=11 // pred_region
        _
      $region36: #{up_forward.3} parent=11 // pred_fallthru
        _
      // Predicated region
      $region37: #{up_forward.3} parent=11 // pred_check
        %p273 = pneg %p214
      $region38: #{up_forward.3} parent=11 // pred_check_branch
        %275 = sbr.rel (%p273) target = $region40
      $region39: #{up_forward.3} parent=11 // pred_region
        _
      $region40: #{up_forward.3} parent=11 // pred_fallthru
        _
    $region12: #{up_forward.3} parent=5 // pred_fallthru
      _
    %p276 = scmp.lt.s32.totalorder %s15, 2
    // Predicated region
    $region41: #{up_forward.3} parent=5 // pred_check
      %p277 = pneg %p276
    $region42: #{up_forward.3} parent=5 // pred_check_branch
      %279 = sbr.rel (%p277) target = $region44
    $region43: #{up_forward.3} parent=5 // pred_region
      // Predicated region
      $region45: #{up_forward.3} parent=43 // pred_check
        %p280 = pneg %p35
      $region46: #{up_forward.3} parent=43 // pred_check_branch
        %282 = sbr.rel (%p280) target = $region48
      $region47: #{up_forward.3} parent=43 // pred_region
        %p283 = scmp.lt.s32.totalorder %s15, 1
        %s284 = scalar_select %p283, %s15, 1
        %s285 = smul.addr %s284, 2
        %s286 = smul.addr %s285, 4
        %s287 = scalar_lea.vmem %s0, %s286
      $region48: #{up_forward.3} parent=43 // pred_fallthru
        _
      // Predicated region
      $region49: #{up_forward.3} parent=43 // pred_check
        %p288 = pneg %p61
      $region50: #{up_forward.3} parent=43 // pred_check_branch
        %290 = sbr.rel (%p288) target = $region52
      $region51: #{up_forward.3} parent=43 // pred_region
        %p291 = scmp.lt.s32.totalorder %s15, 1
        %s292 = scalar_select %p291, %s15, 1
        %s293 = smul.addr %s292, 2
        %s294 = smul.addr %s293, 4
        %s295 = scalar_lea.vmem %s1, %s294
      $region52: #{up_forward.3} parent=43 // pred_fallthru
        _
    $region44: #{up_forward.3} parent=5 // pred_fallthru
      _
    %p296 = scmp.le.s32.totalorder 1, %s15
    %p297 = scmp.lt.s32.totalorder %s15, 3
    %p298 = pnand %p296, %p297
    %p299 = pneg %p298
    // Predicated region
    $region53: #{up_forward.3} parent=5 // pred_check
      _
    $region54: #{up_forward.3} parent=5 // pred_check_branch
      %301 = sbr.rel (%p298) target = $region56
    $region55: #{up_forward.3} parent=5 // pred_region
      %s302 = ssub.s32 %s15, 1
      %p303 = scmp.lt.s32.totalorder %s20, 1
      %s304 = scalar_select %p303, %s20, 1
      %s305 = smul.addr %s304, 2
      %s306 = smul.addr %s305, 4
      %s307 = scalar_lea.vmem %s0, %s306
      %p308 = pneg %p41
      %p309 = pneg %p38
      %p310 = scmp.lt.s32.totalorder %s20, 1
      %s311 = scalar_select %p310, %s20, 1
      %s312 = smul.addr %s311, 2
      %s313 = smul.addr %s312, 4
      %s314 = scalar_lea.vmem %s1, %s313
      %p315 = pneg %p67
      %p316 = pneg %p64
      %p317 = pneg %p88
      %p318 = pneg %p85
      %p319 = pneg %p109
      %p320 = pneg %p106
      %p321 = pneg %p130
      %p322 = pneg %p127
      %p323 = pneg %p151
      %p324 = pneg %p148
      %p325 = pneg %p172
      %p326 = pneg %p169
      %p327 = pneg %p193
      %p328 = pneg %p190
      %p329 = pneg %p214
      %p330 = pneg %p211
      %p331 = pneg %p240
      %p332 = pneg %p237
      %p333 = scmp.lt.s32.totalorder %s20, 1
      %s334 = scalar_select %p333, %s20, 1
      %s335 = smul.addr %s334, 2
      %s336 = smul.addr %s335, 4
      %s337 = scalar_lea.vmem %s9, %s336
      %p338 = scmp.lt.s32.totalorder %s20, 1
      %s339 = scalar_select %p338, %s20, 1
      %s340 = smul.addr %s339, 2
      %s341 = smul.addr %s340, 4
      %s342 = scalar_lea.vmem %s0, %s341
      %p343 = scmp.lt.s32.totalorder %s20, 1
      %s344 = scalar_select %p343, %s20, 1
      %s345 = smul.addr %s344, 2
      %s346 = smul.addr %s345, 4
      %s347 = scalar_lea.vmem %s1, %s346
      %p348 = scmp.lt.s32.totalorder %s20, 1
      %s349 = scalar_select %p348, %s20, 1
      %s350 = smul.addr %s349, 2
      %s351 = smul.addr %s350, 4
      %s352 = scalar_lea.vmem %s9, %s351
      %v353 = vld [vmem:[%s342] sm:$0xff]
      %v355 = vcombine.high %v353, %v353
      %357 = vxpose.xlu0.b32.start [1/16] %v353, 128
      %358 = vxpose.xlu0.b32.cont [2/16] 0.0, 128
      %359 = vxpose.xlu0.b32.cont [3/16] 0.0, 128
      %360 = vxpose.xlu0.b32.cont [4/16] 0.0, 128
      %361 = vxpose.xlu0.b32.cont [5/16] 0.0, 128
      %362 = vxpose.xlu0.b32.cont [6/16] 0.0, 128
      %363 = vxpose.xlu0.b32.cont [7/16] 0.0, 128
      %364 = vxpose.xlu0.b32.cont [8/16] 0.0, 128
      %365 = vxpose.xlu0.b32.cont [9/16] 0.0, 128
      %366 = vxpose.xlu0.b32.cont [10/16] 0.0, 128
      %367 = vxpose.xlu0.b32.cont [11/16] 0.0, 128
      %368 = vxpose.xlu0.b32.cont [12/16] 0.0, 128
      %369 = vxpose.xlu0.b32.cont [13/16] 0.0, 128
      %370 = vxpose.xlu0.b32.cont [14/16] 0.0, 128
      %371 = vxpose.xlu0.b32.cont [15/16] 0.0, 128
      %372 = vxpose.xlu0.b32.end [16/16] 0.0, 128
      %v373 = vpop.trf.xlu0
      %v374 = vpop.trf.xlu0
      %v375 = vpop.trf.xlu0
      %v376 = vpop.trf.xlu0
      %v377 = vpop.trf.xlu0
      %v378 = vpop.trf.xlu0
      %v379 = vpop.trf.xlu0
      %v380 = vpop.trf.xlu0
      %v381 = vpop.trf.xlu0
      %v382 = vpop.trf.xlu0
      %v383 = vpop.trf.xlu0
      %v384 = vpop.trf.xlu0
      %v385 = vpop.trf.xlu0
      %v386 = vpop.trf.xlu0
      %v387 = vpop.trf.xlu0
      %v388 = vpop.trf.xlu0
      %389 = vxpose.xlu0.b32.start [1/16] %v355, 128
      %390 = vxpose.xlu0.b32.cont [2/16] 0.0, 128
      %391 = vxpose.xlu0.b32.cont [3/16] 0.0, 128
      %392 = vxpose.xlu0.b32.cont [4/16] 0.0, 128
      %393 = vxpose.xlu0.b32.cont [5/16] 0.0, 128
      %394 = vxpose.xlu0.b32.cont [6/16] 0.0, 128
      %395 = vxpose.xlu0.b32.cont [7/16] 0.0, 128
      %396 = vxpose.xlu0.b32.cont [8/16] 0.0, 128
      %397 = vxpose.xlu0.b32.cont [9/16] 0.0, 128
      %398 = vxpose.xlu0.b32.cont [10/16] 0.0, 128
      %399 = vxpose.xlu0.b32.cont [11/16] 0.0, 128
      %400 = vxpose.xlu0.b32.cont [12/16] 0.0, 128
      %401 = vxpose.xlu0.b32.cont [13/16] 0.0, 128
      %402 = vxpose.xlu0.b32.cont [14/16] 0.0, 128
      %403 = vxpose.xlu0.b32.cont [15/16] 0.0, 128
      %404 = vxpose.xlu0.b32.end [16/16] 0.0, 128
      %v405 = vpop.trf.xlu0
      %v406 = vpop.trf.xlu0
      %v407 = vpop.trf.xlu0
      %v408 = vpop.trf.xlu0
      %v409 = vpop.trf.xlu0
      %v410 = vpop.trf.xlu0
      %v411 = vpop.trf.xlu0
      %v412 = vpop.trf.xlu0
      %v413 = vpop.trf.xlu0
      %v414 = vpop.trf.xlu0
      %v415 = vpop.trf.xlu0
      %v416 = vpop.trf.xlu0
      %v417 = vpop.trf.xlu0
      %v418 = vpop.trf.xlu0
      %v419 = vpop.trf.xlu0
      %v420 = vpop.trf.xlu0
      %vm421 = vcmask 31744
      %422 = vst.msk [vmem:[#allocation2] sm:$0xff] %vm421, 0.0
      %423 = vst.msk [vmem:[#allocation2 + $0x8] sm:$0xff] %vm421, 0.0
      %vm424 = vcmask 25600
      %425 = vst.msk [vmem:[#allocation2 + $0x10] sm:$0x3] %vm424, 0.0
      %426 = vst.msk [vmem:[#allocation2 + $0x18] sm:$0xff] %vm421, 0.0
      %427 = vst.msk [vmem:[#allocation2 + $0x20] sm:$0xff] %vm421, 0.0
      %428 = vst.msk [vmem:[#allocation2 + $0x28] sm:$0x3] %vm424, 0.0
      %429 = vst.msk [vmem:[#allocation2 + $0x30] sm:$0xff] %vm421, 0.0
      %430 = vst.msk [vmem:[#allocation2 + $0x38] sm:$0xff] %vm421, 0.0
      %431 = vst.msk [vmem:[#allocation2 + $0x40] sm:$0x3] %vm424, 0.0
      %432 = vst.msk [vmem:[#allocation2 + $0x48] sm:$0xff] %vm421, 0.0
      %433 = vst.msk [vmem:[#allocation2 + $0x50] sm:$0xff] %vm421, 0.0
      %434 = vst.msk [vmem:[#allocation2 + $0x58] sm:$0x3] %vm424, 0.0
      %435 = vst.msk [vmem:[#allocation2 + $0x60] sm:$0xff] %vm421, 0.0
      %436 = vst.msk [vmem:[#allocation2 + $0x68] sm:$0xff] %vm421, 0.0
      %437 = vst.msk [vmem:[#allocation2 + $0x70] sm:$0x3] %vm424, 0.0
      %438 = vst.msk [vmem:[#allocation2 + $0x78] sm:$0xff] %vm421, 0.0
      %439 = vst.msk [vmem:[#allocation2 + $0x80] sm:$0xff] %vm421, 0.0
      %440 = vst.msk [vmem:[#allocation2 + $0x88] sm:$0x3] %vm424, 0.0
      %441 = vst.msk [vmem:[#allocation2 + $0x90] sm:$0xff] %vm421, 0.0
      %442 = vst.msk [vmem:[#allocation2 + $0x98] sm:$0xff] %vm421, 0.0
      %443 = vst.msk [vmem:[#allocation2 + $0xa0] sm:$0x3] %vm424, 0.0
      %444 = vst.msk [vmem:[#allocation2 + $0xa8] sm:$0xff] %vm421, 0.0
      %445 = vst.msk [vmem:[#allocation2 + $0xb0] sm:$0xff] %vm421, 0.0
      %446 = vst.msk [vmem:[#allocation2 + $0xb8] sm:$0x3] %vm424, 0.0
      %447 = vst.msk [vmem:[#allocation2 + $0xc0] sm:$0xff] %vm421, 0.0
      %448 = vst.msk [vmem:[#allocation2 + $0xc8] sm:$0xff] %vm421, 0.0
      %449 = vst.msk [vmem:[#allocation2 + $0xd0] sm:$0x3] %vm424, 0.0
      %450 = vst.msk [vmem:[#allocation2 + $0xd8] sm:$0xff] %vm421, 0.0
      %451 = vst.msk [vmem:[#allocation2 + $0xe0] sm:$0xff] %vm421, 0.0
      %452 = vst.msk [vmem:[#allocation2 + $0xe8] sm:$0x3] %vm424, 0.0
      %453 = vst.msk [vmem:[#allocation2 + $0xf0] sm:$0xff] %vm421, 0.0
      %454 = vst.msk [vmem:[#allocation2 + $0xf8] sm:$0xff] %vm421, 0.0
      %455 = vst.msk [vmem:[#allocation2 + $0x100] sm:$0x3] %vm424, 0.0
      %456 = vst.msk [vmem:[#allocation2 + $0x108] sm:$0xff] %vm421, 0.0
      %457 = vst.msk [vmem:[#allocation2 + $0x110] sm:$0xff] %vm421, 0.0
      %458 = vst.msk [vmem:[#allocation2 + $0x118] sm:$0x3] %vm424, 0.0
      %459 = vst.msk [vmem:[#allocation2 + $0x120] sm:$0xff] %vm421, 0.0
      %460 = vst.msk [vmem:[#allocation2 + $0x128] sm:$0xff] %vm421, 0.0
      %461 = vst.msk [vmem:[#allocation2 + $0x130] sm:$0x3] %vm424, 0.0
      %462 = vst.msk [vmem:[#allocation2 + $0x138] sm:$0xff] %vm421, 0.0
      %463 = vst.msk [vmem:[#allocation2 + $0x140] sm:$0xff] %vm421, 0.0
      %464 = vst.msk [vmem:[#allocation2 + $0x148] sm:$0x3] %vm424, 0.0
      %465 = vst.msk [vmem:[#allocation2 + $0x150] sm:$0xff] %vm421, 0.0
      %466 = vst.msk [vmem:[#allocation2 + $0x158] sm:$0xff] %vm421, 0.0
      %467 = vst.msk [vmem:[#allocation2 + $0x160] sm:$0x3] %vm424, 0.0
      %468 = vst.msk [vmem:[#allocation2 + $0x168] sm:$0xff] %vm421, 0.0
      %469 = vst.msk [vmem:[#allocation2 + $0x170] sm:$0xff] %vm421, 0.0
      %470 = vst.msk [vmem:[#allocation2 + $0x178] sm:$0x3] %vm424, 0.0
      %471 = vst.msk [vmem:[#allocation2 + $0x180] sm:$0xff] %vm421, 0.0
      %472 = vst.msk [vmem:[#allocation2 + $0x188] sm:$0xff] %vm421, 0.0
      %473 = vst.msk [vmem:[#allocation2 + $0x190] sm:$0x3] %vm424, 0.0
      %474 = vst.msk [vmem:[#allocation2 + $0x198] sm:$0xff] %vm421, 0.0
      %475 = vst.msk [vmem:[#allocation2 + $0x1a0] sm:$0xff] %vm421, 0.0
      %476 = vst.msk [vmem:[#allocation2 + $0x1a8] sm:$0x3] %vm424, 0.0
      %s477 = scalar_lea.vmem [#allocation2], 24
      %478 = vst.msk [vmem:[%s477 + $0x1] sm:$0xff] %vm421, %v373
      %479 = vst.msk [vmem:[%s477 + $0x9] sm:$0xff] %vm421, %v374
      %480 = vst.msk [vmem:[%s477 + $0x19] sm:$0xff] %vm421, %v375
      %481 = vst.msk [vmem:[%s477 + $0x21] sm:$0xff] %vm421, %v376
      %482 = vst.msk [vmem:[%s477 + $0x31] sm:$0xff] %vm421, %v377
      %483 = vst.msk [vmem:[%s477 + $0x39] sm:$0xff] %vm421, %v378
      %484 = vst.msk [vmem:[%s477 + $0x49] sm:$0xff] %vm421, %v379
      %485 = vst.msk [vmem:[%s477 + $0x51] sm:$0xff] %vm421, %v380
      %486 = vst.msk [vmem:[%s477 + $0x61] sm:$0xff] %vm421, %v381
      %487 = vst.msk [vmem:[%s477 + $0x69] sm:$0xff] %vm421, %v382
      %488 = vst.msk [vmem:[%s477 + $0x79] sm:$0xff] %vm421, %v383
      %489 = vst.msk [vmem:[%s477 + $0x81] sm:$0xff] %vm421, %v384
      %490 = vst.msk [vmem:[%s477 + $0x91] sm:$0xff] %vm421, %v385
      %491 = vst.msk [vmem:[%s477 + $0x99] sm:$0xff] %vm421, %v386
      %492 = vst.msk [vmem:[%s477 + $0xa9] sm:$0xff] %vm421, %v387
      %493 = vst.msk [vmem:[%s477 + $0xb1] sm:$0xff] %vm421, %v388
      %494 = vst.msk [vmem:[%s477 + $0xc1] sm:$0xff] %vm421, %v405
      %495 = vst.msk [vmem:[%s477 + $0xc9] sm:$0xff] %vm421, %v406
      %496 = vst.msk [vmem:[%s477 + $0xd9] sm:$0xff] %vm421, %v407
      %497 = vst.msk [vmem:[%s477 + $0xe1] sm:$0xff] %vm421, %v408
      %498 = vst.msk [vmem:[%s477 + $0xf1] sm:$0xff] %vm421, %v409
      %499 = vst.msk [vmem:[%s477 + $0xf9] sm:$0xff] %vm421, %v410
      %500 = vst.msk [vmem:[%s477 + $0x109] sm:$0xff] %vm421, %v411
      %501 = vst.msk [vmem:[%s477 + $0x111] sm:$0xff] %vm421, %v412
      %502 = vst.msk [vmem:[%s477 + $0x121] sm:$0xff] %vm421, %v413
      %503 = vst.msk [vmem:[%s477 + $0x129] sm:$0xff] %vm421, %v414
      %504 = vst.msk [vmem:[%s477 + $0x139] sm:$0xff] %vm421, %v415
      %505 = vst.msk [vmem:[%s477 + $0x141] sm:$0xff] %vm421, %v416
      %506 = vst.msk [vmem:[%s477 + $0x151] sm:$0xff] %vm421, %v417
      %507 = vst.msk [vmem:[%s477 + $0x159] sm:$0xff] %vm421, %v418
      %508 = vst.msk [vmem:[%s477 + $0x169] sm:$0xff] %vm421, %v419
      %509 = vst.msk [vmem:[%s477 + $0x171] sm:$0xff] %vm421, %v420
      %v510 = vld [vmem:[%s347] sm:$0xff]
      %v512 = vcombine.high %v510, %v510
      %514 = vxpose.xlu0.b32.start [1/16] %v510, 128
      %515 = vxpose.xlu0.b32.cont [2/16] 0.0, 128
      %516 = vxpose.xlu0.b32.cont [3/16] 0.0, 128
      %517 = vxpose.xlu0.b32.cont [4/16] 0.0, 128
      %518 = vxpose.xlu0.b32.cont [5/16] 0.0, 128
      %519 = vxpose.xlu0.b32.cont [6/16] 0.0, 128
      %520 = vxpose.xlu0.b32.cont [7/16] 0.0, 128
      %521 = vxpose.xlu0.b32.cont [8/16] 0.0, 128
      %522 = vxpose.xlu0.b32.cont [9/16] 0.0, 128
      %523 = vxpose.xlu0.b32.cont [10/16] 0.0, 128
      %524 = vxpose.xlu0.b32.cont [11/16] 0.0, 128
      %525 = vxpose.xlu0.b32.cont [12/16] 0.0, 128
      %526 = vxpose.xlu0.b32.cont [13/16] 0.0, 128
      %527 = vxpose.xlu0.b32.cont [14/16] 0.0, 128
      %528 = vxpose.xlu0.b32.cont [15/16] 0.0, 128
      %529 = vxpose.xlu0.b32.end [16/16] 0.0, 128
      %v530 = vpop.trf.xlu0
      %v531 = vpop.trf.xlu0
      %v532 = vpop.trf.xlu0
      %v533 = vpop.trf.xlu0
      %v534 = vpop.trf.xlu0
      %v535 = vpop.trf.xlu0
      %v536 = vpop.trf.xlu0
      %v537 = vpop.trf.xlu0
      %v538 = vpop.trf.xlu0
      %v539 = vpop.trf.xlu0
      %v540 = vpop.trf.xlu0
      %v541 = vpop.trf.xlu0
      %v542 = vpop.trf.xlu0
      %v543 = vpop.trf.xlu0
      %v544 = vpop.trf.xlu0
      %v545 = vpop.trf.xlu0
      %546 = vxpose.xlu0.b32.start [1/16] %v512, 128
      %547 = vxpose.xlu0.b32.cont [2/16] 0.0, 128
      %548 = vxpose.xlu0.b32.cont [3/16] 0.0, 128
      %549 = vxpose.xlu0.b32.cont [4/16] 0.0, 128
      %550 = vxpose.xlu0.b32.cont [5/16] 0.0, 128
      %551 = vxpose.xlu0.b32.cont [6/16] 0.0, 128
      %552 = vxpose.xlu0.b32.cont [7/16] 0.0, 128
      %553 = vxpose.xlu0.b32.cont [8/16] 0.0, 128
      %554 = vxpose.xlu0.b32.cont [9/16] 0.0, 128
      %555 = vxpose.xlu0.b32.cont [10/16] 0.0, 128
      %556 = vxpose.xlu0.b32.cont [11/16] 0.0, 128
      %557 = vxpose.xlu0.b32.cont [12/16] 0.0, 128
      %558 = vxpose.xlu0.b32.cont [13/16] 0.0, 128
      %559 = vxpose.xlu0.b32.cont [14/16] 0.0, 128
      %560 = vxpose.xlu0.b32.cont [15/16] 0.0, 128
      %561 = vxpose.xlu0.b32.end [16/16] 0.0, 128
      %v562 = vpop.trf.xlu0
      %v563 = vpop.trf.xlu0
      %v564 = vpop.trf.xlu0
      %v565 = vpop.trf.xlu0
      %v566 = vpop.trf.xlu0
      %v567 = vpop.trf.xlu0
      %v568 = vpop.trf.xlu0
      %v569 = vpop.trf.xlu0
      %v570 = vpop.trf.xlu0
      %v571 = vpop.trf.xlu0
      %v572 = vpop.trf.xlu0
      %v573 = vpop.trf.xlu0
      %v574 = vpop.trf.xlu0
      %v575 = vpop.trf.xlu0
      %v576 = vpop.trf.xlu0
      %v577 = vpop.trf.xlu0
      %578 = vst.msk [vmem:[#allocation3] sm:$0xff] %vm421, 0.0
      %579 = vst.msk [vmem:[#allocation3 + $0x8] sm:$0xff] %vm421, 0.0
      %580 = vst.msk [vmem:[#allocation3 + $0x10] sm:$0x3] %vm424, 0.0
      %581 = vst.msk [vmem:[#allocation3 + $0x18] sm:$0xff] %vm421, 0.0
      %582 = vst.msk [vmem:[#allocation3 + $0x20] sm:$0xff] %vm421, 0.0
      %583 = vst.msk [vmem:[#allocation3 + $0x28] sm:$0x3] %vm424, 0.0
      %584 = vst.msk [vmem:[#allocation3 + $0x30] sm:$0xff] %vm421, 0.0
      %585 = vst.msk [vmem:[#allocation3 + $0x38] sm:$0xff] %vm421, 0.0
      %586 = vst.msk [vmem:[#allocation3 + $0x40] sm:$0x3] %vm424, 0.0
      %587 = vst.msk [vmem:[#allocation3 + $0x48] sm:$0xff] %vm421, 0.0
      %588 = vst.msk [vmem:[#allocation3 + $0x50] sm:$0xff] %vm421, 0.0
      %589 = vst.msk [vmem:[#allocation3 + $0x58] sm:$0x3] %vm424, 0.0
      %590 = vst.msk [vmem:[#allocation3 + $0x60] sm:$0xff] %vm421, 0.0
      %591 = vst.msk [vmem:[#allocation3 + $0x68] sm:$0xff] %vm421, 0.0
      %592 = vst.msk [vmem:[#allocation3 + $0x70] sm:$0x3] %vm424, 0.0
      %593 = vst.msk [vmem:[#allocation3 + $0x78] sm:$0xff] %vm421, 0.0
      %594 = vst.msk [vmem:[#allocation3 + $0x80] sm:$0xff] %vm421, 0.0
      %595 = vst.msk [vmem:[#allocation3 + $0x88] sm:$0x3] %vm424, 0.0
      %596 = vst.msk [vmem:[#allocation3 + $0x90] sm:$0xff] %vm421, 0.0
      %597 = vst.msk [vmem:[#allocation3 + $0x98] sm:$0xff] %vm421, 0.0
      %598 = vst.msk [vmem:[#allocation3 + $0xa0] sm:$0x3] %vm424, 0.0
      %599 = vst.msk [vmem:[#allocation3 + $0xa8] sm:$0xff] %vm421, 0.0
      %600 = vst.msk [vmem:[#allocation3 + $0xb0] sm:$0xff] %vm421, 0.0
      %601 = vst.msk [vmem:[#allocation3 + $0xb8] sm:$0x3] %vm424, 0.0
      %602 = vst.msk [vmem:[#allocation3 + $0xc0] sm:$0xff] %vm421, 0.0
      %603 = vst.msk [vmem:[#allocation3 + $0xc8] sm:$0xff] %vm421, 0.0
      %604 = vst.msk [vmem:[#allocation3 + $0xd0] sm:$0x3] %vm424, 0.0
      %605 = vst.msk [vmem:[#allocation3 + $0xd8] sm:$0xff] %vm421, 0.0
      %606 = vst.msk [vmem:[#allocation3 + $0xe0] sm:$0xff] %vm421, 0.0
      %607 = vst.msk [vmem:[#allocation3 + $0xe8] sm:$0x3] %vm424, 0.0
      %608 = vst.msk [vmem:[#allocation3 + $0xf0] sm:$0xff] %vm421, 0.0
      %609 = vst.msk [vmem:[#allocation3 + $0xf8] sm:$0xff] %vm421, 0.0
      %610 = vst.msk [vmem:[#allocation3 + $0x100] sm:$0x3] %vm424, 0.0
      %611 = vst.msk [vmem:[#allocation3 + $0x108] sm:$0xff] %vm421, 0.0
      %612 = vst.msk [vmem:[#allocation3 + $0x110] sm:$0xff] %vm421, 0.0
      %613 = vst.msk [vmem:[#allocation3 + $0x118] sm:$0x3] %vm424, 0.0
      %614 = vst.msk [vmem:[#allocation3 + $0x120] sm:$0xff] %vm421, 0.0
      %615 = vst.msk [vmem:[#allocation3 + $0x128] sm:$0xff] %vm421, 0.0
      %616 = vst.msk [vmem:[#allocation3 + $0x130] sm:$0x3] %vm424, 0.0
      %617 = vst.msk [vmem:[#allocation3 + $0x138] sm:$0xff] %vm421, 0.0
      %618 = vst.msk [vmem:[#allocation3 + $0x140] sm:$0xff] %vm421, 0.0
      %619 = vst.msk [vmem:[#allocation3 + $0x148] sm:$0x3] %vm424, 0.0
      %620 = vst.msk [vmem:[#allocation3 + $0x150] sm:$0xff] %vm421, 0.0
      %621 = vst.msk [vmem:[#allocation3 + $0x158] sm:$0xff] %vm421, 0.0
      %622 = vst.msk [vmem:[#allocation3 + $0x160] sm:$0x3] %vm424, 0.0
      %623 = vst.msk [vmem:[#allocation3 + $0x168] sm:$0xff] %vm421, 0.0
      %624 = vst.msk [vmem:[#allocation3 + $0x170] sm:$0xff] %vm421, 0.0
      %625 = vst.msk [vmem:[#allocation3 + $0x178] sm:$0x3] %vm424, 0.0
      %626 = vst.msk [vmem:[#allocation3 + $0x180] sm:$0xff] %vm421, 0.0
      %627 = vst.msk [vmem:[#allocation3 + $0x188] sm:$0xff] %vm421, 0.0
      %628 = vst.msk [vmem:[#allocation3 + $0x190] sm:$0x3] %vm424, 0.0
      %629 = vst.msk [vmem:[#allocation3 + $0x198] sm:$0xff] %vm421, 0.0
      %630 = vst.msk [vmem:[#allocation3 + $0x1a0] sm:$0xff] %vm421, 0.0
      %631 = vst.msk [vmem:[#allocation3 + $0x1a8] sm:$0x3] %vm424, 0.0
      %s632 = scalar_lea.vmem [#allocation3], 24
      %633 = vst.msk [vmem:[%s632 + $0x1] sm:$0xff] %vm421, %v530
      %634 = vst.msk [vmem:[%s632 + $0x9] sm:$0xff] %vm421, %v531
      %635 = vst.msk [vmem:[%s632 + $0x19] sm:$0xff] %vm421, %v532
      %636 = vst.msk [vmem:[%s632 + $0x21] sm:$0xff] %vm421, %v533
      %637 = vst.msk [vmem:[%s632 + $0x31] sm:$0xff] %vm421, %v534
      %638 = vst.msk [vmem:[%s632 + $0x39] sm:$0xff] %vm421, %v535
      %639 = vst.msk [vmem:[%s632 + $0x49] sm:$0xff] %vm421, %v536
      %640 = vst.msk [vmem:[%s632 + $0x51] sm:$0xff] %vm421, %v537
      %641 = vst.msk [vmem:[%s632 + $0x61] sm:$0xff] %vm421, %v538
      %642 = vst.msk [vmem:[%s632 + $0x69] sm:$0xff] %vm421, %v539
      %643 = vst.msk [vmem:[%s632 + $0x79] sm:$0xff] %vm421, %v540
      %644 = vst.msk [vmem:[%s632 + $0x81] sm:$0xff] %vm421, %v541
      %645 = vst.msk [vmem:[%s632 + $0x91] sm:$0xff] %vm421, %v542
      %646 = vst.msk [vmem:[%s632 + $0x99] sm:$0xff] %vm421, %v543
      %647 = vst.msk [vmem:[%s632 + $0xa9] sm:$0xff] %vm421, %v544
      %648 = vst.msk [vmem:[%s632 + $0xb1] sm:$0xff] %vm421, %v545
      %649 = vst.msk [vmem:[%s632 + $0xc1] sm:$0xff] %vm421, %v562
      %650 = vst.msk [vmem:[%s632 + $0xc9] sm:$0xff] %vm421, %v563
      %651 = vst.msk [vmem:[%s632 + $0xd9] sm:$0xff] %vm421, %v564
      %652 = vst.msk [vmem:[%s632 + $0xe1] sm:$0xff] %vm421, %v565
      %653 = vst.msk [vmem:[%s632 + $0xf1] sm:$0xff] %vm421, %v566
      %654 = vst.msk [vmem:[%s632 + $0xf9] sm:$0xff] %vm421, %v567
      %655 = vst.msk [vmem:[%s632 + $0x109] sm:$0xff] %vm421, %v568
      %656 = vst.msk [vmem:[%s632 + $0x111] sm:$0xff] %vm421, %v569
      %657 = vst.msk [vmem:[%s632 + $0x121] sm:$0xff] %vm421, %v570
      %658 = vst.msk [vmem:[%s632 + $0x129] sm:$0xff] %vm421, %v571
      %659 = vst.msk [vmem:[%s632 + $0x139] sm:$0xff] %vm421, %v572
      %660 = vst.msk [vmem:[%s632 + $0x141] sm:$0xff] %vm421, %v573
      %661 = vst.msk [vmem:[%s632 + $0x151] sm:$0xff] %vm421, %v574
      %662 = vst.msk [vmem:[%s632 + $0x159] sm:$0xff] %vm421, %v575
      %663 = vst.msk [vmem:[%s632 + $0x169] sm:$0xff] %vm421, %v576
      %664 = vst.msk [vmem:[%s632 + $0x171] sm:$0xff] %vm421, %v577
      %v665 = vld [vmem:[#allocation2] sm:$0xff]
      %v666 = vld [vmem:[#allocation2 + $0x8] sm:$0xff]
      %v667 = vld [vmem:[#allocation2 + $0x18] sm:$0xff]
      %v668 = vld [vmem:[#allocation2 + $0x20] sm:$0xff]
      %v669 = vld [vmem:[#allocation2 + $0x30] sm:$0xff]
      %v670 = vld [vmem:[#allocation2 + $0x38] sm:$0xff]
      %v671 = vld [vmem:[#allocation2 + $0x48] sm:$0xff]
      %v672 = vld [vmem:[#allocation2 + $0x50] sm:$0xff]
      %v673 = vld [vmem:[#allocation2 + $0x60] sm:$0xff]
      %v674 = vld [vmem:[#allocation2 + $0x68] sm:$0xff]
      %v675 = vld [vmem:[#allocation2 + $0x78] sm:$0xff]
      %v676 = vld [vmem:[#allocation2 + $0x80] sm:$0xff]
      %v677 = vld [vmem:[#allocation2 + $0x90] sm:$0xff]
      %v678 = vld [vmem:[#allocation2 + $0x98] sm:$0xff]
      %v679 = vld [vmem:[#allocation2 + $0xa8] sm:$0xff]
      %v680 = vld [vmem:[#allocation2 + $0xb0] sm:$0xff]
      %v681 = vld [vmem:[#allocation2 + $0xc0] sm:$0xff]
      %v682 = vld [vmem:[#allocation2 + $0xc8] sm:$0xff]
      %v683 = vld [vmem:[#allocation2 + $0xd8] sm:$0xff]
      %v684 = vld [vmem:[#allocation2 + $0xe0] sm:$0xff]
      %v685 = vld [vmem:[#allocation2 + $0xf0] sm:$0xff]
      %v686 = vld [vmem:[#allocation2 + $0xf8] sm:$0xff]
      %v687 = vld [vmem:[#allocation2 + $0x108] sm:$0xff]
      %v688 = vld [vmem:[#allocation2 + $0x110] sm:$0xff]
      %v689 = vld [vmem:[#allocation2 + $0x120] sm:$0xff]
      %v690 = vld [vmem:[#allocation2 + $0x128] sm:$0xff]
      %v691 = vld [vmem:[#allocation2 + $0x138] sm:$0xff]
      %v692 = vld [vmem:[#allocation2 + $0x140] sm:$0xff]
      %v693 = vld [vmem:[#allocation2 + $0x150] sm:$0xff]
      %v694 = vld [vmem:[#allocation2 + $0x158] sm:$0xff]
      %v695 = vld [vmem:[#allocation2 + $0x168] sm:$0xff]
      %v696 = vld [vmem:[#allocation2 + $0x170] sm:$0xff]
      %v697 = vld [vmem:[#allocation2 + $0x1] sm:$0xff]
      %v698 = vld [vmem:[#allocation2 + $0x9] sm:$0xff]
      %v699 = vld [vmem:[#allocation2 + $0x19] sm:$0xff]
      %v700 = vld [vmem:[#allocation2 + $0x21] sm:$0xff]
      %v701 = vld [vmem:[#allocation2 + $0x31] sm:$0xff]
      %v702 = vld [vmem:[#allocation2 + $0x39] sm:$0xff]
      %v703 = vld [vmem:[#allocation2 + $0x49] sm:$0xff]
      %v704 = vld [vmem:[#allocation2 + $0x51] sm:$0xff]
      %v705 = vld [vmem:[#allocation2 + $0x61] sm:$0xff]
      %v706 = vld [vmem:[#allocation2 + $0x69] sm:$0xff]
      %v707 = vld [vmem:[#allocation2 + $0x79] sm:$0xff]
      %v708 = vld [vmem:[#allocation2 + $0x81] sm:$0xff]
      %v709 = vld [vmem:[#allocation2 + $0x91] sm:$0xff]
      %v710 = vld [vmem:[#allocation2 + $0x99] sm:$0xff]
      %v711 = vld [vmem:[#allocation2 + $0xa9] sm:$0xff]
      %v712 = vld [vmem:[#allocation2 + $0xb1] sm:$0xff]
      %v713 = vld [vmem:[#allocation2 + $0xc1] sm:$0xff]
      %v714 = vld [vmem:[#allocation2 + $0xc9] sm:$0xff]
      %v715 = vld [vmem:[#allocation2 + $0xd9] sm:$0xff]
      %v716 = vld [vmem:[#allocation2 + $0xe1] sm:$0xff]
      %v717 = vld [vmem:[#allocation2 + $0xf1] sm:$0xff]
      %v718 = vld [vmem:[#allocation2 + $0xf9] sm:$0xff]
      %v719 = vld [vmem:[#allocation2 + $0x109] sm:$0xff]
      %v720 = vld [vmem:[#allocation2 + $0x111] sm:$0xff]
      %v721 = vld [vmem:[#allocation2 + $0x121] sm:$0xff]
      %v722 = vld [vmem:[#allocation2 + $0x129] sm:$0xff]
      %v723 = vld [vmem:[#allocation2 + $0x139] sm:$0xff]
      %v724 = vld [vmem:[#allocation2 + $0x141] sm:$0xff]
      %v725 = vld [vmem:[#allocation2 + $0x151] sm:$0xff]
      %v726 = vld [vmem:[#allocation2 + $0x159] sm:$0xff]
      %v727 = vld [vmem:[#allocation2 + $0x169] sm:$0xff]
      %v728 = vld [vmem:[#allocation2 + $0x171] sm:$0xff]
      %v729 = vld [vmem:[#allocation2 + $0x2] sm:$0xff]
      %v730 = vld [vmem:[#allocation2 + $0xa] sm:$0xff]
      %v731 = vld [vmem:[#allocation2 + $0x1a] sm:$0xff]
      %v732 = vld [vmem:[#allocation2 + $0x22] sm:$0xff]
      %v733 = vld [vmem:[#allocation2 + $0x32] sm:$0xff]
      %v734 = vld [vmem:[#allocation2 + $0x3a] sm:$0xff]
      %v735 = vld [vmem:[#allocation2 + $0x4a] sm:$0xff]
      %v736 = vld [vmem:[#allocation2 + $0x52] sm:$0xff]
      %v737 = vld [vmem:[#allocation2 + $0x62] sm:$0xff]
      %v738 = vld [vmem:[#allocation2 + $0x6a] sm:$0xff]
      %v739 = vld [vmem:[#allocation2 + $0x7a] sm:$0xff]
      %v740 = vld [vmem:[#allocation2 + $0x82] sm:$0xff]
      %v741 = vld [vmem:[#allocation2 + $0x92] sm:$0xff]
      %v742 = vld [vmem:[#allocation2 + $0x9a] sm:$0xff]
      %v743 = vld [vmem:[#allocation2 + $0xaa] sm:$0xff]
      %v744 = vld [vmem:[#allocation2 + $0xb2] sm:$0xff]
      %v745 = vld [vmem:[#allocation2 + $0xc2] sm:$0xff]
      %v746 = vld [vmem:[#allocation2 + $0xca] sm:$0xff]
      %v747 = vld [vmem:[#allocation2 + $0xda] sm:$0xff]
      %v748 = vld [vmem:[#allocation2 + $0xe2] sm:$0xff]
      %v749 = vld [vmem:[#allocation2 + $0xf2] sm:$0xff]
      %v750 = vld [vmem:[#allocation2 + $0xfa] sm:$0xff]
      %v751 = vld [vmem:[#allocation2 + $0x10a] sm:$0xff]
      %v752 = vld [vmem:[#allocation2 + $0x112] sm:$0xff]
      %v753 = vld [vmem:[#allocation2 + $0x122] sm:$0xff]
      %v754 = vld [vmem:[#allocation2 + $0x12a] sm:$0xff]
      %v755 = vld [vmem:[#allocation2 + $0x13a] sm:$0xff]
      %v756 = vld [vmem:[#allocation2 + $0x142] sm:$0xff]
      %v757 = vld [vmem:[#allocation2 + $0x152] sm:$0xff]
      %v758 = vld [vmem:[#allocation2 + $0x15a] sm:$0xff]
      %v759 = vld [vmem:[#allocation2 + $0x16a] sm:$0xff]
      %v760 = vld [vmem:[#allocation2 + $0x172] sm:$0xff]
      %v761 = vld [vmem:[%s477] sm:$0xff]
      %v762 = vld [vmem:[%s477 + $0x8] sm:$0xff]
      %v763 = vld [vmem:[%s477 + $0x18] sm:$0xff]
      %v764 = vld [vmem:[%s477 + $0x20] sm:$0xff]
      %v765 = vld [vmem:[%s477 + $0x30] sm:$0xff]
      %v766 = vld [vmem:[%s477 + $0x38] sm:$0xff]
      %v767 = vld [vmem:[%s477 + $0x48] sm:$0xff]
      %v768 = vld [vmem:[%s477 + $0x50] sm:$0xff]
      %v769 = vld [vmem:[%s477 + $0x60] sm:$0xff]
      %v770 = vld [vmem:[%s477 + $0x68] sm:$0xff]
      %v771 = vld [vmem:[%s477 + $0x78] sm:$0xff]
      %v772 = vld [vmem:[%s477 + $0x80] sm:$0xff]
      %v773 = vld [vmem:[%s477 + $0x90] sm:$0xff]
      %v774 = vld [vmem:[%s477 + $0x98] sm:$0xff]
      %v775 = vld [vmem:[%s477 + $0xa8] sm:$0xff]
      %v776 = vld [vmem:[%s477 + $0xb0] sm:$0xff]
      %v777 = vld [vmem:[%s477 + $0xc0] sm:$0xff]
      %v778 = vld [vmem:[%s477 + $0xc8] sm:$0xff]
      %v779 = vld [vmem:[%s477 + $0xd8] sm:$0xff]
      %v780 = vld [vmem:[%s477 + $0xe0] sm:$0xff]
      %v781 = vld [vmem:[%s477 + $0xf0] sm:$0xff]
      %v782 = vld [vmem:[%s477 + $0xf8] sm:$0xff]
      %v783 = vld [vmem:[%s477 + $0x108] sm:$0xff]
      %v784 = vld [vmem:[%s477 + $0x110] sm:$0xff]
      %v785 = vld [vmem:[%s477 + $0x120] sm:$0xff]
      %v786 = vld [vmem:[%s477 + $0x128] sm:$0xff]
      %v787 = vld [vmem:[%s477 + $0x138] sm:$0xff]
      %v788 = vld [vmem:[%s477 + $0x140] sm:$0xff]
      %v789 = vld [vmem:[%s477 + $0x150] sm:$0xff]
      %v790 = vld [vmem:[%s477 + $0x158] sm:$0xff]
      %v791 = vld [vmem:[%s477 + $0x168] sm:$0xff]
      %v792 = vld [vmem:[%s477 + $0x170] sm:$0xff]
      %v793 = vld [vmem:[%s477 + $0x1] sm:$0xff]
      %v794 = vld [vmem:[%s477 + $0x9] sm:$0xff]
      %v795 = vld [vmem:[%s477 + $0x19] sm:$0xff]
      %v796 = vld [vmem:[%s477 + $0x21] sm:$0xff]
      %v797 = vld [vmem:[%s477 + $0x31] sm:$0xff]
      %v798 = vld [vmem:[%s477 + $0x39] sm:$0xff]
      %v799 = vld [vmem:[%s477 + $0x49] sm:$0xff]
      %v800 = vld [vmem:[%s477 + $0x51] sm:$0xff]
      %v801 = vld [vmem:[%s477 + $0x61] sm:$0xff]
      %v802 = vld [vmem:[%s477 + $0x69] sm:$0xff]
      %v803 = vld [vmem:[%s477 + $0x79] sm:$0xff]
      %v804 = vld [vmem:[%s477 + $0x81] sm:$0xff]
      %v805 = vld [vmem:[%s477 + $0x91] sm:$0xff]
      %v806 = vld [vmem:[%s477 + $0x99] sm:$0xff]
      %v807 = vld [vmem:[%s477 + $0xa9] sm:$0xff]
      %v808 = vld [vmem:[%s477 + $0xb1] sm:$0xff]
      %v809 = vld [vmem:[%s477 + $0xc1] sm:$0xff]
      %v810 = vld [vmem:[%s477 + $0xc9] sm:$0xff]
      %v811 = vld [vmem:[%s477 + $0xd9] sm:$0xff]
      %v812 = vld [vmem:[%s477 + $0xe1] sm:$0xff]
      %v813 = vld [vmem:[%s477 + $0xf1] sm:$0xff]
      %v814 = vld [vmem:[%s477 + $0xf9] sm:$0xff]
      %v815 = vld [vmem:[%s477 + $0x109] sm:$0xff]
      %v816 = vld [vmem:[%s477 + $0x111] sm:$0xff]
      %v817 = vld [vmem:[%s477 + $0x121] sm:$0xff]
      %v818 = vld [vmem:[%s477 + $0x129] sm:$0xff]
      %v819 = vld [vmem:[%s477 + $0x139] sm:$0xff]
      %v820 = vld [vmem:[%s477 + $0x141] sm:$0xff]
      %v821 = vld [vmem:[%s477 + $0x151] sm:$0xff]
      %v822 = vld [vmem:[%s477 + $0x159] sm:$0xff]
      %v823 = vld [vmem:[%s477 + $0x169] sm:$0xff]
      %v824 = vld [vmem:[%s477 + $0x171] sm:$0xff]
      %v825 = vld [vmem:[%s477 + $0x2] sm:$0xff]
      %v826 = vld [vmem:[%s477 + $0xa] sm:$0xff]
      %v827 = vld [vmem:[%s477 + $0x1a] sm:$0xff]
      %v828 = vld [vmem:[%s477 + $0x22] sm:$0xff]
      %v829 = vld [vmem:[%s477 + $0x32] sm:$0xff]
      %v830 = vld [vmem:[%s477 + $0x3a] sm:$0xff]
      %v831 = vld [vmem:[%s477 + $0x4a] sm:$0xff]
      %v832 = vld [vmem:[%s477 + $0x52] sm:$0xff]
      %v833 = vld [vmem:[%s477 + $0x62] sm:$0xff]
      %v834 = vld [vmem:[%s477 + $0x6a] sm:$0xff]
      %v835 = vld [vmem:[%s477 + $0x7a] sm:$0xff]
      %v836 = vld [vmem:[%s477 + $0x82] sm:$0xff]
      %v837 = vld [vmem:[%s477 + $0x92] sm:$0xff]
      %v838 = vld [vmem:[%s477 + $0x9a] sm:$0xff]
      %v839 = vld [vmem:[%s477 + $0xaa] sm:$0xff]
      %v840 = vld [vmem:[%s477 + $0xb2] sm:$0xff]
      %v841 = vld [vmem:[%s477 + $0xc2] sm:$0xff]
      %v842 = vld [vmem:[%s477 + $0xca] sm:$0xff]
      %v843 = vld [vmem:[%s477 + $0xda] sm:$0xff]
      %v844 = vld [vmem:[%s477 + $0xe2] sm:$0xff]
      %v845 = vld [vmem:[%s477 + $0xf2] sm:$0xff]
      %v846 = vld [vmem:[%s477 + $0xfa] sm:$0xff]
      %v847 = vld [vmem:[%s477 + $0x10a] sm:$0xff]
      %v848 = vld [vmem:[%s477 + $0x112] sm:$0xff]
      %v849 = vld [vmem:[%s477 + $0x122] sm:$0xff]
      %v850 = vld [vmem:[%s477 + $0x12a] sm:$0xff]
      %v851 = vld [vmem:[%s477 + $0x13a] sm:$0xff]
      %v852 = vld [vmem:[%s477 + $0x142] sm:$0xff]
      %v853 = vld [vmem:[%s477 + $0x152] sm:$0xff]
      %v854 = vld [vmem:[%s477 + $0x15a] sm:$0xff]
      %v855 = vld [vmem:[%s477 + $0x16a] sm:$0xff]
      %v856 = vld [vmem:[%s477 + $0x172] sm:$0xff]
      %s857 = scalar_lea.vmem [#allocation2], 48
      %v858 = vld [vmem:[%s857] sm:$0xff]
      %v859 = vld [vmem:[%s857 + $0x8] sm:$0xff]
      %v860 = vld [vmem:[%s857 + $0x18] sm:$0xff]
      %v861 = vld [vmem:[%s857 + $0x20] sm:$0xff]
      %v862 = vld [vmem:[%s857 + $0x30] sm:$0xff]
      %v863 = vld [vmem:[%s857 + $0x38] sm:$0xff]
      %v864 = vld [vmem:[%s857 + $0x48] sm:$0xff]
      %v865 = vld [vmem:[%s857 + $0x50] sm:$0xff]
      %v866 = vld [vmem:[%s857 + $0x60] sm:$0xff]
      %v867 = vld [vmem:[%s857 + $0x68] sm:$0xff]
      %v868 = vld [vmem:[%s857 + $0x78] sm:$0xff]
      %v869 = vld [vmem:[%s857 + $0x80] sm:$0xff]
      %v870 = vld [vmem:[%s857 + $0x90] sm:$0xff]
      %v871 = vld [vmem:[%s857 + $0x98] sm:$0xff]
      %v872 = vld [vmem:[%s857 + $0xa8] sm:$0xff]
      %v873 = vld [vmem:[%s857 + $0xb0] sm:$0xff]
      %v874 = vld [vmem:[%s857 + $0xc0] sm:$0xff]
      %v875 = vld [vmem:[%s857 + $0xc8] sm:$0xff]
      %v876 = vld [vmem:[%s857 + $0xd8] sm:$0xff]
      %v877 = vld [vmem:[%s857 + $0xe0] sm:$0xff]
      %v878 = vld [vmem:[%s857 + $0xf0] sm:$0xff]
      %v879 = vld [vmem:[%s857 + $0xf8] sm:$0xff]
      %v880 = vld [vmem:[%s857 + $0x108] sm:$0xff]
      %v881 = vld [vmem:[%s857 + $0x110] sm:$0xff]
      %v882 = vld [vmem:[%s857 + $0x120] sm:$0xff]
      %v883 = vld [vmem:[%s857 + $0x128] sm:$0xff]
      %v884 = vld [vmem:[%s857 + $0x138] sm:$0xff]
      %v885 = vld [vmem:[%s857 + $0x140] sm:$0xff]
      %v886 = vld [vmem:[%s857 + $0x150] sm:$0xff]
      %v887 = vld [vmem:[%s857 + $0x158] sm:$0xff]
      %v888 = vld [vmem:[%s857 + $0x168] sm:$0xff]
      %v889 = vld [vmem:[%s857 + $0x170] sm:$0xff]
      %v890 = vld [vmem:[%s857 + $0x1] sm:$0xff]
      %v891 = vld [vmem:[%s857 + $0x9] sm:$0xff]
      %v892 = vld [vmem:[%s857 + $0x19] sm:$0xff]
      %v893 = vld [vmem:[%s857 + $0x21] sm:$0xff]
      %v894 = vld [vmem:[%s857 + $0x31] sm:$0xff]
      %v895 = vld [vmem:[%s857 + $0x39] sm:$0xff]
      %v896 = vld [vmem:[%s857 + $0x49] sm:$0xff]
      %v897 = vld [vmem:[%s857 + $0x51] sm:$0xff]
      %v898 = vld [vmem:[%s857 + $0x61] sm:$0xff]
      %v899 = vld [vmem:[%s857 + $0x69] sm:$0xff]
      %v900 = vld [vmem:[%s857 + $0x79] sm:$0xff]
      %v901 = vld [vmem:[%s857 + $0x81] sm:$0xff]
      %v902 = vld [vmem:[%s857 + $0x91] sm:$0xff]
      %v903 = vld [vmem:[%s857 + $0x99] sm:$0xff]
      %v904 = vld [vmem:[%s857 + $0xa9] sm:$0xff]
      %v905 = vld [vmem:[%s857 + $0xb1] sm:$0xff]
      %v906 = vld [vmem:[%s857 + $0xc1] sm:$0xff]
      %v907 = vld [vmem:[%s857 + $0xc9] sm:$0xff]
      %v908 = vld [vmem:[%s857 + $0xd9] sm:$0xff]
      %v909 = vld [vmem:[%s857 + $0xe1] sm:$0xff]
      %v910 = vld [vmem:[%s857 + $0xf1] sm:$0xff]
      %v911 = vld [vmem:[%s857 + $0xf9] sm:$0xff]
      %v912 = vld [vmem:[%s857 + $0x109] sm:$0xff]
      %v913 = vld [vmem:[%s857 + $0x111] sm:$0xff]
      %v914 = vld [vmem:[%s857 + $0x121] sm:$0xff]
      %v915 = vld [vmem:[%s857 + $0x129] sm:$0xff]
      %v916 = vld [vmem:[%s857 + $0x139] sm:$0xff]
      %v917 = vld [vmem:[%s857 + $0x141] sm:$0xff]
      %v918 = vld [vmem:[%s857 + $0x151] sm:$0xff]
      %v919 = vld [vmem:[%s857 + $0x159] sm:$0xff]
      %v920 = vld [vmem:[%s857 + $0x169] sm:$0xff]
      %v921 = vld [vmem:[%s857 + $0x171] sm:$0xff]
      %v922 = vld [vmem:[%s857 + $0x2] sm:$0xff]
      %v923 = vld [vmem:[%s857 + $0xa] sm:$0xff]
      %v924 = vld [vmem:[%s857 + $0x1a] sm:$0xff]
      %v925 = vld [vmem:[%s857 + $0x22] sm:$0xff]
      %v926 = vld [vmem:[%s857 + $0x32] sm:$0xff]
      %v927 = vld [vmem:[%s857 + $0x3a] sm:$0xff]
      %v928 = vld [vmem:[%s857 + $0x4a] sm:$0xff]
      %v929 = vld [vmem:[%s857 + $0x52] sm:$0xff]
      %v930 = vld [vmem:[%s857 + $0x62] sm:$0xff]
      %v931 = vld [vmem:[%s857 + $0x6a] sm:$0xff]
      %v932 = vld [vmem:[%s857 + $0x7a] sm:$0xff]
      %v933 = vld [vmem:[%s857 + $0x82] sm:$0xff]
      %v934 = vld [vmem:[%s857 + $0x92] sm:$0xff]
      %v935 = vld [vmem:[%s857 + $0x9a] sm:$0xff]
      %v936 = vld [vmem:[%s857 + $0xaa] sm:$0xff]
      %v937 = vld [vmem:[%s857 + $0xb2] sm:$0xff]
      %v938 = vld [vmem:[%s857 + $0xc2] sm:$0xff]
      %v939 = vld [vmem:[%s857 + $0xca] sm:$0xff]
      %v940 = vld [vmem:[%s857 + $0xda] sm:$0xff]
      %v941 = vld [vmem:[%s857 + $0xe2] sm:$0xff]
      %v942 = vld [vmem:[%s857 + $0xf2] sm:$0xff]
      %v943 = vld [vmem:[%s857 + $0xfa] sm:$0xff]
      %v944 = vld [vmem:[%s857 + $0x10a] sm:$0xff]
      %v945 = vld [vmem:[%s857 + $0x112] sm:$0xff]
      %v946 = vld [vmem:[%s857 + $0x122] sm:$0xff]
      %v947 = vld [vmem:[%s857 + $0x12a] sm:$0xff]
      %v948 = vld [vmem:[%s857 + $0x13a] sm:$0xff]
      %v949 = vld [vmem:[%s857 + $0x142] sm:$0xff]
      %v950 = vld [vmem:[%s857 + $0x152] sm:$0xff]
      %v951 = vld [vmem:[%s857 + $0x15a] sm:$0xff]
      %v952 = vld [vmem:[%s857 + $0x16a] sm:$0xff]
      %v953 = vld [vmem:[%s857 + $0x172] sm:$0xff]
      %986 = vrot.lane.b32.xlu0 %v697, 4
      %v987 = vpop.permute.xlu0 %986
      %988 = vrot.lane.b32.xlu0 %v698, 4
      %v989 = vpop.permute.xlu0 %988
      %990 = vrot.lane.b32.xlu0 %v699, 4
      %v991 = vpop.permute.xlu0 %990
      %992 = vrot.lane.b32.xlu0 %v700, 4
      %v993 = vpop.permute.xlu0 %992
      %994 = vrot.lane.b32.xlu0 %v701, 4
      %v995 = vpop.permute.xlu0 %994
      %996 = vrot.lane.b32.xlu0 %v702, 4
      %v997 = vpop.permute.xlu0 %996
      %998 = vrot.lane.b32.xlu0 %v703, 4
      %v999 = vpop.permute.xlu0 %998
      %1000 = vrot.lane.b32.xlu0 %v704, 4
      %v1001 = vpop.permute.xlu0 %1000
      %1002 = vrot.lane.b32.xlu0 %v705, 4
      %v1003 = vpop.permute.xlu0 %1002
      %1004 = vrot.lane.b32.xlu0 %v706, 4
      %v1005 = vpop.permute.xlu0 %1004
      %1006 = vrot.lane.b32.xlu0 %v707, 4
      %v1007 = vpop.permute.xlu0 %1006
      %1008 = vrot.lane.b32.xlu0 %v708, 4
      %v1009 = vpop.permute.xlu0 %1008
      %1010 = vrot.lane.b32.xlu0 %v709, 4
      %v1011 = vpop.permute.xlu0 %1010
      %1012 = vrot.lane.b32.xlu0 %v710, 4
      %v1013 = vpop.permute.xlu0 %1012
      %1014 = vrot.lane.b32.xlu0 %v711, 4
      %v1015 = vpop.permute.xlu0 %1014
      %1016 = vrot.lane.b32.xlu0 %v712, 4
      %v1017 = vpop.permute.xlu0 %1016
      %1018 = vrot.lane.b32.xlu0 %v713, 4
      %v1019 = vpop.permute.xlu0 %1018
      %1020 = vrot.lane.b32.xlu0 %v714, 4
      %v1021 = vpop.permute.xlu0 %1020
      %1022 = vrot.lane.b32.xlu0 %v715, 4
      %v1023 = vpop.permute.xlu0 %1022
      %1024 = vrot.lane.b32.xlu0 %v716, 4
      %v1025 = vpop.permute.xlu0 %1024
      %1026 = vrot.lane.b32.xlu0 %v717, 4
      %v1027 = vpop.permute.xlu0 %1026
      %1028 = vrot.lane.b32.xlu0 %v718, 4
      %v1029 = vpop.permute.xlu0 %1028
      %1030 = vrot.lane.b32.xlu0 %v719, 4
      %v1031 = vpop.permute.xlu0 %1030
      %1032 = vrot.lane.b32.xlu0 %v720, 4
      %v1033 = vpop.permute.xlu0 %1032
      %1034 = vrot.lane.b32.xlu0 %v721, 4
      %v1035 = vpop.permute.xlu0 %1034
      %1036 = vrot.lane.b32.xlu0 %v722, 4
      %v1037 = vpop.permute.xlu0 %1036
      %1038 = vrot.lane.b32.xlu0 %v723, 4
      %v1039 = vpop.permute.xlu0 %1038
      %1040 = vrot.lane.b32.xlu0 %v724, 4
      %v1041 = vpop.permute.xlu0 %1040
      %1042 = vrot.lane.b32.xlu0 %v725, 4
      %v1043 = vpop.permute.xlu0 %1042
      %1044 = vrot.lane.b32.xlu0 %v726, 4
      %v1045 = vpop.permute.xlu0 %1044
      %1046 = vrot.lane.b32.xlu0 %v727, 4
      %v1047 = vpop.permute.xlu0 %1046
      %1048 = vrot.lane.b32.xlu0 %v728, 4
      %v1049 = vpop.permute.xlu0 %1048
      %1114 = vrot.lane.b32.xlu0 %v729, 8
      %v1115 = vpop.permute.xlu0 %1114
      %1116 = vrot.lane.b32.xlu0 %v730, 8
      %v1117 = vpop.permute.xlu0 %1116
      %1118 = vrot.lane.b32.xlu0 %v731, 8
      %v1119 = vpop.permute.xlu0 %1118
      %1120 = vrot.lane.b32.xlu0 %v732, 8
      %v1121 = vpop.permute.xlu0 %1120
      %1122 = vrot.lane.b32.xlu0 %v733, 8
      %v1123 = vpop.permute.xlu0 %1122
      %1124 = vrot.lane.b32.xlu0 %v734, 8
      %v1125 = vpop.permute.xlu0 %1124
      %1126 = vrot.lane.b32.xlu0 %v735, 8
      %v1127 = vpop.permute.xlu0 %1126
      %1128 = vrot.lane.b32.xlu0 %v736, 8
      %v1129 = vpop.permute.xlu0 %1128
      %1130 = vrot.lane.b32.xlu0 %v737, 8
      %v1131 = vpop.permute.xlu0 %1130
      %1132 = vrot.lane.b32.xlu0 %v738, 8
      %v1133 = vpop.permute.xlu0 %1132
      %1134 = vrot.lane.b32.xlu0 %v739, 8
      %v1135 = vpop.permute.xlu0 %1134
      %1136 = vrot.lane.b32.xlu0 %v740, 8
      %v1137 = vpop.permute.xlu0 %1136
      %1138 = vrot.lane.b32.xlu0 %v741, 8
      %v1139 = vpop.permute.xlu0 %1138
      %1140 = vrot.lane.b32.xlu0 %v742, 8
      %v1141 = vpop.permute.xlu0 %1140
      %1142 = vrot.lane.b32.xlu0 %v743, 8
      %v1143 = vpop.permute.xlu0 %1142
      %1144 = vrot.lane.b32.xlu0 %v744, 8
      %v1145 = vpop.permute.xlu0 %1144
      %1146 = vrot.lane.b32.xlu0 %v745, 8
      %v1147 = vpop.permute.xlu0 %1146
      %1148 = vrot.lane.b32.xlu0 %v746, 8
      %v1149 = vpop.permute.xlu0 %1148
      %1150 = vrot.lane.b32.xlu0 %v747, 8
      %v1151 = vpop.permute.xlu0 %1150
      %1152 = vrot.lane.b32.xlu0 %v748, 8
      %v1153 = vpop.permute.xlu0 %1152
      %1154 = vrot.lane.b32.xlu0 %v749, 8
      %v1155 = vpop.permute.xlu0 %1154
      %1156 = vrot.lane.b32.xlu0 %v750, 8
      %v1157 = vpop.permute.xlu0 %1156
      %1158 = vrot.lane.b32.xlu0 %v751, 8
      %v1159 = vpop.permute.xlu0 %1158
      %1160 = vrot.lane.b32.xlu0 %v752, 8
      %v1161 = vpop.permute.xlu0 %1160
      %1162 = vrot.lane.b32.xlu0 %v753, 8
      %v1163 = vpop.permute.xlu0 %1162
      %1164 = vrot.lane.b32.xlu0 %v754, 8
      %v1165 = vpop.permute.xlu0 %1164
      %1166 = vrot.lane.b32.xlu0 %v755, 8
      %v1167 = vpop.permute.xlu0 %1166
      %1168 = vrot.lane.b32.xlu0 %v756, 8
      %v1169 = vpop.permute.xlu0 %1168
      %1170 = vrot.lane.b32.xlu0 %v757, 8
      %v1171 = vpop.permute.xlu0 %1170
      %1172 = vrot.lane.b32.xlu0 %v758, 8
      %v1173 = vpop.permute.xlu0 %1172
      %1174 = vrot.lane.b32.xlu0 %v759, 8
      %v1175 = vpop.permute.xlu0 %1174
      %1176 = vrot.lane.b32.xlu0 %v760, 8
      %v1177 = vpop.permute.xlu0 %1176
      %1242 = vrot.lane.b32.xlu0 %v761, 12
      %v1243 = vpop.permute.xlu0 %1242
      %1244 = vrot.lane.b32.xlu0 %v762, 12
      %v1245 = vpop.permute.xlu0 %1244
      %1246 = vrot.lane.b32.xlu0 %v763, 12
      %v1247 = vpop.permute.xlu0 %1246
      %1248 = vrot.lane.b32.xlu0 %v764, 12
      %v1249 = vpop.permute.xlu0 %1248
      %1250 = vrot.lane.b32.xlu0 %v765, 12
      %v1251 = vpop.permute.xlu0 %1250
      %1252 = vrot.lane.b32.xlu0 %v766, 12
      %v1253 = vpop.permute.xlu0 %1252
      %1254 = vrot.lane.b32.xlu0 %v767, 12
      %v1255 = vpop.permute.xlu0 %1254
      %1256 = vrot.lane.b32.xlu0 %v768, 12
      %v1257 = vpop.permute.xlu0 %1256
      %1258 = vrot.lane.b32.xlu0 %v769, 12
      %v1259 = vpop.permute.xlu0 %1258
      %1260 = vrot.lane.b32.xlu0 %v770, 12
      %v1261 = vpop.permute.xlu0 %1260
      %1262 = vrot.lane.b32.xlu0 %v771, 12
      %v1263 = vpop.permute.xlu0 %1262
      %1264 = vrot.lane.b32.xlu0 %v772, 12
      %v1265 = vpop.permute.xlu0 %1264
      %1266 = vrot.lane.b32.xlu0 %v773, 12
      %v1267 = vpop.permute.xlu0 %1266
      %1268 = vrot.lane.b32.xlu0 %v774, 12
      %v1269 = vpop.permute.xlu0 %1268
      %1270 = vrot.lane.b32.xlu0 %v775, 12
      %v1271 = vpop.permute.xlu0 %1270
      %1272 = vrot.lane.b32.xlu0 %v776, 12
      %v1273 = vpop.permute.xlu0 %1272
      %1274 = vrot.lane.b32.xlu0 %v777, 12
      %v1275 = vpop.permute.xlu0 %1274
      %1276 = vrot.lane.b32.xlu0 %v778, 12
      %v1277 = vpop.permute.xlu0 %1276
      %1278 = vrot.lane.b32.xlu0 %v779, 12
      %v1279 = vpop.permute.xlu0 %1278
      %1280 = vrot.lane.b32.xlu0 %v780, 12
      %v1281 = vpop.permute.xlu0 %1280
      %1282 = vrot.lane.b32.xlu0 %v781, 12
      %v1283 = vpop.permute.xlu0 %1282
      %1284 = vrot.lane.b32.xlu0 %v782, 12
      %v1285 = vpop.permute.xlu0 %1284
      %1286 = vrot.lane.b32.xlu0 %v783, 12
      %v1287 = vpop.permute.xlu0 %1286
      %1288 = vrot.lane.b32.xlu0 %v784, 12
      %v1289 = vpop.permute.xlu0 %1288
      %1290 = vrot.lane.b32.xlu0 %v785, 12
      %v1291 = vpop.permute.xlu0 %1290
      %1292 = vrot.lane.b32.xlu0 %v786, 12
      %v1293 = vpop.permute.xlu0 %1292
      %1294 = vrot.lane.b32.xlu0 %v787, 12
      %v1295 = vpop.permute.xlu0 %1294
      %1296 = vrot.lane.b32.xlu0 %v788, 12
      %v1297 = vpop.permute.xlu0 %1296
      %1298 = vrot.lane.b32.xlu0 %v789, 12
      %v1299 = vpop.permute.xlu0 %1298
      %1300 = vrot.lane.b32.xlu0 %v790, 12
      %v1301 = vpop.permute.xlu0 %1300
      %1302 = vrot.lane.b32.xlu0 %v791, 12
      %v1303 = vpop.permute.xlu0 %1302
      %1304 = vrot.lane.b32.xlu0 %v792, 12
      %v1305 = vpop.permute.xlu0 %1304
      %1370 = vrot.lane.b32.xlu0 %v793, 16
      %v1371 = vpop.permute.xlu0 %1370
      %1372 = vrot.lane.b32.xlu0 %v794, 16
      %v1373 = vpop.permute.xlu0 %1372
      %1374 = vrot.lane.b32.xlu0 %v795, 16
      %v1375 = vpop.permute.xlu0 %1374
      %1376 = vrot.lane.b32.xlu0 %v796, 16
      %v1377 = vpop.permute.xlu0 %1376
      %1378 = vrot.lane.b32.xlu0 %v797, 16
      %v1379 = vpop.permute.xlu0 %1378
      %1380 = vrot.lane.b32.xlu0 %v798, 16
      %v1381 = vpop.permute.xlu0 %1380
      %1382 = vrot.lane.b32.xlu0 %v799, 16
      %v1383 = vpop.permute.xlu0 %1382
      %1384 = vrot.lane.b32.xlu0 %v800, 16
      %v1385 = vpop.permute.xlu0 %1384
      %1386 = vrot.lane.b32.xlu0 %v801, 16
      %v1387 = vpop.permute.xlu0 %1386
      %1388 = vrot.lane.b32.xlu0 %v802, 16
      %v1389 = vpop.permute.xlu0 %1388
      %1390 = vrot.lane.b32.xlu0 %v803, 16
      %v1391 = vpop.permute.xlu0 %1390
      %1392 = vrot.lane.b32.xlu0 %v804, 16
      %v1393 = vpop.permute.xlu0 %1392
      %1394 = vrot.lane.b32.xlu0 %v805, 16
      %v1395 = vpop.permute.xlu0 %1394
      %1396 = vrot.lane.b32.xlu0 %v806, 16
      %v1397 = vpop.permute.xlu0 %1396
      %1398 = vrot.lane.b32.xlu0 %v807, 16
      %v1399 = vpop.permute.xlu0 %1398
      %1400 = vrot.lane.b32.xlu0 %v808, 16
      %v1401 = vpop.permute.xlu0 %1400
      %1402 = vrot.lane.b32.xlu0 %v809, 16
      %v1403 = vpop.permute.xlu0 %1402
      %1404 = vrot.lane.b32.xlu0 %v810, 16
      %v1405 = vpop.permute.xlu0 %1404
      %1406 = vrot.lane.b32.xlu0 %v811, 16
      %v1407 = vpop.permute.xlu0 %1406
      %1408 = vrot.lane.b32.xlu0 %v812, 16
      %v1409 = vpop.permute.xlu0 %1408
      %1410 = vrot.lane.b32.xlu0 %v813, 16
      %v1411 = vpop.permute.xlu0 %1410
      %1412 = vrot.lane.b32.xlu0 %v814, 16
      %v1413 = vpop.permute.xlu0 %1412
      %1414 = vrot.lane.b32.xlu0 %v815, 16
      %v1415 = vpop.permute.xlu0 %1414
      %1416 = vrot.lane.b32.xlu0 %v816, 16
      %v1417 = vpop.permute.xlu0 %1416
      %1418 = vrot.lane.b32.xlu0 %v817, 16
      %v1419 = vpop.permute.xlu0 %1418
      %1420 = vrot.lane.b32.xlu0 %v818, 16
      %v1421 = vpop.permute.xlu0 %1420
      %1422 = vrot.lane.b32.xlu0 %v819, 16
      %v1423 = vpop.permute.xlu0 %1422
      %1424 = vrot.lane.b32.xlu0 %v820, 16
      %v1425 = vpop.permute.xlu0 %1424
      %1426 = vrot.lane.b32.xlu0 %v821, 16
      %v1427 = vpop.permute.xlu0 %1426
      %1428 = vrot.lane.b32.xlu0 %v822, 16
      %v1429 = vpop.permute.xlu0 %1428
      %1430 = vrot.lane.b32.xlu0 %v823, 16
      %v1431 = vpop.permute.xlu0 %1430
      %1432 = vrot.lane.b32.xlu0 %v824, 16
      %v1433 = vpop.permute.xlu0 %1432
      %1498 = vrot.lane.b32.xlu0 %v825, 20
      %v1499 = vpop.permute.xlu0 %1498
      %1500 = vrot.lane.b32.xlu0 %v826, 20
      %v1501 = vpop.permute.xlu0 %1500
      %1502 = vrot.lane.b32.xlu0 %v827, 20
      %v1503 = vpop.permute.xlu0 %1502
      %1504 = vrot.lane.b32.xlu0 %v828, 20
      %v1505 = vpop.permute.xlu0 %1504
      %1506 = vrot.lane.b32.xlu0 %v829, 20
      %v1507 = vpop.permute.xlu0 %1506
      %1508 = vrot.lane.b32.xlu0 %v830, 20
      %v1509 = vpop.permute.xlu0 %1508
      %1510 = vrot.lane.b32.xlu0 %v831, 20
      %v1511 = vpop.permute.xlu0 %1510
      %1512 = vrot.lane.b32.xlu0 %v832, 20
      %v1513 = vpop.permute.xlu0 %1512
      %1514 = vrot.lane.b32.xlu0 %v833, 20
      %v1515 = vpop.permute.xlu0 %1514
      %1516 = vrot.lane.b32.xlu0 %v834, 20
      %v1517 = vpop.permute.xlu0 %1516
      %1518 = vrot.lane.b32.xlu0 %v835, 20
      %v1519 = vpop.permute.xlu0 %1518
      %1520 = vrot.lane.b32.xlu0 %v836, 20
      %v1521 = vpop.permute.xlu0 %1520
      %1522 = vrot.lane.b32.xlu0 %v837, 20
      %v1523 = vpop.permute.xlu0 %1522
      %1524 = vrot.lane.b32.xlu0 %v838, 20
      %v1525 = vpop.permute.xlu0 %1524
      %1526 = vrot.lane.b32.xlu0 %v839, 20
      %v1527 = vpop.permute.xlu0 %1526
      %1528 = vrot.lane.b32.xlu0 %v840, 20
      %v1529 = vpop.permute.xlu0 %1528
      %1530 = vrot.lane.b32.xlu0 %v841, 20
      %v1531 = vpop.permute.xlu0 %1530
      %1532 = vrot.lane.b32.xlu0 %v842, 20
      %v1533 = vpop.permute.xlu0 %1532
      %1534 = vrot.lane.b32.xlu0 %v843, 20
      %v1535 = vpop.permute.xlu0 %1534
      %1536 = vrot.lane.b32.xlu0 %v844, 20
      %v1537 = vpop.permute.xlu0 %1536
      %1538 = vrot.lane.b32.xlu0 %v845, 20
      %v1539 = vpop.permute.xlu0 %1538
      %1540 = vrot.lane.b32.xlu0 %v846, 20
      %v1541 = vpop.permute.xlu0 %1540
      %1542 = vrot.lane.b32.xlu0 %v847, 20
      %v1543 = vpop.permute.xlu0 %1542
      %1544 = vrot.lane.b32.xlu0 %v848, 20
      %v1545 = vpop.permute.xlu0 %1544
      %1546 = vrot.lane.b32.xlu0 %v849, 20
      %v1547 = vpop.permute.xlu0 %1546
      %1548 = vrot.lane.b32.xlu0 %v850, 20
      %v1549 = vpop.permute.xlu0 %1548
      %1550 = vrot.lane.b32.xlu0 %v851, 20
      %v1551 = vpop.permute.xlu0 %1550
      %1552 = vrot.lane.b32.xlu0 %v852, 20
      %v1553 = vpop.permute.xlu0 %1552
      %1554 = vrot.lane.b32.xlu0 %v853, 20
      %v1555 = vpop.permute.xlu0 %1554
      %1556 = vrot.lane.b32.xlu0 %v854, 20
      %v1557 = vpop.permute.xlu0 %1556
      %1558 = vrot.lane.b32.xlu0 %v855, 20
      %v1559 = vpop.permute.xlu0 %1558
      %1560 = vrot.lane.b32.xlu0 %v856, 20
      %v1561 = vpop.permute.xlu0 %1560
      %1626 = vrot.lane.b32.xlu0 %v858, 24
      %v1627 = vpop.permute.xlu0 %1626
      %1628 = vrot.lane.b32.xlu0 %v859, 24
      %v1629 = vpop.permute.xlu0 %1628
      %1630 = vrot.lane.b32.xlu0 %v860, 24
      %v1631 = vpop.permute.xlu0 %1630
      %1632 = vrot.lane.b32.xlu0 %v861, 24
      %v1633 = vpop.permute.xlu0 %1632
      %1634 = vrot.lane.b32.xlu0 %v862, 24
      %v1635 = vpop.permute.xlu0 %1634
      %1636 = vrot.lane.b32.xlu0 %v863, 24
      %v1637 = vpop.permute.xlu0 %1636
      %1638 = vrot.lane.b32.xlu0 %v864, 24
      %v1639 = vpop.permute.xlu0 %1638
      %1640 = vrot.lane.b32.xlu0 %v865, 24
      %v1641 = vpop.permute.xlu0 %1640
      %1642 = vrot.lane.b32.xlu0 %v866, 24
      %v1643 = vpop.permute.xlu0 %1642
      %1644 = vrot.lane.b32.xlu0 %v867, 24
      %v1645 = vpop.permute.xlu0 %1644
      %1646 = vrot.lane.b32.xlu0 %v868, 24
      %v1647 = vpop.permute.xlu0 %1646
      %1648 = vrot.lane.b32.xlu0 %v869, 24
      %v1649 = vpop.permute.xlu0 %1648
      %1650 = vrot.lane.b32.xlu0 %v870, 24
      %v1651 = vpop.permute.xlu0 %1650
      %1652 = vrot.lane.b32.xlu0 %v871, 24
      %v1653 = vpop.permute.xlu0 %1652
      %1654 = vrot.lane.b32.xlu0 %v872, 24
      %v1655 = vpop.permute.xlu0 %1654
      %1656 = vrot.lane.b32.xlu0 %v873, 24
      %v1657 = vpop.permute.xlu0 %1656
      %1658 = vrot.lane.b32.xlu0 %v874, 24
      %v1659 = vpop.permute.xlu0 %1658
      %1660 = vrot.lane.b32.xlu0 %v875, 24
      %v1661 = vpop.permute.xlu0 %1660
      %1662 = vrot.lane.b32.xlu0 %v876, 24
      %v1663 = vpop.permute.xlu0 %1662
      %1664 = vrot.lane.b32.xlu0 %v877, 24
      %v1665 = vpop.permute.xlu0 %1664
      %1666 = vrot.lane.b32.xlu0 %v878, 24
      %v1667 = vpop.permute.xlu0 %1666
      %1668 = vrot.lane.b32.xlu0 %v879, 24
      %v1669 = vpop.permute.xlu0 %1668
      %1670 = vrot.lane.b32.xlu0 %v880, 24
      %v1671 = vpop.permute.xlu0 %1670
      %1672 = vrot.lane.b32.xlu0 %v881, 24
      %v1673 = vpop.permute.xlu0 %1672
      %1674 = vrot.lane.b32.xlu0 %v882, 24
      %v1675 = vpop.permute.xlu0 %1674
      %1676 = vrot.lane.b32.xlu0 %v883, 24
      %v1677 = vpop.permute.xlu0 %1676
      %1678 = vrot.lane.b32.xlu0 %v884, 24
      %v1679 = vpop.permute.xlu0 %1678
      %1680 = vrot.lane.b32.xlu0 %v885, 24
      %v1681 = vpop.permute.xlu0 %1680
      %1682 = vrot.lane.b32.xlu0 %v886, 24
      %v1683 = vpop.permute.xlu0 %1682
      %1684 = vrot.lane.b32.xlu0 %v887, 24
      %v1685 = vpop.permute.xlu0 %1684
      %1686 = vrot.lane.b32.xlu0 %v888, 24
      %v1687 = vpop.permute.xlu0 %1686
      %1688 = vrot.lane.b32.xlu0 %v889, 24
      %v1689 = vpop.permute.xlu0 %1688
      %1754 = vrot.lane.b32.xlu0 %v890, 28
      %v1755 = vpop.permute.xlu0 %1754
      %1756 = vrot.lane.b32.xlu0 %v891, 28
      %v1757 = vpop.permute.xlu0 %1756
      %1758 = vrot.lane.b32.xlu0 %v892, 28
      %v1759 = vpop.permute.xlu0 %1758
      %1760 = vrot.lane.b32.xlu0 %v893, 28
      %v1761 = vpop.permute.xlu0 %1760
      %1762 = vrot.lane.b32.xlu0 %v894, 28
      %v1763 = vpop.permute.xlu0 %1762
      %1764 = vrot.lane.b32.xlu0 %v895, 28
      %v1765 = vpop.permute.xlu0 %1764
      %1766 = vrot.lane.b32.xlu0 %v896, 28
      %v1767 = vpop.permute.xlu0 %1766
      %1768 = vrot.lane.b32.xlu0 %v897, 28
      %v1769 = vpop.permute.xlu0 %1768
      %1770 = vrot.lane.b32.xlu0 %v898, 28
      %v1771 = vpop.permute.xlu0 %1770
      %1772 = vrot.lane.b32.xlu0 %v899, 28
      %v1773 = vpop.permute.xlu0 %1772
      %1774 = vrot.lane.b32.xlu0 %v900, 28
      %v1775 = vpop.permute.xlu0 %1774
      %1776 = vrot.lane.b32.xlu0 %v901, 28
      %v1777 = vpop.permute.xlu0 %1776
      %1778 = vrot.lane.b32.xlu0 %v902, 28
      %v1779 = vpop.permute.xlu0 %1778
      %1780 = vrot.lane.b32.xlu0 %v903, 28
      %v1781 = vpop.permute.xlu0 %1780
      %1782 = vrot.lane.b32.xlu0 %v904, 28
      %v1783 = vpop.permute.xlu0 %1782
      %1784 = vrot.lane.b32.xlu0 %v905, 28
      %v1785 = vpop.permute.xlu0 %1784
      %1786 = vrot.lane.b32.xlu0 %v906, 28
      %v1787 = vpop.permute.xlu0 %1786
      %1788 = vrot.lane.b32.xlu0 %v907, 28
      %v1789 = vpop.permute.xlu0 %1788
      %1790 = vrot.lane.b32.xlu0 %v908, 28
      %v1791 = vpop.permute.xlu0 %1790
      %1792 = vrot.lane.b32.xlu0 %v909, 28
      %v1793 = vpop.permute.xlu0 %1792
      %1794 = vrot.lane.b32.xlu0 %v910, 28
      %v1795 = vpop.permute.xlu0 %1794
      %1796 = vrot.lane.b32.xlu0 %v911, 28
      %v1797 = vpop.permute.xlu0 %1796
      %1798 = vrot.lane.b32.xlu0 %v912, 28
      %v1799 = vpop.permute.xlu0 %1798
      %1800 = vrot.lane.b32.xlu0 %v913, 28
      %v1801 = vpop.permute.xlu0 %1800
      %1802 = vrot.lane.b32.xlu0 %v914, 28
      %v1803 = vpop.permute.xlu0 %1802
      %1804 = vrot.lane.b32.xlu0 %v915, 28
      %v1805 = vpop.permute.xlu0 %1804
      %1806 = vrot.lane.b32.xlu0 %v916, 28
      %v1807 = vpop.permute.xlu0 %1806
      %1808 = vrot.lane.b32.xlu0 %v917, 28
      %v1809 = vpop.permute.xlu0 %1808
      %1810 = vrot.lane.b32.xlu0 %v918, 28
      %v1811 = vpop.permute.xlu0 %1810
      %1812 = vrot.lane.b32.xlu0 %v919, 28
      %v1813 = vpop.permute.xlu0 %1812
      %1814 = vrot.lane.b32.xlu0 %v920, 28
      %v1815 = vpop.permute.xlu0 %1814
      %1816 = vrot.lane.b32.xlu0 %v921, 28
      %v1817 = vpop.permute.xlu0 %1816
      %1882 = vrot.lane.b32.xlu0 %v922, 32
      %v1883 = vpop.permute.xlu0 %1882
      %1884 = vrot.lane.b32.xlu0 %v923, 32
      %v1885 = vpop.permute.xlu0 %1884
      %1886 = vrot.lane.b32.xlu0 %v924, 32
      %v1887 = vpop.permute.xlu0 %1886
      %1888 = vrot.lane.b32.xlu0 %v925, 32
      %v1889 = vpop.permute.xlu0 %1888
      %1890 = vrot.lane.b32.xlu0 %v926, 32
      %v1891 = vpop.permute.xlu0 %1890
      %1892 = vrot.lane.b32.xlu0 %v927, 32
      %v1893 = vpop.permute.xlu0 %1892
      %1894 = vrot.lane.b32.xlu0 %v928, 32
      %v1895 = vpop.permute.xlu0 %1894
      %1896 = vrot.lane.b32.xlu0 %v929, 32
      %v1897 = vpop.permute.xlu0 %1896
      %1898 = vrot.lane.b32.xlu0 %v930, 32
      %v1899 = vpop.permute.xlu0 %1898
      %1900 = vrot.lane.b32.xlu0 %v931, 32
      %v1901 = vpop.permute.xlu0 %1900
      %1902 = vrot.lane.b32.xlu0 %v932, 32
      %v1903 = vpop.permute.xlu0 %1902
      %1904 = vrot.lane.b32.xlu0 %v933, 32
      %v1905 = vpop.permute.xlu0 %1904
      %1906 = vrot.lane.b32.xlu0 %v934, 32
      %v1907 = vpop.permute.xlu0 %1906
      %1908 = vrot.lane.b32.xlu0 %v935, 32
      %v1909 = vpop.permute.xlu0 %1908
      %1910 = vrot.lane.b32.xlu0 %v936, 32
      %v1911 = vpop.permute.xlu0 %1910
      %1912 = vrot.lane.b32.xlu0 %v937, 32
      %v1913 = vpop.permute.xlu0 %1912
      %1914 = vrot.lane.b32.xlu0 %v938, 32
      %v1915 = vpop.permute.xlu0 %1914
      %1916 = vrot.lane.b32.xlu0 %v939, 32
      %v1917 = vpop.permute.xlu0 %1916
      %1918 = vrot.lane.b32.xlu0 %v940, 32
      %v1919 = vpop.permute.xlu0 %1918
      %1920 = vrot.lane.b32.xlu0 %v941, 32
      %v1921 = vpop.permute.xlu0 %1920
      %1922 = vrot.lane.b32.xlu0 %v942, 32
      %v1923 = vpop.permute.xlu0 %1922
      %1924 = vrot.lane.b32.xlu0 %v943, 32
      %v1925 = vpop.permute.xlu0 %1924
      %1926 = vrot.lane.b32.xlu0 %v944, 32
      %v1927 = vpop.permute.xlu0 %1926
      %1928 = vrot.lane.b32.xlu0 %v945, 32
      %v1929 = vpop.permute.xlu0 %1928
      %1930 = vrot.lane.b32.xlu0 %v946, 32
      %v1931 = vpop.permute.xlu0 %1930
      %1932 = vrot.lane.b32.xlu0 %v947, 32
      %v1933 = vpop.permute.xlu0 %1932
      %1934 = vrot.lane.b32.xlu0 %v948, 32
      %v1935 = vpop.permute.xlu0 %1934
      %1936 = vrot.lane.b32.xlu0 %v949, 32
      %v1937 = vpop.permute.xlu0 %1936
      %1938 = vrot.lane.b32.xlu0 %v950, 32
      %v1939 = vpop.permute.xlu0 %1938
      %1940 = vrot.lane.b32.xlu0 %v951, 32
      %v1941 = vpop.permute.xlu0 %1940
      %1942 = vrot.lane.b32.xlu0 %v952, 32
      %v1943 = vpop.permute.xlu0 %1942
      %1944 = vrot.lane.b32.xlu0 %v953, 32
      %v1945 = vpop.permute.xlu0 %1944
      %v1978 = vsel %vm421, %v665, %v987
      %v1979 = vsel %vm421, %v666, %v989
      %v1980 = vsel %vm421, %v667, %v991
      %v1981 = vsel %vm421, %v668, %v993
      %v1982 = vsel %vm421, %v669, %v995
      %v1983 = vsel %vm421, %v670, %v997
      %v1984 = vsel %vm421, %v671, %v999
      %v1985 = vsel %vm421, %v672, %v1001
      %v1986 = vsel %vm421, %v673, %v1003
      %v1987 = vsel %vm421, %v674, %v1005
      %v1988 = vsel %vm421, %v675, %v1007
      %v1989 = vsel %vm421, %v676, %v1009
      %v1990 = vsel %vm421, %v677, %v1011
      %v1991 = vsel %vm421, %v678, %v1013
      %v1992 = vsel %vm421, %v679, %v1015
      %v1993 = vsel %vm421, %v680, %v1017
      %v1994 = vsel %vm421, %v681, %v1019
      %v1995 = vsel %vm421, %v682, %v1021
      %v1996 = vsel %vm421, %v683, %v1023
      %v1997 = vsel %vm421, %v684, %v1025
      %v1998 = vsel %vm421, %v685, %v1027
      %v1999 = vsel %vm421, %v686, %v1029
      %v2000 = vsel %vm421, %v687, %v1031
      %v2001 = vsel %vm421, %v688, %v1033
      %v2002 = vsel %vm421, %v689, %v1035
      %v2003 = vsel %vm421, %v690, %v1037
      %v2004 = vsel %vm421, %v691, %v1039
      %v2005 = vsel %vm421, %v692, %v1041
      %v2006 = vsel %vm421, %v693, %v1043
      %v2007 = vsel %vm421, %v694, %v1045
      %v2008 = vsel %vm421, %v695, %v1047
      %v2009 = vsel %vm421, %v696, %v1049
      %vm2010 = vcmask 64512
      %v2011 = vsel %vm2010, %v1978, %v1115
      %v2012 = vsel %vm2010, %v1979, %v1117
      %v2013 = vsel %vm2010, %v1980, %v1119
      %v2014 = vsel %vm2010, %v1981, %v1121
      %v2015 = vsel %vm2010, %v1982, %v1123
      %v2016 = vsel %vm2010, %v1983, %v1125
      %v2017 = vsel %vm2010, %v1984, %v1127
      %v2018 = vsel %vm2010, %v1985, %v1129
      %v2019 = vsel %vm2010, %v1986, %v1131
      %v2020 = vsel %vm2010, %v1987, %v1133
      %v2021 = vsel %vm2010, %v1988, %v1135
      %v2022 = vsel %vm2010, %v1989, %v1137
      %v2023 = vsel %vm2010, %v1990, %v1139
      %v2024 = vsel %vm2010, %v1991, %v1141
      %v2025 = vsel %vm2010, %v1992, %v1143
      %v2026 = vsel %vm2010, %v1993, %v1145
      %v2027 = vsel %vm2010, %v1994, %v1147
      %v2028 = vsel %vm2010, %v1995, %v1149
      %v2029 = vsel %vm2010, %v1996, %v1151
      %v2030 = vsel %vm2010, %v1997, %v1153
      %v2031 = vsel %vm2010, %v1998, %v1155
      %v2032 = vsel %vm2010, %v1999, %v1157
      %v2033 = vsel %vm2010, %v2000, %v1159
      %v2034 = vsel %vm2010, %v2001, %v1161
      %v2035 = vsel %vm2010, %v2002, %v1163
      %v2036 = vsel %vm2010, %v2003, %v1165
      %v2037 = vsel %vm2010, %v2004, %v1167
      %v2038 = vsel %vm2010, %v2005, %v1169
      %v2039 = vsel %vm2010, %v2006, %v1171
      %v2040 = vsel %vm2010, %v2007, %v1173
      %v2041 = vsel %vm2010, %v2008, %v1175
      %v2042 = vsel %vm2010, %v2009, %v1177
      %vm2043 = vcmask 97280
      %v2044 = vsel %vm2043, %v2011, %v1243
      %v2045 = vsel %vm2043, %v2012, %v1245
      %v2046 = vsel %vm2043, %v2013, %v1247
      %v2047 = vsel %vm2043, %v2014, %v1249
      %v2048 = vsel %vm2043, %v2015, %v1251
      %v2049 = vsel %vm2043, %v2016, %v1253
      %v2050 = vsel %vm2043, %v2017, %v1255
      %v2051 = vsel %vm2043, %v2018, %v1257
      %v2052 = vsel %vm2043, %v2019, %v1259
      %v2053 = vsel %vm2043, %v2020, %v1261
      %v2054 = vsel %vm2043, %v2021, %v1263
      %v2055 = vsel %vm2043, %v2022, %v1265
      %v2056 = vsel %vm2043, %v2023, %v1267
      %v2057 = vsel %vm2043, %v2024, %v1269
      %v2058 = vsel %vm2043, %v2025, %v1271
      %v2059 = vsel %vm2043, %v2026, %v1273
      %v2060 = vsel %vm2043, %v2027, %v1275
      %v2061 = vsel %vm2043, %v2028, %v1277
      %v2062 = vsel %vm2043, %v2029, %v1279
      %v2063 = vsel %vm2043, %v2030, %v1281
      %v2064 = vsel %vm2043, %v2031, %v1283
      %v2065 = vsel %vm2043, %v2032, %v1285
      %v2066 = vsel %vm2043, %v2033, %v1287
      %v2067 = vsel %vm2043, %v2034, %v1289
      %v2068 = vsel %vm2043, %v2035, %v1291
      %v2069 = vsel %vm2043, %v2036, %v1293
      %v2070 = vsel %vm2043, %v2037, %v1295
      %v2071 = vsel %vm2043, %v2038, %v1297
      %v2072 = vsel %vm2043, %v2039, %v1299
      %v2073 = vsel %vm2043, %v2040, %v1301
      %v2074 = vsel %vm2043, %v2041, %v1303
      %v2075 = vsel %vm2043, %v2042, %v1305
      %vm2076 = vcmask 130048
      %v2077 = vsel %vm2076, %v2044, %v1371
      %v2078 = vsel %vm2076, %v2045, %v1373
      %v2079 = vsel %vm2076, %v2046, %v1375
      %v2080 = vsel %vm2076, %v2047, %v1377
      %v2081 = vsel %vm2076, %v2048, %v1379
      %v2082 = vsel %vm2076, %v2049, %v1381
      %v2083 = vsel %vm2076, %v2050, %v1383
      %v2084 = vsel %vm2076, %v2051, %v1385
      %v2085 = vsel %vm2076, %v2052, %v1387
      %v2086 = vsel %vm2076, %v2053, %v1389
      %v2087 = vsel %vm2076, %v2054, %v1391
      %v2088 = vsel %vm2076, %v2055, %v1393
      %v2089 = vsel %vm2076, %v2056, %v1395
      %v2090 = vsel %vm2076, %v2057, %v1397
      %v2091 = vsel %vm2076, %v2058, %v1399
      %v2092 = vsel %vm2076, %v2059, %v1401
      %v2093 = vsel %vm2076, %v2060, %v1403
      %v2094 = vsel %vm2076, %v2061, %v1405
      %v2095 = vsel %vm2076, %v2062, %v1407
      %v2096 = vsel %vm2076, %v2063, %v1409
      %v2097 = vsel %vm2076, %v2064, %v1411
      %v2098 = vsel %vm2076, %v2065, %v1413
      %v2099 = vsel %vm2076, %v2066, %v1415
      %v2100 = vsel %vm2076, %v2067, %v1417
      %v2101 = vsel %vm2076, %v2068, %v1419
      %v2102 = vsel %vm2076, %v2069, %v1421
      %v2103 = vsel %vm2076, %v2070, %v1423
      %v2104 = vsel %vm2076, %v2071, %v1425
      %v2105 = vsel %vm2076, %v2072, %v1427
      %v2106 = vsel %vm2076, %v2073, %v1429
      %v2107 = vsel %vm2076, %v2074, %v1431
      %v2108 = vsel %vm2076, %v2075, %v1433
      %vm2109 = vcmask 162816
      %v2110 = vsel %vm2109, %v2077, %v1499
      %v2111 = vsel %vm2109, %v2078, %v1501
      %v2112 = vsel %vm2109, %v2079, %v1503
      %v2113 = vsel %vm2109, %v2080, %v1505
      %v2114 = vsel %vm2109, %v2081, %v1507
      %v2115 = vsel %vm2109, %v2082, %v1509
      %v2116 = vsel %vm2109, %v2083, %v1511
      %v2117 = vsel %vm2109, %v2084, %v1513
      %v2118 = vsel %vm2109, %v2085, %v1515
      %v2119 = vsel %vm2109, %v2086, %v1517
      %v2120 = vsel %vm2109, %v2087, %v1519
      %v2121 = vsel %vm2109, %v2088, %v1521
      %v2122 = vsel %vm2109, %v2089, %v1523
      %v2123 = vsel %vm2109, %v2090, %v1525
      %v2124 = vsel %vm2109, %v2091, %v1527
      %v2125 = vsel %vm2109, %v2092, %v1529
      %v2126 = vsel %vm2109, %v2093, %v1531
      %v2127 = vsel %vm2109, %v2094, %v1533
      %v2128 = vsel %vm2109, %v2095, %v1535
      %v2129 = vsel %vm2109, %v2096, %v1537
      %v2130 = vsel %vm2109, %v2097, %v1539
      %v2131 = vsel %vm2109, %v2098, %v1541
      %v2132 = vsel %vm2109, %v2099, %v1543
      %v2133 = vsel %vm2109, %v2100, %v1545
      %v2134 = vsel %vm2109, %v2101, %v1547
      %v2135 = vsel %vm2109, %v2102, %v1549
      %v2136 = vsel %vm2109, %v2103, %v1551
      %v2137 = vsel %vm2109, %v2104, %v1553
      %v2138 = vsel %vm2109, %v2105, %v1555
      %v2139 = vsel %vm2109, %v2106, %v1557
      %v2140 = vsel %vm2109, %v2107, %v1559
      %v2141 = vsel %vm2109, %v2108, %v1561
      %vm2142 = vcmask 195584
      %v2143 = vsel %vm2142, %v2110, %v1627
      %v2144 = vsel %vm2142, %v2111, %v1629
      %v2145 = vsel %vm2142, %v2112, %v1631
      %v2146 = vsel %vm2142, %v2113, %v1633
      %v2147 = vsel %vm2142, %v2114, %v1635
      %v2148 = vsel %vm2142, %v2115, %v1637
      %v2149 = vsel %vm2142, %v2116, %v1639
      %v2150 = vsel %vm2142, %v2117, %v1641
      %v2151 = vsel %vm2142, %v2118, %v1643
      %v2152 = vsel %vm2142, %v2119, %v1645
      %v2153 = vsel %vm2142, %v2120, %v1647
      %v2154 = vsel %vm2142, %v2121, %v1649
      %v2155 = vsel %vm2142, %v2122, %v1651
      %v2156 = vsel %vm2142, %v2123, %v1653
      %v2157 = vsel %vm2142, %v2124, %v1655
      %v2158 = vsel %vm2142, %v2125, %v1657
      %v2159 = vsel %vm2142, %v2126, %v1659
      %v2160 = vsel %vm2142, %v2127, %v1661
      %v2161 = vsel %vm2142, %v2128, %v1663
      %v2162 = vsel %vm2142, %v2129, %v1665
      %v2163 = vsel %vm2142, %v2130, %v1667
      %v2164 = vsel %vm2142, %v2131, %v1669
      %v2165 = vsel %vm2142, %v2132, %v1671
      %v2166 = vsel %vm2142, %v2133, %v1673
      %v2167 = vsel %vm2142, %v2134, %v1675
      %v2168 = vsel %vm2142, %v2135, %v1677
      %v2169 = vsel %vm2142, %v2136, %v1679
      %v2170 = vsel %vm2142, %v2137, %v1681
      %v2171 = vsel %vm2142, %v2138, %v1683
      %v2172 = vsel %vm2142, %v2139, %v1685
      %v2173 = vsel %vm2142, %v2140, %v1687
      %v2174 = vsel %vm2142, %v2141, %v1689
      %vm2175 = vcmask 228352
      %v2176 = vsel %vm2175, %v2143, %v1755
      %v2177 = vsel %vm2175, %v2144, %v1757
      %v2178 = vsel %vm2175, %v2145, %v1759
      %v2179 = vsel %vm2175, %v2146, %v1761
      %v2180 = vsel %vm2175, %v2147, %v1763
      %v2181 = vsel %vm2175, %v2148, %v1765
      %v2182 = vsel %vm2175, %v2149, %v1767
      %v2183 = vsel %vm2175, %v2150, %v1769
      %v2184 = vsel %vm2175, %v2151, %v1771
      %v2185 = vsel %vm2175, %v2152, %v1773
      %v2186 = vsel %vm2175, %v2153, %v1775
      %v2187 = vsel %vm2175, %v2154, %v1777
      %v2188 = vsel %vm2175, %v2155, %v1779
      %v2189 = vsel %vm2175, %v2156, %v1781
      %v2190 = vsel %vm2175, %v2157, %v1783
      %v2191 = vsel %vm2175, %v2158, %v1785
      %v2192 = vsel %vm2175, %v2159, %v1787
      %v2193 = vsel %vm2175, %v2160, %v1789
      %v2194 = vsel %vm2175, %v2161, %v1791
      %v2195 = vsel %vm2175, %v2162, %v1793
      %v2196 = vsel %vm2175, %v2163, %v1795
      %v2197 = vsel %vm2175, %v2164, %v1797
      %v2198 = vsel %vm2175, %v2165, %v1799
      %v2199 = vsel %vm2175, %v2166, %v1801
      %v2200 = vsel %vm2175, %v2167, %v1803
      %v2201 = vsel %vm2175, %v2168, %v1805
      %v2202 = vsel %vm2175, %v2169, %v1807
      %v2203 = vsel %vm2175, %v2170, %v1809
      %v2204 = vsel %vm2175, %v2171, %v1811
      %v2205 = vsel %vm2175, %v2172, %v1813
      %v2206 = vsel %vm2175, %v2173, %v1815
      %v2207 = vsel %vm2175, %v2174, %v1817
      %vm2208 = vcmask 261120
      %v2209 = vsel %vm2208, %v2176, %v1883
      %v2210 = vsel %vm2208, %v2177, %v1885
      %v2211 = vsel %vm2208, %v2178, %v1887
      %v2212 = vsel %vm2208, %v2179, %v1889
      %v2213 = vsel %vm2208, %v2180, %v1891
      %v2214 = vsel %vm2208, %v2181, %v1893
      %v2215 = vsel %vm2208, %v2182, %v1895
      %v2216 = vsel %vm2208, %v2183, %v1897
      %v2217 = vsel %vm2208, %v2184, %v1899
      %v2218 = vsel %vm2208, %v2185, %v1901
      %v2219 = vsel %vm2208, %v2186, %v1903
      %v2220 = vsel %vm2208, %v2187, %v1905
      %v2221 = vsel %vm2208, %v2188, %v1907
      %v2222 = vsel %vm2208, %v2189, %v1909
      %v2223 = vsel %vm2208, %v2190, %v1911
      %v2224 = vsel %vm2208, %v2191, %v1913
      %v2225 = vsel %vm2208, %v2192, %v1915
      %v2226 = vsel %vm2208, %v2193, %v1917
      %v2227 = vsel %vm2208, %v2194, %v1919
      %v2228 = vsel %vm2208, %v2195, %v1921
      %v2229 = vsel %vm2208, %v2196, %v1923
      %v2230 = vsel %vm2208, %v2197, %v1925
      %v2231 = vsel %vm2208, %v2198, %v1927
      %v2232 = vsel %vm2208, %v2199, %v1929
      %v2233 = vsel %vm2208, %v2200, %v1931
      %v2234 = vsel %vm2208, %v2201, %v1933
      %v2235 = vsel %vm2208, %v2202, %v1935
      %v2236 = vsel %vm2208, %v2203, %v1937
      %v2237 = vsel %vm2208, %v2204, %v1939
      %v2238 = vsel %vm2208, %v2205, %v1941
      %v2239 = vsel %vm2208, %v2206, %v1943
      %v2240 = vsel %vm2208, %v2207, %v1945
      %v2241 = vld [vmem:[%s2] sm:$0xff]
      %v2242 = vld [vmem:[%s2 + $0x8] sm:$0xff]
      %v2243 = vld [vmem:[%s2 + $0x10] sm:$0xff]
      %v2244 = vld [vmem:[%s2 + $0x18] sm:$0xff]
      %v2245 = vld [vmem:[%s2 + $0x20] sm:$0xf]
      %v2246 = vld [vmem:[#allocation3] sm:$0xff]
      %v2247 = vld [vmem:[#allocation3 + $0x8] sm:$0xff]
      %v2248 = vld [vmem:[#allocation3 + $0x18] sm:$0xff]
      %v2249 = vld [vmem:[#allocation3 + $0x20] sm:$0xff]
      %v2250 = vld [vmem:[#allocation3 + $0x30] sm:$0xff]
      %v2251 = vld [vmem:[#allocation3 + $0x38] sm:$0xff]
      %v2252 = vld [vmem:[#allocation3 + $0x48] sm:$0xff]
      %v2253 = vld [vmem:[#allocation3 + $0x50] sm:$0xff]
      %v2254 = vld [vmem:[#allocation3 + $0x60] sm:$0xff]
      %v2255 = vld [vmem:[#allocation3 + $0x68] sm:$0xff]
      %v2256 = vld [vmem:[#allocation3 + $0x78] sm:$0xff]
      %v2257 = vld [vmem:[#allocation3 + $0x80] sm:$0xff]
      %v2258 = vld [vmem:[#allocation3 + $0x90] sm:$0xff]
      %v2259 = vld [vmem:[#allocation3 + $0x98] sm:$0xff]
      %v2260 = vld [vmem:[#allocation3 + $0xa8] sm:$0xff]
      %v2261 = vld [vmem:[#allocation3 + $0xb0] sm:$0xff]
      %v2262 = vld [vmem:[#allocation3 + $0xc0] sm:$0xff]
      %v2263 = vld [vmem:[#allocation3 + $0xc8] sm:$0xff]
      %v2264 = vld [vmem:[#allocation3 + $0xd8] sm:$0xff]
      %v2265 = vld [vmem:[#allocation3 + $0xe0] sm:$0xff]
      %v2266 = vld [vmem:[#allocation3 + $0xf0] sm:$0xff]
      %v2267 = vld [vmem:[#allocation3 + $0xf8] sm:$0xff]
      %v2268 = vld [vmem:[#allocation3 + $0x108] sm:$0xff]
      %v2269 = vld [vmem:[#allocation3 + $0x110] sm:$0xff]
      %v2270 = vld [vmem:[#allocation3 + $0x120] sm:$0xff]
      %v2271 = vld [vmem:[#allocation3 + $0x128] sm:$0xff]
      %v2272 = vld [vmem:[#allocation3 + $0x138] sm:$0xff]
      %v2273 = vld [vmem:[#allocation3 + $0x140] sm:$0xff]
      %v2274 = vld [vmem:[#allocation3 + $0x150] sm:$0xff]
      %v2275 = vld [vmem:[#allocation3 + $0x158] sm:$0xff]
      %v2276 = vld [vmem:[#allocation3 + $0x168] sm:$0xff]
      %v2277 = vld [vmem:[#allocation3 + $0x170] sm:$0xff]
      %v2278 = vld [vmem:[#allocation3 + $0x1] sm:$0xff]
      %v2279 = vld [vmem:[#allocation3 + $0x9] sm:$0xff]
      %v2280 = vld [vmem:[#allocation3 + $0x19] sm:$0xff]
      %v2281 = vld [vmem:[#allocation3 + $0x21] sm:$0xff]
      %v2282 = vld [vmem:[#allocation3 + $0x31] sm:$0xff]
      %v2283 = vld [vmem:[#allocation3 + $0x39] sm:$0xff]
      %v2284 = vld [vmem:[#allocation3 + $0x49] sm:$0xff]
      %v2285 = vld [vmem:[#allocation3 + $0x51] sm:$0xff]
      %v2286 = vld [vmem:[#allocation3 + $0x61] sm:$0xff]
      %v2287 = vld [vmem:[#allocation3 + $0x69] sm:$0xff]
      %v2288 = vld [vmem:[#allocation3 + $0x79] sm:$0xff]
      %v2289 = vld [vmem:[#allocation3 + $0x81] sm:$0xff]
      %v2290 = vld [vmem:[#allocation3 + $0x91] sm:$0xff]
      %v2291 = vld [vmem:[#allocation3 + $0x99] sm:$0xff]
      %v2292 = vld [vmem:[#allocation3 + $0xa9] sm:$0xff]
      %v2293 = vld [vmem:[#allocation3 + $0xb1] sm:$0xff]
      %v2294 = vld [vmem:[#allocation3 + $0xc1] sm:$0xff]
      %v2295 = vld [vmem:[#allocation3 + $0xc9] sm:$0xff]
      %v2296 = vld [vmem:[#allocation3 + $0xd9] sm:$0xff]
      %v2297 = vld [vmem:[#allocation3 + $0xe1] sm:$0xff]
      %v2298 = vld [vmem:[#allocation3 + $0xf1] sm:$0xff]
      %v2299 = vld [vmem:[#allocation3 + $0xf9] sm:$0xff]
      %v2300 = vld [vmem:[#allocation3 + $0x109] sm:$0xff]
      %v2301 = vld [vmem:[#allocation3 + $0x111] sm:$0xff]
      %v2302 = vld [vmem:[#allocation3 + $0x121] sm:$0xff]
      %v2303 = vld [vmem:[#allocation3 + $0x129] sm:$0xff]
      %v2304 = vld [vmem:[#allocation3 + $0x139] sm:$0xff]
      %v2305 = vld [vmem:[#allocation3 + $0x141] sm:$0xff]
      %v2306 = vld [vmem:[#allocation3 + $0x151] sm:$0xff]
      %v2307 = vld [vmem:[#allocation3 + $0x159] sm:$0xff]
      %v2308 = vld [vmem:[#allocation3 + $0x169] sm:$0xff]
      %v2309 = vld [vmem:[#allocation3 + $0x171] sm:$0xff]
      %v2310 = vld [vmem:[#allocation3 + $0x2] sm:$0xff]
      %v2311 = vld [vmem:[#allocation3 + $0xa] sm:$0xff]
      %v2312 = vld [vmem:[#allocation3 + $0x1a] sm:$0xff]
      %v2313 = vld [vmem:[#allocation3 + $0x22] sm:$0xff]
      %v2314 = vld [vmem:[#allocation3 + $0x32] sm:$0xff]
      %v2315 = vld [vmem:[#allocation3 + $0x3a] sm:$0xff]
      %v2316 = vld [vmem:[#allocation3 + $0x4a] sm:$0xff]
      %v2317 = vld [vmem:[#allocation3 + $0x52] sm:$0xff]
      %v2318 = vld [vmem:[#allocation3 + $0x62] sm:$0xff]
      %v2319 = vld [vmem:[#allocation3 + $0x6a] sm:$0xff]
      %v2320 = vld [vmem:[#allocation3 + $0x7a] sm:$0xff]
      %v2321 = vld [vmem:[#allocation3 + $0x82] sm:$0xff]
      %v2322 = vld [vmem:[#allocation3 + $0x92] sm:$0xff]
      %v2323 = vld [vmem:[#allocation3 + $0x9a] sm:$0xff]
      %v2324 = vld [vmem:[#allocation3 + $0xaa] sm:$0xff]
      %v2325 = vld [vmem:[#allocation3 + $0xb2] sm:$0xff]
      %v2326 = vld [vmem:[#allocation3 + $0xc2] sm:$0xff]
      %v2327 = vld [vmem:[#allocation3 + $0xca] sm:$0xff]
      %v2328 = vld [vmem:[#allocation3 + $0xda] sm:$0xff]
      %v2329 = vld [vmem:[#allocation3 + $0xe2] sm:$0xff]
      %v2330 = vld [vmem:[#allocation3 + $0xf2] sm:$0xff]
      %v2331 = vld [vmem:[#allocation3 + $0xfa] sm:$0xff]
      %v2332 = vld [vmem:[#allocation3 + $0x10a] sm:$0xff]
      %v2333 = vld [vmem:[#allocation3 + $0x112] sm:$0xff]
      %v2334 = vld [vmem:[#allocation3 + $0x122] sm:$0xff]
      %v2335 = vld [vmem:[#allocation3 + $0x12a] sm:$0xff]
      %v2336 = vld [vmem:[#allocation3 + $0x13a] sm:$0xff]
      %v2337 = vld [vmem:[#allocation3 + $0x142] sm:$0xff]
      %v2338 = vld [vmem:[#allocation3 + $0x152] sm:$0xff]
      %v2339 = vld [vmem:[#allocation3 + $0x15a] sm:$0xff]
      %v2340 = vld [vmem:[#allocation3 + $0x16a] sm:$0xff]
      %v2341 = vld [vmem:[#allocation3 + $0x172] sm:$0xff]
      %v2342 = vld [vmem:[%s632] sm:$0xff]
      %v2343 = vld [vmem:[%s632 + $0x8] sm:$0xff]
      %v2344 = vld [vmem:[%s632 + $0x18] sm:$0xff]
      %v2345 = vld [vmem:[%s632 + $0x20] sm:$0xff]
      %v2346 = vld [vmem:[%s632 + $0x30] sm:$0xff]
      %v2347 = vld [vmem:[%s632 + $0x38] sm:$0xff]
      %v2348 = vld [vmem:[%s632 + $0x48] sm:$0xff]
      %v2349 = vld [vmem:[%s632 + $0x50] sm:$0xff]
      %v2350 = vld [vmem:[%s632 + $0x60] sm:$0xff]
      %v2351 = vld [vmem:[%s632 + $0x68] sm:$0xff]
      %v2352 = vld [vmem:[%s632 + $0x78] sm:$0xff]
      %v2353 = vld [vmem:[%s632 + $0x80] sm:$0xff]
      %v2354 = vld [vmem:[%s632 + $0x90] sm:$0xff]
      %v2355 = vld [vmem:[%s632 + $0x98] sm:$0xff]
      %v2356 = vld [vmem:[%s632 + $0xa8] sm:$0xff]
      %v2357 = vld [vmem:[%s632 + $0xb0] sm:$0xff]
      %v2358 = vld [vmem:[%s632 + $0xc0] sm:$0xff]
      %v2359 = vld [vmem:[%s632 + $0xc8] sm:$0xff]
      %v2360 = vld [vmem:[%s632 + $0xd8] sm:$0xff]
      %v2361 = vld [vmem:[%s632 + $0xe0] sm:$0xff]
      %v2362 = vld [vmem:[%s632 + $0xf0] sm:$0xff]
      %v2363 = vld [vmem:[%s632 + $0xf8] sm:$0xff]
      %v2364 = vld [vmem:[%s632 + $0x108] sm:$0xff]
      %v2365 = vld [vmem:[%s632 + $0x110] sm:$0xff]
      %v2366 = vld [vmem:[%s632 + $0x120] sm:$0xff]
      %v2367 = vld [vmem:[%s632 + $0x128] sm:$0xff]
      %v2368 = vld [vmem:[%s632 + $0x138] sm:$0xff]
      %v2369 = vld [vmem:[%s632 + $0x140] sm:$0xff]
      %v2370 = vld [vmem:[%s632 + $0x150] sm:$0xff]
      %v2371 = vld [vmem:[%s632 + $0x158] sm:$0xff]
      %v2372 = vld [vmem:[%s632 + $0x168] sm:$0xff]
      %v2373 = vld [vmem:[%s632 + $0x170] sm:$0xff]
      %v2374 = vld [vmem:[%s632 + $0x1] sm:$0xff]
      %v2375 = vld [vmem:[%s632 + $0x9] sm:$0xff]
      %v2376 = vld [vmem:[%s632 + $0x19] sm:$0xff]
      %v2377 = vld [vmem:[%s632 + $0x21] sm:$0xff]
      %v2378 = vld [vmem:[%s632 + $0x31] sm:$0xff]
      %v2379 = vld [vmem:[%s632 + $0x39] sm:$0xff]
      %v2380 = vld [vmem:[%s632 + $0x49] sm:$0xff]
      %v2381 = vld [vmem:[%s632 + $0x51] sm:$0xff]
      %v2382 = vld [vmem:[%s632 + $0x61] sm:$0xff]
      %v2383 = vld [vmem:[%s632 + $0x69] sm:$0xff]
      %v2384 = vld [vmem:[%s632 + $0x79] sm:$0xff]
      %v2385 = vld [vmem:[%s632 + $0x81] sm:$0xff]
      %v2386 = vld [vmem:[%s632 + $0x91] sm:$0xff]
      %v2387 = vld [vmem:[%s632 + $0x99] sm:$0xff]
      %v2388 = vld [vmem:[%s632 + $0xa9] sm:$0xff]
      %v2389 = vld [vmem:[%s632 + $0xb1] sm:$0xff]
      %v2390 = vld [vmem:[%s632 + $0xc1] sm:$0xff]
      %v2391 = vld [vmem:[%s632 + $0xc9] sm:$0xff]
      %v2392 = vld [vmem:[%s632 + $0xd9] sm:$0xff]
      %v2393 = vld [vmem:[%s632 + $0xe1] sm:$0xff]
      %v2394 = vld [vmem:[%s632 + $0xf1] sm:$0xff]
      %v2395 = vld [vmem:[%s632 + $0xf9] sm:$0xff]
      %v2396 = vld [vmem:[%s632 + $0x109] sm:$0xff]
      %v2397 = vld [vmem:[%s632 + $0x111] sm:$0xff]
      %v2398 = vld [vmem:[%s632 + $0x121] sm:$0xff]
      %v2399 = vld [vmem:[%s632 + $0x129] sm:$0xff]
      %v2400 = vld [vmem:[%s632 + $0x139] sm:$0xff]
      %v2401 = vld [vmem:[%s632 + $0x141] sm:$0xff]
      %v2402 = vld [vmem:[%s632 + $0x151] sm:$0xff]
      %v2403 = vld [vmem:[%s632 + $0x159] sm:$0xff]
      %v2404 = vld [vmem:[%s632 + $0x169] sm:$0xff]
      %v2405 = vld [vmem:[%s632 + $0x171] sm:$0xff]
      %v2406 = vld [vmem:[%s632 + $0x2] sm:$0xff]
      %v2407 = vld [vmem:[%s632 + $0xa] sm:$0xff]
      %v2408 = vld [vmem:[%s632 + $0x1a] sm:$0xff]
      %v2409 = vld [vmem:[%s632 + $0x22] sm:$0xff]
      %v2410 = vld [vmem:[%s632 + $0x32] sm:$0xff]
      %v2411 = vld [vmem:[%s632 + $0x3a] sm:$0xff]
      %v2412 = vld [vmem:[%s632 + $0x4a] sm:$0xff]
      %v2413 = vld [vmem:[%s632 + $0x52] sm:$0xff]
      %v2414 = vld [vmem:[%s632 + $0x62] sm:$0xff]
      %v2415 = vld [vmem:[%s632 + $0x6a] sm:$0xff]
      %v2416 = vld [vmem:[%s632 + $0x7a] sm:$0xff]
      %v2417 = vld [vmem:[%s632 + $0x82] sm:$0xff]
      %v2418 = vld [vmem:[%s632 + $0x92] sm:$0xff]
      %v2419 = vld [vmem:[%s632 + $0x9a] sm:$0xff]
      %v2420 = vld [vmem:[%s632 + $0xaa] sm:$0xff]
      %v2421 = vld [vmem:[%s632 + $0xb2] sm:$0xff]
      %v2422 = vld [vmem:[%s632 + $0xc2] sm:$0xff]
      %v2423 = vld [vmem:[%s632 + $0xca] sm:$0xff]
      %v2424 = vld [vmem:[%s632 + $0xda] sm:$0xff]
      %v2425 = vld [vmem:[%s632 + $0xe2] sm:$0xff]
      %v2426 = vld [vmem:[%s632 + $0xf2] sm:$0xff]
      %v2427 = vld [vmem:[%s632 + $0xfa] sm:$0xff]
      %v2428 = vld [vmem:[%s632 + $0x10a] sm:$0xff]
      %v2429 = vld [vmem:[%s632 + $0x112] sm:$0xff]
      %v2430 = vld [vmem:[%s632 + $0x122] sm:$0xff]
      %v2431 = vld [vmem:[%s632 + $0x12a] sm:$0xff]
      %v2432 = vld [vmem:[%s632 + $0x13a] sm:$0xff]
      %v2433 = vld [vmem:[%s632 + $0x142] sm:$0xff]
      %v2434 = vld [vmem:[%s632 + $0x152] sm:$0xff]
      %v2435 = vld [vmem:[%s632 + $0x15a] sm:$0xff]
      %v2436 = vld [vmem:[%s632 + $0x16a] sm:$0xff]
      %v2437 = vld [vmem:[%s632 + $0x172] sm:$0xff]
      %s2438 = scalar_lea.vmem [#allocation3], 48
      %v2439 = vld [vmem:[%s2438] sm:$0xff]
      %v2440 = vld [vmem:[%s2438 + $0x8] sm:$0xff]
      %v2441 = vld [vmem:[%s2438 + $0x18] sm:$0xff]
      %v2442 = vld [vmem:[%s2438 + $0x20] sm:$0xff]
      %v2443 = vld [vmem:[%s2438 + $0x30] sm:$0xff]
      %v2444 = vld [vmem:[%s2438 + $0x38] sm:$0xff]
      %v2445 = vld [vmem:[%s2438 + $0x48] sm:$0xff]
      %v2446 = vld [vmem:[%s2438 + $0x50] sm:$0xff]
      %v2447 = vld [vmem:[%s2438 + $0x60] sm:$0xff]
      %v2448 = vld [vmem:[%s2438 + $0x68] sm:$0xff]
      %v2449 = vld [vmem:[%s2438 + $0x78] sm:$0xff]
      %v2450 = vld [vmem:[%s2438 + $0x80] sm:$0xff]
      %v2451 = vld [vmem:[%s2438 + $0x90] sm:$0xff]
      %v2452 = vld [vmem:[%s2438 + $0x98] sm:$0xff]
      %v2453 = vld [vmem:[%s2438 + $0xa8] sm:$0xff]
      %v2454 = vld [vmem:[%s2438 + $0xb0] sm:$0xff]
      %v2455 = vld [vmem:[%s2438 + $0xc0] sm:$0xff]
      %v2456 = vld [vmem:[%s2438 + $0xc8] sm:$0xff]
      %v2457 = vld [vmem:[%s2438 + $0xd8] sm:$0xff]
      %v2458 = vld [vmem:[%s2438 + $0xe0] sm:$0xff]
      %v2459 = vld [vmem:[%s2438 + $0xf0] sm:$0xff]
      %v2460 = vld [vmem:[%s2438 + $0xf8] sm:$0xff]
      %v2461 = vld [vmem:[%s2438 + $0x108] sm:$0xff]
      %v2462 = vld [vmem:[%s2438 + $0x110] sm:$0xff]
      %v2463 = vld [vmem:[%s2438 + $0x120] sm:$0xff]
      %v2464 = vld [vmem:[%s2438 + $0x128] sm:$0xff]
      %v2465 = vld [vmem:[%s2438 + $0x138] sm:$0xff]
      %v2466 = vld [vmem:[%s2438 + $0x140] sm:$0xff]
      %v2467 = vld [vmem:[%s2438 + $0x150] sm:$0xff]
      %v2468 = vld [vmem:[%s2438 + $0x158] sm:$0xff]
      %v2469 = vld [vmem:[%s2438 + $0x168] sm:$0xff]
      %v2470 = vld [vmem:[%s2438 + $0x170] sm:$0xff]
      %v2471 = vld [vmem:[%s2438 + $0x1] sm:$0xff]
      %v2472 = vld [vmem:[%s2438 + $0x9] sm:$0xff]
      %v2473 = vld [vmem:[%s2438 + $0x19] sm:$0xff]
      %v2474 = vld [vmem:[%s2438 + $0x21] sm:$0xff]
      %v2475 = vld [vmem:[%s2438 + $0x31] sm:$0xff]
      %v2476 = vld [vmem:[%s2438 + $0x39] sm:$0xff]
      %v2477 = vld [vmem:[%s2438 + $0x49] sm:$0xff]
      %v2478 = vld [vmem:[%s2438 + $0x51] sm:$0xff]
      %v2479 = vld [vmem:[%s2438 + $0x61] sm:$0xff]
      %v2480 = vld [vmem:[%s2438 + $0x69] sm:$0xff]
      %v2481 = vld [vmem:[%s2438 + $0x79] sm:$0xff]
      %v2482 = vld [vmem:[%s2438 + $0x81] sm:$0xff]
      %v2483 = vld [vmem:[%s2438 + $0x91] sm:$0xff]
      %v2484 = vld [vmem:[%s2438 + $0x99] sm:$0xff]
      %v2485 = vld [vmem:[%s2438 + $0xa9] sm:$0xff]
      %v2486 = vld [vmem:[%s2438 + $0xb1] sm:$0xff]
      %v2487 = vld [vmem:[%s2438 + $0xc1] sm:$0xff]
      %v2488 = vld [vmem:[%s2438 + $0xc9] sm:$0xff]
      %v2489 = vld [vmem:[%s2438 + $0xd9] sm:$0xff]
      %v2490 = vld [vmem:[%s2438 + $0xe1] sm:$0xff]
      %v2491 = vld [vmem:[%s2438 + $0xf1] sm:$0xff]
      %v2492 = vld [vmem:[%s2438 + $0xf9] sm:$0xff]
      %v2493 = vld [vmem:[%s2438 + $0x109] sm:$0xff]
      %v2494 = vld [vmem:[%s2438 + $0x111] sm:$0xff]
      %v2495 = vld [vmem:[%s2438 + $0x121] sm:$0xff]
      %v2496 = vld [vmem:[%s2438 + $0x129] sm:$0xff]
      %v2497 = vld [vmem:[%s2438 + $0x139] sm:$0xff]
      %v2498 = vld [vmem:[%s2438 + $0x141] sm:$0xff]
      %v2499 = vld [vmem:[%s2438 + $0x151] sm:$0xff]
      %v2500 = vld [vmem:[%s2438 + $0x159] sm:$0xff]
      %v2501 = vld [vmem:[%s2438 + $0x169] sm:$0xff]
      %v2502 = vld [vmem:[%s2438 + $0x171] sm:$0xff]
      %v2503 = vld [vmem:[%s2438 + $0x2] sm:$0xff]
      %v2504 = vld [vmem:[%s2438 + $0xa] sm:$0xff]
      %v2505 = vld [vmem:[%s2438 + $0x1a] sm:$0xff]
      %v2506 = vld [vmem:[%s2438 + $0x22] sm:$0xff]
      %v2507 = vld [vmem:[%s2438 + $0x32] sm:$0xff]
      %v2508 = vld [vmem:[%s2438 + $0x3a] sm:$0xff]
      %v2509 = vld [vmem:[%s2438 + $0x4a] sm:$0xff]
      %v2510 = vld [vmem:[%s2438 + $0x52] sm:$0xff]
      %v2511 = vld [vmem:[%s2438 + $0x62] sm:$0xff]
      %v2512 = vld [vmem:[%s2438 + $0x6a] sm:$0xff]
      %v2513 = vld [vmem:[%s2438 + $0x7a] sm:$0xff]
      %v2514 = vld [vmem:[%s2438 + $0x82] sm:$0xff]
      %v2515 = vld [vmem:[%s2438 + $0x92] sm:$0xff]
      %v2516 = vld [vmem:[%s2438 + $0x9a] sm:$0xff]
      %v2517 = vld [vmem:[%s2438 + $0xaa] sm:$0xff]
      %v2518 = vld [vmem:[%s2438 + $0xb2] sm:$0xff]
      %v2519 = vld [vmem:[%s2438 + $0xc2] sm:$0xff]
      %v2520 = vld [vmem:[%s2438 + $0xca] sm:$0xff]
      %v2521 = vld [vmem:[%s2438 + $0xda] sm:$0xff]
      %v2522 = vld [vmem:[%s2438 + $0xe2] sm:$0xff]
      %v2523 = vld [vmem:[%s2438 + $0xf2] sm:$0xff]
      %v2524 = vld [vmem:[%s2438 + $0xfa] sm:$0xff]
      %v2525 = vld [vmem:[%s2438 + $0x10a] sm:$0xff]
      %v2526 = vld [vmem:[%s2438 + $0x112] sm:$0xff]
      %v2527 = vld [vmem:[%s2438 + $0x122] sm:$0xff]
      %v2528 = vld [vmem:[%s2438 + $0x12a] sm:$0xff]
      %v2529 = vld [vmem:[%s2438 + $0x13a] sm:$0xff]
      %v2530 = vld [vmem:[%s2438 + $0x142] sm:$0xff]
      %v2531 = vld [vmem:[%s2438 + $0x152] sm:$0xff]
      %v2532 = vld [vmem:[%s2438 + $0x15a] sm:$0xff]
      %v2533 = vld [vmem:[%s2438 + $0x16a] sm:$0xff]
      %v2534 = vld [vmem:[%s2438 + $0x172] sm:$0xff]
      %2567 = vrot.lane.b32.xlu0 %v2278, 4
      %v2568 = vpop.permute.xlu0 %2567
      %2569 = vrot.lane.b32.xlu0 %v2279, 4
      %v2570 = vpop.permute.xlu0 %2569
      %2571 = vrot.lane.b32.xlu0 %v2280, 4
      %v2572 = vpop.permute.xlu0 %2571
      %2573 = vrot.lane.b32.xlu0 %v2281, 4
      %v2574 = vpop.permute.xlu0 %2573
      %2575 = vrot.lane.b32.xlu0 %v2282, 4
      %v2576 = vpop.permute.xlu0 %2575
      %2577 = vrot.lane.b32.xlu0 %v2283, 4
      %v2578 = vpop.permute.xlu0 %2577
      %2579 = vrot.lane.b32.xlu0 %v2284, 4
      %v2580 = vpop.permute.xlu0 %2579
      %2581 = vrot.lane.b32.xlu0 %v2285, 4
      %v2582 = vpop.permute.xlu0 %2581
      %2583 = vrot.lane.b32.xlu0 %v2286, 4
      %v2584 = vpop.permute.xlu0 %2583
      %2585 = vrot.lane.b32.xlu0 %v2287, 4
      %v2586 = vpop.permute.xlu0 %2585
      %2587 = vrot.lane.b32.xlu0 %v2288, 4
      %v2588 = vpop.permute.xlu0 %2587
      %2589 = vrot.lane.b32.xlu0 %v2289, 4
      %v2590 = vpop.permute.xlu0 %2589
      %2591 = vrot.lane.b32.xlu0 %v2290, 4
      %v2592 = vpop.permute.xlu0 %2591
      %2593 = vrot.lane.b32.xlu0 %v2291, 4
      %v2594 = vpop.permute.xlu0 %2593
      %2595 = vrot.lane.b32.xlu0 %v2292, 4
      %v2596 = vpop.permute.xlu0 %2595
      %2597 = vrot.lane.b32.xlu0 %v2293, 4
      %v2598 = vpop.permute.xlu0 %2597
      %2599 = vrot.lane.b32.xlu0 %v2294, 4
      %v2600 = vpop.permute.xlu0 %2599
      %2601 = vrot.lane.b32.xlu0 %v2295, 4
      %v2602 = vpop.permute.xlu0 %2601
      %2603 = vrot.lane.b32.xlu0 %v2296, 4
      %v2604 = vpop.permute.xlu0 %2603
      %2605 = vrot.lane.b32.xlu0 %v2297, 4
      %v2606 = vpop.permute.xlu0 %2605
      %2607 = vrot.lane.b32.xlu0 %v2298, 4
      %v2608 = vpop.permute.xlu0 %2607
      %2609 = vrot.lane.b32.xlu0 %v2299, 4
      %v2610 = vpop.permute.xlu0 %2609
      %2611 = vrot.lane.b32.xlu0 %v2300, 4
      %v2612 = vpop.permute.xlu0 %2611
      %2613 = vrot.lane.b32.xlu0 %v2301, 4
      %v2614 = vpop.permute.xlu0 %2613
      %2615 = vrot.lane.b32.xlu0 %v2302, 4
      %v2616 = vpop.permute.xlu0 %2615
      %2617 = vrot.lane.b32.xlu0 %v2303, 4
      %v2618 = vpop.permute.xlu0 %2617
      %2619 = vrot.lane.b32.xlu0 %v2304, 4
      %v2620 = vpop.permute.xlu0 %2619
      %2621 = vrot.lane.b32.xlu0 %v2305, 4
      %v2622 = vpop.permute.xlu0 %2621
      %2623 = vrot.lane.b32.xlu0 %v2306, 4
      %v2624 = vpop.permute.xlu0 %2623
      %2625 = vrot.lane.b32.xlu0 %v2307, 4
      %v2626 = vpop.permute.xlu0 %2625
      %2627 = vrot.lane.b32.xlu0 %v2308, 4
      %v2628 = vpop.permute.xlu0 %2627
      %2629 = vrot.lane.b32.xlu0 %v2309, 4
      %v2630 = vpop.permute.xlu0 %2629
      %2695 = vrot.lane.b32.xlu0 %v2310, 8
      %v2696 = vpop.permute.xlu0 %2695
      %2697 = vrot.lane.b32.xlu0 %v2311, 8
      %v2698 = vpop.permute.xlu0 %2697
      %2699 = vrot.lane.b32.xlu0 %v2312, 8
      %v2700 = vpop.permute.xlu0 %2699
      %2701 = vrot.lane.b32.xlu0 %v2313, 8
      %v2702 = vpop.permute.xlu0 %2701
      %2703 = vrot.lane.b32.xlu0 %v2314, 8
      %v2704 = vpop.permute.xlu0 %2703
      %2705 = vrot.lane.b32.xlu0 %v2315, 8
      %v2706 = vpop.permute.xlu0 %2705
      %2707 = vrot.lane.b32.xlu0 %v2316, 8
      %v2708 = vpop.permute.xlu0 %2707
      %2709 = vrot.lane.b32.xlu0 %v2317, 8
      %v2710 = vpop.permute.xlu0 %2709
      %2711 = vrot.lane.b32.xlu0 %v2318, 8
      %v2712 = vpop.permute.xlu0 %2711
      %2713 = vrot.lane.b32.xlu0 %v2319, 8
      %v2714 = vpop.permute.xlu0 %2713
      %2715 = vrot.lane.b32.xlu0 %v2320, 8
      %v2716 = vpop.permute.xlu0 %2715
      %2717 = vrot.lane.b32.xlu0 %v2321, 8
      %v2718 = vpop.permute.xlu0 %2717
      %2719 = vrot.lane.b32.xlu0 %v2322, 8
      %v2720 = vpop.permute.xlu0 %2719
      %2721 = vrot.lane.b32.xlu0 %v2323, 8
      %v2722 = vpop.permute.xlu0 %2721
      %2723 = vrot.lane.b32.xlu0 %v2324, 8
      %v2724 = vpop.permute.xlu0 %2723
      %2725 = vrot.lane.b32.xlu0 %v2325, 8
      %v2726 = vpop.permute.xlu0 %2725
      %2727 = vrot.lane.b32.xlu0 %v2326, 8
      %v2728 = vpop.permute.xlu0 %2727
      %2729 = vrot.lane.b32.xlu0 %v2327, 8
      %v2730 = vpop.permute.xlu0 %2729
      %2731 = vrot.lane.b32.xlu0 %v2328, 8
      %v2732 = vpop.permute.xlu0 %2731
      %2733 = vrot.lane.b32.xlu0 %v2329, 8
      %v2734 = vpop.permute.xlu0 %2733
      %2735 = vrot.lane.b32.xlu0 %v2330, 8
      %v2736 = vpop.permute.xlu0 %2735
      %2737 = vrot.lane.b32.xlu0 %v2331, 8
      %v2738 = vpop.permute.xlu0 %2737
      %2739 = vrot.lane.b32.xlu0 %v2332, 8
      %v2740 = vpop.permute.xlu0 %2739
      %2741 = vrot.lane.b32.xlu0 %v2333, 8
      %v2742 = vpop.permute.xlu0 %2741
      %2743 = vrot.lane.b32.xlu0 %v2334, 8
      %v2744 = vpop.permute.xlu0 %2743
      %2745 = vrot.lane.b32.xlu0 %v2335, 8
      %v2746 = vpop.permute.xlu0 %2745
      %2747 = vrot.lane.b32.xlu0 %v2336, 8
      %v2748 = vpop.permute.xlu0 %2747
      %2749 = vrot.lane.b32.xlu0 %v2337, 8
      %v2750 = vpop.permute.xlu0 %2749
      %2751 = vrot.lane.b32.xlu0 %v2338, 8
      %v2752 = vpop.permute.xlu0 %2751
      %2753 = vrot.lane.b32.xlu0 %v2339, 8
      %v2754 = vpop.permute.xlu0 %2753
      %2755 = vrot.lane.b32.xlu0 %v2340, 8
      %v2756 = vpop.permute.xlu0 %2755
      %2757 = vrot.lane.b32.xlu0 %v2341, 8
      %v2758 = vpop.permute.xlu0 %2757
      %2823 = vrot.lane.b32.xlu0 %v2342, 12
      %v2824 = vpop.permute.xlu0 %2823
      %2825 = vrot.lane.b32.xlu0 %v2343, 12
      %v2826 = vpop.permute.xlu0 %2825
      %2827 = vrot.lane.b32.xlu0 %v2344, 12
      %v2828 = vpop.permute.xlu0 %2827
      %2829 = vrot.lane.b32.xlu0 %v2345, 12
      %v2830 = vpop.permute.xlu0 %2829
      %2831 = vrot.lane.b32.xlu0 %v2346, 12
      %v2832 = vpop.permute.xlu0 %2831
      %2833 = vrot.lane.b32.xlu0 %v2347, 12
      %v2834 = vpop.permute.xlu0 %2833
      %2835 = vrot.lane.b32.xlu0 %v2348, 12
      %v2836 = vpop.permute.xlu0 %2835
      %2837 = vrot.lane.b32.xlu0 %v2349, 12
      %v2838 = vpop.permute.xlu0 %2837
      %2839 = vrot.lane.b32.xlu0 %v2350, 12
      %v2840 = vpop.permute.xlu0 %2839
      %2841 = vrot.lane.b32.xlu0 %v2351, 12
      %v2842 = vpop.permute.xlu0 %2841
      %2843 = vrot.lane.b32.xlu0 %v2352, 12
      %v2844 = vpop.permute.xlu0 %2843
      %2845 = vrot.lane.b32.xlu0 %v2353, 12
      %v2846 = vpop.permute.xlu0 %2845
      %2847 = vrot.lane.b32.xlu0 %v2354, 12
      %v2848 = vpop.permute.xlu0 %2847
      %2849 = vrot.lane.b32.xlu0 %v2355, 12
      %v2850 = vpop.permute.xlu0 %2849
      %2851 = vrot.lane.b32.xlu0 %v2356, 12
      %v2852 = vpop.permute.xlu0 %2851
      %2853 = vrot.lane.b32.xlu0 %v2357, 12
      %v2854 = vpop.permute.xlu0 %2853
      %2855 = vrot.lane.b32.xlu0 %v2358, 12
      %v2856 = vpop.permute.xlu0 %2855
      %2857 = vrot.lane.b32.xlu0 %v2359, 12
      %v2858 = vpop.permute.xlu0 %2857
      %2859 = vrot.lane.b32.xlu0 %v2360, 12
      %v2860 = vpop.permute.xlu0 %2859
      %2861 = vrot.lane.b32.xlu0 %v2361, 12
      %v2862 = vpop.permute.xlu0 %2861
      %2863 = vrot.lane.b32.xlu0 %v2362, 12
      %v2864 = vpop.permute.xlu0 %2863
      %2865 = vrot.lane.b32.xlu0 %v2363, 12
      %v2866 = vpop.permute.xlu0 %2865
      %2867 = vrot.lane.b32.xlu0 %v2364, 12
      %v2868 = vpop.permute.xlu0 %2867
      %2869 = vrot.lane.b32.xlu0 %v2365, 12
      %v2870 = vpop.permute.xlu0 %2869
      %2871 = vrot.lane.b32.xlu0 %v2366, 12
      %v2872 = vpop.permute.xlu0 %2871
      %2873 = vrot.lane.b32.xlu0 %v2367, 12
      %v2874 = vpop.permute.xlu0 %2873
      %2875 = vrot.lane.b32.xlu0 %v2368, 12
      %v2876 = vpop.permute.xlu0 %2875
      %2877 = vrot.lane.b32.xlu0 %v2369, 12
      %v2878 = vpop.permute.xlu0 %2877
      %2879 = vrot.lane.b32.xlu0 %v2370, 12
      %v2880 = vpop.permute.xlu0 %2879
      %2881 = vrot.lane.b32.xlu0 %v2371, 12
      %v2882 = vpop.permute.xlu0 %2881
      %2883 = vrot.lane.b32.xlu0 %v2372, 12
      %v2884 = vpop.permute.xlu0 %2883
      %2885 = vrot.lane.b32.xlu0 %v2373, 12
      %v2886 = vpop.permute.xlu0 %2885
      %2951 = vrot.lane.b32.xlu0 %v2374, 16
      %v2952 = vpop.permute.xlu0 %2951
      %2953 = vrot.lane.b32.xlu0 %v2375, 16
      %v2954 = vpop.permute.xlu0 %2953
      %2955 = vrot.lane.b32.xlu0 %v2376, 16
      %v2956 = vpop.permute.xlu0 %2955
      %2957 = vrot.lane.b32.xlu0 %v2377, 16
      %v2958 = vpop.permute.xlu0 %2957
      %2959 = vrot.lane.b32.xlu0 %v2378, 16
      %v2960 = vpop.permute.xlu0 %2959
      %2961 = vrot.lane.b32.xlu0 %v2379, 16
      %v2962 = vpop.permute.xlu0 %2961
      %2963 = vrot.lane.b32.xlu0 %v2380, 16
      %v2964 = vpop.permute.xlu0 %2963
      %2965 = vrot.lane.b32.xlu0 %v2381, 16
      %v2966 = vpop.permute.xlu0 %2965
      %2967 = vrot.lane.b32.xlu0 %v2382, 16
      %v2968 = vpop.permute.xlu0 %2967
      %2969 = vrot.lane.b32.xlu0 %v2383, 16
      %v2970 = vpop.permute.xlu0 %2969
      %2971 = vrot.lane.b32.xlu0 %v2384, 16
      %v2972 = vpop.permute.xlu0 %2971
      %2973 = vrot.lane.b32.xlu0 %v2385, 16
      %v2974 = vpop.permute.xlu0 %2973
      %2975 = vrot.lane.b32.xlu0 %v2386, 16
      %v2976 = vpop.permute.xlu0 %2975
      %2977 = vrot.lane.b32.xlu0 %v2387, 16
      %v2978 = vpop.permute.xlu0 %2977
      %2979 = vrot.lane.b32.xlu0 %v2388, 16
      %v2980 = vpop.permute.xlu0 %2979
      %2981 = vrot.lane.b32.xlu0 %v2389, 16
      %v2982 = vpop.permute.xlu0 %2981
      %2983 = vrot.lane.b32.xlu0 %v2390, 16
      %v2984 = vpop.permute.xlu0 %2983
      %2985 = vrot.lane.b32.xlu0 %v2391, 16
      %v2986 = vpop.permute.xlu0 %2985
      %2987 = vrot.lane.b32.xlu0 %v2392, 16
      %v2988 = vpop.permute.xlu0 %2987
      %2989 = vrot.lane.b32.xlu0 %v2393, 16
      %v2990 = vpop.permute.xlu0 %2989
      %2991 = vrot.lane.b32.xlu0 %v2394, 16
      %v2992 = vpop.permute.xlu0 %2991
      %2993 = vrot.lane.b32.xlu0 %v2395, 16
      %v2994 = vpop.permute.xlu0 %2993
      %2995 = vrot.lane.b32.xlu0 %v2396, 16
      %v2996 = vpop.permute.xlu0 %2995
      %2997 = vrot.lane.b32.xlu0 %v2397, 16
      %v2998 = vpop.permute.xlu0 %2997
      %2999 = vrot.lane.b32.xlu0 %v2398, 16
      %v3000 = vpop.permute.xlu0 %2999
      %3001 = vrot.lane.b32.xlu0 %v2399, 16
      %v3002 = vpop.permute.xlu0 %3001
      %3003 = vrot.lane.b32.xlu0 %v2400, 16
      %v3004 = vpop.permute.xlu0 %3003
      %3005 = vrot.lane.b32.xlu0 %v2401, 16
      %v3006 = vpop.permute.xlu0 %3005
      %3007 = vrot.lane.b32.xlu0 %v2402, 16
      %v3008 = vpop.permute.xlu0 %3007
      %3009 = vrot.lane.b32.xlu0 %v2403, 16
      %v3010 = vpop.permute.xlu0 %3009
      %3011 = vrot.lane.b32.xlu0 %v2404, 16
      %v3012 = vpop.permute.xlu0 %3011
      %3013 = vrot.lane.b32.xlu0 %v2405, 16
      %v3014 = vpop.permute.xlu0 %3013
      %3079 = vrot.lane.b32.xlu0 %v2406, 20
      %v3080 = vpop.permute.xlu0 %3079
      %3081 = vrot.lane.b32.xlu0 %v2407, 20
      %v3082 = vpop.permute.xlu0 %3081
      %3083 = vrot.lane.b32.xlu0 %v2408, 20
      %v3084 = vpop.permute.xlu0 %3083
      %3085 = vrot.lane.b32.xlu0 %v2409, 20
      %v3086 = vpop.permute.xlu0 %3085
      %3087 = vrot.lane.b32.xlu0 %v2410, 20
      %v3088 = vpop.permute.xlu0 %3087
      %3089 = vrot.lane.b32.xlu0 %v2411, 20
      %v3090 = vpop.permute.xlu0 %3089
      %3091 = vrot.lane.b32.xlu0 %v2412, 20
      %v3092 = vpop.permute.xlu0 %3091
      %3093 = vrot.lane.b32.xlu0 %v2413, 20
      %v3094 = vpop.permute.xlu0 %3093
      %3095 = vrot.lane.b32.xlu0 %v2414, 20
      %v3096 = vpop.permute.xlu0 %3095
      %3097 = vrot.lane.b32.xlu0 %v2415, 20
      %v3098 = vpop.permute.xlu0 %3097
      %3099 = vrot.lane.b32.xlu0 %v2416, 20
      %v3100 = vpop.permute.xlu0 %3099
      %3101 = vrot.lane.b32.xlu0 %v2417, 20
      %v3102 = vpop.permute.xlu0 %3101
      %3103 = vrot.lane.b32.xlu0 %v2418, 20
      %v3104 = vpop.permute.xlu0 %3103
      %3105 = vrot.lane.b32.xlu0 %v2419, 20
      %v3106 = vpop.permute.xlu0 %3105
      %3107 = vrot.lane.b32.xlu0 %v2420, 20
      %v3108 = vpop.permute.xlu0 %3107
      %3109 = vrot.lane.b32.xlu0 %v2421, 20
      %v3110 = vpop.permute.xlu0 %3109
      %3111 = vrot.lane.b32.xlu0 %v2422, 20
      %v3112 = vpop.permute.xlu0 %3111
      %3113 = vrot.lane.b32.xlu0 %v2423, 20
      %v3114 = vpop.permute.xlu0 %3113
      %3115 = vrot.lane.b32.xlu0 %v2424, 20
      %v3116 = vpop.permute.xlu0 %3115
      %3117 = vrot.lane.b32.xlu0 %v2425, 20
      %v3118 = vpop.permute.xlu0 %3117
      %3119 = vrot.lane.b32.xlu0 %v2426, 20
      %v3120 = vpop.permute.xlu0 %3119
      %3121 = vrot.lane.b32.xlu0 %v2427, 20
      %v3122 = vpop.permute.xlu0 %3121
      %3123 = vrot.lane.b32.xlu0 %v2428, 20
      %v3124 = vpop.permute.xlu0 %3123
      %3125 = vrot.lane.b32.xlu0 %v2429, 20
      %v3126 = vpop.permute.xlu0 %3125
      %3127 = vrot.lane.b32.xlu0 %v2430, 20
      %v3128 = vpop.permute.xlu0 %3127
      %3129 = vrot.lane.b32.xlu0 %v2431, 20
      %v3130 = vpop.permute.xlu0 %3129
      %3131 = vrot.lane.b32.xlu0 %v2432, 20
      %v3132 = vpop.permute.xlu0 %3131
      %3133 = vrot.lane.b32.xlu0 %v2433, 20
      %v3134 = vpop.permute.xlu0 %3133
      %3135 = vrot.lane.b32.xlu0 %v2434, 20
      %v3136 = vpop.permute.xlu0 %3135
      %3137 = vrot.lane.b32.xlu0 %v2435, 20
      %v3138 = vpop.permute.xlu0 %3137
      %3139 = vrot.lane.b32.xlu0 %v2436, 20
      %v3140 = vpop.permute.xlu0 %3139
      %3141 = vrot.lane.b32.xlu0 %v2437, 20
      %v3142 = vpop.permute.xlu0 %3141
      %3207 = vrot.lane.b32.xlu0 %v2439, 24
      %v3208 = vpop.permute.xlu0 %3207
      %3209 = vrot.lane.b32.xlu0 %v2440, 24
      %v3210 = vpop.permute.xlu0 %3209
      %3211 = vrot.lane.b32.xlu0 %v2441, 24
      %v3212 = vpop.permute.xlu0 %3211
      %3213 = vrot.lane.b32.xlu0 %v2442, 24
      %v3214 = vpop.permute.xlu0 %3213
      %3215 = vrot.lane.b32.xlu0 %v2443, 24
      %v3216 = vpop.permute.xlu0 %3215
      %3217 = vrot.lane.b32.xlu0 %v2444, 24
      %v3218 = vpop.permute.xlu0 %3217
      %3219 = vrot.lane.b32.xlu0 %v2445, 24
      %v3220 = vpop.permute.xlu0 %3219
      %3221 = vrot.lane.b32.xlu0 %v2446, 24
      %v3222 = vpop.permute.xlu0 %3221
      %3223 = vrot.lane.b32.xlu0 %v2447, 24
      %v3224 = vpop.permute.xlu0 %3223
      %3225 = vrot.lane.b32.xlu0 %v2448, 24
      %v3226 = vpop.permute.xlu0 %3225
      %3227 = vrot.lane.b32.xlu0 %v2449, 24
      %v3228 = vpop.permute.xlu0 %3227
      %3229 = vrot.lane.b32.xlu0 %v2450, 24
      %v3230 = vpop.permute.xlu0 %3229
      %3231 = vrot.lane.b32.xlu0 %v2451, 24
      %v3232 = vpop.permute.xlu0 %3231
      %3233 = vrot.lane.b32.xlu0 %v2452, 24
      %v3234 = vpop.permute.xlu0 %3233
      %3235 = vrot.lane.b32.xlu0 %v2453, 24
      %v3236 = vpop.permute.xlu0 %3235
      %3237 = vrot.lane.b32.xlu0 %v2454, 24
      %v3238 = vpop.permute.xlu0 %3237
      %3239 = vrot.lane.b32.xlu0 %v2455, 24
      %v3240 = vpop.permute.xlu0 %3239
      %3241 = vrot.lane.b32.xlu0 %v2456, 24
      %v3242 = vpop.permute.xlu0 %3241
      %3243 = vrot.lane.b32.xlu0 %v2457, 24
      %v3244 = vpop.permute.xlu0 %3243
      %3245 = vrot.lane.b32.xlu0 %v2458, 24
      %v3246 = vpop.permute.xlu0 %3245
      %3247 = vrot.lane.b32.xlu0 %v2459, 24
      %v3248 = vpop.permute.xlu0 %3247
      %3249 = vrot.lane.b32.xlu0 %v2460, 24
      %v3250 = vpop.permute.xlu0 %3249
      %3251 = vrot.lane.b32.xlu0 %v2461, 24
      %v3252 = vpop.permute.xlu0 %3251
      %3253 = vrot.lane.b32.xlu0 %v2462, 24
      %v3254 = vpop.permute.xlu0 %3253
      %3255 = vrot.lane.b32.xlu0 %v2463, 24
      %v3256 = vpop.permute.xlu0 %3255
      %3257 = vrot.lane.b32.xlu0 %v2464, 24
      %v3258 = vpop.permute.xlu0 %3257
      %3259 = vrot.lane.b32.xlu0 %v2465, 24
      %v3260 = vpop.permute.xlu0 %3259
      %3261 = vrot.lane.b32.xlu0 %v2466, 24
      %v3262 = vpop.permute.xlu0 %3261
      %3263 = vrot.lane.b32.xlu0 %v2467, 24
      %v3264 = vpop.permute.xlu0 %3263
      %3265 = vrot.lane.b32.xlu0 %v2468, 24
      %v3266 = vpop.permute.xlu0 %3265
      %3267 = vrot.lane.b32.xlu0 %v2469, 24
      %v3268 = vpop.permute.xlu0 %3267
      %3269 = vrot.lane.b32.xlu0 %v2470, 24
      %v3270 = vpop.permute.xlu0 %3269
      %3335 = vrot.lane.b32.xlu0 %v2471, 28
      %v3336 = vpop.permute.xlu0 %3335
      %3337 = vrot.lane.b32.xlu0 %v2472, 28
      %v3338 = vpop.permute.xlu0 %3337
      %3339 = vrot.lane.b32.xlu0 %v2473, 28
      %v3340 = vpop.permute.xlu0 %3339
      %3341 = vrot.lane.b32.xlu0 %v2474, 28
      %v3342 = vpop.permute.xlu0 %3341
      %3343 = vrot.lane.b32.xlu0 %v2475, 28
      %v3344 = vpop.permute.xlu0 %3343
      %3345 = vrot.lane.b32.xlu0 %v2476, 28
      %v3346 = vpop.permute.xlu0 %3345
      %3347 = vrot.lane.b32.xlu0 %v2477, 28
      %v3348 = vpop.permute.xlu0 %3347
      %3349 = vrot.lane.b32.xlu0 %v2478, 28
      %v3350 = vpop.permute.xlu0 %3349
      %3351 = vrot.lane.b32.xlu0 %v2479, 28
      %v3352 = vpop.permute.xlu0 %3351
      %3353 = vrot.lane.b32.xlu0 %v2480, 28
      %v3354 = vpop.permute.xlu0 %3353
      %3355 = vrot.lane.b32.xlu0 %v2481, 28
      %v3356 = vpop.permute.xlu0 %3355
      %3357 = vrot.lane.b32.xlu0 %v2482, 28
      %v3358 = vpop.permute.xlu0 %3357
      %3359 = vrot.lane.b32.xlu0 %v2483, 28
      %v3360 = vpop.permute.xlu0 %3359
      %3361 = vrot.lane.b32.xlu0 %v2484, 28
      %v3362 = vpop.permute.xlu0 %3361
      %3363 = vrot.lane.b32.xlu0 %v2485, 28
      %v3364 = vpop.permute.xlu0 %3363
      %3365 = vrot.lane.b32.xlu0 %v2486, 28
      %v3366 = vpop.permute.xlu0 %3365
      %3367 = vrot.lane.b32.xlu0 %v2487, 28
      %v3368 = vpop.permute.xlu0 %3367
      %3369 = vrot.lane.b32.xlu0 %v2488, 28
      %v3370 = vpop.permute.xlu0 %3369
      %3371 = vrot.lane.b32.xlu0 %v2489, 28
      %v3372 = vpop.permute.xlu0 %3371
      %3373 = vrot.lane.b32.xlu0 %v2490, 28
      %v3374 = vpop.permute.xlu0 %3373
      %3375 = vrot.lane.b32.xlu0 %v2491, 28
      %v3376 = vpop.permute.xlu0 %3375
      %3377 = vrot.lane.b32.xlu0 %v2492, 28
      %v3378 = vpop.permute.xlu0 %3377
      %3379 = vrot.lane.b32.xlu0 %v2493, 28
      %v3380 = vpop.permute.xlu0 %3379
      %3381 = vrot.lane.b32.xlu0 %v2494, 28
      %v3382 = vpop.permute.xlu0 %3381
      %3383 = vrot.lane.b32.xlu0 %v2495, 28
      %v3384 = vpop.permute.xlu0 %3383
      %3385 = vrot.lane.b32.xlu0 %v2496, 28
      %v3386 = vpop.permute.xlu0 %3385
      %3387 = vrot.lane.b32.xlu0 %v2497, 28
      %v3388 = vpop.permute.xlu0 %3387
      %3389 = vrot.lane.b32.xlu0 %v2498, 28
      %v3390 = vpop.permute.xlu0 %3389
      %3391 = vrot.lane.b32.xlu0 %v2499, 28
      %v3392 = vpop.permute.xlu0 %3391
      %3393 = vrot.lane.b32.xlu0 %v2500, 28
      %v3394 = vpop.permute.xlu0 %3393
      %3395 = vrot.lane.b32.xlu0 %v2501, 28
      %v3396 = vpop.permute.xlu0 %3395
      %3397 = vrot.lane.b32.xlu0 %v2502, 28
      %v3398 = vpop.permute.xlu0 %3397
      %3463 = vrot.lane.b32.xlu0 %v2503, 32
      %v3464 = vpop.permute.xlu0 %3463
      %3465 = vrot.lane.b32.xlu0 %v2504, 32
      %v3466 = vpop.permute.xlu0 %3465
      %3467 = vrot.lane.b32.xlu0 %v2505, 32
      %v3468 = vpop.permute.xlu0 %3467
      %3469 = vrot.lane.b32.xlu0 %v2506, 32
      %v3470 = vpop.permute.xlu0 %3469
      %3471 = vrot.lane.b32.xlu0 %v2507, 32
      %v3472 = vpop.permute.xlu0 %3471
      %3473 = vrot.lane.b32.xlu0 %v2508, 32
      %v3474 = vpop.permute.xlu0 %3473
      %3475 = vrot.lane.b32.xlu0 %v2509, 32
      %v3476 = vpop.permute.xlu0 %3475
      %3477 = vrot.lane.b32.xlu0 %v2510, 32
      %v3478 = vpop.permute.xlu0 %3477
      %3479 = vrot.lane.b32.xlu0 %v2511, 32
      %v3480 = vpop.permute.xlu0 %3479
      %3481 = vrot.lane.b32.xlu0 %v2512, 32
      %v3482 = vpop.permute.xlu0 %3481
      %3483 = vrot.lane.b32.xlu0 %v2513, 32
      %v3484 = vpop.permute.xlu0 %3483
      %3485 = vrot.lane.b32.xlu0 %v2514, 32
      %v3486 = vpop.permute.xlu0 %3485
      %3487 = vrot.lane.b32.xlu0 %v2515, 32
      %v3488 = vpop.permute.xlu0 %3487
      %3489 = vrot.lane.b32.xlu0 %v2516, 32
      %v3490 = vpop.permute.xlu0 %3489
      %3491 = vrot.lane.b32.xlu0 %v2517, 32
      %v3492 = vpop.permute.xlu0 %3491
      %3493 = vrot.lane.b32.xlu0 %v2518, 32
      %v3494 = vpop.permute.xlu0 %3493
      %3495 = vrot.lane.b32.xlu0 %v2519, 32
      %v3496 = vpop.permute.xlu0 %3495
      %3497 = vrot.lane.b32.xlu0 %v2520, 32
      %v3498 = vpop.permute.xlu0 %3497
      %3499 = vrot.lane.b32.xlu0 %v2521, 32
      %v3500 = vpop.permute.xlu0 %3499
      %3501 = vrot.lane.b32.xlu0 %v2522, 32
      %v3502 = vpop.permute.xlu0 %3501
      %3503 = vrot.lane.b32.xlu0 %v2523, 32
      %v3504 = vpop.permute.xlu0 %3503
      %3505 = vrot.lane.b32.xlu0 %v2524, 32
      %v3506 = vpop.permute.xlu0 %3505
      %3507 = vrot.lane.b32.xlu0 %v2525, 32
      %v3508 = vpop.permute.xlu0 %3507
      %3509 = vrot.lane.b32.xlu0 %v2526, 32
      %v3510 = vpop.permute.xlu0 %3509
      %3511 = vrot.lane.b32.xlu0 %v2527, 32
      %v3512 = vpop.permute.xlu0 %3511
      %3513 = vrot.lane.b32.xlu0 %v2528, 32
      %v3514 = vpop.permute.xlu0 %3513
      %3515 = vrot.lane.b32.xlu0 %v2529, 32
      %v3516 = vpop.permute.xlu0 %3515
      %3517 = vrot.lane.b32.xlu0 %v2530, 32
      %v3518 = vpop.permute.xlu0 %3517
      %3519 = vrot.lane.b32.xlu0 %v2531, 32
      %v3520 = vpop.permute.xlu0 %3519
      %3521 = vrot.lane.b32.xlu0 %v2532, 32
      %v3522 = vpop.permute.xlu0 %3521
      %3523 = vrot.lane.b32.xlu0 %v2533, 32
      %v3524 = vpop.permute.xlu0 %3523
      %3525 = vrot.lane.b32.xlu0 %v2534, 32
      %v3526 = vpop.permute.xlu0 %3525
      %v3559 = vsel %vm421, %v2246, %v2568
      %v3560 = vsel %vm421, %v2247, %v2570
      %v3561 = vsel %vm421, %v2248, %v2572
      %v3562 = vsel %vm421, %v2249, %v2574
      %v3563 = vsel %vm421, %v2250, %v2576
      %v3564 = vsel %vm421, %v2251, %v2578
      %v3565 = vsel %vm421, %v2252, %v2580
      %v3566 = vsel %vm421, %v2253, %v2582
      %v3567 = vsel %vm421, %v2254, %v2584
      %v3568 = vsel %vm421, %v2255, %v2586
      %v3569 = vsel %vm421, %v2256, %v2588
      %v3570 = vsel %vm421, %v2257, %v2590
      %v3571 = vsel %vm421, %v2258, %v2592
      %v3572 = vsel %vm421, %v2259, %v2594
      %v3573 = vsel %vm421, %v2260, %v2596
      %v3574 = vsel %vm421, %v2261, %v2598
      %v3575 = vsel %vm421, %v2262, %v2600
      %v3576 = vsel %vm421, %v2263, %v2602
      %v3577 = vsel %vm421, %v2264, %v2604
      %v3578 = vsel %vm421, %v2265, %v2606
      %v3579 = vsel %vm421, %v2266, %v2608
      %v3580 = vsel %vm421, %v2267, %v2610
      %v3581 = vsel %vm421, %v2268, %v2612
      %v3582 = vsel %vm421, %v2269, %v2614
      %v3583 = vsel %vm421, %v2270, %v2616
      %v3584 = vsel %vm421, %v2271, %v2618
      %v3585 = vsel %vm421, %v2272, %v2620
      %v3586 = vsel %vm421, %v2273, %v2622
      %v3587 = vsel %vm421, %v2274, %v2624
      %v3588 = vsel %vm421, %v2275, %v2626
      %v3589 = vsel %vm421, %v2276, %v2628
      %v3590 = vsel %vm421, %v2277, %v2630
      %v3591 = vsel %vm2010, %v3559, %v2696
      %v3592 = vsel %vm2010, %v3560, %v2698
      %v3593 = vsel %vm2010, %v3561, %v2700
      %v3594 = vsel %vm2010, %v3562, %v2702
      %v3595 = vsel %vm2010, %v3563, %v2704
      %v3596 = vsel %vm2010, %v3564, %v2706
      %v3597 = vsel %vm2010, %v3565, %v2708
      %v3598 = vsel %vm2010, %v3566, %v2710
      %v3599 = vsel %vm2010, %v3567, %v2712
      %v3600 = vsel %vm2010, %v3568, %v2714
      %v3601 = vsel %vm2010, %v3569, %v2716
      %v3602 = vsel %vm2010, %v3570, %v2718
      %v3603 = vsel %vm2010, %v3571, %v2720
      %v3604 = vsel %vm2010, %v3572, %v2722
      %v3605 = vsel %vm2010, %v3573, %v2724
      %v3606 = vsel %vm2010, %v3574, %v2726
      %v3607 = vsel %vm2010, %v3575, %v2728
      %v3608 = vsel %vm2010, %v3576, %v2730
      %v3609 = vsel %vm2010, %v3577, %v2732
      %v3610 = vsel %vm2010, %v3578, %v2734
      %v3611 = vsel %vm2010, %v3579, %v2736
      %v3612 = vsel %vm2010, %v3580, %v2738
      %v3613 = vsel %vm2010, %v3581, %v2740
      %v3614 = vsel %vm2010, %v3582, %v2742
      %v3615 = vsel %vm2010, %v3583, %v2744
      %v3616 = vsel %vm2010, %v3584, %v2746
      %v3617 = vsel %vm2010, %v3585, %v2748
      %v3618 = vsel %vm2010, %v3586, %v2750
      %v3619 = vsel %vm2010, %v3587, %v2752
      %v3620 = vsel %vm2010, %v3588, %v2754
      %v3621 = vsel %vm2010, %v3589, %v2756
      %v3622 = vsel %vm2010, %v3590, %v2758
      %v3623 = vsel %vm2043, %v3591, %v2824
      %v3624 = vsel %vm2043, %v3592, %v2826
      %v3625 = vsel %vm2043, %v3593, %v2828
      %v3626 = vsel %vm2043, %v3594, %v2830
      %v3627 = vsel %vm2043, %v3595, %v2832
      %v3628 = vsel %vm2043, %v3596, %v2834
      %v3629 = vsel %vm2043, %v3597, %v2836
      %v3630 = vsel %vm2043, %v3598, %v2838
      %v3631 = vsel %vm2043, %v3599, %v2840
      %v3632 = vsel %vm2043, %v3600, %v2842
      %v3633 = vsel %vm2043, %v3601, %v2844
      %v3634 = vsel %vm2043, %v3602, %v2846
      %v3635 = vsel %vm2043, %v3603, %v2848
      %v3636 = vsel %vm2043, %v3604, %v2850
      %v3637 = vsel %vm2043, %v3605, %v2852
      %v3638 = vsel %vm2043, %v3606, %v2854
      %v3639 = vsel %vm2043, %v3607, %v2856
      %v3640 = vsel %vm2043, %v3608, %v2858
      %v3641 = vsel %vm2043, %v3609, %v2860
      %v3642 = vsel %vm2043, %v3610, %v2862
      %v3643 = vsel %vm2043, %v3611, %v2864
      %v3644 = vsel %vm2043, %v3612, %v2866
      %v3645 = vsel %vm2043, %v3613, %v2868
      %v3646 = vsel %vm2043, %v3614, %v2870
      %v3647 = vsel %vm2043, %v3615, %v2872
      %v3648 = vsel %vm2043, %v3616, %v2874
      %v3649 = vsel %vm2043, %v3617, %v2876
      %v3650 = vsel %vm2043, %v3618, %v2878
      %v3651 = vsel %vm2043, %v3619, %v2880
      %v3652 = vsel %vm2043, %v3620, %v2882
      %v3653 = vsel %vm2043, %v3621, %v2884
      %v3654 = vsel %vm2043, %v3622, %v2886
      %v3655 = vsel %vm2076, %v3623, %v2952
      %v3656 = vsel %vm2076, %v3624, %v2954
      %v3657 = vsel %vm2076, %v3625, %v2956
      %v3658 = vsel %vm2076, %v3626, %v2958
      %v3659 = vsel %vm2076, %v3627, %v2960
      %v3660 = vsel %vm2076, %v3628, %v2962
      %v3661 = vsel %vm2076, %v3629, %v2964
      %v3662 = vsel %vm2076, %v3630, %v2966
      %v3663 = vsel %vm2076, %v3631, %v2968
      %v3664 = vsel %vm2076, %v3632, %v2970
      %v3665 = vsel %vm2076, %v3633, %v2972
      %v3666 = vsel %vm2076, %v3634, %v2974
      %v3667 = vsel %vm2076, %v3635, %v2976
      %v3668 = vsel %vm2076, %v3636, %v2978
      %v3669 = vsel %vm2076, %v3637, %v2980
      %v3670 = vsel %vm2076, %v3638, %v2982
      %v3671 = vsel %vm2076, %v3639, %v2984
      %v3672 = vsel %vm2076, %v3640, %v2986
      %v3673 = vsel %vm2076, %v3641, %v2988
      %v3674 = vsel %vm2076, %v3642, %v2990
      %v3675 = vsel %vm2076, %v3643, %v2992
      %v3676 = vsel %vm2076, %v3644, %v2994
      %v3677 = vsel %vm2076, %v3645, %v2996
      %v3678 = vsel %vm2076, %v3646, %v2998
      %v3679 = vsel %vm2076, %v3647, %v3000
      %v3680 = vsel %vm2076, %v3648, %v3002
      %v3681 = vsel %vm2076, %v3649, %v3004
      %v3682 = vsel %vm2076, %v3650, %v3006
      %v3683 = vsel %vm2076, %v3651, %v3008
      %v3684 = vsel %vm2076, %v3652, %v3010
      %v3685 = vsel %vm2076, %v3653, %v3012
      %v3686 = vsel %vm2076, %v3654, %v3014
      %v3687 = vsel %vm2109, %v3655, %v3080
      %v3688 = vsel %vm2109, %v3656, %v3082
      %v3689 = vsel %vm2109, %v3657, %v3084
      %v3690 = vsel %vm2109, %v3658, %v3086
      %v3691 = vsel %vm2109, %v3659, %v3088
      %v3692 = vsel %vm2109, %v3660, %v3090
      %v3693 = vsel %vm2109, %v3661, %v3092
      %v3694 = vsel %vm2109, %v3662, %v3094
      %v3695 = vsel %vm2109, %v3663, %v3096
      %v3696 = vsel %vm2109, %v3664, %v3098
      %v3697 = vsel %vm2109, %v3665, %v3100
      %v3698 = vsel %vm2109, %v3666, %v3102
      %v3699 = vsel %vm2109, %v3667, %v3104
      %v3700 = vsel %vm2109, %v3668, %v3106
      %v3701 = vsel %vm2109, %v3669, %v3108
      %v3702 = vsel %vm2109, %v3670, %v3110
      %v3703 = vsel %vm2109, %v3671, %v3112
      %v3704 = vsel %vm2109, %v3672, %v3114
      %v3705 = vsel %vm2109, %v3673, %v3116
      %v3706 = vsel %vm2109, %v3674, %v3118
      %v3707 = vsel %vm2109, %v3675, %v3120
      %v3708 = vsel %vm2109, %v3676, %v3122
      %v3709 = vsel %vm2109, %v3677, %v3124
      %v3710 = vsel %vm2109, %v3678, %v3126
      %v3711 = vsel %vm2109, %v3679, %v3128
      %v3712 = vsel %vm2109, %v3680, %v3130
      %v3713 = vsel %vm2109, %v3681, %v3132
      %v3714 = vsel %vm2109, %v3682, %v3134
      %v3715 = vsel %vm2109, %v3683, %v3136
      %v3716 = vsel %vm2109, %v3684, %v3138
      %v3717 = vsel %vm2109, %v3685, %v3140
      %v3718 = vsel %vm2109, %v3686, %v3142
      %v3719 = vsel %vm2142, %v3687, %v3208
      %v3720 = vsel %vm2142, %v3688, %v3210
      %v3721 = vsel %vm2142, %v3689, %v3212
      %v3722 = vsel %vm2142, %v3690, %v3214
      %v3723 = vsel %vm2142, %v3691, %v3216
      %v3724 = vsel %vm2142, %v3692, %v3218
      %v3725 = vsel %vm2142, %v3693, %v3220
      %v3726 = vsel %vm2142, %v3694, %v3222
      %v3727 = vsel %vm2142, %v3695, %v3224
      %v3728 = vsel %vm2142, %v3696, %v3226
      %v3729 = vsel %vm2142, %v3697, %v3228
      %v3730 = vsel %vm2142, %v3698, %v3230
      %v3731 = vsel %vm2142, %v3699, %v3232
      %v3732 = vsel %vm2142, %v3700, %v3234
      %v3733 = vsel %vm2142, %v3701, %v3236
      %v3734 = vsel %vm2142, %v3702, %v3238
      %v3735 = vsel %vm2142, %v3703, %v3240
      %v3736 = vsel %vm2142, %v3704, %v3242
      %v3737 = vsel %vm2142, %v3705, %v3244
      %v3738 = vsel %vm2142, %v3706, %v3246
      %v3739 = vsel %vm2142, %v3707, %v3248
      %v3740 = vsel %vm2142, %v3708, %v3250
      %v3741 = vsel %vm2142, %v3709, %v3252
      %v3742 = vsel %vm2142, %v3710, %v3254
      %v3743 = vsel %vm2142, %v3711, %v3256
      %v3744 = vsel %vm2142, %v3712, %v3258
      %v3745 = vsel %vm2142, %v3713, %v3260
      %v3746 = vsel %vm2142, %v3714, %v3262
      %v3747 = vsel %vm2142, %v3715, %v3264
      %v3748 = vsel %vm2142, %v3716, %v3266
      %v3749 = vsel %vm2142, %v3717, %v3268
      %v3750 = vsel %vm2142, %v3718, %v3270
      %v3751 = vsel %vm2175, %v3719, %v3336
      %v3752 = vsel %vm2175, %v3720, %v3338
      %v3753 = vsel %vm2175, %v3721, %v3340
      %v3754 = vsel %vm2175, %v3722, %v3342
      %v3755 = vsel %vm2175, %v3723, %v3344
      %v3756 = vsel %vm2175, %v3724, %v3346
      %v3757 = vsel %vm2175, %v3725, %v3348
      %v3758 = vsel %vm2175, %v3726, %v3350
      %v3759 = vsel %vm2175, %v3727, %v3352
      %v3760 = vsel %vm2175, %v3728, %v3354
      %v3761 = vsel %vm2175, %v3729, %v3356
      %v3762 = vsel %vm2175, %v3730, %v3358
      %v3763 = vsel %vm2175, %v3731, %v3360
      %v3764 = vsel %vm2175, %v3732, %v3362
      %v3765 = vsel %vm2175, %v3733, %v3364
      %v3766 = vsel %vm2175, %v3734, %v3366
      %v3767 = vsel %vm2175, %v3735, %v3368
      %v3768 = vsel %vm2175, %v3736, %v3370
      %v3769 = vsel %vm2175, %v3737, %v3372
      %v3770 = vsel %vm2175, %v3738, %v3374
      %v3771 = vsel %vm2175, %v3739, %v3376
      %v3772 = vsel %vm2175, %v3740, %v3378
      %v3773 = vsel %vm2175, %v3741, %v3380
      %v3774 = vsel %vm2175, %v3742, %v3382
      %v3775 = vsel %vm2175, %v3743, %v3384
      %v3776 = vsel %vm2175, %v3744, %v3386
      %v3777 = vsel %vm2175, %v3745, %v3388
      %v3778 = vsel %vm2175, %v3746, %v3390
      %v3779 = vsel %vm2175, %v3747, %v3392
      %v3780 = vsel %vm2175, %v3748, %v3394
      %v3781 = vsel %vm2175, %v3749, %v3396
      %v3782 = vsel %vm2175, %v3750, %v3398
      %v3783 = vsel %vm2208, %v3751, %v3464
      %v3784 = vsel %vm2208, %v3752, %v3466
      %v3785 = vsel %vm2208, %v3753, %v3468
      %v3786 = vsel %vm2208, %v3754, %v3470
      %v3787 = vsel %vm2208, %v3755, %v3472
      %v3788 = vsel %vm2208, %v3756, %v3474
      %v3789 = vsel %vm2208, %v3757, %v3476
      %v3790 = vsel %vm2208, %v3758, %v3478
      %v3791 = vsel %vm2208, %v3759, %v3480
      %v3792 = vsel %vm2208, %v3760, %v3482
      %v3793 = vsel %vm2208, %v3761, %v3484
      %v3794 = vsel %vm2208, %v3762, %v3486
      %v3795 = vsel %vm2208, %v3763, %v3488
      %v3796 = vsel %vm2208, %v3764, %v3490
      %v3797 = vsel %vm2208, %v3765, %v3492
      %v3798 = vsel %vm2208, %v3766, %v3494
      %v3799 = vsel %vm2208, %v3767, %v3496
      %v3800 = vsel %vm2208, %v3768, %v3498
      %v3801 = vsel %vm2208, %v3769, %v3500
      %v3802 = vsel %vm2208, %v3770, %v3502
      %v3803 = vsel %vm2208, %v3771, %v3504
      %v3804 = vsel %vm2208, %v3772, %v3506
      %v3805 = vsel %vm2208, %v3773, %v3508
      %v3806 = vsel %vm2208, %v3774, %v3510
      %v3807 = vsel %vm2208, %v3775, %v3512
      %v3808 = vsel %vm2208, %v3776, %v3514
      %v3809 = vsel %vm2208, %v3777, %v3516
      %v3810 = vsel %vm2208, %v3778, %v3518
      %v3811 = vsel %vm2208, %v3779, %v3520
      %v3812 = vsel %vm2208, %v3780, %v3522
      %v3813 = vsel %vm2208, %v3781, %v3524
      %v3814 = vsel %vm2208, %v3782, %v3526
      %v3815 = vld [vmem:[%s3] sm:$0xff]
      %v3816 = vld [vmem:[%s3 + $0x8] sm:$0xff]
      %v3817 = vld [vmem:[%s3 + $0x10] sm:$0xff]
      %v3818 = vld [vmem:[%s3 + $0x18] sm:$0xff]
      %v3819 = vld [vmem:[%s3 + $0x20] sm:$0xf]
      %vm3820 = vcmask 293888
      %v3822 = vsel %vm3820, %v3783, 0
      %v3825 = vsel %vm3820, %v3784, 0
      %v3828 = vsel %vm3820, %v3785, 0
      %v3831 = vsel %vm3820, %v3786, 0
      %v3834 = vsel %vm3820, %v3787, 0
      %v3837 = vsel %vm3820, %v3788, 0
      %v3840 = vsel %vm3820, %v3789, 0
      %v3843 = vsel %vm3820, %v3790, 0
      %v3846 = vsel %vm3820, %v3791, 0
      %v3849 = vsel %vm3820, %v3792, 0
      %v3852 = vsel %vm3820, %v3793, 0
      %v3855 = vsel %vm3820, %v3794, 0
      %v3858 = vsel %vm3820, %v3795, 0
      %v3861 = vsel %vm3820, %v3796, 0
      %v3864 = vsel %vm3820, %v3797, 0
      %v3867 = vsel %vm3820, %v3798, 0
      %v3870 = vsel %vm3820, %v3799, 0
      %v3873 = vsel %vm3820, %v3800, 0
      %v3876 = vsel %vm3820, %v3801, 0
      %v3879 = vsel %vm3820, %v3802, 0
      %v3882 = vsel %vm3820, %v3803, 0
      %v3885 = vsel %vm3820, %v3804, 0
      %v3888 = vsel %vm3820, %v3805, 0
      %v3891 = vsel %vm3820, %v3806, 0
      %v3894 = vsel %vm3820, %v3807, 0
      %v3897 = vsel %vm3820, %v3808, 0
      %v3900 = vsel %vm3820, %v3809, 0
      %v3903 = vsel %vm3820, %v3810, 0
      %v3906 = vsel %vm3820, %v3811, 0
      %v3909 = vsel %vm3820, %v3812, 0
      %v3912 = vsel %vm3820, %v3813, 0
      %v3915 = vsel %vm3820, %v3814, 0
      %vm3917 = vcmask 1043456
      %v3919 = vsel %vm3917, %v3819, 0
      %3921 = vmatprep.subr.mxu0 0.0
      %3922 = vmatpush1.msra.mxu0 0.0
      %3923 = vmatprep.subr.mxu0 0.0
      %3924 = vmatpush1.msra.mxu0 0.0
      %3925 = vmatprep.subr.mxu0 0.0
      %3926 = vmatpush1.msra.mxu0 0.0
      %3927 = vmatprep.subr.mxu0 0.0
      %3928 = vmatpush1.msra.mxu0 0.0
      %3929 = vmatprep.subr.mxu0 0.0
      %3930 = vmatpush1.msra.mxu0 0.0
      %3931 = vmatprep.subr.mxu0 0.0
      %3932 = vmatpush1.msra.mxu0 0.0
      %3933 = vmatprep.subr.mxu0 0.0
      %3934 = vmatpush1.msra.mxu0 0.0
      %3935 = vmatprep.subr.mxu0 0.0
      %3936 = vmatpush1.msra.mxu0 0.0
      %3937 = vmatprep.subr.mxu0 0.0
      %3938 = vmatpush1.msra.mxu0 0.0
      %3939 = vmatprep.subr.mxu0 0.0
      %3940 = vmatpush1.msra.mxu0 0.0
      %3941 = vmatprep.subr.mxu0 0.0
      %3942 = vmatpush1.msra.mxu0 0.0
      %3943 = vmatprep.subr.mxu0 0.0
      %3944 = vmatpush1.msra.mxu0 %v3919
      %3945 = vmatprep.subr.mxu0 0.0
      %3946 = vmatpush1.msra.mxu0 %v3818
      %3947 = vmatprep.subr.mxu0 0.0
      %3948 = vmatpush1.msra.mxu0 %v3817
      %3949 = vmatprep.subr.mxu0 0.0
      %3950 = vmatpush1.msra.mxu0 %v3816
      %3951 = vmatprep.subr.mxu0 0.0
      %3952 = vmatpush1.msra.mxu0 %v3815
      %3953 = vmatprep.subr.mxu0 0.0
      %3954 = vmatpush2.msra.mxu0 0.0
      %3955 = vmatprep.subr.mxu0 0.0
      %3956 = vmatpush2.msra.mxu0 0.0
      %3957 = vmatprep.subr.mxu0 0.0
      %3958 = vmatpush2.msra.mxu0 0.0
      %3959 = vmatprep.subr.mxu0 0.0
      %3960 = vmatpush2.msra.mxu0 0.0
      %3961 = vmatprep.subr.mxu0 0.0
      %3962 = vmatpush2.msra.mxu0 0.0
      %3963 = vmatprep.subr.mxu0 0.0
      %3964 = vmatpush2.msra.mxu0 0.0
      %3965 = vmatprep.subr.mxu0 0.0
      %3966 = vmatpush2.msra.mxu0 0.0
      %3967 = vmatprep.subr.mxu0 0.0
      %3968 = vmatpush2.msra.mxu0 0.0
      %3969 = vmatprep.subr.mxu0 0.0
      %3970 = vmatpush2.msra.mxu0 0.0
      %3971 = vmatprep.subr.mxu0 0.0
      %3972 = vmatpush2.msra.mxu0 0.0
      %3973 = vmatprep.subr.mxu0 0.0
      %3974 = vmatpush2.msra.mxu0 0.0
      %3975 = vmatprep.subr.mxu0 0.0
      %3976 = vmatpush2.msra.mxu0 0.0
      %3977 = vmatprep.subr.mxu0 0.0
      %3978 = vmatpush2.msra.mxu0 0.0
      %3979 = vmatprep.subr.mxu0 0.0
      %3980 = vmatpush2.msra.mxu0 0.0
      %3981 = vmatprep.subr.mxu0 0.0
      %3982 = vmatpush2.msra.mxu0 0.0
      %3983 = vmatprep.subr.mxu0 0.0
      %3984 = vmatpush2.msra.mxu0 0.0
      %3985 = vmatprep.mubr.f32.mxu0 0.0
      %3986 = vmatmul.mubr.f32.gmra.mxu0 %v3822
      %v3987 = vpop.f32.mrf.mxu0
      %v3988 = vadd.f32 0.0, %v3987
      %v3989 = vpop.f32.mrf.mxu0
      %3990 = vmatprep.mubr.f32.mxu0 0.0
      %3991 = vmatmul.mubr.f32.gmra.mxu0 %v3825
      %v3992 = vpop.f32.mrf.mxu0
      %v3993 = vadd.f32 0.0, %v3992
      %v3994 = vpop.f32.mrf.mxu0
      %3995 = vmatprep.mubr.f32.mxu0 0.0
      %3996 = vmatmul.mubr.f32.gmra.mxu0 %v3828
      %v3997 = vpop.f32.mrf.mxu0
      %v3998 = vadd.f32 0.0, %v3997
      %v3999 = vpop.f32.mrf.mxu0
      %4000 = vmatprep.mubr.f32.mxu0 0.0
      %4001 = vmatmul.mubr.f32.gmra.mxu0 %v3831
      %v4002 = vpop.f32.mrf.mxu0
      %v4003 = vadd.f32 0.0, %v4002
      %v4004 = vpop.f32.mrf.mxu0
      %4005 = vmatprep.mubr.f32.mxu0 0.0
      %4006 = vmatmul.mubr.f32.gmra.mxu0 %v3834
      %v4007 = vpop.f32.mrf.mxu0
      %v4008 = vadd.f32 0.0, %v4007
      %v4009 = vpop.f32.mrf.mxu0
      %4010 = vmatprep.mubr.f32.mxu0 0.0
      %4011 = vmatmul.mubr.f32.gmra.mxu0 %v3837
      %v4012 = vpop.f32.mrf.mxu0
      %v4013 = vadd.f32 0.0, %v4012
      %v4014 = vpop.f32.mrf.mxu0
      %4015 = vmatprep.mubr.f32.mxu0 0.0
      %4016 = vmatmul.mubr.f32.gmra.mxu0 %v3840
      %v4017 = vpop.f32.mrf.mxu0
      %v4018 = vadd.f32 0.0, %v4017
      %v4019 = vpop.f32.mrf.mxu0
      %4020 = vmatprep.mubr.f32.mxu0 0.0
      %4021 = vmatmul.mubr.f32.gmra.mxu0 %v3843
      %v4022 = vpop.f32.mrf.mxu0
      %v4023 = vadd.f32 0.0, %v4022
      %v4024 = vpop.f32.mrf.mxu0
      %4025 = vmatprep.mubr.f32.mxu0 0.0
      %4026 = vmatmul.mubr.f32.gmra.mxu0 %v3846
      %v4027 = vpop.f32.mrf.mxu0
      %v4028 = vadd.f32 0.0, %v4027
      %v4029 = vpop.f32.mrf.mxu0
      %4030 = vmatprep.mubr.f32.mxu0 0.0
      %4031 = vmatmul.mubr.f32.gmra.mxu0 %v3849
      %v4032 = vpop.f32.mrf.mxu0
      %v4033 = vadd.f32 0.0, %v4032
      %v4034 = vpop.f32.mrf.mxu0
      %4035 = vmatprep.mubr.f32.mxu0 0.0
      %4036 = vmatmul.mubr.f32.gmra.mxu0 %v3852
      %v4037 = vpop.f32.mrf.mxu0
      %v4038 = vadd.f32 0.0, %v4037
      %v4039 = vpop.f32.mrf.mxu0
      %4040 = vmatprep.mubr.f32.mxu0 0.0
      %4041 = vmatmul.mubr.f32.gmra.mxu0 %v3855
      %v4042 = vpop.f32.mrf.mxu0
      %v4043 = vadd.f32 0.0, %v4042
      %v4044 = vpop.f32.mrf.mxu0
      %4045 = vmatprep.mubr.f32.mxu0 0.0
      %4046 = vmatmul.mubr.f32.gmra.mxu0 %v3858
      %v4047 = vpop.f32.mrf.mxu0
      %v4048 = vadd.f32 0.0, %v4047
      %v4049 = vpop.f32.mrf.mxu0
      %4050 = vmatprep.mubr.f32.mxu0 0.0
      %4051 = vmatmul.mubr.f32.gmra.mxu0 %v3861
      %v4052 = vpop.f32.mrf.mxu0
      %v4053 = vadd.f32 0.0, %v4052
      %v4054 = vpop.f32.mrf.mxu0
      %4055 = vmatprep.mubr.f32.mxu0 0.0
      %4056 = vmatmul.mubr.f32.gmra.mxu0 %v3864
      %v4057 = vpop.f32.mrf.mxu0
      %v4058 = vadd.f32 0.0, %v4057
      %v4059 = vpop.f32.mrf.mxu0
      %4060 = vmatprep.mubr.f32.mxu0 0.0
      %4061 = vmatmul.mubr.f32.gmra.mxu0 %v3867
      %v4062 = vpop.f32.mrf.mxu0
      %v4063 = vadd.f32 0.0, %v4062
      %v4064 = vpop.f32.mrf.mxu0
      %4065 = vmatprep.mubr.f32.mxu0 0.0
      %4066 = vmatmul.mubr.f32.gmra.mxu0 %v3870
      %v4067 = vpop.f32.mrf.mxu0
      %v4068 = vadd.f32 0.0, %v4067
      %v4069 = vpop.f32.mrf.mxu0
      %4070 = vmatprep.mubr.f32.mxu0 0.0
      %4071 = vmatmul.mubr.f32.gmra.mxu0 %v3873
      %v4072 = vpop.f32.mrf.mxu0
      %v4073 = vadd.f32 0.0, %v4072
      %v4074 = vpop.f32.mrf.mxu0
      %4075 = vmatprep.mubr.f32.mxu0 0.0
      %4076 = vmatmul.mubr.f32.gmra.mxu0 %v3876
      %v4077 = vpop.f32.mrf.mxu0
      %v4078 = vadd.f32 0.0, %v4077
      %v4079 = vpop.f32.mrf.mxu0
      %4080 = vmatprep.mubr.f32.mxu0 0.0
      %4081 = vmatmul.mubr.f32.gmra.mxu0 %v3879
      %v4082 = vpop.f32.mrf.mxu0
      %v4083 = vadd.f32 0.0, %v4082
      %v4084 = vpop.f32.mrf.mxu0
      %4085 = vmatprep.mubr.f32.mxu0 0.0
      %4086 = vmatmul.mubr.f32.gmra.mxu0 %v3882
      %v4087 = vpop.f32.mrf.mxu0
      %v4088 = vadd.f32 0.0, %v4087
      %v4089 = vpop.f32.mrf.mxu0
      %4090 = vmatprep.mubr.f32.mxu0 0.0
      %4091 = vmatmul.mubr.f32.gmra.mxu0 %v3885
      %v4092 = vpop.f32.mrf.mxu0
      %v4093 = vadd.f32 0.0, %v4092
      %v4094 = vpop.f32.mrf.mxu0
      %4095 = vmatprep.mubr.f32.mxu0 0.0
      %4096 = vmatmul.mubr.f32.gmra.mxu0 %v3888
      %v4097 = vpop.f32.mrf.mxu0
      %v4098 = vadd.f32 0.0, %v4097
      %v4099 = vpop.f32.mrf.mxu0
      %4100 = vmatprep.mubr.f32.mxu0 0.0
      %4101 = vmatmul.mubr.f32.gmra.mxu0 %v3891
      %v4102 = vpop.f32.mrf.mxu0
      %v4103 = vadd.f32 0.0, %v4102
      %v4104 = vpop.f32.mrf.mxu0
      %4105 = vmatprep.mubr.f32.mxu0 0.0
      %4106 = vmatmul.mubr.f32.gmra.mxu0 %v3894
      %v4107 = vpop.f32.mrf.mxu0
      %v4108 = vadd.f32 0.0, %v4107
      %v4109 = vpop.f32.mrf.mxu0
      %4110 = vmatprep.mubr.f32.mxu0 0.0
      %4111 = vmatmul.mubr.f32.gmra.mxu0 %v3897
      %v4112 = vpop.f32.mrf.mxu0
      %v4113 = vadd.f32 0.0, %v4112
      %v4114 = vpop.f32.mrf.mxu0
      %4115 = vmatprep.mubr.f32.mxu0 0.0
      %4116 = vmatmul.mubr.f32.gmra.mxu0 %v3900
      %v4117 = vpop.f32.mrf.mxu0
      %v4118 = vadd.f32 0.0, %v4117
      %v4119 = vpop.f32.mrf.mxu0
      %4120 = vmatprep.mubr.f32.mxu0 0.0
      %4121 = vmatmul.mubr.f32.gmra.mxu0 %v3903
      %v4122 = vpop.f32.mrf.mxu0
      %v4123 = vadd.f32 0.0, %v4122
      %v4124 = vpop.f32.mrf.mxu0
      %4125 = vmatprep.mubr.f32.mxu0 0.0
      %4126 = vmatmul.mubr.f32.gmra.mxu0 %v3906
      %v4127 = vpop.f32.mrf.mxu0
      %v4128 = vadd.f32 0.0, %v4127
      %v4129 = vpop.f32.mrf.mxu0
      %4130 = vmatprep.mubr.f32.mxu0 0.0
      %4131 = vmatmul.mubr.f32.gmra.mxu0 %v3909
      %v4132 = vpop.f32.mrf.mxu0
      %v4133 = vadd.f32 0.0, %v4132
      %v4134 = vpop.f32.mrf.mxu0
      %4135 = vmatprep.mubr.f32.mxu0 0.0
      %4136 = vmatmul.mubr.f32.gmra.mxu0 %v3912
      %v4137 = vpop.f32.mrf.mxu0
      %v4138 = vadd.f32 0.0, %v4137
      %v4139 = vpop.f32.mrf.mxu0
      %4140 = vmatprep.mubr.f32.mxu0 0.0
      %4141 = vmatmul.mubr.f32.gmra.mxu0 %v3915
      %v4142 = vpop.f32.mrf.mxu0
      %v4143 = vadd.f32 0.0, %v4142
      %v4144 = vpop.f32.mrf.mxu0
      %4145 = vdwg.mxu0
      %v4147 = vsel %vm3820, %v2209, 0
      %v4150 = vsel %vm3820, %v2210, 0
      %v4153 = vsel %vm3820, %v2211, 0
      %v4156 = vsel %vm3820, %v2212, 0
      %v4159 = vsel %vm3820, %v2213, 0
      %v4162 = vsel %vm3820, %v2214, 0
      %v4165 = vsel %vm3820, %v2215, 0
      %v4168 = vsel %vm3820, %v2216, 0
      %v4171 = vsel %vm3820, %v2217, 0
      %v4174 = vsel %vm3820, %v2218, 0
      %v4177 = vsel %vm3820, %v2219, 0
      %v4180 = vsel %vm3820, %v2220, 0
      %v4183 = vsel %vm3820, %v2221, 0
      %v4186 = vsel %vm3820, %v2222, 0
      %v4189 = vsel %vm3820, %v2223, 0
      %v4192 = vsel %vm3820, %v2224, 0
      %v4195 = vsel %vm3820, %v2225, 0
      %v4198 = vsel %vm3820, %v2226, 0
      %v4201 = vsel %vm3820, %v2227, 0
      %v4204 = vsel %vm3820, %v2228, 0
      %v4207 = vsel %vm3820, %v2229, 0
      %v4210 = vsel %vm3820, %v2230, 0
      %v4213 = vsel %vm3820, %v2231, 0
      %v4216 = vsel %vm3820, %v2232, 0
      %v4219 = vsel %vm3820, %v2233, 0
      %v4222 = vsel %vm3820, %v2234, 0
      %v4225 = vsel %vm3820, %v2235, 0
      %v4228 = vsel %vm3820, %v2236, 0
      %v4231 = vsel %vm3820, %v2237, 0
      %v4234 = vsel %vm3820, %v2238, 0
      %v4237 = vsel %vm3820, %v2239, 0
      %v4240 = vsel %vm3820, %v2240, 0
      %v4243 = vsel %vm3917, %v2245, 0
      %4245 = vmatprep.subr.mxu0 0.0
      %4246 = vmatpush1.msra.mxu0 0.0
      %4247 = vmatprep.subr.mxu0 0.0
      %4248 = vmatpush1.msra.mxu0 0.0
      %4249 = vmatprep.subr.mxu0 0.0
      %4250 = vmatpush1.msra.mxu0 0.0
      %4251 = vmatprep.subr.mxu0 0.0
      %4252 = vmatpush1.msra.mxu0 0.0
      %4253 = vmatprep.subr.mxu0 0.0
      %4254 = vmatpush1.msra.mxu0 0.0
      %4255 = vmatprep.subr.mxu0 0.0
      %4256 = vmatpush1.msra.mxu0 0.0
      %4257 = vmatprep.subr.mxu0 0.0
      %4258 = vmatpush1.msra.mxu0 0.0
      %4259 = vmatprep.subr.mxu0 0.0
      %4260 = vmatpush1.msra.mxu0 0.0
      %4261 = vmatprep.subr.mxu0 0.0
      %4262 = vmatpush1.msra.mxu0 0.0
      %4263 = vmatprep.subr.mxu0 0.0
      %4264 = vmatpush1.msra.mxu0 0.0
      %4265 = vmatprep.subr.mxu0 0.0
      %4266 = vmatpush1.msra.mxu0 0.0
      %4267 = vmatprep.subr.mxu0 0.0
      %4268 = vmatpush1.msra.mxu0 %v4243
      %4269 = vmatprep.subr.mxu0 0.0
      %4270 = vmatpush1.msra.mxu0 %v2244
      %4271 = vmatprep.subr.mxu0 0.0
      %4272 = vmatpush1.msra.mxu0 %v2243
      %4273 = vmatprep.subr.mxu0 0.0
      %4274 = vmatpush1.msra.mxu0 %v2242
      %4275 = vmatprep.subr.mxu0 0.0
      %4276 = vmatpush1.msra.mxu0 %v2241
      %4277 = vmatprep.subr.mxu0 0.0
      %4278 = vmatpush2.msra.mxu0 0.0
      %4279 = vmatprep.subr.mxu0 0.0
      %4280 = vmatpush2.msra.mxu0 0.0
      %4281 = vmatprep.subr.mxu0 0.0
      %4282 = vmatpush2.msra.mxu0 0.0
      %4283 = vmatprep.subr.mxu0 0.0
      %4284 = vmatpush2.msra.mxu0 0.0
      %4285 = vmatprep.subr.mxu0 0.0
      %4286 = vmatpush2.msra.mxu0 0.0
      %4287 = vmatprep.subr.mxu0 0.0
      %4288 = vmatpush2.msra.mxu0 0.0
      %4289 = vmatprep.subr.mxu0 0.0
      %4290 = vmatpush2.msra.mxu0 0.0
      %4291 = vmatprep.subr.mxu0 0.0
      %4292 = vmatpush2.msra.mxu0 0.0
      %4293 = vmatprep.subr.mxu0 0.0
      %4294 = vmatpush2.msra.mxu0 0.0
      %4295 = vmatprep.subr.mxu0 0.0
      %4296 = vmatpush2.msra.mxu0 0.0
      %4297 = vmatprep.subr.mxu0 0.0
      %4298 = vmatpush2.msra.mxu0 0.0
      %4299 = vmatprep.subr.mxu0 0.0
      %4300 = vmatpush2.msra.mxu0 0.0
      %4301 = vmatprep.subr.mxu0 0.0
      %4302 = vmatpush2.msra.mxu0 0.0
      %4303 = vmatprep.subr.mxu0 0.0
      %4304 = vmatpush2.msra.mxu0 0.0
      %4305 = vmatprep.subr.mxu0 0.0
      %4306 = vmatpush2.msra.mxu0 0.0
      %4307 = vmatprep.subr.mxu0 0.0
      %4308 = vmatpush2.msra.mxu0 0.0
      %4309 = vmatprep.mubr.f32.mxu0 0.0
      %4310 = vmatmul.mubr.f32.gmra.mxu0 %v4147
      %v4311 = vpop.f32.mrf.mxu0
      %v4312 = vadd.f32 %v3988, %v4311
      %v4313 = vpop.f32.mrf.mxu0
      %4314 = vmatprep.mubr.f32.mxu0 0.0
      %4315 = vmatmul.mubr.f32.gmra.mxu0 %v4150
      %v4316 = vpop.f32.mrf.mxu0
      %v4317 = vadd.f32 %v3993, %v4316
      %v4318 = vpop.f32.mrf.mxu0
      %4319 = vmatprep.mubr.f32.mxu0 0.0
      %4320 = vmatmul.mubr.f32.gmra.mxu0 %v4153
      %v4321 = vpop.f32.mrf.mxu0
      %v4322 = vadd.f32 %v3998, %v4321
      %v4323 = vpop.f32.mrf.mxu0
      %4324 = vmatprep.mubr.f32.mxu0 0.0
      %4325 = vmatmul.mubr.f32.gmra.mxu0 %v4156
      %v4326 = vpop.f32.mrf.mxu0
      %v4327 = vadd.f32 %v4003, %v4326
      %v4328 = vpop.f32.mrf.mxu0
      %4329 = vmatprep.mubr.f32.mxu0 0.0
      %4330 = vmatmul.mubr.f32.gmra.mxu0 %v4159
      %v4331 = vpop.f32.mrf.mxu0
      %v4332 = vadd.f32 %v4008, %v4331
      %v4333 = vpop.f32.mrf.mxu0
      %4334 = vmatprep.mubr.f32.mxu0 0.0
      %4335 = vmatmul.mubr.f32.gmra.mxu0 %v4162
      %v4336 = vpop.f32.mrf.mxu0
      %v4337 = vadd.f32 %v4013, %v4336
      %v4338 = vpop.f32.mrf.mxu0
      %4339 = vmatprep.mubr.f32.mxu0 0.0
      %4340 = vmatmul.mubr.f32.gmra.mxu0 %v4165
      %v4341 = vpop.f32.mrf.mxu0
      %v4342 = vadd.f32 %v4018, %v4341
      %v4343 = vpop.f32.mrf.mxu0
      %4344 = vmatprep.mubr.f32.mxu0 0.0
      %4345 = vmatmul.mubr.f32.gmra.mxu0 %v4168
      %v4346 = vpop.f32.mrf.mxu0
      %v4347 = vadd.f32 %v4023, %v4346
      %v4348 = vpop.f32.mrf.mxu0
      %4349 = vmatprep.mubr.f32.mxu0 0.0
      %4350 = vmatmul.mubr.f32.gmra.mxu0 %v4171
      %v4351 = vpop.f32.mrf.mxu0
      %v4352 = vadd.f32 %v4028, %v4351
      %v4353 = vpop.f32.mrf.mxu0
      %4354 = vmatprep.mubr.f32.mxu0 0.0
      %4355 = vmatmul.mubr.f32.gmra.mxu0 %v4174
      %v4356 = vpop.f32.mrf.mxu0
      %v4357 = vadd.f32 %v4033, %v4356
      %v4358 = vpop.f32.mrf.mxu0
      %4359 = vmatprep.mubr.f32.mxu0 0.0
      %4360 = vmatmul.mubr.f32.gmra.mxu0 %v4177
      %v4361 = vpop.f32.mrf.mxu0
      %v4362 = vadd.f32 %v4038, %v4361
      %v4363 = vpop.f32.mrf.mxu0
      %4364 = vmatprep.mubr.f32.mxu0 0.0
      %4365 = vmatmul.mubr.f32.gmra.mxu0 %v4180
      %v4366 = vpop.f32.mrf.mxu0
      %v4367 = vadd.f32 %v4043, %v4366
      %v4368 = vpop.f32.mrf.mxu0
      %4369 = vmatprep.mubr.f32.mxu0 0.0
      %4370 = vmatmul.mubr.f32.gmra.mxu0 %v4183
      %v4371 = vpop.f32.mrf.mxu0
      %v4372 = vadd.f32 %v4048, %v4371
      %v4373 = vpop.f32.mrf.mxu0
      %4374 = vmatprep.mubr.f32.mxu0 0.0
      %4375 = vmatmul.mubr.f32.gmra.mxu0 %v4186
      %v4376 = vpop.f32.mrf.mxu0
      %v4377 = vadd.f32 %v4053, %v4376
      %v4378 = vpop.f32.mrf.mxu0
      %4379 = vmatprep.mubr.f32.mxu0 0.0
      %4380 = vmatmul.mubr.f32.gmra.mxu0 %v4189
      %v4381 = vpop.f32.mrf.mxu0
      %v4382 = vadd.f32 %v4058, %v4381
      %v4383 = vpop.f32.mrf.mxu0
      %4384 = vmatprep.mubr.f32.mxu0 0.0
      %4385 = vmatmul.mubr.f32.gmra.mxu0 %v4192
      %v4386 = vpop.f32.mrf.mxu0
      %v4387 = vadd.f32 %v4063, %v4386
      %v4388 = vpop.f32.mrf.mxu0
      %4389 = vmatprep.mubr.f32.mxu0 0.0
      %4390 = vmatmul.mubr.f32.gmra.mxu0 %v4195
      %v4391 = vpop.f32.mrf.mxu0
      %v4392 = vadd.f32 %v4068, %v4391
      %v4393 = vpop.f32.mrf.mxu0
      %4394 = vmatprep.mubr.f32.mxu0 0.0
      %4395 = vmatmul.mubr.f32.gmra.mxu0 %v4198
      %v4396 = vpop.f32.mrf.mxu0
      %v4397 = vadd.f32 %v4073, %v4396
      %v4398 = vpop.f32.mrf.mxu0
      %4399 = vmatprep.mubr.f32.mxu0 0.0
      %4400 = vmatmul.mubr.f32.gmra.mxu0 %v4201
      %v4401 = vpop.f32.mrf.mxu0
      %v4402 = vadd.f32 %v4078, %v4401
      %v4403 = vpop.f32.mrf.mxu0
      %4404 = vmatprep.mubr.f32.mxu0 0.0
      %4405 = vmatmul.mubr.f32.gmra.mxu0 %v4204
      %v4406 = vpop.f32.mrf.mxu0
      %v4407 = vadd.f32 %v4083, %v4406
      %v4408 = vpop.f32.mrf.mxu0
      %4409 = vmatprep.mubr.f32.mxu0 0.0
      %4410 = vmatmul.mubr.f32.gmra.mxu0 %v4207
      %v4411 = vpop.f32.mrf.mxu0
      %v4412 = vadd.f32 %v4088, %v4411
      %v4413 = vpop.f32.mrf.mxu0
      %4414 = vmatprep.mubr.f32.mxu0 0.0
      %4415 = vmatmul.mubr.f32.gmra.mxu0 %v4210
      %v4416 = vpop.f32.mrf.mxu0
      %v4417 = vadd.f32 %v4093, %v4416
      %v4418 = vpop.f32.mrf.mxu0
      %4419 = vmatprep.mubr.f32.mxu0 0.0
      %4420 = vmatmul.mubr.f32.gmra.mxu0 %v4213
      %v4421 = vpop.f32.mrf.mxu0
      %v4422 = vadd.f32 %v4098, %v4421
      %v4423 = vpop.f32.mrf.mxu0
      %4424 = vmatprep.mubr.f32.mxu0 0.0
      %4425 = vmatmul.mubr.f32.gmra.mxu0 %v4216
      %v4426 = vpop.f32.mrf.mxu0
      %v4427 = vadd.f32 %v4103, %v4426
      %v4428 = vpop.f32.mrf.mxu0
      %4429 = vmatprep.mubr.f32.mxu0 0.0
      %4430 = vmatmul.mubr.f32.gmra.mxu0 %v4219
      %v4431 = vpop.f32.mrf.mxu0
      %v4432 = vadd.f32 %v4108, %v4431
      %v4433 = vpop.f32.mrf.mxu0
      %4434 = vmatprep.mubr.f32.mxu0 0.0
      %4435 = vmatmul.mubr.f32.gmra.mxu0 %v4222
      %v4436 = vpop.f32.mrf.mxu0
      %v4437 = vadd.f32 %v4113, %v4436
      %v4438 = vpop.f32.mrf.mxu0
      %4439 = vmatprep.mubr.f32.mxu0 0.0
      %4440 = vmatmul.mubr.f32.gmra.mxu0 %v4225
      %v4441 = vpop.f32.mrf.mxu0
      %v4442 = vadd.f32 %v4118, %v4441
      %v4443 = vpop.f32.mrf.mxu0
      %4444 = vmatprep.mubr.f32.mxu0 0.0
      %4445 = vmatmul.mubr.f32.gmra.mxu0 %v4228
      %v4446 = vpop.f32.mrf.mxu0
      %v4447 = vadd.f32 %v4123, %v4446
      %v4448 = vpop.f32.mrf.mxu0
      %4449 = vmatprep.mubr.f32.mxu0 0.0
      %4450 = vmatmul.mubr.f32.gmra.mxu0 %v4231
      %v4451 = vpop.f32.mrf.mxu0
      %v4452 = vadd.f32 %v4128, %v4451
      %v4453 = vpop.f32.mrf.mxu0
      %4454 = vmatprep.mubr.f32.mxu0 0.0
      %4455 = vmatmul.mubr.f32.gmra.mxu0 %v4234
      %v4456 = vpop.f32.mrf.mxu0
      %v4457 = vadd.f32 %v4133, %v4456
      %v4458 = vpop.f32.mrf.mxu0
      %4459 = vmatprep.mubr.f32.mxu0 0.0
      %4460 = vmatmul.mubr.f32.gmra.mxu0 %v4237
      %v4461 = vpop.f32.mrf.mxu0
      %v4462 = vadd.f32 %v4138, %v4461
      %v4463 = vpop.f32.mrf.mxu0
      %4464 = vmatprep.mubr.f32.mxu0 0.0
      %4465 = vmatmul.mubr.f32.gmra.mxu0 %v4240
      %v4466 = vpop.f32.mrf.mxu0
      %v4467 = vadd.f32 %v4143, %v4466
      %v4468 = vpop.f32.mrf.mxu0
      %4469 = vdwg.mxu0
      %v4470 = vld [vmem:[%s5] sm:$0x1]
      %v4472 = vlaneseq
      %v4473 = vshrl.u32 %v4472, 7
      %v4474 = vsub.s32 0, %v4473
      %v4475 = vrot.slane %v4470, %v4474
      %v4477 = vmul.f32 %v4312, %v4475
      %v4478 = vmul.f32 %v4317, %v4475
      %v4479 = vmul.f32 %v4322, %v4475
      %v4480 = vmul.f32 %v4327, %v4475
      %v4481 = vmul.f32 %v4332, %v4475
      %v4482 = vmul.f32 %v4337, %v4475
      %v4483 = vmul.f32 %v4342, %v4475
      %v4484 = vmul.f32 %v4347, %v4475
      %v4485 = vmul.f32 %v4352, %v4475
      %v4486 = vmul.f32 %v4357, %v4475
      %v4487 = vmul.f32 %v4362, %v4475
      %v4488 = vmul.f32 %v4367, %v4475
      %v4489 = vmul.f32 %v4372, %v4475
      %v4490 = vmul.f32 %v4377, %v4475
      %v4491 = vmul.f32 %v4382, %v4475
      %v4492 = vmul.f32 %v4387, %v4475
      %v4493 = vmul.f32 %v4392, %v4475
      %v4494 = vmul.f32 %v4397, %v4475
      %v4495 = vmul.f32 %v4402, %v4475
      %v4496 = vmul.f32 %v4407, %v4475
      %v4497 = vmul.f32 %v4412, %v4475
      %v4498 = vmul.f32 %v4417, %v4475
      %v4499 = vmul.f32 %v4422, %v4475
      %v4500 = vmul.f32 %v4427, %v4475
      %v4501 = vmul.f32 %v4432, %v4475
      %v4502 = vmul.f32 %v4437, %v4475
      %v4503 = vmul.f32 %v4442, %v4475
      %v4504 = vmul.f32 %v4447, %v4475
      %v4505 = vmul.f32 %v4452, %v4475
      %v4506 = vmul.f32 %v4457, %v4475
      %v4507 = vmul.f32 %v4462, %v4475
      %v4508 = vmul.f32 %v4467, %v4475
      %v4509 = vld [vmem:[%s6] sm:$0x1]
      %v4511 = vlaneseq
      %v4512 = vshrl.u32 %v4511, 7
      %v4513 = vsub.s32 0, %v4512
      %v4514 = vrot.slane %v4509, %v4513
      %v4516 = vadd.f32 %v4477, %v4514
      %v4517 = vadd.f32 %v4478, %v4514
      %v4518 = vadd.f32 %v4479, %v4514
      %v4519 = vadd.f32 %v4480, %v4514
      %v4520 = vadd.f32 %v4481, %v4514
      %v4521 = vadd.f32 %v4482, %v4514
      %v4522 = vadd.f32 %v4483, %v4514
      %v4523 = vadd.f32 %v4484, %v4514
      %v4524 = vadd.f32 %v4485, %v4514
      %v4525 = vadd.f32 %v4486, %v4514
      %v4526 = vadd.f32 %v4487, %v4514
      %v4527 = vadd.f32 %v4488, %v4514
      %v4528 = vadd.f32 %v4489, %v4514
      %v4529 = vadd.f32 %v4490, %v4514
      %v4530 = vadd.f32 %v4491, %v4514
      %v4531 = vadd.f32 %v4492, %v4514
      %v4532 = vadd.f32 %v4493, %v4514
      %v4533 = vadd.f32 %v4494, %v4514
      %v4534 = vadd.f32 %v4495, %v4514
      %v4535 = vadd.f32 %v4496, %v4514
      %v4536 = vadd.f32 %v4497, %v4514
      %v4537 = vadd.f32 %v4498, %v4514
      %v4538 = vadd.f32 %v4499, %v4514
      %v4539 = vadd.f32 %v4500, %v4514
      %v4540 = vadd.f32 %v4501, %v4514
      %v4541 = vadd.f32 %v4502, %v4514
      %v4542 = vadd.f32 %v4503, %v4514
      %v4543 = vadd.f32 %v4504, %v4514
      %v4544 = vadd.f32 %v4505, %v4514
      %v4545 = vadd.f32 %v4506, %v4514
      %v4546 = vadd.f32 %v4507, %v4514
      %v4547 = vadd.f32 %v4508, %v4514
      %v4548 = vmax.f32 %v4516, 0.0
      %v4549 = vmax.f32 %v4517, 0.0
      %v4550 = vmax.f32 %v4518, 0.0
      %v4551 = vmax.f32 %v4519, 0.0
      %v4552 = vmax.f32 %v4520, 0.0
      %v4553 = vmax.f32 %v4521, 0.0
      %v4554 = vmax.f32 %v4522, 0.0
      %v4555 = vmax.f32 %v4523, 0.0
      %v4556 = vmax.f32 %v4524, 0.0
      %v4557 = vmax.f32 %v4525, 0.0
      %v4558 = vmax.f32 %v4526, 0.0
      %v4559 = vmax.f32 %v4527, 0.0
      %v4560 = vmax.f32 %v4528, 0.0
      %v4561 = vmax.f32 %v4529, 0.0
      %v4562 = vmax.f32 %v4530, 0.0
      %v4563 = vmax.f32 %v4531, 0.0
      %v4564 = vmax.f32 %v4532, 0.0
      %v4565 = vmax.f32 %v4533, 0.0
      %v4566 = vmax.f32 %v4534, 0.0
      %v4567 = vmax.f32 %v4535, 0.0
      %v4568 = vmax.f32 %v4536, 0.0
      %v4569 = vmax.f32 %v4537, 0.0
      %v4570 = vmax.f32 %v4538, 0.0
      %v4571 = vmax.f32 %v4539, 0.0
      %v4572 = vmax.f32 %v4540, 0.0
      %v4573 = vmax.f32 %v4541, 0.0
      %v4574 = vmax.f32 %v4542, 0.0
      %v4575 = vmax.f32 %v4543, 0.0
      %v4576 = vmax.f32 %v4544, 0.0
      %v4577 = vmax.f32 %v4545, 0.0
      %v4578 = vmax.f32 %v4546, 0.0
      %v4579 = vmax.f32 %v4547, 0.0
      %4580 = vst.msk [vmem:[#allocation4] sm:$0xff] %vm421, 0.0
      %4581 = vst.msk [vmem:[#allocation4 + $0x8] sm:$0xff] %vm421, 0.0
      %4582 = vst.msk [vmem:[#allocation4 + $0x10] sm:$0x3] %vm424, 0.0
      %4583 = vst.msk [vmem:[#allocation4 + $0x18] sm:$0xff] %vm421, 0.0
      %4584 = vst.msk [vmem:[#allocation4 + $0x20] sm:$0xff] %vm421, 0.0
      %4585 = vst.msk [vmem:[#allocation4 + $0x28] sm:$0x3] %vm424, 0.0
      %4586 = vst.msk [vmem:[#allocation4 + $0x30] sm:$0xff] %vm421, 0.0
      %4587 = vst.msk [vmem:[#allocation4 + $0x38] sm:$0xff] %vm421, 0.0
      %4588 = vst.msk [vmem:[#allocation4 + $0x40] sm:$0x3] %vm424, 0.0
      %4589 = vst.msk [vmem:[#allocation4 + $0x48] sm:$0xff] %vm421, 0.0
      %4590 = vst.msk [vmem:[#allocation4 + $0x50] sm:$0xff] %vm421, 0.0
      %4591 = vst.msk [vmem:[#allocation4 + $0x58] sm:$0x3] %vm424, 0.0
      %4592 = vst.msk [vmem:[#allocation4 + $0x60] sm:$0xff] %vm421, 0.0
      %4593 = vst.msk [vmem:[#allocation4 + $0x68] sm:$0xff] %vm421, 0.0
      %4594 = vst.msk [vmem:[#allocation4 + $0x70] sm:$0x3] %vm424, 0.0
      %4595 = vst.msk [vmem:[#allocation4 + $0x78] sm:$0xff] %vm421, 0.0
      %4596 = vst.msk [vmem:[#allocation4 + $0x80] sm:$0xff] %vm421, 0.0
      %4597 = vst.msk [vmem:[#allocation4 + $0x88] sm:$0x3] %vm424, 0.0
      %4598 = vst.msk [vmem:[#allocation4 + $0x90] sm:$0xff] %vm421, 0.0
      %4599 = vst.msk [vmem:[#allocation4 + $0x98] sm:$0xff] %vm421, 0.0
      %4600 = vst.msk [vmem:[#allocation4 + $0xa0] sm:$0x3] %vm424, 0.0
      %4601 = vst.msk [vmem:[#allocation4 + $0xa8] sm:$0xff] %vm421, 0.0
      %4602 = vst.msk [vmem:[#allocation4 + $0xb0] sm:$0xff] %vm421, 0.0
      %4603 = vst.msk [vmem:[#allocation4 + $0xb8] sm:$0x3] %vm424, 0.0
      %4604 = vst.msk [vmem:[#allocation4 + $0xc0] sm:$0xff] %vm421, 0.0
      %4605 = vst.msk [vmem:[#allocation4 + $0xc8] sm:$0xff] %vm421, 0.0
      %4606 = vst.msk [vmem:[#allocation4 + $0xd0] sm:$0x3] %vm424, 0.0
      %4607 = vst.msk [vmem:[#allocation4 + $0xd8] sm:$0xff] %vm421, 0.0
      %4608 = vst.msk [vmem:[#allocation4 + $0xe0] sm:$0xff] %vm421, 0.0
      %4609 = vst.msk [vmem:[#allocation4 + $0xe8] sm:$0x3] %vm424, 0.0
      %4610 = vst.msk [vmem:[#allocation4 + $0xf0] sm:$0xff] %vm421, 0.0
      %4611 = vst.msk [vmem:[#allocation4 + $0xf8] sm:$0xff] %vm421, 0.0
      %4612 = vst.msk [vmem:[#allocation4 + $0x100] sm:$0x3] %vm424, 0.0
      %4613 = vst.msk [vmem:[#allocation4 + $0x108] sm:$0xff] %vm421, 0.0
      %4614 = vst.msk [vmem:[#allocation4 + $0x110] sm:$0xff] %vm421, 0.0
      %4615 = vst.msk [vmem:[#allocation4 + $0x118] sm:$0x3] %vm424, 0.0
      %4616 = vst.msk [vmem:[#allocation4 + $0x120] sm:$0xff] %vm421, 0.0
      %4617 = vst.msk [vmem:[#allocation4 + $0x128] sm:$0xff] %vm421, 0.0
      %4618 = vst.msk [vmem:[#allocation4 + $0x130] sm:$0x3] %vm424, 0.0
      %4619 = vst.msk [vmem:[#allocation4 + $0x138] sm:$0xff] %vm421, 0.0
      %4620 = vst.msk [vmem:[#allocation4 + $0x140] sm:$0xff] %vm421, 0.0
      %4621 = vst.msk [vmem:[#allocation4 + $0x148] sm:$0x3] %vm424, 0.0
      %4622 = vst.msk [vmem:[#allocation4 + $0x150] sm:$0xff] %vm421, 0.0
      %4623 = vst.msk [vmem:[#allocation4 + $0x158] sm:$0xff] %vm421, 0.0
      %4624 = vst.msk [vmem:[#allocation4 + $0x160] sm:$0x3] %vm424, 0.0
      %4625 = vst.msk [vmem:[#allocation4 + $0x168] sm:$0xff] %vm421, 0.0
      %4626 = vst.msk [vmem:[#allocation4 + $0x170] sm:$0xff] %vm421, 0.0
      %4627 = vst.msk [vmem:[#allocation4 + $0x178] sm:$0x3] %vm424, 0.0
      %4628 = vst.msk [vmem:[#allocation4 + $0x180] sm:$0xff] %vm421, 0.0
      %4629 = vst.msk [vmem:[#allocation4 + $0x188] sm:$0xff] %vm421, 0.0
      %4630 = vst.msk [vmem:[#allocation4 + $0x190] sm:$0x3] %vm424, 0.0
      %4631 = vst.msk [vmem:[#allocation4 + $0x198] sm:$0xff] %vm421, 0.0
      %4632 = vst.msk [vmem:[#allocation4 + $0x1a0] sm:$0xff] %vm421, 0.0
      %4633 = vst.msk [vmem:[#allocation4 + $0x1a8] sm:$0x3] %vm424, 0.0
      %s4634 = scalar_lea.vmem [#allocation4], 24
      %4635 = vst.msk [vmem:[%s4634 + $0x1] sm:$0xff] %vm421, %v4548
      %4636 = vst.msk [vmem:[%s4634 + $0x9] sm:$0xff] %vm421, %v4549
      %4637 = vst.msk [vmem:[%s4634 + $0x19] sm:$0xff] %vm421, %v4550
      %4638 = vst.msk [vmem:[%s4634 + $0x21] sm:$0xff] %vm421, %v4551
      %4639 = vst.msk [vmem:[%s4634 + $0x31] sm:$0xff] %vm421, %v4552
      %4640 = vst.msk [vmem:[%s4634 + $0x39] sm:$0xff] %vm421, %v4553
      %4641 = vst.msk [vmem:[%s4634 + $0x49] sm:$0xff] %vm421, %v4554
      %4642 = vst.msk [vmem:[%s4634 + $0x51] sm:$0xff] %vm421, %v4555
      %4643 = vst.msk [vmem:[%s4634 + $0x61] sm:$0xff] %vm421, %v4556
      %4644 = vst.msk [vmem:[%s4634 + $0x69] sm:$0xff] %vm421, %v4557
      %4645 = vst.msk [vmem:[%s4634 + $0x79] sm:$0xff] %vm421, %v4558
      %4646 = vst.msk [vmem:[%s4634 + $0x81] sm:$0xff] %vm421, %v4559
      %4647 = vst.msk [vmem:[%s4634 + $0x91] sm:$0xff] %vm421, %v4560
      %4648 = vst.msk [vmem:[%s4634 + $0x99] sm:$0xff] %vm421, %v4561
      %4649 = vst.msk [vmem:[%s4634 + $0xa9] sm:$0xff] %vm421, %v4562
      %4650 = vst.msk [vmem:[%s4634 + $0xb1] sm:$0xff] %vm421, %v4563
      %4651 = vst.msk [vmem:[%s4634 + $0xc1] sm:$0xff] %vm421, %v4564
      %4652 = vst.msk [vmem:[%s4634 + $0xc9] sm:$0xff] %vm421, %v4565
      %4653 = vst.msk [vmem:[%s4634 + $0xd9] sm:$0xff] %vm421, %v4566
      %4654 = vst.msk [vmem:[%s4634 + $0xe1] sm:$0xff] %vm421, %v4567
      %4655 = vst.msk [vmem:[%s4634 + $0xf1] sm:$0xff] %vm421, %v4568
      %4656 = vst.msk [vmem:[%s4634 + $0xf9] sm:$0xff] %vm421, %v4569
      %4657 = vst.msk [vmem:[%s4634 + $0x109] sm:$0xff] %vm421, %v4570
      %4658 = vst.msk [vmem:[%s4634 + $0x111] sm:$0xff] %vm421, %v4571
      %4659 = vst.msk [vmem:[%s4634 + $0x121] sm:$0xff] %vm421, %v4572
      %4660 = vst.msk [vmem:[%s4634 + $0x129] sm:$0xff] %vm421, %v4573
      %4661 = vst.msk [vmem:[%s4634 + $0x139] sm:$0xff] %vm421, %v4574
      %4662 = vst.msk [vmem:[%s4634 + $0x141] sm:$0xff] %vm421, %v4575
      %4663 = vst.msk [vmem:[%s4634 + $0x151] sm:$0xff] %vm421, %v4576
      %4664 = vst.msk [vmem:[%s4634 + $0x159] sm:$0xff] %vm421, %v4577
      %4665 = vst.msk [vmem:[%s4634 + $0x169] sm:$0xff] %vm421, %v4578
      %4666 = vst.msk [vmem:[%s4634 + $0x171] sm:$0xff] %vm421, %v4579
      %v4667 = vld [vmem:[#allocation4] sm:$0xff]
      %v4668 = vld [vmem:[#allocation4 + $0x8] sm:$0xff]
      %v4669 = vld [vmem:[#allocation4 + $0x18] sm:$0xff]
      %v4670 = vld [vmem:[#allocation4 + $0x20] sm:$0xff]
      %v4671 = vld [vmem:[#allocation4 + $0x30] sm:$0xff]
      %v4672 = vld [vmem:[#allocation4 + $0x38] sm:$0xff]
      %v4673 = vld [vmem:[#allocation4 + $0x48] sm:$0xff]
      %v4674 = vld [vmem:[#allocation4 + $0x50] sm:$0xff]
      %v4675 = vld [vmem:[#allocation4 + $0x60] sm:$0xff]
      %v4676 = vld [vmem:[#allocation4 + $0x68] sm:$0xff]
      %v4677 = vld [vmem:[#allocation4 + $0x78] sm:$0xff]
      %v4678 = vld [vmem:[#allocation4 + $0x80] sm:$0xff]
      %v4679 = vld [vmem:[#allocation4 + $0x90] sm:$0xff]
      %v4680 = vld [vmem:[#allocation4 + $0x98] sm:$0xff]
      %v4681 = vld [vmem:[#allocation4 + $0xa8] sm:$0xff]
      %v4682 = vld [vmem:[#allocation4 + $0xb0] sm:$0xff]
      %v4683 = vld [vmem:[#allocation4 + $0xc0] sm:$0xff]
      %v4684 = vld [vmem:[#allocation4 + $0xc8] sm:$0xff]
      %v4685 = vld [vmem:[#allocation4 + $0xd8] sm:$0xff]
      %v4686 = vld [vmem:[#allocation4 + $0xe0] sm:$0xff]
      %v4687 = vld [vmem:[#allocation4 + $0xf0] sm:$0xff]
      %v4688 = vld [vmem:[#allocation4 + $0xf8] sm:$0xff]
      %v4689 = vld [vmem:[#allocation4 + $0x108] sm:$0xff]
      %v4690 = vld [vmem:[#allocation4 + $0x110] sm:$0xff]
      %v4691 = vld [vmem:[#allocation4 + $0x120] sm:$0xff]
      %v4692 = vld [vmem:[#allocation4 + $0x128] sm:$0xff]
      %v4693 = vld [vmem:[#allocation4 + $0x138] sm:$0xff]
      %v4694 = vld [vmem:[#allocation4 + $0x140] sm:$0xff]
      %v4695 = vld [vmem:[#allocation4 + $0x150] sm:$0xff]
      %v4696 = vld [vmem:[#allocation4 + $0x158] sm:$0xff]
      %v4697 = vld [vmem:[#allocation4 + $0x168] sm:$0xff]
      %v4698 = vld [vmem:[#allocation4 + $0x170] sm:$0xff]
      %v4699 = vld [vmem:[#allocation4 + $0x1] sm:$0xff]
      %v4700 = vld [vmem:[#allocation4 + $0x9] sm:$0xff]
      %v4701 = vld [vmem:[#allocation4 + $0x19] sm:$0xff]
      %v4702 = vld [vmem:[#allocation4 + $0x21] sm:$0xff]
      %v4703 = vld [vmem:[#allocation4 + $0x31] sm:$0xff]
      %v4704 = vld [vmem:[#allocation4 + $0x39] sm:$0xff]
      %v4705 = vld [vmem:[#allocation4 + $0x49] sm:$0xff]
      %v4706 = vld [vmem:[#allocation4 + $0x51] sm:$0xff]
      %v4707 = vld [vmem:[#allocation4 + $0x61] sm:$0xff]
      %v4708 = vld [vmem:[#allocation4 + $0x69] sm:$0xff]
      %v4709 = vld [vmem:[#allocation4 + $0x79] sm:$0xff]
      %v4710 = vld [vmem:[#allocation4 + $0x81] sm:$0xff]
      %v4711 = vld [vmem:[#allocation4 + $0x91] sm:$0xff]
      %v4712 = vld [vmem:[#allocation4 + $0x99] sm:$0xff]
      %v4713 = vld [vmem:[#allocation4 + $0xa9] sm:$0xff]
      %v4714 = vld [vmem:[#allocation4 + $0xb1] sm:$0xff]
      %v4715 = vld [vmem:[#allocation4 + $0xc1] sm:$0xff]
      %v4716 = vld [vmem:[#allocation4 + $0xc9] sm:$0xff]
      %v4717 = vld [vmem:[#allocation4 + $0xd9] sm:$0xff]
      %v4718 = vld [vmem:[#allocation4 + $0xe1] sm:$0xff]
      %v4719 = vld [vmem:[#allocation4 + $0xf1] sm:$0xff]
      %v4720 = vld [vmem:[#allocation4 + $0xf9] sm:$0xff]
      %v4721 = vld [vmem:[#allocation4 + $0x109] sm:$0xff]
      %v4722 = vld [vmem:[#allocation4 + $0x111] sm:$0xff]
      %v4723 = vld [vmem:[#allocation4 + $0x121] sm:$0xff]
      %v4724 = vld [vmem:[#allocation4 + $0x129] sm:$0xff]
      %v4725 = vld [vmem:[#allocation4 + $0x139] sm:$0xff]
      %v4726 = vld [vmem:[#allocation4 + $0x141] sm:$0xff]
      %v4727 = vld [vmem:[#allocation4 + $0x151] sm:$0xff]
      %v4728 = vld [vmem:[#allocation4 + $0x159] sm:$0xff]
      %v4729 = vld [vmem:[#allocation4 + $0x169] sm:$0xff]
      %v4730 = vld [vmem:[#allocation4 + $0x171] sm:$0xff]
      %v4731 = vld [vmem:[#allocation4 + $0x2] sm:$0xff]
      %v4732 = vld [vmem:[#allocation4 + $0xa] sm:$0xff]
      %v4733 = vld [vmem:[#allocation4 + $0x1a] sm:$0xff]
      %v4734 = vld [vmem:[#allocation4 + $0x22] sm:$0xff]
      %v4735 = vld [vmem:[#allocation4 + $0x32] sm:$0xff]
      %v4736 = vld [vmem:[#allocation4 + $0x3a] sm:$0xff]
      %v4737 = vld [vmem:[#allocation4 + $0x4a] sm:$0xff]
      %v4738 = vld [vmem:[#allocation4 + $0x52] sm:$0xff]
      %v4739 = vld [vmem:[#allocation4 + $0x62] sm:$0xff]
      %v4740 = vld [vmem:[#allocation4 + $0x6a] sm:$0xff]
      %v4741 = vld [vmem:[#allocation4 + $0x7a] sm:$0xff]
      %v4742 = vld [vmem:[#allocation4 + $0x82] sm:$0xff]
      %v4743 = vld [vmem:[#allocation4 + $0x92] sm:$0xff]
      %v4744 = vld [vmem:[#allocation4 + $0x9a] sm:$0xff]
      %v4745 = vld [vmem:[#allocation4 + $0xaa] sm:$0xff]
      %v4746 = vld [vmem:[#allocation4 + $0xb2] sm:$0xff]
      %v4747 = vld [vmem:[#allocation4 + $0xc2] sm:$0xff]
      %v4748 = vld [vmem:[#allocation4 + $0xca] sm:$0xff]
      %v4749 = vld [vmem:[#allocation4 + $0xda] sm:$0xff]
      %v4750 = vld [vmem:[#allocation4 + $0xe2] sm:$0xff]
      %v4751 = vld [vmem:[#allocation4 + $0xf2] sm:$0xff]
      %v4752 = vld [vmem:[#allocation4 + $0xfa] sm:$0xff]
      %v4753 = vld [vmem:[#allocation4 + $0x10a] sm:$0xff]
      %v4754 = vld [vmem:[#allocation4 + $0x112] sm:$0xff]
      %v4755 = vld [vmem:[#allocation4 + $0x122] sm:$0xff]
      %v4756 = vld [vmem:[#allocation4 + $0x12a] sm:$0xff]
      %v4757 = vld [vmem:[#allocation4 + $0x13a] sm:$0xff]
      %v4758 = vld [vmem:[#allocation4 + $0x142] sm:$0xff]
      %v4759 = vld [vmem:[#allocation4 + $0x152] sm:$0xff]
      %v4760 = vld [vmem:[#allocation4 + $0x15a] sm:$0xff]
      %v4761 = vld [vmem:[#allocation4 + $0x16a] sm:$0xff]
      %v4762 = vld [vmem:[#allocation4 + $0x172] sm:$0xff]
      %v4763 = vld [vmem:[%s4634] sm:$0xff]
      %v4764 = vld [vmem:[%s4634 + $0x8] sm:$0xff]
      %v4765 = vld [vmem:[%s4634 + $0x18] sm:$0xff]
      %v4766 = vld [vmem:[%s4634 + $0x20] sm:$0xff]
      %v4767 = vld [vmem:[%s4634 + $0x30] sm:$0xff]
      %v4768 = vld [vmem:[%s4634 + $0x38] sm:$0xff]
      %v4769 = vld [vmem:[%s4634 + $0x48] sm:$0xff]
      %v4770 = vld [vmem:[%s4634 + $0x50] sm:$0xff]
      %v4771 = vld [vmem:[%s4634 + $0x60] sm:$0xff]
      %v4772 = vld [vmem:[%s4634 + $0x68] sm:$0xff]
      %v4773 = vld [vmem:[%s4634 + $0x78] sm:$0xff]
      %v4774 = vld [vmem:[%s4634 + $0x80] sm:$0xff]
      %v4775 = vld [vmem:[%s4634 + $0x90] sm:$0xff]
      %v4776 = vld [vmem:[%s4634 + $0x98] sm:$0xff]
      %v4777 = vld [vmem:[%s4634 + $0xa8] sm:$0xff]
      %v4778 = vld [vmem:[%s4634 + $0xb0] sm:$0xff]
      %v4779 = vld [vmem:[%s4634 + $0xc0] sm:$0xff]
      %v4780 = vld [vmem:[%s4634 + $0xc8] sm:$0xff]
      %v4781 = vld [vmem:[%s4634 + $0xd8] sm:$0xff]
      %v4782 = vld [vmem:[%s4634 + $0xe0] sm:$0xff]
      %v4783 = vld [vmem:[%s4634 + $0xf0] sm:$0xff]
      %v4784 = vld [vmem:[%s4634 + $0xf8] sm:$0xff]
      %v4785 = vld [vmem:[%s4634 + $0x108] sm:$0xff]
      %v4786 = vld [vmem:[%s4634 + $0x110] sm:$0xff]
      %v4787 = vld [vmem:[%s4634 + $0x120] sm:$0xff]
      %v4788 = vld [vmem:[%s4634 + $0x128] sm:$0xff]
      %v4789 = vld [vmem:[%s4634 + $0x138] sm:$0xff]
      %v4790 = vld [vmem:[%s4634 + $0x140] sm:$0xff]
      %v4791 = vld [vmem:[%s4634 + $0x150] sm:$0xff]
      %v4792 = vld [vmem:[%s4634 + $0x158] sm:$0xff]
      %v4793 = vld [vmem:[%s4634 + $0x168] sm:$0xff]
      %v4794 = vld [vmem:[%s4634 + $0x170] sm:$0xff]
      %v4795 = vld [vmem:[%s4634 + $0x1] sm:$0xff]
      %v4796 = vld [vmem:[%s4634 + $0x9] sm:$0xff]
      %v4797 = vld [vmem:[%s4634 + $0x19] sm:$0xff]
      %v4798 = vld [vmem:[%s4634 + $0x21] sm:$0xff]
      %v4799 = vld [vmem:[%s4634 + $0x31] sm:$0xff]
      %v4800 = vld [vmem:[%s4634 + $0x39] sm:$0xff]
      %v4801 = vld [vmem:[%s4634 + $0x49] sm:$0xff]
      %v4802 = vld [vmem:[%s4634 + $0x51] sm:$0xff]
      %v4803 = vld [vmem:[%s4634 + $0x61] sm:$0xff]
      %v4804 = vld [vmem:[%s4634 + $0x69] sm:$0xff]
      %v4805 = vld [vmem:[%s4634 + $0x79] sm:$0xff]
      %v4806 = vld [vmem:[%s4634 + $0x81] sm:$0xff]
      %v4807 = vld [vmem:[%s4634 + $0x91] sm:$0xff]
      %v4808 = vld [vmem:[%s4634 + $0x99] sm:$0xff]
      %v4809 = vld [vmem:[%s4634 + $0xa9] sm:$0xff]
      %v4810 = vld [vmem:[%s4634 + $0xb1] sm:$0xff]
      %v4811 = vld [vmem:[%s4634 + $0xc1] sm:$0xff]
      %v4812 = vld [vmem:[%s4634 + $0xc9] sm:$0xff]
      %v4813 = vld [vmem:[%s4634 + $0xd9] sm:$0xff]
      %v4814 = vld [vmem:[%s4634 + $0xe1] sm:$0xff]
      %v4815 = vld [vmem:[%s4634 + $0xf1] sm:$0xff]
      %v4816 = vld [vmem:[%s4634 + $0xf9] sm:$0xff]
      %v4817 = vld [vmem:[%s4634 + $0x109] sm:$0xff]
      %v4818 = vld [vmem:[%s4634 + $0x111] sm:$0xff]
      %v4819 = vld [vmem:[%s4634 + $0x121] sm:$0xff]
      %v4820 = vld [vmem:[%s4634 + $0x129] sm:$0xff]
      %v4821 = vld [vmem:[%s4634 + $0x139] sm:$0xff]
      %v4822 = vld [vmem:[%s4634 + $0x141] sm:$0xff]
      %v4823 = vld [vmem:[%s4634 + $0x151] sm:$0xff]
      %v4824 = vld [vmem:[%s4634 + $0x159] sm:$0xff]
      %v4825 = vld [vmem:[%s4634 + $0x169] sm:$0xff]
      %v4826 = vld [vmem:[%s4634 + $0x171] sm:$0xff]
      %v4827 = vld [vmem:[%s4634 + $0x2] sm:$0xff]
      %v4828 = vld [vmem:[%s4634 + $0xa] sm:$0xff]
      %v4829 = vld [vmem:[%s4634 + $0x1a] sm:$0xff]
      %v4830 = vld [vmem:[%s4634 + $0x22] sm:$0xff]
      %v4831 = vld [vmem:[%s4634 + $0x32] sm:$0xff]
      %v4832 = vld [vmem:[%s4634 + $0x3a] sm:$0xff]
      %v4833 = vld [vmem:[%s4634 + $0x4a] sm:$0xff]
      %v4834 = vld [vmem:[%s4634 + $0x52] sm:$0xff]
      %v4835 = vld [vmem:[%s4634 + $0x62] sm:$0xff]
      %v4836 = vld [vmem:[%s4634 + $0x6a] sm:$0xff]
      %v4837 = vld [vmem:[%s4634 + $0x7a] sm:$0xff]
      %v4838 = vld [vmem:[%s4634 + $0x82] sm:$0xff]
      %v4839 = vld [vmem:[%s4634 + $0x92] sm:$0xff]
      %v4840 = vld [vmem:[%s4634 + $0x9a] sm:$0xff]
      %v4841 = vld [vmem:[%s4634 + $0xaa] sm:$0xff]
      %v4842 = vld [vmem:[%s4634 + $0xb2] sm:$0xff]
      %v4843 = vld [vmem:[%s4634 + $0xc2] sm:$0xff]
      %v4844 = vld [vmem:[%s4634 + $0xca] sm:$0xff]
      %v4845 = vld [vmem:[%s4634 + $0xda] sm:$0xff]
      %v4846 = vld [vmem:[%s4634 + $0xe2] sm:$0xff]
      %v4847 = vld [vmem:[%s4634 + $0xf2] sm:$0xff]
      %v4848 = vld [vmem:[%s4634 + $0xfa] sm:$0xff]
      %v4849 = vld [vmem:[%s4634 + $0x10a] sm:$0xff]
      %v4850 = vld [vmem:[%s4634 + $0x112] sm:$0xff]
      %v4851 = vld [vmem:[%s4634 + $0x122] sm:$0xff]
      %v4852 = vld [vmem:[%s4634 + $0x12a] sm:$0xff]
      %v4853 = vld [vmem:[%s4634 + $0x13a] sm:$0xff]
      %v4854 = vld [vmem:[%s4634 + $0x142] sm:$0xff]
      %v4855 = vld [vmem:[%s4634 + $0x152] sm:$0xff]
      %v4856 = vld [vmem:[%s4634 + $0x15a] sm:$0xff]
      %v4857 = vld [vmem:[%s4634 + $0x16a] sm:$0xff]
      %v4858 = vld [vmem:[%s4634 + $0x172] sm:$0xff]
      %s4859 = scalar_lea.vmem [#allocation4], 48
      %v4860 = vld [vmem:[%s4859] sm:$0xff]
      %v4861 = vld [vmem:[%s4859 + $0x8] sm:$0xff]
      %v4862 = vld [vmem:[%s4859 + $0x18] sm:$0xff]
      %v4863 = vld [vmem:[%s4859 + $0x20] sm:$0xff]
      %v4864 = vld [vmem:[%s4859 + $0x30] sm:$0xff]
      %v4865 = vld [vmem:[%s4859 + $0x38] sm:$0xff]
      %v4866 = vld [vmem:[%s4859 + $0x48] sm:$0xff]
      %v4867 = vld [vmem:[%s4859 + $0x50] sm:$0xff]
      %v4868 = vld [vmem:[%s4859 + $0x60] sm:$0xff]
      %v4869 = vld [vmem:[%s4859 + $0x68] sm:$0xff]
      %v4870 = vld [vmem:[%s4859 + $0x78] sm:$0xff]
      %v4871 = vld [vmem:[%s4859 + $0x80] sm:$0xff]
      %v4872 = vld [vmem:[%s4859 + $0x90] sm:$0xff]
      %v4873 = vld [vmem:[%s4859 + $0x98] sm:$0xff]
      %v4874 = vld [vmem:[%s4859 + $0xa8] sm:$0xff]
      %v4875 = vld [vmem:[%s4859 + $0xb0] sm:$0xff]
      %v4876 = vld [vmem:[%s4859 + $0xc0] sm:$0xff]
      %v4877 = vld [vmem:[%s4859 + $0xc8] sm:$0xff]
      %v4878 = vld [vmem:[%s4859 + $0xd8] sm:$0xff]
      %v4879 = vld [vmem:[%s4859 + $0xe0] sm:$0xff]
      %v4880 = vld [vmem:[%s4859 + $0xf0] sm:$0xff]
      %v4881 = vld [vmem:[%s4859 + $0xf8] sm:$0xff]
      %v4882 = vld [vmem:[%s4859 + $0x108] sm:$0xff]
      %v4883 = vld [vmem:[%s4859 + $0x110] sm:$0xff]
      %v4884 = vld [vmem:[%s4859 + $0x120] sm:$0xff]
      %v4885 = vld [vmem:[%s4859 + $0x128] sm:$0xff]
      %v4886 = vld [vmem:[%s4859 + $0x138] sm:$0xff]
      %v4887 = vld [vmem:[%s4859 + $0x140] sm:$0xff]
      %v4888 = vld [vmem:[%s4859 + $0x150] sm:$0xff]
      %v4889 = vld [vmem:[%s4859 + $0x158] sm:$0xff]
      %v4890 = vld [vmem:[%s4859 + $0x168] sm:$0xff]
      %v4891 = vld [vmem:[%s4859 + $0x170] sm:$0xff]
      %v4892 = vld [vmem:[%s4859 + $0x1] sm:$0xff]
      %v4893 = vld [vmem:[%s4859 + $0x9] sm:$0xff]
      %v4894 = vld [vmem:[%s4859 + $0x19] sm:$0xff]
      %v4895 = vld [vmem:[%s4859 + $0x21] sm:$0xff]
      %v4896 = vld [vmem:[%s4859 + $0x31] sm:$0xff]
      %v4897 = vld [vmem:[%s4859 + $0x39] sm:$0xff]
      %v4898 = vld [vmem:[%s4859 + $0x49] sm:$0xff]
      %v4899 = vld [vmem:[%s4859 + $0x51] sm:$0xff]
      %v4900 = vld [vmem:[%s4859 + $0x61] sm:$0xff]
      %v4901 = vld [vmem:[%s4859 + $0x69] sm:$0xff]
      %v4902 = vld [vmem:[%s4859 + $0x79] sm:$0xff]
      %v4903 = vld [vmem:[%s4859 + $0x81] sm:$0xff]
      %v4904 = vld [vmem:[%s4859 + $0x91] sm:$0xff]
      %v4905 = vld [vmem:[%s4859 + $0x99] sm:$0xff]
      %v4906 = vld [vmem:[%s4859 + $0xa9] sm:$0xff]
      %v4907 = vld [vmem:[%s4859 + $0xb1] sm:$0xff]
      %v4908 = vld [vmem:[%s4859 + $0xc1] sm:$0xff]
      %v4909 = vld [vmem:[%s4859 + $0xc9] sm:$0xff]
      %v4910 = vld [vmem:[%s4859 + $0xd9] sm:$0xff]
      %v4911 = vld [vmem:[%s4859 + $0xe1] sm:$0xff]
      %v4912 = vld [vmem:[%s4859 + $0xf1] sm:$0xff]
      %v4913 = vld [vmem:[%s4859 + $0xf9] sm:$0xff]
      %v4914 = vld [vmem:[%s4859 + $0x109] sm:$0xff]
      %v4915 = vld [vmem:[%s4859 + $0x111] sm:$0xff]
      %v4916 = vld [vmem:[%s4859 + $0x121] sm:$0xff]
      %v4917 = vld [vmem:[%s4859 + $0x129] sm:$0xff]
      %v4918 = vld [vmem:[%s4859 + $0x139] sm:$0xff]
      %v4919 = vld [vmem:[%s4859 + $0x141] sm:$0xff]
      %v4920 = vld [vmem:[%s4859 + $0x151] sm:$0xff]
      %v4921 = vld [vmem:[%s4859 + $0x159] sm:$0xff]
      %v4922 = vld [vmem:[%s4859 + $0x169] sm:$0xff]
      %v4923 = vld [vmem:[%s4859 + $0x171] sm:$0xff]
      %v4924 = vld [vmem:[%s4859 + $0x2] sm:$0xff]
      %v4925 = vld [vmem:[%s4859 + $0xa] sm:$0xff]
      %v4926 = vld [vmem:[%s4859 + $0x1a] sm:$0xff]
      %v4927 = vld [vmem:[%s4859 + $0x22] sm:$0xff]
      %v4928 = vld [vmem:[%s4859 + $0x32] sm:$0xff]
      %v4929 = vld [vmem:[%s4859 + $0x3a] sm:$0xff]
      %v4930 = vld [vmem:[%s4859 + $0x4a] sm:$0xff]
      %v4931 = vld [vmem:[%s4859 + $0x52] sm:$0xff]
      %v4932 = vld [vmem:[%s4859 + $0x62] sm:$0xff]
      %v4933 = vld [vmem:[%s4859 + $0x6a] sm:$0xff]
      %v4934 = vld [vmem:[%s4859 + $0x7a] sm:$0xff]
      %v4935 = vld [vmem:[%s4859 + $0x82] sm:$0xff]
      %v4936 = vld [vmem:[%s4859 + $0x92] sm:$0xff]
      %v4937 = vld [vmem:[%s4859 + $0x9a] sm:$0xff]
      %v4938 = vld [vmem:[%s4859 + $0xaa] sm:$0xff]
      %v4939 = vld [vmem:[%s4859 + $0xb2] sm:$0xff]
      %v4940 = vld [vmem:[%s4859 + $0xc2] sm:$0xff]
      %v4941 = vld [vmem:[%s4859 + $0xca] sm:$0xff]
      %v4942 = vld [vmem:[%s4859 + $0xda] sm:$0xff]
      %v4943 = vld [vmem:[%s4859 + $0xe2] sm:$0xff]
      %v4944 = vld [vmem:[%s4859 + $0xf2] sm:$0xff]
      %v4945 = vld [vmem:[%s4859 + $0xfa] sm:$0xff]
      %v4946 = vld [vmem:[%s4859 + $0x10a] sm:$0xff]
      %v4947 = vld [vmem:[%s4859 + $0x112] sm:$0xff]
      %v4948 = vld [vmem:[%s4859 + $0x122] sm:$0xff]
      %v4949 = vld [vmem:[%s4859 + $0x12a] sm:$0xff]
      %v4950 = vld [vmem:[%s4859 + $0x13a] sm:$0xff]
      %v4951 = vld [vmem:[%s4859 + $0x142] sm:$0xff]
      %v4952 = vld [vmem:[%s4859 + $0x152] sm:$0xff]
      %v4953 = vld [vmem:[%s4859 + $0x15a] sm:$0xff]
      %v4954 = vld [vmem:[%s4859 + $0x16a] sm:$0xff]
      %v4955 = vld [vmem:[%s4859 + $0x172] sm:$0xff]
      %4988 = vrot.lane.b32.xlu0 %v4699, 4
      %v4989 = vpop.permute.xlu0 %4988
      %4990 = vrot.lane.b32.xlu0 %v4700, 4
      %v4991 = vpop.permute.xlu0 %4990
      %4992 = vrot.lane.b32.xlu0 %v4701, 4
      %v4993 = vpop.permute.xlu0 %4992
      %4994 = vrot.lane.b32.xlu0 %v4702, 4
      %v4995 = vpop.permute.xlu0 %4994
      %4996 = vrot.lane.b32.xlu0 %v4703, 4
      %v4997 = vpop.permute.xlu0 %4996
      %4998 = vrot.lane.b32.xlu0 %v4704, 4
      %v4999 = vpop.permute.xlu0 %4998
      %5000 = vrot.lane.b32.xlu0 %v4705, 4
      %v5001 = vpop.permute.xlu0 %5000
      %5002 = vrot.lane.b32.xlu0 %v4706, 4
      %v5003 = vpop.permute.xlu0 %5002
      %5004 = vrot.lane.b32.xlu0 %v4707, 4
      %v5005 = vpop.permute.xlu0 %5004
      %5006 = vrot.lane.b32.xlu0 %v4708, 4
      %v5007 = vpop.permute.xlu0 %5006
      %5008 = vrot.lane.b32.xlu0 %v4709, 4
      %v5009 = vpop.permute.xlu0 %5008
      %5010 = vrot.lane.b32.xlu0 %v4710, 4
      %v5011 = vpop.permute.xlu0 %5010
      %5012 = vrot.lane.b32.xlu0 %v4711, 4
      %v5013 = vpop.permute.xlu0 %5012
      %5014 = vrot.lane.b32.xlu0 %v4712, 4
      %v5015 = vpop.permute.xlu0 %5014
      %5016 = vrot.lane.b32.xlu0 %v4713, 4
      %v5017 = vpop.permute.xlu0 %5016
      %5018 = vrot.lane.b32.xlu0 %v4714, 4
      %v5019 = vpop.permute.xlu0 %5018
      %5020 = vrot.lane.b32.xlu0 %v4715, 4
      %v5021 = vpop.permute.xlu0 %5020
      %5022 = vrot.lane.b32.xlu0 %v4716, 4
      %v5023 = vpop.permute.xlu0 %5022
      %5024 = vrot.lane.b32.xlu0 %v4717, 4
      %v5025 = vpop.permute.xlu0 %5024
      %5026 = vrot.lane.b32.xlu0 %v4718, 4
      %v5027 = vpop.permute.xlu0 %5026
      %5028 = vrot.lane.b32.xlu0 %v4719, 4
      %v5029 = vpop.permute.xlu0 %5028
      %5030 = vrot.lane.b32.xlu0 %v4720, 4
      %v5031 = vpop.permute.xlu0 %5030
      %5032 = vrot.lane.b32.xlu0 %v4721, 4
      %v5033 = vpop.permute.xlu0 %5032
      %5034 = vrot.lane.b32.xlu0 %v4722, 4
      %v5035 = vpop.permute.xlu0 %5034
      %5036 = vrot.lane.b32.xlu0 %v4723, 4
      %v5037 = vpop.permute.xlu0 %5036
      %5038 = vrot.lane.b32.xlu0 %v4724, 4
      %v5039 = vpop.permute.xlu0 %5038
      %5040 = vrot.lane.b32.xlu0 %v4725, 4
      %v5041 = vpop.permute.xlu0 %5040
      %5042 = vrot.lane.b32.xlu0 %v4726, 4
      %v5043 = vpop.permute.xlu0 %5042
      %5044 = vrot.lane.b32.xlu0 %v4727, 4
      %v5045 = vpop.permute.xlu0 %5044
      %5046 = vrot.lane.b32.xlu0 %v4728, 4
      %v5047 = vpop.permute.xlu0 %5046
      %5048 = vrot.lane.b32.xlu0 %v4729, 4
      %v5049 = vpop.permute.xlu0 %5048
      %5050 = vrot.lane.b32.xlu0 %v4730, 4
      %v5051 = vpop.permute.xlu0 %5050
      %5116 = vrot.lane.b32.xlu0 %v4731, 8
      %v5117 = vpop.permute.xlu0 %5116
      %5118 = vrot.lane.b32.xlu0 %v4732, 8
      %v5119 = vpop.permute.xlu0 %5118
      %5120 = vrot.lane.b32.xlu0 %v4733, 8
      %v5121 = vpop.permute.xlu0 %5120
      %5122 = vrot.lane.b32.xlu0 %v4734, 8
      %v5123 = vpop.permute.xlu0 %5122
      %5124 = vrot.lane.b32.xlu0 %v4735, 8
      %v5125 = vpop.permute.xlu0 %5124
      %5126 = vrot.lane.b32.xlu0 %v4736, 8
      %v5127 = vpop.permute.xlu0 %5126
      %5128 = vrot.lane.b32.xlu0 %v4737, 8
      %v5129 = vpop.permute.xlu0 %5128
      %5130 = vrot.lane.b32.xlu0 %v4738, 8
      %v5131 = vpop.permute.xlu0 %5130
      %5132 = vrot.lane.b32.xlu0 %v4739, 8
      %v5133 = vpop.permute.xlu0 %5132
      %5134 = vrot.lane.b32.xlu0 %v4740, 8
      %v5135 = vpop.permute.xlu0 %5134
      %5136 = vrot.lane.b32.xlu0 %v4741, 8
      %v5137 = vpop.permute.xlu0 %5136
      %5138 = vrot.lane.b32.xlu0 %v4742, 8
      %v5139 = vpop.permute.xlu0 %5138
      %5140 = vrot.lane.b32.xlu0 %v4743, 8
      %v5141 = vpop.permute.xlu0 %5140
      %5142 = vrot.lane.b32.xlu0 %v4744, 8
      %v5143 = vpop.permute.xlu0 %5142
      %5144 = vrot.lane.b32.xlu0 %v4745, 8
      %v5145 = vpop.permute.xlu0 %5144
      %5146 = vrot.lane.b32.xlu0 %v4746, 8
      %v5147 = vpop.permute.xlu0 %5146
      %5148 = vrot.lane.b32.xlu0 %v4747, 8
      %v5149 = vpop.permute.xlu0 %5148
      %5150 = vrot.lane.b32.xlu0 %v4748, 8
      %v5151 = vpop.permute.xlu0 %5150
      %5152 = vrot.lane.b32.xlu0 %v4749, 8
      %v5153 = vpop.permute.xlu0 %5152
      %5154 = vrot.lane.b32.xlu0 %v4750, 8
      %v5155 = vpop.permute.xlu0 %5154
      %5156 = vrot.lane.b32.xlu0 %v4751, 8
      %v5157 = vpop.permute.xlu0 %5156
      %5158 = vrot.lane.b32.xlu0 %v4752, 8
      %v5159 = vpop.permute.xlu0 %5158
      %5160 = vrot.lane.b32.xlu0 %v4753, 8
      %v5161 = vpop.permute.xlu0 %5160
      %5162 = vrot.lane.b32.xlu0 %v4754, 8
      %v5163 = vpop.permute.xlu0 %5162
      %5164 = vrot.lane.b32.xlu0 %v4755, 8
      %v5165 = vpop.permute.xlu0 %5164
      %5166 = vrot.lane.b32.xlu0 %v4756, 8
      %v5167 = vpop.permute.xlu0 %5166
      %5168 = vrot.lane.b32.xlu0 %v4757, 8
      %v5169 = vpop.permute.xlu0 %5168
      %5170 = vrot.lane.b32.xlu0 %v4758, 8
      %v5171 = vpop.permute.xlu0 %5170
      %5172 = vrot.lane.b32.xlu0 %v4759, 8
      %v5173 = vpop.permute.xlu0 %5172
      %5174 = vrot.lane.b32.xlu0 %v4760, 8
      %v5175 = vpop.permute.xlu0 %5174
      %5176 = vrot.lane.b32.xlu0 %v4761, 8
      %v5177 = vpop.permute.xlu0 %5176
      %5178 = vrot.lane.b32.xlu0 %v4762, 8
      %v5179 = vpop.permute.xlu0 %5178
      %5244 = vrot.lane.b32.xlu0 %v4763, 12
      %v5245 = vpop.permute.xlu0 %5244
      %5246 = vrot.lane.b32.xlu0 %v4764, 12
      %v5247 = vpop.permute.xlu0 %5246
      %5248 = vrot.lane.b32.xlu0 %v4765, 12
      %v5249 = vpop.permute.xlu0 %5248
      %5250 = vrot.lane.b32.xlu0 %v4766, 12
      %v5251 = vpop.permute.xlu0 %5250
      %5252 = vrot.lane.b32.xlu0 %v4767, 12
      %v5253 = vpop.permute.xlu0 %5252
      %5254 = vrot.lane.b32.xlu0 %v4768, 12
      %v5255 = vpop.permute.xlu0 %5254
      %5256 = vrot.lane.b32.xlu0 %v4769, 12
      %v5257 = vpop.permute.xlu0 %5256
      %5258 = vrot.lane.b32.xlu0 %v4770, 12
      %v5259 = vpop.permute.xlu0 %5258
      %5260 = vrot.lane.b32.xlu0 %v4771, 12
      %v5261 = vpop.permute.xlu0 %5260
      %5262 = vrot.lane.b32.xlu0 %v4772, 12
      %v5263 = vpop.permute.xlu0 %5262
      %5264 = vrot.lane.b32.xlu0 %v4773, 12
      %v5265 = vpop.permute.xlu0 %5264
      %5266 = vrot.lane.b32.xlu0 %v4774, 12
      %v5267 = vpop.permute.xlu0 %5266
      %5268 = vrot.lane.b32.xlu0 %v4775, 12
      %v5269 = vpop.permute.xlu0 %5268
      %5270 = vrot.lane.b32.xlu0 %v4776, 12
      %v5271 = vpop.permute.xlu0 %5270
      %5272 = vrot.lane.b32.xlu0 %v4777, 12
      %v5273 = vpop.permute.xlu0 %5272
      %5274 = vrot.lane.b32.xlu0 %v4778, 12
      %v5275 = vpop.permute.xlu0 %5274
      %5276 = vrot.lane.b32.xlu0 %v4779, 12
      %v5277 = vpop.permute.xlu0 %5276
      %5278 = vrot.lane.b32.xlu0 %v4780, 12
      %v5279 = vpop.permute.xlu0 %5278
      %5280 = vrot.lane.b32.xlu0 %v4781, 12
      %v5281 = vpop.permute.xlu0 %5280
      %5282 = vrot.lane.b32.xlu0 %v4782, 12
      %v5283 = vpop.permute.xlu0 %5282
      %5284 = vrot.lane.b32.xlu0 %v4783, 12
      %v5285 = vpop.permute.xlu0 %5284
      %5286 = vrot.lane.b32.xlu0 %v4784, 12
      %v5287 = vpop.permute.xlu0 %5286
      %5288 = vrot.lane.b32.xlu0 %v4785, 12
      %v5289 = vpop.permute.xlu0 %5288
      %5290 = vrot.lane.b32.xlu0 %v4786, 12
      %v5291 = vpop.permute.xlu0 %5290
      %5292 = vrot.lane.b32.xlu0 %v4787, 12
      %v5293 = vpop.permute.xlu0 %5292
      %5294 = vrot.lane.b32.xlu0 %v4788, 12
      %v5295 = vpop.permute.xlu0 %5294
      %5296 = vrot.lane.b32.xlu0 %v4789, 12
      %v5297 = vpop.permute.xlu0 %5296
      %5298 = vrot.lane.b32.xlu0 %v4790, 12
      %v5299 = vpop.permute.xlu0 %5298
      %5300 = vrot.lane.b32.xlu0 %v4791, 12
      %v5301 = vpop.permute.xlu0 %5300
      %5302 = vrot.lane.b32.xlu0 %v4792, 12
      %v5303 = vpop.permute.xlu0 %5302
      %5304 = vrot.lane.b32.xlu0 %v4793, 12
      %v5305 = vpop.permute.xlu0 %5304
      %5306 = vrot.lane.b32.xlu0 %v4794, 12
      %v5307 = vpop.permute.xlu0 %5306
      %5372 = vrot.lane.b32.xlu0 %v4795, 16
      %v5373 = vpop.permute.xlu0 %5372
      %5374 = vrot.lane.b32.xlu0 %v4796, 16
      %v5375 = vpop.permute.xlu0 %5374
      %5376 = vrot.lane.b32.xlu0 %v4797, 16
      %v5377 = vpop.permute.xlu0 %5376
      %5378 = vrot.lane.b32.xlu0 %v4798, 16
      %v5379 = vpop.permute.xlu0 %5378
      %5380 = vrot.lane.b32.xlu0 %v4799, 16
      %v5381 = vpop.permute.xlu0 %5380
      %5382 = vrot.lane.b32.xlu0 %v4800, 16
      %v5383 = vpop.permute.xlu0 %5382
      %5384 = vrot.lane.b32.xlu0 %v4801, 16
      %v5385 = vpop.permute.xlu0 %5384
      %5386 = vrot.lane.b32.xlu0 %v4802, 16
      %v5387 = vpop.permute.xlu0 %5386
      %5388 = vrot.lane.b32.xlu0 %v4803, 16
      %v5389 = vpop.permute.xlu0 %5388
      %5390 = vrot.lane.b32.xlu0 %v4804, 16
      %v5391 = vpop.permute.xlu0 %5390
      %5392 = vrot.lane.b32.xlu0 %v4805, 16
      %v5393 = vpop.permute.xlu0 %5392
      %5394 = vrot.lane.b32.xlu0 %v4806, 16
      %v5395 = vpop.permute.xlu0 %5394
      %5396 = vrot.lane.b32.xlu0 %v4807, 16
      %v5397 = vpop.permute.xlu0 %5396
      %5398 = vrot.lane.b32.xlu0 %v4808, 16
      %v5399 = vpop.permute.xlu0 %5398
      %5400 = vrot.lane.b32.xlu0 %v4809, 16
      %v5401 = vpop.permute.xlu0 %5400
      %5402 = vrot.lane.b32.xlu0 %v4810, 16
      %v5403 = vpop.permute.xlu0 %5402
      %5404 = vrot.lane.b32.xlu0 %v4811, 16
      %v5405 = vpop.permute.xlu0 %5404
      %5406 = vrot.lane.b32.xlu0 %v4812, 16
      %v5407 = vpop.permute.xlu0 %5406
      %5408 = vrot.lane.b32.xlu0 %v4813, 16
      %v5409 = vpop.permute.xlu0 %5408
      %5410 = vrot.lane.b32.xlu0 %v4814, 16
      %v5411 = vpop.permute.xlu0 %5410
      %5412 = vrot.lane.b32.xlu0 %v4815, 16
      %v5413 = vpop.permute.xlu0 %5412
      %5414 = vrot.lane.b32.xlu0 %v4816, 16
      %v5415 = vpop.permute.xlu0 %5414
      %5416 = vrot.lane.b32.xlu0 %v4817, 16
      %v5417 = vpop.permute.xlu0 %5416
      %5418 = vrot.lane.b32.xlu0 %v4818, 16
      %v5419 = vpop.permute.xlu0 %5418
      %5420 = vrot.lane.b32.xlu0 %v4819, 16
      %v5421 = vpop.permute.xlu0 %5420
      %5422 = vrot.lane.b32.xlu0 %v4820, 16
      %v5423 = vpop.permute.xlu0 %5422
      %5424 = vrot.lane.b32.xlu0 %v4821, 16
      %v5425 = vpop.permute.xlu0 %5424
      %5426 = vrot.lane.b32.xlu0 %v4822, 16
      %v5427 = vpop.permute.xlu0 %5426
      %5428 = vrot.lane.b32.xlu0 %v4823, 16
      %v5429 = vpop.permute.xlu0 %5428
      %5430 = vrot.lane.b32.xlu0 %v4824, 16
      %v5431 = vpop.permute.xlu0 %5430
      %5432 = vrot.lane.b32.xlu0 %v4825, 16
      %v5433 = vpop.permute.xlu0 %5432
      %5434 = vrot.lane.b32.xlu0 %v4826, 16
      %v5435 = vpop.permute.xlu0 %5434
      %5500 = vrot.lane.b32.xlu0 %v4827, 20
      %v5501 = vpop.permute.xlu0 %5500
      %5502 = vrot.lane.b32.xlu0 %v4828, 20
      %v5503 = vpop.permute.xlu0 %5502
      %5504 = vrot.lane.b32.xlu0 %v4829, 20
      %v5505 = vpop.permute.xlu0 %5504
      %5506 = vrot.lane.b32.xlu0 %v4830, 20
      %v5507 = vpop.permute.xlu0 %5506
      %5508 = vrot.lane.b32.xlu0 %v4831, 20
      %v5509 = vpop.permute.xlu0 %5508
      %5510 = vrot.lane.b32.xlu0 %v4832, 20
      %v5511 = vpop.permute.xlu0 %5510
      %5512 = vrot.lane.b32.xlu0 %v4833, 20
      %v5513 = vpop.permute.xlu0 %5512
      %5514 = vrot.lane.b32.xlu0 %v4834, 20
      %v5515 = vpop.permute.xlu0 %5514
      %5516 = vrot.lane.b32.xlu0 %v4835, 20
      %v5517 = vpop.permute.xlu0 %5516
      %5518 = vrot.lane.b32.xlu0 %v4836, 20
      %v5519 = vpop.permute.xlu0 %5518
      %5520 = vrot.lane.b32.xlu0 %v4837, 20
      %v5521 = vpop.permute.xlu0 %5520
      %5522 = vrot.lane.b32.xlu0 %v4838, 20
      %v5523 = vpop.permute.xlu0 %5522
      %5524 = vrot.lane.b32.xlu0 %v4839, 20
      %v5525 = vpop.permute.xlu0 %5524
      %5526 = vrot.lane.b32.xlu0 %v4840, 20
      %v5527 = vpop.permute.xlu0 %5526
      %5528 = vrot.lane.b32.xlu0 %v4841, 20
      %v5529 = vpop.permute.xlu0 %5528
      %5530 = vrot.lane.b32.xlu0 %v4842, 20
      %v5531 = vpop.permute.xlu0 %5530
      %5532 = vrot.lane.b32.xlu0 %v4843, 20
      %v5533 = vpop.permute.xlu0 %5532
      %5534 = vrot.lane.b32.xlu0 %v4844, 20
      %v5535 = vpop.permute.xlu0 %5534
      %5536 = vrot.lane.b32.xlu0 %v4845, 20
      %v5537 = vpop.permute.xlu0 %5536
      %5538 = vrot.lane.b32.xlu0 %v4846, 20
      %v5539 = vpop.permute.xlu0 %5538
      %5540 = vrot.lane.b32.xlu0 %v4847, 20
      %v5541 = vpop.permute.xlu0 %5540
      %5542 = vrot.lane.b32.xlu0 %v4848, 20
      %v5543 = vpop.permute.xlu0 %5542
      %5544 = vrot.lane.b32.xlu0 %v4849, 20
      %v5545 = vpop.permute.xlu0 %5544
      %5546 = vrot.lane.b32.xlu0 %v4850, 20
      %v5547 = vpop.permute.xlu0 %5546
      %5548 = vrot.lane.b32.xlu0 %v4851, 20
      %v5549 = vpop.permute.xlu0 %5548
      %5550 = vrot.lane.b32.xlu0 %v4852, 20
      %v5551 = vpop.permute.xlu0 %5550
      %5552 = vrot.lane.b32.xlu0 %v4853, 20
      %v5553 = vpop.permute.xlu0 %5552
      %5554 = vrot.lane.b32.xlu0 %v4854, 20
      %v5555 = vpop.permute.xlu0 %5554
      %5556 = vrot.lane.b32.xlu0 %v4855, 20
      %v5557 = vpop.permute.xlu0 %5556
      %5558 = vrot.lane.b32.xlu0 %v4856, 20
      %v5559 = vpop.permute.xlu0 %5558
      %5560 = vrot.lane.b32.xlu0 %v4857, 20
      %v5561 = vpop.permute.xlu0 %5560
      %5562 = vrot.lane.b32.xlu0 %v4858, 20
      %v5563 = vpop.permute.xlu0 %5562
      %5628 = vrot.lane.b32.xlu0 %v4860, 24
      %v5629 = vpop.permute.xlu0 %5628
      %5630 = vrot.lane.b32.xlu0 %v4861, 24
      %v5631 = vpop.permute.xlu0 %5630
      %5632 = vrot.lane.b32.xlu0 %v4862, 24
      %v5633 = vpop.permute.xlu0 %5632
      %5634 = vrot.lane.b32.xlu0 %v4863, 24
      %v5635 = vpop.permute.xlu0 %5634
      %5636 = vrot.lane.b32.xlu0 %v4864, 24
      %v5637 = vpop.permute.xlu0 %5636
      %5638 = vrot.lane.b32.xlu0 %v4865, 24
      %v5639 = vpop.permute.xlu0 %5638
      %5640 = vrot.lane.b32.xlu0 %v4866, 24
      %v5641 = vpop.permute.xlu0 %5640
      %5642 = vrot.lane.b32.xlu0 %v4867, 24
      %v5643 = vpop.permute.xlu0 %5642
      %5644 = vrot.lane.b32.xlu0 %v4868, 24
      %v5645 = vpop.permute.xlu0 %5644
      %5646 = vrot.lane.b32.xlu0 %v4869, 24
      %v5647 = vpop.permute.xlu0 %5646
      %5648 = vrot.lane.b32.xlu0 %v4870, 24
      %v5649 = vpop.permute.xlu0 %5648
      %5650 = vrot.lane.b32.xlu0 %v4871, 24
      %v5651 = vpop.permute.xlu0 %5650
      %5652 = vrot.lane.b32.xlu0 %v4872, 24
      %v5653 = vpop.permute.xlu0 %5652
      %5654 = vrot.lane.b32.xlu0 %v4873, 24
      %v5655 = vpop.permute.xlu0 %5654
      %5656 = vrot.lane.b32.xlu0 %v4874, 24
      %v5657 = vpop.permute.xlu0 %5656
      %5658 = vrot.lane.b32.xlu0 %v4875, 24
      %v5659 = vpop.permute.xlu0 %5658
      %5660 = vrot.lane.b32.xlu0 %v4876, 24
      %v5661 = vpop.permute.xlu0 %5660
      %5662 = vrot.lane.b32.xlu0 %v4877, 24
      %v5663 = vpop.permute.xlu0 %5662
      %5664 = vrot.lane.b32.xlu0 %v4878, 24
      %v5665 = vpop.permute.xlu0 %5664
      %5666 = vrot.lane.b32.xlu0 %v4879, 24
      %v5667 = vpop.permute.xlu0 %5666
      %5668 = vrot.lane.b32.xlu0 %v4880, 24
      %v5669 = vpop.permute.xlu0 %5668
      %5670 = vrot.lane.b32.xlu0 %v4881, 24
      %v5671 = vpop.permute.xlu0 %5670
      %5672 = vrot.lane.b32.xlu0 %v4882, 24
      %v5673 = vpop.permute.xlu0 %5672
      %5674 = vrot.lane.b32.xlu0 %v4883, 24
      %v5675 = vpop.permute.xlu0 %5674
      %5676 = vrot.lane.b32.xlu0 %v4884, 24
      %v5677 = vpop.permute.xlu0 %5676
      %5678 = vrot.lane.b32.xlu0 %v4885, 24
      %v5679 = vpop.permute.xlu0 %5678
      %5680 = vrot.lane.b32.xlu0 %v4886, 24
      %v5681 = vpop.permute.xlu0 %5680
      %5682 = vrot.lane.b32.xlu0 %v4887, 24
      %v5683 = vpop.permute.xlu0 %5682
      %5684 = vrot.lane.b32.xlu0 %v4888, 24
      %v5685 = vpop.permute.xlu0 %5684
      %5686 = vrot.lane.b32.xlu0 %v4889, 24
      %v5687 = vpop.permute.xlu0 %5686
      %5688 = vrot.lane.b32.xlu0 %v4890, 24
      %v5689 = vpop.permute.xlu0 %5688
      %5690 = vrot.lane.b32.xlu0 %v4891, 24
      %v5691 = vpop.permute.xlu0 %5690
      %5756 = vrot.lane.b32.xlu0 %v4892, 28
      %v5757 = vpop.permute.xlu0 %5756
      %5758 = vrot.lane.b32.xlu0 %v4893, 28
      %v5759 = vpop.permute.xlu0 %5758
      %5760 = vrot.lane.b32.xlu0 %v4894, 28
      %v5761 = vpop.permute.xlu0 %5760
      %5762 = vrot.lane.b32.xlu0 %v4895, 28
      %v5763 = vpop.permute.xlu0 %5762
      %5764 = vrot.lane.b32.xlu0 %v4896, 28
      %v5765 = vpop.permute.xlu0 %5764
      %5766 = vrot.lane.b32.xlu0 %v4897, 28
      %v5767 = vpop.permute.xlu0 %5766
      %5768 = vrot.lane.b32.xlu0 %v4898, 28
      %v5769 = vpop.permute.xlu0 %5768
      %5770 = vrot.lane.b32.xlu0 %v4899, 28
      %v5771 = vpop.permute.xlu0 %5770
      %5772 = vrot.lane.b32.xlu0 %v4900, 28
      %v5773 = vpop.permute.xlu0 %5772
      %5774 = vrot.lane.b32.xlu0 %v4901, 28
      %v5775 = vpop.permute.xlu0 %5774
      %5776 = vrot.lane.b32.xlu0 %v4902, 28
      %v5777 = vpop.permute.xlu0 %5776
      %5778 = vrot.lane.b32.xlu0 %v4903, 28
      %v5779 = vpop.permute.xlu0 %5778
      %5780 = vrot.lane.b32.xlu0 %v4904, 28
      %v5781 = vpop.permute.xlu0 %5780
      %5782 = vrot.lane.b32.xlu0 %v4905, 28
      %v5783 = vpop.permute.xlu0 %5782
      %5784 = vrot.lane.b32.xlu0 %v4906, 28
      %v5785 = vpop.permute.xlu0 %5784
      %5786 = vrot.lane.b32.xlu0 %v4907, 28
      %v5787 = vpop.permute.xlu0 %5786
      %5788 = vrot.lane.b32.xlu0 %v4908, 28
      %v5789 = vpop.permute.xlu0 %5788
      %5790 = vrot.lane.b32.xlu0 %v4909, 28
      %v5791 = vpop.permute.xlu0 %5790
      %5792 = vrot.lane.b32.xlu0 %v4910, 28
      %v5793 = vpop.permute.xlu0 %5792
      %5794 = vrot.lane.b32.xlu0 %v4911, 28
      %v5795 = vpop.permute.xlu0 %5794
      %5796 = vrot.lane.b32.xlu0 %v4912, 28
      %v5797 = vpop.permute.xlu0 %5796
      %5798 = vrot.lane.b32.xlu0 %v4913, 28
      %v5799 = vpop.permute.xlu0 %5798
      %5800 = vrot.lane.b32.xlu0 %v4914, 28
      %v5801 = vpop.permute.xlu0 %5800
      %5802 = vrot.lane.b32.xlu0 %v4915, 28
      %v5803 = vpop.permute.xlu0 %5802
      %5804 = vrot.lane.b32.xlu0 %v4916, 28
      %v5805 = vpop.permute.xlu0 %5804
      %5806 = vrot.lane.b32.xlu0 %v4917, 28
      %v5807 = vpop.permute.xlu0 %5806
      %5808 = vrot.lane.b32.xlu0 %v4918, 28
      %v5809 = vpop.permute.xlu0 %5808
      %5810 = vrot.lane.b32.xlu0 %v4919, 28
      %v5811 = vpop.permute.xlu0 %5810
      %5812 = vrot.lane.b32.xlu0 %v4920, 28
      %v5813 = vpop.permute.xlu0 %5812
      %5814 = vrot.lane.b32.xlu0 %v4921, 28
      %v5815 = vpop.permute.xlu0 %5814
      %5816 = vrot.lane.b32.xlu0 %v4922, 28
      %v5817 = vpop.permute.xlu0 %5816
      %5818 = vrot.lane.b32.xlu0 %v4923, 28
      %v5819 = vpop.permute.xlu0 %5818
      %5884 = vrot.lane.b32.xlu0 %v4924, 32
      %v5885 = vpop.permute.xlu0 %5884
      %5886 = vrot.lane.b32.xlu0 %v4925, 32
      %v5887 = vpop.permute.xlu0 %5886
      %5888 = vrot.lane.b32.xlu0 %v4926, 32
      %v5889 = vpop.permute.xlu0 %5888
      %5890 = vrot.lane.b32.xlu0 %v4927, 32
      %v5891 = vpop.permute.xlu0 %5890
      %5892 = vrot.lane.b32.xlu0 %v4928, 32
      %v5893 = vpop.permute.xlu0 %5892
      %5894 = vrot.lane.b32.xlu0 %v4929, 32
      %v5895 = vpop.permute.xlu0 %5894
      %5896 = vrot.lane.b32.xlu0 %v4930, 32
      %v5897 = vpop.permute.xlu0 %5896
      %5898 = vrot.lane.b32.xlu0 %v4931, 32
      %v5899 = vpop.permute.xlu0 %5898
      %5900 = vrot.lane.b32.xlu0 %v4932, 32
      %v5901 = vpop.permute.xlu0 %5900
      %5902 = vrot.lane.b32.xlu0 %v4933, 32
      %v5903 = vpop.permute.xlu0 %5902
      %5904 = vrot.lane.b32.xlu0 %v4934, 32
      %v5905 = vpop.permute.xlu0 %5904
      %5906 = vrot.lane.b32.xlu0 %v4935, 32
      %v5907 = vpop.permute.xlu0 %5906
      %5908 = vrot.lane.b32.xlu0 %v4936, 32
      %v5909 = vpop.permute.xlu0 %5908
      %5910 = vrot.lane.b32.xlu0 %v4937, 32
      %v5911 = vpop.permute.xlu0 %5910
      %5912 = vrot.lane.b32.xlu0 %v4938, 32
      %v5913 = vpop.permute.xlu0 %5912
      %5914 = vrot.lane.b32.xlu0 %v4939, 32
      %v5915 = vpop.permute.xlu0 %5914
      %5916 = vrot.lane.b32.xlu0 %v4940, 32
      %v5917 = vpop.permute.xlu0 %5916
      %5918 = vrot.lane.b32.xlu0 %v4941, 32
      %v5919 = vpop.permute.xlu0 %5918
      %5920 = vrot.lane.b32.xlu0 %v4942, 32
      %v5921 = vpop.permute.xlu0 %5920
      %5922 = vrot.lane.b32.xlu0 %v4943, 32
      %v5923 = vpop.permute.xlu0 %5922
      %5924 = vrot.lane.b32.xlu0 %v4944, 32
      %v5925 = vpop.permute.xlu0 %5924
      %5926 = vrot.lane.b32.xlu0 %v4945, 32
      %v5927 = vpop.permute.xlu0 %5926
      %5928 = vrot.lane.b32.xlu0 %v4946, 32
      %v5929 = vpop.permute.xlu0 %5928
      %5930 = vrot.lane.b32.xlu0 %v4947, 32
      %v5931 = vpop.permute.xlu0 %5930
      %5932 = vrot.lane.b32.xlu0 %v4948, 32
      %v5933 = vpop.permute.xlu0 %5932
      %5934 = vrot.lane.b32.xlu0 %v4949, 32
      %v5935 = vpop.permute.xlu0 %5934
      %5936 = vrot.lane.b32.xlu0 %v4950, 32
      %v5937 = vpop.permute.xlu0 %5936
      %5938 = vrot.lane.b32.xlu0 %v4951, 32
      %v5939 = vpop.permute.xlu0 %5938
      %5940 = vrot.lane.b32.xlu0 %v4952, 32
      %v5941 = vpop.permute.xlu0 %5940
      %5942 = vrot.lane.b32.xlu0 %v4953, 32
      %v5943 = vpop.permute.xlu0 %5942
      %5944 = vrot.lane.b32.xlu0 %v4954, 32
      %v5945 = vpop.permute.xlu0 %5944
      %5946 = vrot.lane.b32.xlu0 %v4955, 32
      %v5947 = vpop.permute.xlu0 %5946
      %v5980 = vsel %vm421, %v4667, %v4989
      %v5981 = vsel %vm421, %v4668, %v4991
      %v5982 = vsel %vm421, %v4669, %v4993
      %v5983 = vsel %vm421, %v4670, %v4995
      %v5984 = vsel %vm421, %v4671, %v4997
      %v5985 = vsel %vm421, %v4672, %v4999
      %v5986 = vsel %vm421, %v4673, %v5001
      %v5987 = vsel %vm421, %v4674, %v5003
      %v5988 = vsel %vm421, %v4675, %v5005
      %v5989 = vsel %vm421, %v4676, %v5007
      %v5990 = vsel %vm421, %v4677, %v5009
      %v5991 = vsel %vm421, %v4678, %v5011
      %v5992 = vsel %vm421, %v4679, %v5013
      %v5993 = vsel %vm421, %v4680, %v5015
      %v5994 = vsel %vm421, %v4681, %v5017
      %v5995 = vsel %vm421, %v4682, %v5019
      %v5996 = vsel %vm421, %v4683, %v5021
      %v5997 = vsel %vm421, %v4684, %v5023
      %v5998 = vsel %vm421, %v4685, %v5025
      %v5999 = vsel %vm421, %v4686, %v5027
      %v6000 = vsel %vm421, %v4687, %v5029
      %v6001 = vsel %vm421, %v4688, %v5031
      %v6002 = vsel %vm421, %v4689, %v5033
      %v6003 = vsel %vm421, %v4690, %v5035
      %v6004 = vsel %vm421, %v4691, %v5037
      %v6005 = vsel %vm421, %v4692, %v5039
      %v6006 = vsel %vm421, %v4693, %v5041
      %v6007 = vsel %vm421, %v4694, %v5043
      %v6008 = vsel %vm421, %v4695, %v5045
      %v6009 = vsel %vm421, %v4696, %v5047
      %v6010 = vsel %vm421, %v4697, %v5049
      %v6011 = vsel %vm421, %v4698, %v5051
      %v6012 = vsel %vm2010, %v5980, %v5117
      %v6013 = vsel %vm2010, %v5981, %v5119
      %v6014 = vsel %vm2010, %v5982, %v5121
      %v6015 = vsel %vm2010, %v5983, %v5123
      %v6016 = vsel %vm2010, %v5984, %v5125
      %v6017 = vsel %vm2010, %v5985, %v5127
      %v6018 = vsel %vm2010, %v5986, %v5129
      %v6019 = vsel %vm2010, %v5987, %v5131
      %v6020 = vsel %vm2010, %v5988, %v5133
      %v6021 = vsel %vm2010, %v5989, %v5135
      %v6022 = vsel %vm2010, %v5990, %v5137
      %v6023 = vsel %vm2010, %v5991, %v5139
      %v6024 = vsel %vm2010, %v5992, %v5141
      %v6025 = vsel %vm2010, %v5993, %v5143
      %v6026 = vsel %vm2010, %v5994, %v5145
      %v6027 = vsel %vm2010, %v5995, %v5147
      %v6028 = vsel %vm2010, %v5996, %v5149
      %v6029 = vsel %vm2010, %v5997, %v5151
      %v6030 = vsel %vm2010, %v5998, %v5153
      %v6031 = vsel %vm2010, %v5999, %v5155
      %v6032 = vsel %vm2010, %v6000, %v5157
      %v6033 = vsel %vm2010, %v6001, %v5159
      %v6034 = vsel %vm2010, %v6002, %v5161
      %v6035 = vsel %vm2010, %v6003, %v5163
      %v6036 = vsel %vm2010, %v6004, %v5165
      %v6037 = vsel %vm2010, %v6005, %v5167
      %v6038 = vsel %vm2010, %v6006, %v5169
      %v6039 = vsel %vm2010, %v6007, %v5171
      %v6040 = vsel %vm2010, %v6008, %v5173
      %v6041 = vsel %vm2010, %v6009, %v5175
      %v6042 = vsel %vm2010, %v6010, %v5177
      %v6043 = vsel %vm2010, %v6011, %v5179
      %v6044 = vsel %vm2043, %v6012, %v5245
      %v6045 = vsel %vm2043, %v6013, %v5247
      %v6046 = vsel %vm2043, %v6014, %v5249
      %v6047 = vsel %vm2043, %v6015, %v5251
      %v6048 = vsel %vm2043, %v6016, %v5253
      %v6049 = vsel %vm2043, %v6017, %v5255
      %v6050 = vsel %vm2043, %v6018, %v5257
      %v6051 = vsel %vm2043, %v6019, %v5259
      %v6052 = vsel %vm2043, %v6020, %v5261
      %v6053 = vsel %vm2043, %v6021, %v5263
      %v6054 = vsel %vm2043, %v6022, %v5265
      %v6055 = vsel %vm2043, %v6023, %v5267
      %v6056 = vsel %vm2043, %v6024, %v5269
      %v6057 = vsel %vm2043, %v6025, %v5271
      %v6058 = vsel %vm2043, %v6026, %v5273
      %v6059 = vsel %vm2043, %v6027, %v5275
      %v6060 = vsel %vm2043, %v6028, %v5277
      %v6061 = vsel %vm2043, %v6029, %v5279
      %v6062 = vsel %vm2043, %v6030, %v5281
      %v6063 = vsel %vm2043, %v6031, %v5283
      %v6064 = vsel %vm2043, %v6032, %v5285
      %v6065 = vsel %vm2043, %v6033, %v5287
      %v6066 = vsel %vm2043, %v6034, %v5289
      %v6067 = vsel %vm2043, %v6035, %v5291
      %v6068 = vsel %vm2043, %v6036, %v5293
      %v6069 = vsel %vm2043, %v6037, %v5295
      %v6070 = vsel %vm2043, %v6038, %v5297
      %v6071 = vsel %vm2043, %v6039, %v5299
      %v6072 = vsel %vm2043, %v6040, %v5301
      %v6073 = vsel %vm2043, %v6041, %v5303
      %v6074 = vsel %vm2043, %v6042, %v5305
      %v6075 = vsel %vm2043, %v6043, %v5307
      %v6076 = vsel %vm2076, %v6044, %v5373
      %v6077 = vsel %vm2076, %v6045, %v5375
      %v6078 = vsel %vm2076, %v6046, %v5377
      %v6079 = vsel %vm2076, %v6047, %v5379
      %v6080 = vsel %vm2076, %v6048, %v5381
      %v6081 = vsel %vm2076, %v6049, %v5383
      %v6082 = vsel %vm2076, %v6050, %v5385
      %v6083 = vsel %vm2076, %v6051, %v5387
      %v6084 = vsel %vm2076, %v6052, %v5389
      %v6085 = vsel %vm2076, %v6053, %v5391
      %v6086 = vsel %vm2076, %v6054, %v5393
      %v6087 = vsel %vm2076, %v6055, %v5395
      %v6088 = vsel %vm2076, %v6056, %v5397
      %v6089 = vsel %vm2076, %v6057, %v5399
      %v6090 = vsel %vm2076, %v6058, %v5401
      %v6091 = vsel %vm2076, %v6059, %v5403
      %v6092 = vsel %vm2076, %v6060, %v5405
      %v6093 = vsel %vm2076, %v6061, %v5407
      %v6094 = vsel %vm2076, %v6062, %v5409
      %v6095 = vsel %vm2076, %v6063, %v5411
      %v6096 = vsel %vm2076, %v6064, %v5413
      %v6097 = vsel %vm2076, %v6065, %v5415
      %v6098 = vsel %vm2076, %v6066, %v5417
      %v6099 = vsel %vm2076, %v6067, %v5419
      %v6100 = vsel %vm2076, %v6068, %v5421
      %v6101 = vsel %vm2076, %v6069, %v5423
      %v6102 = vsel %vm2076, %v6070, %v5425
      %v6103 = vsel %vm2076, %v6071, %v5427
      %v6104 = vsel %vm2076, %v6072, %v5429
      %v6105 = vsel %vm2076, %v6073, %v5431
      %v6106 = vsel %vm2076, %v6074, %v5433
      %v6107 = vsel %vm2076, %v6075, %v5435
      %v6108 = vsel %vm2109, %v6076, %v5501
      %v6109 = vsel %vm2109, %v6077, %v5503
      %v6110 = vsel %vm2109, %v6078, %v5505
      %v6111 = vsel %vm2109, %v6079, %v5507
      %v6112 = vsel %vm2109, %v6080, %v5509
      %v6113 = vsel %vm2109, %v6081, %v5511
      %v6114 = vsel %vm2109, %v6082, %v5513
      %v6115 = vsel %vm2109, %v6083, %v5515
      %v6116 = vsel %vm2109, %v6084, %v5517
      %v6117 = vsel %vm2109, %v6085, %v5519
      %v6118 = vsel %vm2109, %v6086, %v5521
      %v6119 = vsel %vm2109, %v6087, %v5523
      %v6120 = vsel %vm2109, %v6088, %v5525
      %v6121 = vsel %vm2109, %v6089, %v5527
      %v6122 = vsel %vm2109, %v6090, %v5529
      %v6123 = vsel %vm2109, %v6091, %v5531
      %v6124 = vsel %vm2109, %v6092, %v5533
      %v6125 = vsel %vm2109, %v6093, %v5535
      %v6126 = vsel %vm2109, %v6094, %v5537
      %v6127 = vsel %vm2109, %v6095, %v5539
      %v6128 = vsel %vm2109, %v6096, %v5541
      %v6129 = vsel %vm2109, %v6097, %v5543
      %v6130 = vsel %vm2109, %v6098, %v5545
      %v6131 = vsel %vm2109, %v6099, %v5547
      %v6132 = vsel %vm2109, %v6100, %v5549
      %v6133 = vsel %vm2109, %v6101, %v5551
      %v6134 = vsel %vm2109, %v6102, %v5553
      %v6135 = vsel %vm2109, %v6103, %v5555
      %v6136 = vsel %vm2109, %v6104, %v5557
      %v6137 = vsel %vm2109, %v6105, %v5559
      %v6138 = vsel %vm2109, %v6106, %v5561
      %v6139 = vsel %vm2109, %v6107, %v5563
      %v6140 = vsel %vm2142, %v6108, %v5629
      %v6141 = vsel %vm2142, %v6109, %v5631
      %v6142 = vsel %vm2142, %v6110, %v5633
      %v6143 = vsel %vm2142, %v6111, %v5635
      %v6144 = vsel %vm2142, %v6112, %v5637
      %v6145 = vsel %vm2142, %v6113, %v5639
      %v6146 = vsel %vm2142, %v6114, %v5641
      %v6147 = vsel %vm2142, %v6115, %v5643
      %v6148 = vsel %vm2142, %v6116, %v5645
      %v6149 = vsel %vm2142, %v6117, %v5647
      %v6150 = vsel %vm2142, %v6118, %v5649
      %v6151 = vsel %vm2142, %v6119, %v5651
      %v6152 = vsel %vm2142, %v6120, %v5653
      %v6153 = vsel %vm2142, %v6121, %v5655
      %v6154 = vsel %vm2142, %v6122, %v5657
      %v6155 = vsel %vm2142, %v6123, %v5659
      %v6156 = vsel %vm2142, %v6124, %v5661
      %v6157 = vsel %vm2142, %v6125, %v5663
      %v6158 = vsel %vm2142, %v6126, %v5665
      %v6159 = vsel %vm2142, %v6127, %v5667
      %v6160 = vsel %vm2142, %v6128, %v5669
      %v6161 = vsel %vm2142, %v6129, %v5671
      %v6162 = vsel %vm2142, %v6130, %v5673
      %v6163 = vsel %vm2142, %v6131, %v5675
      %v6164 = vsel %vm2142, %v6132, %v5677
      %v6165 = vsel %vm2142, %v6133, %v5679
      %v6166 = vsel %vm2142, %v6134, %v5681
      %v6167 = vsel %vm2142, %v6135, %v5683
      %v6168 = vsel %vm2142, %v6136, %v5685
      %v6169 = vsel %vm2142, %v6137, %v5687
      %v6170 = vsel %vm2142, %v6138, %v5689
      %v6171 = vsel %vm2142, %v6139, %v5691
      %v6172 = vsel %vm2175, %v6140, %v5757
      %v6173 = vsel %vm2175, %v6141, %v5759
      %v6174 = vsel %vm2175, %v6142, %v5761
      %v6175 = vsel %vm2175, %v6143, %v5763
      %v6176 = vsel %vm2175, %v6144, %v5765
      %v6177 = vsel %vm2175, %v6145, %v5767
      %v6178 = vsel %vm2175, %v6146, %v5769
      %v6179 = vsel %vm2175, %v6147, %v5771
      %v6180 = vsel %vm2175, %v6148, %v5773
      %v6181 = vsel %vm2175, %v6149, %v5775
      %v6182 = vsel %vm2175, %v6150, %v5777
      %v6183 = vsel %vm2175, %v6151, %v5779
      %v6184 = vsel %vm2175, %v6152, %v5781
      %v6185 = vsel %vm2175, %v6153, %v5783
      %v6186 = vsel %vm2175, %v6154, %v5785
      %v6187 = vsel %vm2175, %v6155, %v5787
      %v6188 = vsel %vm2175, %v6156, %v5789
      %v6189 = vsel %vm2175, %v6157, %v5791
      %v6190 = vsel %vm2175, %v6158, %v5793
      %v6191 = vsel %vm2175, %v6159, %v5795
      %v6192 = vsel %vm2175, %v6160, %v5797
      %v6193 = vsel %vm2175, %v6161, %v5799
      %v6194 = vsel %vm2175, %v6162, %v5801
      %v6195 = vsel %vm2175, %v6163, %v5803
      %v6196 = vsel %vm2175, %v6164, %v5805
      %v6197 = vsel %vm2175, %v6165, %v5807
      %v6198 = vsel %vm2175, %v6166, %v5809
      %v6199 = vsel %vm2175, %v6167, %v5811
      %v6200 = vsel %vm2175, %v6168, %v5813
      %v6201 = vsel %vm2175, %v6169, %v5815
      %v6202 = vsel %vm2175, %v6170, %v5817
      %v6203 = vsel %vm2175, %v6171, %v5819
      %v6204 = vsel %vm2208, %v6172, %v5885
      %v6205 = vsel %vm2208, %v6173, %v5887
      %v6206 = vsel %vm2208, %v6174, %v5889
      %v6207 = vsel %vm2208, %v6175, %v5891
      %v6208 = vsel %vm2208, %v6176, %v5893
      %v6209 = vsel %vm2208, %v6177, %v5895
      %v6210 = vsel %vm2208, %v6178, %v5897
      %v6211 = vsel %vm2208, %v6179, %v5899
      %v6212 = vsel %vm2208, %v6180, %v5901
      %v6213 = vsel %vm2208, %v6181, %v5903
      %v6214 = vsel %vm2208, %v6182, %v5905
      %v6215 = vsel %vm2208, %v6183, %v5907
      %v6216 = vsel %vm2208, %v6184, %v5909
      %v6217 = vsel %vm2208, %v6185, %v5911
      %v6218 = vsel %vm2208, %v6186, %v5913
      %v6219 = vsel %vm2208, %v6187, %v5915
      %v6220 = vsel %vm2208, %v6188, %v5917
      %v6221 = vsel %vm2208, %v6189, %v5919
      %v6222 = vsel %vm2208, %v6190, %v5921
      %v6223 = vsel %vm2208, %v6191, %v5923
      %v6224 = vsel %vm2208, %v6192, %v5925
      %v6225 = vsel %vm2208, %v6193, %v5927
      %v6226 = vsel %vm2208, %v6194, %v5929
      %v6227 = vsel %vm2208, %v6195, %v5931
      %v6228 = vsel %vm2208, %v6196, %v5933
      %v6229 = vsel %vm2208, %v6197, %v5935
      %v6230 = vsel %vm2208, %v6198, %v5937
      %v6231 = vsel %vm2208, %v6199, %v5939
      %v6232 = vsel %vm2208, %v6200, %v5941
      %v6233 = vsel %vm2208, %v6201, %v5943
      %v6234 = vsel %vm2208, %v6202, %v5945
      %v6235 = vsel %vm2208, %v6203, %v5947
      %v6236 = vld [vmem:[%s4] sm:$0xff]
      %v6237 = vld [vmem:[%s4 + $0x8] sm:$0xff]
      %v6238 = vld [vmem:[%s4 + $0x10] sm:$0xff]
      %v6239 = vld [vmem:[%s4 + $0x18] sm:$0xff]
      %v6240 = vld [vmem:[%s4 + $0x20] sm:$0xf]
      %v6242 = vsel %vm3820, %v6204, 0
      %v6245 = vsel %vm3820, %v6205, 0
      %v6248 = vsel %vm3820, %v6206, 0
      %v6251 = vsel %vm3820, %v6207, 0
      %v6254 = vsel %vm3820, %v6208, 0
      %v6257 = vsel %vm3820, %v6209, 0
      %v6260 = vsel %vm3820, %v6210, 0
      %v6263 = vsel %vm3820, %v6211, 0
      %v6266 = vsel %vm3820, %v6212, 0
      %v6269 = vsel %vm3820, %v6213, 0
      %v6272 = vsel %vm3820, %v6214, 0
      %v6275 = vsel %vm3820, %v6215, 0
      %v6278 = vsel %vm3820, %v6216, 0
      %v6281 = vsel %vm3820, %v6217, 0
      %v6284 = vsel %vm3820, %v6218, 0
      %v6287 = vsel %vm3820, %v6219, 0
      %v6290 = vsel %vm3820, %v6220, 0
      %v6293 = vsel %vm3820, %v6221, 0
      %v6296 = vsel %vm3820, %v6222, 0
      %v6299 = vsel %vm3820, %v6223, 0
      %v6302 = vsel %vm3820, %v6224, 0
      %v6305 = vsel %vm3820, %v6225, 0
      %v6308 = vsel %vm3820, %v6226, 0
      %v6311 = vsel %vm3820, %v6227, 0
      %v6314 = vsel %vm3820, %v6228, 0
      %v6317 = vsel %vm3820, %v6229, 0
      %v6320 = vsel %vm3820, %v6230, 0
      %v6323 = vsel %vm3820, %v6231, 0
      %v6326 = vsel %vm3820, %v6232, 0
      %v6329 = vsel %vm3820, %v6233, 0
      %v6332 = vsel %vm3820, %v6234, 0
      %v6335 = vsel %vm3820, %v6235, 0
      %v6338 = vsel %vm3917, %v6240, 0
      %6340 = vmatprep.subr.mxu0 0.0
      %6341 = vmatpush1.msra.mxu0 0.0
      %6342 = vmatprep.subr.mxu0 0.0
      %6343 = vmatpush1.msra.mxu0 0.0
      %6344 = vmatprep.subr.mxu0 0.0
      %6345 = vmatpush1.msra.mxu0 0.0
      %6346 = vmatprep.subr.mxu0 0.0
      %6347 = vmatpush1.msra.mxu0 0.0
      %6348 = vmatprep.subr.mxu0 0.0
      %6349 = vmatpush1.msra.mxu0 0.0
      %6350 = vmatprep.subr.mxu0 0.0
      %6351 = vmatpush1.msra.mxu0 0.0
      %6352 = vmatprep.subr.mxu0 0.0
      %6353 = vmatpush1.msra.mxu0 0.0
      %6354 = vmatprep.subr.mxu0 0.0
      %6355 = vmatpush1.msra.mxu0 0.0
      %6356 = vmatprep.subr.mxu0 0.0
      %6357 = vmatpush1.msra.mxu0 0.0
      %6358 = vmatprep.subr.mxu0 0.0
      %6359 = vmatpush1.msra.mxu0 0.0
      %6360 = vmatprep.subr.mxu0 0.0
      %6361 = vmatpush1.msra.mxu0 0.0
      %6362 = vmatprep.subr.mxu0 0.0
      %6363 = vmatpush1.msra.mxu0 %v6338
      %6364 = vmatprep.subr.mxu0 0.0
      %6365 = vmatpush1.msra.mxu0 %v6239
      %6366 = vmatprep.subr.mxu0 0.0
      %6367 = vmatpush1.msra.mxu0 %v6238
      %6368 = vmatprep.subr.mxu0 0.0
      %6369 = vmatpush1.msra.mxu0 %v6237
      %6370 = vmatprep.subr.mxu0 0.0
      %6371 = vmatpush1.msra.mxu0 %v6236
      %6372 = vmatprep.subr.mxu0 0.0
      %6373 = vmatpush2.msra.mxu0 0.0
      %6374 = vmatprep.subr.mxu0 0.0
      %6375 = vmatpush2.msra.mxu0 0.0
      %6376 = vmatprep.subr.mxu0 0.0
      %6377 = vmatpush2.msra.mxu0 0.0
      %6378 = vmatprep.subr.mxu0 0.0
      %6379 = vmatpush2.msra.mxu0 0.0
      %6380 = vmatprep.subr.mxu0 0.0
      %6381 = vmatpush2.msra.mxu0 0.0
      %6382 = vmatprep.subr.mxu0 0.0
      %6383 = vmatpush2.msra.mxu0 0.0
      %6384 = vmatprep.subr.mxu0 0.0
      %6385 = vmatpush2.msra.mxu0 0.0
      %6386 = vmatprep.subr.mxu0 0.0
      %6387 = vmatpush2.msra.mxu0 0.0
      %6388 = vmatprep.subr.mxu0 0.0
      %6389 = vmatpush2.msra.mxu0 0.0
      %6390 = vmatprep.subr.mxu0 0.0
      %6391 = vmatpush2.msra.mxu0 0.0
      %6392 = vmatprep.subr.mxu0 0.0
      %6393 = vmatpush2.msra.mxu0 0.0
      %6394 = vmatprep.subr.mxu0 0.0
      %6395 = vmatpush2.msra.mxu0 0.0
      %6396 = vmatprep.subr.mxu0 0.0
      %6397 = vmatpush2.msra.mxu0 0.0
      %6398 = vmatprep.subr.mxu0 0.0
      %6399 = vmatpush2.msra.mxu0 0.0
      %6400 = vmatprep.subr.mxu0 0.0
      %6401 = vmatpush2.msra.mxu0 0.0
      %6402 = vmatprep.subr.mxu0 0.0
      %6403 = vmatpush2.msra.mxu0 0.0
      %6404 = vmatprep.mubr.f32.mxu0 0.0
      %6405 = vmatmul.mubr.f32.gmra.mxu0 %v6242
      %v6406 = vpop.f32.mrf.mxu0
      %v6407 = vadd.f32 0.0, %v6406
      %v6408 = vpop.f32.mrf.mxu0
      %6409 = vmatprep.mubr.f32.mxu0 0.0
      %6410 = vmatmul.mubr.f32.gmra.mxu0 %v6245
      %v6411 = vpop.f32.mrf.mxu0
      %v6412 = vadd.f32 0.0, %v6411
      %v6413 = vpop.f32.mrf.mxu0
      %6414 = vmatprep.mubr.f32.mxu0 0.0
      %6415 = vmatmul.mubr.f32.gmra.mxu0 %v6248
      %v6416 = vpop.f32.mrf.mxu0
      %v6417 = vadd.f32 0.0, %v6416
      %v6418 = vpop.f32.mrf.mxu0
      %6419 = vmatprep.mubr.f32.mxu0 0.0
      %6420 = vmatmul.mubr.f32.gmra.mxu0 %v6251
      %v6421 = vpop.f32.mrf.mxu0
      %v6422 = vadd.f32 0.0, %v6421
      %v6423 = vpop.f32.mrf.mxu0
      %6424 = vmatprep.mubr.f32.mxu0 0.0
      %6425 = vmatmul.mubr.f32.gmra.mxu0 %v6254
      %v6426 = vpop.f32.mrf.mxu0
      %v6427 = vadd.f32 0.0, %v6426
      %v6428 = vpop.f32.mrf.mxu0
      %6429 = vmatprep.mubr.f32.mxu0 0.0
      %6430 = vmatmul.mubr.f32.gmra.mxu0 %v6257
      %v6431 = vpop.f32.mrf.mxu0
      %v6432 = vadd.f32 0.0, %v6431
      %v6433 = vpop.f32.mrf.mxu0
      %6434 = vmatprep.mubr.f32.mxu0 0.0
      %6435 = vmatmul.mubr.f32.gmra.mxu0 %v6260
      %v6436 = vpop.f32.mrf.mxu0
      %v6437 = vadd.f32 0.0, %v6436
      %v6438 = vpop.f32.mrf.mxu0
      %6439 = vmatprep.mubr.f32.mxu0 0.0
      %6440 = vmatmul.mubr.f32.gmra.mxu0 %v6263
      %v6441 = vpop.f32.mrf.mxu0
      %v6442 = vadd.f32 0.0, %v6441
      %v6443 = vpop.f32.mrf.mxu0
      %6444 = vmatprep.mubr.f32.mxu0 0.0
      %6445 = vmatmul.mubr.f32.gmra.mxu0 %v6266
      %v6446 = vpop.f32.mrf.mxu0
      %v6447 = vadd.f32 0.0, %v6446
      %v6448 = vpop.f32.mrf.mxu0
      %6449 = vmatprep.mubr.f32.mxu0 0.0
      %6450 = vmatmul.mubr.f32.gmra.mxu0 %v6269
      %v6451 = vpop.f32.mrf.mxu0
      %v6452 = vadd.f32 0.0, %v6451
      %v6453 = vpop.f32.mrf.mxu0
      %6454 = vmatprep.mubr.f32.mxu0 0.0
      %6455 = vmatmul.mubr.f32.gmra.mxu0 %v6272
      %v6456 = vpop.f32.mrf.mxu0
      %v6457 = vadd.f32 0.0, %v6456
      %v6458 = vpop.f32.mrf.mxu0
      %6459 = vmatprep.mubr.f32.mxu0 0.0
      %6460 = vmatmul.mubr.f32.gmra.mxu0 %v6275
      %v6461 = vpop.f32.mrf.mxu0
      %v6462 = vadd.f32 0.0, %v6461
      %v6463 = vpop.f32.mrf.mxu0
      %6464 = vmatprep.mubr.f32.mxu0 0.0
      %6465 = vmatmul.mubr.f32.gmra.mxu0 %v6278
      %v6466 = vpop.f32.mrf.mxu0
      %v6467 = vadd.f32 0.0, %v6466
      %v6468 = vpop.f32.mrf.mxu0
      %6469 = vmatprep.mubr.f32.mxu0 0.0
      %6470 = vmatmul.mubr.f32.gmra.mxu0 %v6281
      %v6471 = vpop.f32.mrf.mxu0
      %v6472 = vadd.f32 0.0, %v6471
      %v6473 = vpop.f32.mrf.mxu0
      %6474 = vmatprep.mubr.f32.mxu0 0.0
      %6475 = vmatmul.mubr.f32.gmra.mxu0 %v6284
      %v6476 = vpop.f32.mrf.mxu0
      %v6477 = vadd.f32 0.0, %v6476
      %v6478 = vpop.f32.mrf.mxu0
      %6479 = vmatprep.mubr.f32.mxu0 0.0
      %6480 = vmatmul.mubr.f32.gmra.mxu0 %v6287
      %v6481 = vpop.f32.mrf.mxu0
      %v6482 = vadd.f32 0.0, %v6481
      %v6483 = vpop.f32.mrf.mxu0
      %6484 = vmatprep.mubr.f32.mxu0 0.0
      %6485 = vmatmul.mubr.f32.gmra.mxu0 %v6290
      %v6486 = vpop.f32.mrf.mxu0
      %v6487 = vadd.f32 0.0, %v6486
      %v6488 = vpop.f32.mrf.mxu0
      %6489 = vmatprep.mubr.f32.mxu0 0.0
      %6490 = vmatmul.mubr.f32.gmra.mxu0 %v6293
      %v6491 = vpop.f32.mrf.mxu0
      %v6492 = vadd.f32 0.0, %v6491
      %v6493 = vpop.f32.mrf.mxu0
      %6494 = vmatprep.mubr.f32.mxu0 0.0
      %6495 = vmatmul.mubr.f32.gmra.mxu0 %v6296
      %v6496 = vpop.f32.mrf.mxu0
      %v6497 = vadd.f32 0.0, %v6496
      %v6498 = vpop.f32.mrf.mxu0
      %6499 = vmatprep.mubr.f32.mxu0 0.0
      %6500 = vmatmul.mubr.f32.gmra.mxu0 %v6299
      %v6501 = vpop.f32.mrf.mxu0
      %v6502 = vadd.f32 0.0, %v6501
      %v6503 = vpop.f32.mrf.mxu0
      %6504 = vmatprep.mubr.f32.mxu0 0.0
      %6505 = vmatmul.mubr.f32.gmra.mxu0 %v6302
      %v6506 = vpop.f32.mrf.mxu0
      %v6507 = vadd.f32 0.0, %v6506
      %v6508 = vpop.f32.mrf.mxu0
      %6509 = vmatprep.mubr.f32.mxu0 0.0
      %6510 = vmatmul.mubr.f32.gmra.mxu0 %v6305
      %v6511 = vpop.f32.mrf.mxu0
      %v6512 = vadd.f32 0.0, %v6511
      %v6513 = vpop.f32.mrf.mxu0
      %6514 = vmatprep.mubr.f32.mxu0 0.0
      %6515 = vmatmul.mubr.f32.gmra.mxu0 %v6308
      %v6516 = vpop.f32.mrf.mxu0
      %v6517 = vadd.f32 0.0, %v6516
      %v6518 = vpop.f32.mrf.mxu0
      %6519 = vmatprep.mubr.f32.mxu0 0.0
      %6520 = vmatmul.mubr.f32.gmra.mxu0 %v6311
      %v6521 = vpop.f32.mrf.mxu0
      %v6522 = vadd.f32 0.0, %v6521
      %v6523 = vpop.f32.mrf.mxu0
      %6524 = vmatprep.mubr.f32.mxu0 0.0
      %6525 = vmatmul.mubr.f32.gmra.mxu0 %v6314
      %v6526 = vpop.f32.mrf.mxu0
      %v6527 = vadd.f32 0.0, %v6526
      %v6528 = vpop.f32.mrf.mxu0
      %6529 = vmatprep.mubr.f32.mxu0 0.0
      %6530 = vmatmul.mubr.f32.gmra.mxu0 %v6317
      %v6531 = vpop.f32.mrf.mxu0
      %v6532 = vadd.f32 0.0, %v6531
      %v6533 = vpop.f32.mrf.mxu0
      %6534 = vmatprep.mubr.f32.mxu0 0.0
      %6535 = vmatmul.mubr.f32.gmra.mxu0 %v6320
      %v6536 = vpop.f32.mrf.mxu0
      %v6537 = vadd.f32 0.0, %v6536
      %v6538 = vpop.f32.mrf.mxu0
      %6539 = vmatprep.mubr.f32.mxu0 0.0
      %6540 = vmatmul.mubr.f32.gmra.mxu0 %v6323
      %v6541 = vpop.f32.mrf.mxu0
      %v6542 = vadd.f32 0.0, %v6541
      %v6543 = vpop.f32.mrf.mxu0
      %6544 = vmatprep.mubr.f32.mxu0 0.0
      %6545 = vmatmul.mubr.f32.gmra.mxu0 %v6326
      %v6546 = vpop.f32.mrf.mxu0
      %v6547 = vadd.f32 0.0, %v6546
      %v6548 = vpop.f32.mrf.mxu0
      %6549 = vmatprep.mubr.f32.mxu0 0.0
      %6550 = vmatmul.mubr.f32.gmra.mxu0 %v6329
      %v6551 = vpop.f32.mrf.mxu0
      %v6552 = vadd.f32 0.0, %v6551
      %v6553 = vpop.f32.mrf.mxu0
      %6554 = vmatprep.mubr.f32.mxu0 0.0
      %6555 = vmatmul.mubr.f32.gmra.mxu0 %v6332
      %v6556 = vpop.f32.mrf.mxu0
      %v6557 = vadd.f32 0.0, %v6556
      %v6558 = vpop.f32.mrf.mxu0
      %6559 = vmatprep.mubr.f32.mxu0 0.0
      %6560 = vmatmul.mubr.f32.gmra.mxu0 %v6335
      %v6561 = vpop.f32.mrf.mxu0
      %v6562 = vadd.f32 0.0, %v6561
      %v6563 = vpop.f32.mrf.mxu0
      %6564 = vdwg.mxu0
      %v6565 = vld [vmem:[%s7] sm:$0x1]
      %v6567 = vlaneseq
      %v6568 = vshrl.u32 %v6567, 7
      %v6569 = vsub.s32 0, %v6568
      %v6570 = vrot.slane %v6565, %v6569
      %v6572 = vmul.f32 %v6407, %v6570
      %v6573 = vmul.f32 %v6412, %v6570
      %v6574 = vmul.f32 %v6417, %v6570
      %v6575 = vmul.f32 %v6422, %v6570
      %v6576 = vmul.f32 %v6427, %v6570
      %v6577 = vmul.f32 %v6432, %v6570
      %v6578 = vmul.f32 %v6437, %v6570
      %v6579 = vmul.f32 %v6442, %v6570
      %v6580 = vmul.f32 %v6447, %v6570
      %v6581 = vmul.f32 %v6452, %v6570
      %v6582 = vmul.f32 %v6457, %v6570
      %v6583 = vmul.f32 %v6462, %v6570
      %v6584 = vmul.f32 %v6467, %v6570
      %v6585 = vmul.f32 %v6472, %v6570
      %v6586 = vmul.f32 %v6477, %v6570
      %v6587 = vmul.f32 %v6482, %v6570
      %v6588 = vmul.f32 %v6487, %v6570
      %v6589 = vmul.f32 %v6492, %v6570
      %v6590 = vmul.f32 %v6497, %v6570
      %v6591 = vmul.f32 %v6502, %v6570
      %v6592 = vmul.f32 %v6507, %v6570
      %v6593 = vmul.f32 %v6512, %v6570
      %v6594 = vmul.f32 %v6517, %v6570
      %v6595 = vmul.f32 %v6522, %v6570
      %v6596 = vmul.f32 %v6527, %v6570
      %v6597 = vmul.f32 %v6532, %v6570
      %v6598 = vmul.f32 %v6537, %v6570
      %v6599 = vmul.f32 %v6542, %v6570
      %v6600 = vmul.f32 %v6547, %v6570
      %v6601 = vmul.f32 %v6552, %v6570
      %v6602 = vmul.f32 %v6557, %v6570
      %v6603 = vmul.f32 %v6562, %v6570
      %v6604 = vld [vmem:[%s8] sm:$0x1]
      %v6606 = vlaneseq
      %v6607 = vshrl.u32 %v6606, 7
      %v6608 = vsub.s32 0, %v6607
      %v6609 = vrot.slane %v6604, %v6608
      %v6611 = vadd.f32 %v6572, %v6609
      %v6612 = vadd.f32 %v6573, %v6609
      %v6613 = vadd.f32 %v6574, %v6609
      %v6614 = vadd.f32 %v6575, %v6609
      %v6615 = vadd.f32 %v6576, %v6609
      %v6616 = vadd.f32 %v6577, %v6609
      %v6617 = vadd.f32 %v6578, %v6609
      %v6618 = vadd.f32 %v6579, %v6609
      %v6619 = vadd.f32 %v6580, %v6609
      %v6620 = vadd.f32 %v6581, %v6609
      %v6621 = vadd.f32 %v6582, %v6609
      %v6622 = vadd.f32 %v6583, %v6609
      %v6623 = vadd.f32 %v6584, %v6609
      %v6624 = vadd.f32 %v6585, %v6609
      %v6625 = vadd.f32 %v6586, %v6609
      %v6626 = vadd.f32 %v6587, %v6609
      %v6627 = vadd.f32 %v6588, %v6609
      %v6628 = vadd.f32 %v6589, %v6609
      %v6629 = vadd.f32 %v6590, %v6609
      %v6630 = vadd.f32 %v6591, %v6609
      %v6631 = vadd.f32 %v6592, %v6609
      %v6632 = vadd.f32 %v6593, %v6609
      %v6633 = vadd.f32 %v6594, %v6609
      %v6634 = vadd.f32 %v6595, %v6609
      %v6635 = vadd.f32 %v6596, %v6609
      %v6636 = vadd.f32 %v6597, %v6609
      %v6637 = vadd.f32 %v6598, %v6609
      %v6638 = vadd.f32 %v6599, %v6609
      %v6639 = vadd.f32 %v6600, %v6609
      %v6640 = vadd.f32 %v6601, %v6609
      %v6641 = vadd.f32 %v6602, %v6609
      %v6642 = vadd.f32 %v6603, %v6609
      %v6643 = vmax.f32 %v6611, 0.0
      %v6644 = vmax.f32 %v6612, 0.0
      %v6645 = vmax.f32 %v6613, 0.0
      %v6646 = vmax.f32 %v6614, 0.0
      %v6647 = vmax.f32 %v6615, 0.0
      %v6648 = vmax.f32 %v6616, 0.0
      %v6649 = vmax.f32 %v6617, 0.0
      %v6650 = vmax.f32 %v6618, 0.0
      %v6651 = vmax.f32 %v6619, 0.0
      %v6652 = vmax.f32 %v6620, 0.0
      %v6653 = vmax.f32 %v6621, 0.0
      %v6654 = vmax.f32 %v6622, 0.0
      %v6655 = vmax.f32 %v6623, 0.0
      %v6656 = vmax.f32 %v6624, 0.0
      %v6657 = vmax.f32 %v6625, 0.0
      %v6658 = vmax.f32 %v6626, 0.0
      %v6659 = vmax.f32 %v6627, 0.0
      %v6660 = vmax.f32 %v6628, 0.0
      %v6661 = vmax.f32 %v6629, 0.0
      %v6662 = vmax.f32 %v6630, 0.0
      %v6663 = vmax.f32 %v6631, 0.0
      %v6664 = vmax.f32 %v6632, 0.0
      %v6665 = vmax.f32 %v6633, 0.0
      %v6666 = vmax.f32 %v6634, 0.0
      %v6667 = vmax.f32 %v6635, 0.0
      %v6668 = vmax.f32 %v6636, 0.0
      %v6669 = vmax.f32 %v6637, 0.0
      %v6670 = vmax.f32 %v6638, 0.0
      %v6671 = vmax.f32 %v6639, 0.0
      %v6672 = vmax.f32 %v6640, 0.0
      %v6673 = vmax.f32 %v6641, 0.0
      %v6674 = vmax.f32 %v6642, 0.0
      %6675 = vxpose.xlu0.b32.start [1/16] %v6643, 128
      %6676 = vxpose.xlu0.b32.cont [2/16] %v6644, 128
      %6677 = vxpose.xlu0.b32.cont [3/16] %v6645, 128
      %6678 = vxpose.xlu0.b32.cont [4/16] %v6646, 128
      %6679 = vxpose.xlu0.b32.cont [5/16] %v6647, 128
      %6680 = vxpose.xlu0.b32.cont [6/16] %v6648, 128
      %6681 = vxpose.xlu0.b32.cont [7/16] %v6649, 128
      %6682 = vxpose.xlu0.b32.cont [8/16] %v6650, 128
      %6683 = vxpose.xlu0.b32.cont [9/16] %v6651, 128
      %6684 = vxpose.xlu0.b32.cont [10/16] %v6652, 128
      %6685 = vxpose.xlu0.b32.cont [11/16] %v6653, 128
      %6686 = vxpose.xlu0.b32.cont [12/16] %v6654, 128
      %6687 = vxpose.xlu0.b32.cont [13/16] %v6655, 128
      %6688 = vxpose.xlu0.b32.cont [14/16] %v6656, 128
      %6689 = vxpose.xlu0.b32.cont [15/16] %v6657, 128
      %6690 = vxpose.xlu0.b32.end [16/16] %v6658, 128
      %v6691 = vpop.trf.xlu0
      %v6692 = vpop.trf.xlu0
      %v6693 = vpop.trf.xlu0
      %v6694 = vpop.trf.xlu0
      %v6695 = vpop.trf.xlu0
      %v6696 = vpop.trf.xlu0
      %v6697 = vpop.trf.xlu0
      %v6698 = vpop.trf.xlu0
      %v6699 = vpop.trf.xlu0
      %v6700 = vpop.trf.xlu0
      %v6701 = vpop.trf.xlu0
      %v6702 = vpop.trf.xlu0
      %v6703 = vpop.trf.xlu0
      %v6704 = vpop.trf.xlu0
      %v6705 = vpop.trf.xlu0
      %v6706 = vpop.trf.xlu0
      %6707 = vxpose.xlu0.b32.start [1/16] %v6659, 128
      %6708 = vxpose.xlu0.b32.cont [2/16] %v6660, 128
      %6709 = vxpose.xlu0.b32.cont [3/16] %v6661, 128
      %6710 = vxpose.xlu0.b32.cont [4/16] %v6662, 128
      %6711 = vxpose.xlu0.b32.cont [5/16] %v6663, 128
      %6712 = vxpose.xlu0.b32.cont [6/16] %v6664, 128
      %6713 = vxpose.xlu0.b32.cont [7/16] %v6665, 128
      %6714 = vxpose.xlu0.b32.cont [8/16] %v6666, 128
      %6715 = vxpose.xlu0.b32.cont [9/16] %v6667, 128
      %6716 = vxpose.xlu0.b32.cont [10/16] %v6668, 128
      %6717 = vxpose.xlu0.b32.cont [11/16] %v6669, 128
      %6718 = vxpose.xlu0.b32.cont [12/16] %v6670, 128
      %6719 = vxpose.xlu0.b32.cont [13/16] %v6671, 128
      %6720 = vxpose.xlu0.b32.cont [14/16] %v6672, 128
      %6721 = vxpose.xlu0.b32.cont [15/16] %v6673, 128
      %6722 = vxpose.xlu0.b32.end [16/16] %v6674, 128
      %v6723 = vpop.trf.xlu0
      %v6724 = vpop.trf.xlu0
      %v6725 = vpop.trf.xlu0
      %v6726 = vpop.trf.xlu0
      %v6727 = vpop.trf.xlu0
      %v6728 = vpop.trf.xlu0
      %v6729 = vpop.trf.xlu0
      %v6730 = vpop.trf.xlu0
      %v6731 = vpop.trf.xlu0
      %v6732 = vpop.trf.xlu0
      %v6733 = vpop.trf.xlu0
      %v6734 = vpop.trf.xlu0
      %v6735 = vpop.trf.xlu0
      %v6736 = vpop.trf.xlu0
      %v6737 = vpop.trf.xlu0
      %v6738 = vpop.trf.xlu0
      %v6741 = vcombine.low %v6691, %v6723
      %6743 = vst [vmem:[%s352] sm:$0xff] %v6741
      %p6744 = scmp.lt.s32.totalorder %s20, 1
      %s6745 = scalar_select %p6744, %s20, 1
      %s6746 = smul.addr %s6745, 2
      %s6747 = smul.addr %s6746, 4
      %s6748 = scalar_lea.vmem %s9, %s6747
      // Predicated region
      $region57: #{up_forward.3} parent=55 // pred_check
        %p6749 = pneg %p237
      $region58: #{up_forward.3} parent=55 // pred_check_branch
        %6751 = sbr.rel (%p6749) target = $region60
      $region59: #{up_forward.3} parent=55 // pred_region
        _
      $region60: #{up_forward.3} parent=55 // pred_fallthru
        _
    $region56: #{up_forward.3} parent=5 // pred_fallthru
      _
    %p6752 = scmp.le.s32.totalorder 2, %s15
    // Predicated region
    $region61: #{up_forward.3} parent=5 // pred_check
      %p6753 = pneg %p6752
    $region62: #{up_forward.3} parent=5 // pred_check_branch
      %6755 = sbr.rel (%p6753) target = $region64
    $region63: #{up_forward.3} parent=5 // pred_region
      %s6756 = ssub.s32 %s15, 2
      // Predicated region
      $region65: #{up_forward.3} parent=63 // pred_check
        %p6757 = pneg %p243
      $region66: #{up_forward.3} parent=63 // pred_check_branch
        %6759 = sbr.rel (%p6757) target = $region68
      $region67: #{up_forward.3} parent=63 // pred_region
        %p6760 = scmp.lt.s32.totalorder %s21, 1
        %s6761 = scalar_select %p6760, %s21, 1
        %s6762 = smul.addr %s6761, 2
        %s6763 = smul.addr %s6762, 4
        %s6764 = scalar_lea.vmem %s9, %s6763
      $region68: #{up_forward.3} parent=63 // pred_fallthru
        _
    $region64: #{up_forward.3} parent=5 // pred_fallthru
      _
  $region6: #{up_forward.3} parent=0 // loop_footer
    %s19 = sadd.s32 1, %s15
  $region7: #{up_forward.3} parent=0 // loop_footer_branch
    %14 = sbr.rel target = $region3
  $region8: #{up_forward.3} parent=0 // loop_exit
    _

</llo_original>
